<compile_context>
chip_gen: v5e
topology: v5e:2x2
jax: 0.10.0
libtpu: 0.0.40
codegen_flags: <defaults>
</compile_context>

<pallas_src>
import functools
import math

import jax
import jax.numpy as jnp
from jax import lax
from jax.experimental import pallas as pl
from jax.experimental.pallas import tpu as pltpu

EPS = 1e-6            # bias_epsilon
LEAKY_SLOPE = 0.2     # act_layer = LeakyReLU(0.2)

# MXU operand / intermediate-activation dtype.  bf16 is native on the MXU of
# every listed generation (v5e/v6e/v7x); accumulation is always f32 via
# preferred_element_type.  Set to jnp.float32 for bit-closer numerics.
MXU_DTYPE = jnp.bfloat16

# TODO(synk): verify against the torch VNAttention whether the softmax scale
# folds the xyz factor: head_dim**-0.5 (timm-style, assumed here) vs
# (head_dim*3)**-0.5.  Flip this flag if the reference folds the 3.
SCALE_INCLUDES_XYZ = False


# ----------------------------------------------------------------------------
# Per-generation sizing (v5e/v6e: 128 MiB VMEM, 1 TC; v7x: 64 MiB, 2 TCs).
# ----------------------------------------------------------------------------
@functools.lru_cache(maxsize=None)
def _config():
    vmem = 64 * 1024 * 1024
    try:
        info = pltpu.get_tpu_info()
        vmem = int(getattr(info, "vmem_capacity_bytes", vmem))
    except Exception:
        pass
    if vmem >= 100 * 1024 * 1024:          # v5e / v6e (128 MiB physical VMEM)
        return {"vmem_limit": 96 * 1024 * 1024, "proj_tile": 512,
                "mlp_tile": 384, "attn_q_tile": 512, "attn_kv_tile": 512}
    # v7x-style 64 MiB VMEM
    return {"vmem_limit": 48 * 1024 * 1024, "proj_tile": 512,
            "mlp_tile": 256, "attn_q_tile": 512, "attn_kv_tile": 512}


def _cparams(dimension_semantics, cfg):
    return pltpu.CompilerParams(dimension_semantics=dimension_semantics,
                                vmem_limit_bytes=cfg["vmem_limit"])


def _tile(n, target):
    """Token tile for 'parallel' grids: multiple of 8 (or full dim), capped at
    `target`, and split so the grid has >=2 steps when possible (v7x: 2 TCs)."""
    if n < 16:
        return n
    cap = min(target, -(-n // 2))
    return min(n, max(8, ((cap + 7) // 8) * 8))


def _seq_tile(n, target):
    """Attention q/kv tile: full dim if it fits, else a multiple of 8."""
    if n <= target:
        return n
    return max(8, (target // 8) * 8)


# ----------------------------------------------------------------------------
# Kernel 1: fused VecLayerNorm('sim3') + VecLinear('so3') projection(s).
#   x: (3, T, C) tiled over tokens; weight resident; one (3*tT, C) x (C, sum)
#   matmul; the result is split into the per-projection outputs in-register.
# Used for norm1+Wqkv (self), norm_q+Wq and norm_v+W[kv] (cross).
# ----------------------------------------------------------------------------
def _ln_proj_kernel(x_ref, w_ref, *o_refs, eps, out_dims):
    x = x_ref[...]                                            # (3, tT, C) f32
    t = x.shape[1]
    nsq = jnp.sum(x * x, axis=0)                              # per-channel |v|^2
    # TODO(synk): eps placement assumed 1/(sqrt(mean)+eps) as in the torch
    # VecLayerNorm; lax.rsqrt would be faster but moves eps inside the sqrt.
    inv = 1.0 / (jnp.sqrt(jnp.mean(nsq, axis=-1, keepdims=True)) + eps)
    xn = (x * inv[None]).astype(MXU_DTYPE).reshape(3 * t, -1)
    y = jnp.dot(xn, w_ref[...], preferred_element_type=jnp.float32)
    off = 0
    for o_ref, d in zip(o_refs, out_dims):
        o_ref[...] = y[:, off:off + d].reshape(3, t, d).astype(o_ref.dtype)
        off += d


def ln_vec_proj(x3, w, out_dims, cfg, *, eps=EPS):
    _, T, C = x3.shape
    tT = _tile(T, cfg["proj_tile"])
    out_shapes = tuple(jax.ShapeDtypeStruct((3, T, d), MXU_DTYPE)
                       for d in out_dims)
    out_specs = tuple(pl.BlockSpec((3, tT, d), lambda i: (0, i, 0))
                      for d in out_dims)
    outs = pl.pallas_call(
        functools.partial(_ln_proj_kernel, eps=eps, out_dims=tuple(out_dims)),
        out_shape=out_shapes,
        grid=(pl.cdiv(T, tT),),
        in_specs=[pl.BlockSpec((3, tT, C), lambda i: (0, i, 0)),
                  pl.BlockSpec(w.shape, lambda i: (0, 0))],
        out_specs=out_specs,
        compiler_params=_cparams(("parallel",), cfg),
    )(x3, w)
    if len(out_dims) == 1:
        if isinstance(outs, (tuple, list)):
            return tuple(outs)
        return (outs,)
    return tuple(outs)


# ----------------------------------------------------------------------------
# Kernel 2: VecLinear (attention output projection) fused with the residual
# add, accumulating in place (input_output_aliases).
# ----------------------------------------------------------------------------
def _proj_residual_kernel(x_ref, w_ref, r_ref, o_ref):
    x = x_ref[...]                                            # (3, tT, C) bf16
    t = x.shape[1]
    y = jnp.dot(x.reshape(3 * t, -1).astype(MXU_DTYPE), w_ref[...],
                preferred_element_type=jnp.float32)
    o_ref[...] = r_ref[...] + y.reshape(3, t, -1)


def vec_linear_residual(x3, w, r3, cfg):
    _, T, C = r3.shape
    Ci = x3.shape[2]
    tT = _tile(T, cfg["proj_tile"])
    return pl.pallas_call(
        _proj_residual_kernel,
        out_shape=jax.ShapeDtypeStruct((3, T, C), jnp.float32),
        grid=(pl.cdiv(T, tT),),
        in_specs=[pl.BlockSpec((3, tT, Ci), lambda i: (0, i, 0)),
                  pl.BlockSpec(w.shape, lambda i: (0, 0)),
                  pl.BlockSpec((3, tT, C), lambda i: (0, i, 0))],
        out_specs=pl.BlockSpec((3, tT, C), lambda i: (0, i, 0)),
        input_output_aliases={2: 0},     # accumulate into the residual buffer
        compiler_params=_cparams(("parallel",), cfg),
    )(x3, w, r3)


# ----------------------------------------------------------------------------
# Kernel 3: fused norm2 + equivariant MLP + residual:
#   LN -> VecLinear(C->H) -> VecActivation(LeakyReLU 0.2) -> VecLinear(H->C)
#   -> + residual (in place).  All matmuls are single (3*tT, .) dots.
# ----------------------------------------------------------------------------
def _ln_mlp_residual_kernel(x_ref, w1_ref, u_ref, w2_ref, o_ref, *, eps, slope):
    x = x_ref[...]                                            # (3, tT, C) f32
    t = x.shape[1]
    nsq = jnp.sum(x * x, axis=0)
    inv = 1.0 / (jnp.sqrt(jnp.mean(nsq, axis=-1, keepdims=True)) + eps)
    xn = (x * inv[None]).astype(MXU_DTYPE).reshape(3 * t, -1)
    h = jnp.dot(xn, w1_ref[...], preferred_element_type=jnp.float32)  # (3t, H)
    d = jnp.dot(h.astype(MXU_DTYPE), u_ref[...],
                preferred_element_type=jnp.float32)                   # (3t, H)
    h3 = h.reshape(3, t, -1)
    d3 = d.reshape(3, t, -1)
    # VecActivation: decompose along the learned direction, activate the
    # parallel component only.
    # TODO(synk): lax.rsqrt would move this to the EUP but changes eps placement.
    dinv = 1.0 / (jnp.sqrt(jnp.sum(d3 * d3, axis=0)) + eps)   # (t, H)
    k3 = d3 * dinv[None]
    dotp = jnp.sum(h3 * k3, axis=0)                           # (t, H)
    delta = jnp.where(dotp >= 0, 0.0, (slope - 1.0) * dotp)   # LeakyReLU(d)-d
    h3 = h3 + delta[None] * k3
    y = jnp.dot(h3.reshape(3 * t, -1).astype(MXU_DTYPE), w2_ref[...],
                preferred_element_type=jnp.float32)
    o_ref[...] = x + y.reshape(3, t, -1)


def ln_vec_mlp_residual(x3, params, cfg, *, eps=EPS, slope=LEAKY_SLOPE):
    _, T, C = x3.shape
    w1, u, w2 = params["w1"], params["u"], params["w2"]
    tT = _tile(T, cfg["mlp_tile"])
    return pl.pallas_call(
        functools.partial(_ln_mlp_residual_kernel, eps=eps, slope=slope),
        out_shape=jax.ShapeDtypeStruct((3, T, C), jnp.float32),
        grid=(pl.cdiv(T, tT),),
        in_specs=[pl.BlockSpec((3, tT, C), lambda i: (0, i, 0)),
                  pl.BlockSpec(w1.shape, lambda i: (0, 0)),
                  pl.BlockSpec(u.shape, lambda i: (0, 0)),
                  pl.BlockSpec(w2.shape, lambda i: (0, 0))],
        out_specs=pl.BlockSpec((3, tT, C), lambda i: (0, i, 0)),
        input_output_aliases={0: 0},     # residual accumulates in place
        compiler_params=_cparams(("parallel",), cfg),
    )(x3, w1, u, w2)


# ----------------------------------------------------------------------------
# Kernel 4: VN (cross-)attention core, flash-tiled over key tiles with online
# softmax.  Heads are looped inside the kernel over static channel slices of
# the (3, tq, C) / (3, tk, C) blocks, so no head split/merge transposes are
# needed in XLA; the output is written merged-head into (3, B, Nq, C).
# Scores are VN inner products (sum over xyz of the per-axis Dh dots); the
# softmax scale is pre-folded into the q projection weights.
# ----------------------------------------------------------------------------
def _flash_vn_attn_kernel(q_ref, k_ref, v_ref, o_ref, m_sc, l_sc, acc_sc, *,
                          num_heads, head_dim, nk, tk, mask_keys):
    ik = pl.program_id(2)

    @pl.when(ik == 0)
    def _():
        m_sc[...] = jnp.full(m_sc.shape, -1e30, jnp.float32)
        l_sc[...] = jnp.zeros(l_sc.shape, jnp.float32)
        acc_sc[...] = jnp.zeros(acc_sc.shape, jnp.float32)

    q = q_ref[...][:, 0]                       # (3, tq, C), scale pre-folded
    k = k_ref[...][:, 0]                       # (3, tk, C)
    v = v_ref[...][:, 0]
    tq = q.shape[1]

    if mask_keys:  # only compiled when Nk % tk != 0 (padded last kv tile)
        valid = (ik * tk
                 + lax.broadcasted_iota(jnp.int32, (tq, tk), 1)) < nk

    dn = (((1,), (1,)), ((), ()))              # contract the Dh axis
    for h in range(num_heads):
        lo, hi = h * head_dim, (h + 1) * head_dim
        qh, kh, vh = q[:, :, lo:hi], k[:, :, lo:hi], v[:, :, lo:hi]
        s = (lax.dot_general(qh[0], kh[0], dn, preferred_element_type=jnp.float32)
             + lax.dot_general(qh[1], kh[1], dn, preferred_element_type=jnp.float32)
             + lax.dot_general(qh[2], kh[2], dn, preferred_element_type=jnp.float32))
        if mask_keys:
            s = jnp.where(valid, s, -1e30)

        m_prev = m_sc[h]                       # (tq, 128) lane-replicated
        l_prev = l_sc[h]
        m_next = jnp.maximum(m_prev, jnp.max(s, axis=-1, keepdims=True))
        alpha = jnp.exp(m_prev - m_next)
        p = jnp.exp(s - m_next[:, 0:1])
        l_sc[h] = alpha * l_prev + jnp.sum(p, axis=-1, keepdims=True)
        m_sc[h] = m_next

        a0 = alpha[:, 0:1]
        p = p.astype(vh.dtype)
        acc_sc[0, :, lo:hi] = a0 * acc_sc[0, :, lo:hi] + jnp.dot(
            p, vh[0], preferred_element_type=jnp.float32)
        acc_sc[1, :, lo:hi] = a0 * acc_sc[1, :, lo:hi] + jnp.dot(
            p, vh[1], preferred_element_type=jnp.float32)
        acc_sc[2, :, lo:hi] = a0 * acc_sc[2, :, lo:hi] + jnp.dot(
            p, vh[2], preferred_element_type=jnp.float32)

    @pl.when(ik == pl.num_programs(2) - 1)
    def _():
        invs = [jnp.broadcast_to(pl.reciprocal(l_sc[h][:, 0:1], approx=True),
                                 (tq, head_dim))
                for h in range(num_heads)]
        inv = jnp.concatenate(invs, axis=-1)   # (tq, C), per-head denominators
        o_ref[...] = (acc_sc[...] * inv[None])[:, None].astype(o_ref.dtype)


def flash_vn_attention(qp, kp, vp, batch, num_heads, cfg):
    _, Tq, C = qp.shape
    _, Tk, _ = kp.shape
    Nq, Nk = Tq // batch, Tk // batch
    head_dim = C // num_heads
    q4 = qp.reshape(3, batch, Nq, C)           # free reshape (split dim)
    k4 = kp.reshape(3, batch, Nk, C)
    v4 = vp.reshape(3, batch, Nk, C)
    tq = _seq_tile(Nq, cfg["attn_q_tile"])
    tk = _seq_tile(Nk, cfg["attn_kv_tile"])
    mask_keys = (Nk % tk) != 0
    out = pl.pallas_call(
        functools.partial(_flash_vn_attn_kernel, num_heads=num_heads,
                          head_dim=head_dim, nk=Nk, tk=tk, mask_keys=mask_keys),
        out_shape=jax.ShapeDtypeStruct((3, batch, Nq, C), qp.dtype),
        grid=(batch, pl.cdiv(Nq, tq), pl.cdiv(Nk, tk)),
        in_specs=[pl.BlockSpec((3, 1, tq, C), lambda b, iq, ik: (0, b, iq, 0)),
                  pl.BlockSpec((3, 1, tk, C), lambda b, iq, ik: (0, b, ik, 0)),
                  pl.BlockSpec((3, 1, tk, C), lambda b, iq, ik: (0, b, ik, 0))],
        out_specs=pl.BlockSpec((3, 1, tq, C), lambda b, iq, ik: (0, b, iq, 0)),
        scratch_shapes=[pltpu.VMEM((num_heads, tq, 128), jnp.float32),
                        pltpu.VMEM((num_heads, tq, 128), jnp.float32),
                        pltpu.VMEM((3, tq, C), jnp.float32)],
        compiler_params=_cparams(("parallel", "parallel", "arbitrary"), cfg),
    )(q4, k4, v4)
    return out.reshape(3, Tq, C)


# ----------------------------------------------------------------------------
# Block forward (mirrors VecCrossAttnBlockApi.forward with 'vnattn' styles).
# ----------------------------------------------------------------------------
def vec_cross_attn_block_forward(params, q, v, num_heads=2):
    # TODO(synk): the 'vngraph' local-attention branch (VNDynamicGraphAttention
    # with knn idx), the denoise_length attention mask, LayerScale
    # (init_values=None) and transform_restore (scale_factor=None) are not
    # instantiated; under this config they are identities / unused in the
    # torch forward as well.
    B, Nq, C, _ = q.shape
    _, Nv, _, _ = v.shape
    assert C % num_heads == 0
    cfg = _config()

    # one-time layout change: xyz-leading, channels on the lane axis
    q3 = jnp.transpose(q, (3, 0, 1, 2)).reshape(3, B * Nq, C).astype(jnp.float32)
    v3 = jnp.transpose(v, (3, 0, 1, 2)).reshape(3, B * Nv, C).astype(jnp.float32)

    # --- self attention residual: norm1 -> VNAttention -> + (in place) ---
    qp, kp, vp = ln_vec_proj(q3, params["self_attn"]["wqkv"], (C, C, C), cfg)
    o3 = flash_vn_attention(qp, kp, vp, B, num_heads, cfg)
    q3 = vec_linear_residual(o3, params["self_attn"]["wo"], q3, cfg)

    # --- cross attention residual: norm_q / norm_v -> VNCrossAttention -> + ---
    (qp,) = ln_vec_proj(q3, params["cross_attn"]["wq"], (C,), cfg)
    kp, vp = ln_vec_proj(v3, params["cross_attn"]["wkv"], (C, C), cfg)
    o3 = flash_vn_attention(qp, kp, vp, B, num_heads, cfg)
    q3 = vec_linear_residual(o3, params["cross_attn"]["wo"], q3, cfg)

    # --- MLP residual: norm2 -> VecLinear/VecActivation/VecLinear -> + ---
    q3 = ln_vec_mlp_residual(q3, params["mlp"], cfg)

    return jnp.transpose(q3.reshape(3, B, Nq, C), (1, 2, 3, 0))


def init_params(key, dim, num_heads, mlp_ratio=4.0):
    hidden = int(dim * mlp_ratio)
    head_dim = dim // num_heads
    scale = ((head_dim * 3.0) ** -0.5 if SCALE_INCLUDES_XYZ
             else head_dim ** -0.5)
    ks = jax.random.split(key, 11)

    def w(k, shape):
        return jax.random.normal(k, shape, jnp.float32) * 0.1

    def cast(a):
        return a.astype(MXU_DTYPE)

    wq_s, wk_s, wv_s, wo_s = (w(ks[0], (dim, dim)), w(ks[1], (dim, dim)),
                              w(ks[2], (dim, dim)), w(ks[3], (dim, dim)))
    wq_c, wk_c, wv_c, wo_c = (w(ks[4], (dim, dim)), w(ks[5], (dim, dim)),
                              w(ks[6], (dim, dim)), w(ks[7], (dim, dim)))
    return {
        # Q|K|V (and K|V) weights pre-concatenated so one fused LN+projection
        # kernel produces all projections per branch; the softmax scale is
        # folded into the q columns; weights live in HBM as MXU_DTYPE (bf16).
        "self_attn": {"wqkv": cast(jnp.concatenate(
                          [wq_s * scale, wk_s, wv_s], axis=1)),
                      "wo": cast(wo_s)},
        "cross_attn": {"wq": cast(wq_c * scale),
                       "wkv": cast(jnp.concatenate([wk_c, wv_c], axis=1)),
                       "wo": cast(wo_c)},
        "mlp": {"w1": cast(w(ks[8], (dim, hidden))),
                "u": cast(w(ks[9], (hidden, hidden))),
                "w2": cast(w(ks[10], (hidden, dim)))},
    }


if __name__ == "__main__":
    key = jax.random.PRNGKey(0)
    kq, kv, kp = jax.random.split(key, 3)

    B, Nq, Nv, dim, heads = 2, 8, 16, 8, 2
    q = jax.random.normal(kq, (B, Nq, dim, 3), jnp.float32)
    v = jax.random.normal(kv, (B, Nv, dim, 3), jnp.float32)
    params = init_params(kp, dim, heads)

    fwd = jax.jit(functools.partial(vec_cross_attn_block_forward,
                                    num_heads=heads))
    out = fwd(params, q, v)
    out = jax.block_until_ready(out)

    assert out.shape == (B, Nq, dim, 3)
    assert bool(jnp.all(jnp.isfinite(out)))
    print("KERNEL_OK")
</pallas_src>

<mosaic_0001>
module attributes {stable_mosaic.version = 11 : i64} {
  func.func @_proj_residual_kernel(%arg0: i32, %arg1: memref<3x8x8xbf16, #tpu.memory_space<vmem>>, %arg2: memref<8x8xbf16, #tpu.memory_space<vmem>>, %arg3: memref<3x8x8xf32, #tpu.memory_space<vmem>>, %arg4: memref<3x8x8xf32, #tpu.memory_space<vmem>>) attributes {dimension_semantics = [#tpu.dimension_semantics<parallel>], iteration_bounds = array<i64: 2>, scalar_prefetch = 0 : i64, scratch_operands = 0 : i64, tpu.core_type = #tpu.core_type<tc>, window_params = [{transform_indices = @transform_0, window_bounds = array<i64: 3, 8, 8>}, {pipeline_mode = #tpu.pipeline_mode<synchronous>, transform_indices = @transform_1, window_bounds = array<i64: 8, 8>}, {transform_indices = @transform_2, window_bounds = array<i64: 3, 8, 8>}, {transform_indices = @transform_3, window_bounds = array<i64: 3, 8, 8>}]} {
    %c0 = arith.constant 0 : index
    %c0_0 = arith.constant 0 : index
    %c0_1 = arith.constant 0 : index
    %0 = vector.load %arg1[%c0, %c0_0, %c0_1] : memref<3x8x8xbf16, #tpu.memory_space<vmem>>, vector<3x8x8xbf16>
    %1 = vector.shape_cast %0 : vector<3x8x8xbf16> to vector<24x8xbf16>
    %c0_2 = arith.constant 0 : index
    %c0_3 = arith.constant 0 : index
    %2 = vector.load %arg2[%c0_2, %c0_3] : memref<8x8xbf16, #tpu.memory_space<vmem>>, vector<8x8xbf16>
    %cst = arith.constant dense<0.000000e+00> : vector<24x8xf32>
    %3 = tpu.matmul %1, %2, %cst {dimension_numbers = #tpu.dot_dimension_numbers<[1], [0], [0], [1], [0, 0, 1, 1], [], []>} : vector<24x8xbf16>, vector<8x8xbf16>, vector<24x8xf32> -> vector<24x8xf32>
    %c0_4 = arith.constant 0 : index
    %c0_5 = arith.constant 0 : index
    %c0_6 = arith.constant 0 : index
    %4 = vector.load %arg3[%c0_4, %c0_5, %c0_6] : memref<3x8x8xf32, #tpu.memory_space<vmem>>, vector<3x8x8xf32>
    %5 = vector.shape_cast %3 : vector<24x8xf32> to vector<3x8x8xf32>
    %6 = arith.addf %4, %5 : vector<3x8x8xf32>
    %c0_7 = arith.constant 0 : index
    %c0_8 = arith.constant 0 : index
    %c0_9 = arith.constant 0 : index
    %7 = vector.load %arg4[%c0_7, %c0_8, %c0_9] : memref<3x8x8xf32, #tpu.memory_space<vmem>>, vector<3x8x8xf32>
    tpu.vector_store %arg4[%c0_7, %c0_8, %c0_9], %6 {strides = array<i32>} : memref<3x8x8xf32, #tpu.memory_space<vmem>>, vector<3x8x8xf32>,
    return
  }
  func.func @transform_0(%arg0: i32) -> (i32, i32, i32) {
    %c0_i32 = arith.constant 0 : i32
    %c0_i32_0 = arith.constant 0 : i32
    %c0_i32_1 = arith.constant 0 : i32
    return %c0_i32, %arg0, %c0_i32_0 : i32, i32, i32
  }
  func.func @transform_1(%arg0: i32) -> (i32, i32) {
    %c0_i32 = arith.constant 0 : i32
    %c0_i32_0 = arith.constant 0 : i32
    %c0_i32_1 = arith.constant 0 : i32
    return %c0_i32, %c0_i32_0 : i32, i32
  }
  func.func @transform_2(%arg0: i32) -> (i32, i32, i32) {
    %c0_i32 = arith.constant 0 : i32
    %c0_i32_0 = arith.constant 0 : i32
    %c0_i32_1 = arith.constant 0 : i32
    return %c0_i32, %arg0, %c0_i32_0 : i32, i32, i32
  }
  func.func @transform_3(%arg0: i32) -> (i32, i32, i32) {
    %c0_i32 = arith.constant 0 : i32
    %c0_i32_0 = arith.constant 0 : i32
    %c0_i32_1 = arith.constant 0 : i32
    return %c0_i32, %arg0, %c0_i32_0 : i32, i32, i32
  }
}

module attributes {stable_mosaic.version = 11 : i64} {
  func.func @_flash_vn_attn_kernel(%arg0: i32, %arg1: i32, %arg2: i32, %arg3: memref<3x1x8x8xbf16, #tpu.memory_space<vmem>>, %arg4: memref<3x1x8x8xbf16, #tpu.memory_space<vmem>>, %arg5: memref<3x1x8x8xbf16, #tpu.memory_space<vmem>>, %arg6: memref<3x1x8x8xbf16, #tpu.memory_space<vmem>>, %arg7: memref<2x8x128xf32, #tpu.memory_space<vmem>>, %arg8: memref<2x8x128xf32, #tpu.memory_space<vmem>>, %arg9: memref<3x8x8xf32, #tpu.memory_space<vmem>>) attributes {dimension_semantics = [#tpu.dimension_semantics<parallel>, #tpu.dimension_semantics<parallel>, #tpu.dimension_semantics<arbitrary>], iteration_bounds = array<i64: 2, 1, 1>, scalar_prefetch = 0 : i64, scratch_operands = 3 : i64, tpu.core_type = #tpu.core_type<tc>, window_params = [{transform_indices = @transform_0, window_bounds = array<i64: 3, 1, 8, 8>}, {transform_indices = @transform_1, window_bounds = array<i64: 3, 1, 8, 8>}, {transform_indices = @transform_2, window_bounds = array<i64: 3, 1, 8, 8>}, {transform_indices = @transform_3, window_bounds = array<i64: 3, 1, 8, 8>}]} {
    %c0_i32 = arith.constant 0 : i32
    %0 = arith.cmpi eq, %arg2, %c0_i32 : i32
    %1 = arith.extui %0 : i1 to i32
    %c0_i32_0 = arith.constant 0 : i32
    %2 = arith.cmpi ne, %1, %c0_i32_0 : i32
    scf.if %2 {
      %cst_86 = arith.constant -1.000000e+30 : f32
      %172 = vector.broadcast %cst_86 : f32 to vector<2x8x128xf32>
      %c0_87 = arith.constant 0 : index
      %c0_88 = arith.constant 0 : index
      %c0_89 = arith.constant 0 : index
      %173 = vector.load %arg7[%c0_87, %c0_88, %c0_89] : memref<2x8x128xf32, #tpu.memory_space<vmem>>, vector<2x8x128xf32>
      tpu.vector_store %arg7[%c0_87, %c0_88, %c0_89], %172 {strides = array<i32>} : memref<2x8x128xf32, #tpu.memory_space<vmem>>, vector<2x8x128xf32>,
      %cst_90 = arith.constant 0.000000e+00 : f32
      %174 = vector.broadcast %cst_90 : f32 to vector<2x8x128xf32>
      %c0_91 = arith.constant 0 : index
      %c0_92 = arith.constant 0 : index
      %c0_93 = arith.constant 0 : index
      %175 = vector.load %arg8[%c0_91, %c0_92, %c0_93] : memref<2x8x128xf32, #tpu.memory_space<vmem>>, vector<2x8x128xf32>
      tpu.vector_store %arg8[%c0_91, %c0_92, %c0_93], %174 {strides = array<i32>} : memref<2x8x128xf32, #tpu.memory_space<vmem>>, vector<2x8x128xf32>,
      %cst_94 = arith.constant 0.000000e+00 : f32
      %176 = vector.broadcast %cst_94 : f32 to vector<3x8x8xf32>
      %c0_95 = arith.constant 0 : index
      %c0_96 = arith.constant 0 : index
      %c0_97 = arith.constant 0 : index
      %177 = vector.load %arg9[%c0_95, %c0_96, %c0_97] : memref<3x8x8xf32, #tpu.memory_space<vmem>>, vector<3x8x8xf32>
      tpu.vector_store %arg9[%c0_95, %c0_96, %c0_97], %176 {strides = array<i32>} : memref<3x8x8xf32, #tpu.memory_space<vmem>>, vector<3x8x8xf32>,
    } else {
    }
    %c0 = arith.constant 0 : index
    %c0_1 = arith.constant 0 : index
    %c0_2 = arith.constant 0 : index
    %c0_3 = arith.constant 0 : index
    %3 = vector.load %arg3[%c0, %c0_1, %c0_2, %c0_3] : memref<3x1x8x8xbf16, #tpu.memory_space<vmem>>, vector<3x1x8x8xbf16>
    %4 = vector.shape_cast %3 : vector<3x1x8x8xbf16> to vector<3x8x8xbf16>
    %c0_4 = arith.constant 0 : index
    %c0_5 = arith.constant 0 : index
    %c0_6 = arith.constant 0 : index
    %c0_7 = arith.constant 0 : index
    %5 = vector.load %arg4[%c0_4, %c0_5, %c0_6, %c0_7] : memref<3x1x8x8xbf16, #tpu.memory_space<vmem>>, vector<3x1x8x8xbf16>
    %6 = vector.shape_cast %5 : vector<3x1x8x8xbf16> to vector<3x8x8xbf16>
    %c0_8 = arith.constant 0 : index
    %c0_9 = arith.constant 0 : index
    %c0_10 = arith.constant 0 : index
    %c0_11 = arith.constant 0 : index
    %7 = vector.load %arg5[%c0_8, %c0_9, %c0_10, %c0_11] : memref<3x1x8x8xbf16, #tpu.memory_space<vmem>>, vector<3x1x8x8xbf16>
    %8 = vector.shape_cast %7 : vector<3x1x8x8xbf16> to vector<3x8x8xbf16>
    %9 = vector.extract_strided_slice %4 {offsets = [0, 0, 0], sizes = [3, 8, 4], strides = [1, 1, 1]} : vector<3x8x8xbf16> to vector<3x8x4xbf16>
    %10 = vector.extract_strided_slice %6 {offsets = [0, 0, 0], sizes = [3, 8, 4], strides = [1, 1, 1]} : vector<3x8x8xbf16> to vector<3x8x4xbf16>
    %11 = vector.extract_strided_slice %8 {offsets = [0, 0, 0], sizes = [3, 8, 4], strides = [1, 1, 1]} : vector<3x8x8xbf16> to vector<3x8x4xbf16>
    %12 = vector.extract_strided_slice %9 {offsets = [0, 0, 0], sizes = [1, 8, 4], strides = [1, 1, 1]} : vector<3x8x4xbf16> to vector<1x8x4xbf16>
    %13 = vector.shape_cast %12 : vector<1x8x4xbf16> to vector<8x4xbf16>
    %14 = vector.extract_strided_slice %10 {offsets = [0, 0, 0], sizes = [1, 8, 4], strides = [1, 1, 1]} : vector<3x8x4xbf16> to vector<1x8x4xbf16>
    %15 = vector.shape_cast %14 : vector<1x8x4xbf16> to vector<8x4xbf16>
    %cst = arith.constant dense<0.000000e+00> : vector<8x8xf32>
    %16 = tpu.matmul %13, %15, %cst {dimension_numbers = #tpu.dot_dimension_numbers<[1], [1], [0], [0], [0, 0, 1, 0], [], []>} : vector<8x4xbf16>, vector<8x4xbf16>, vector<8x8xf32> -> vector<8x8xf32>
    %17 = vector.extract_strided_slice %9 {offsets = [1, 0, 0], sizes = [1, 8, 4], strides = [1, 1, 1]} : vector<3x8x4xbf16> to vector<1x8x4xbf16>
    %18 = vector.shape_cast %17 : vector<1x8x4xbf16> to vector<8x4xbf16>
    %19 = vector.extract_strided_slice %10 {offsets = [1, 0, 0], sizes = [1, 8, 4], strides = [1, 1, 1]} : vector<3x8x4xbf16> to vector<1x8x4xbf16>
    %20 = vector.shape_cast %19 : vector<1x8x4xbf16> to vector<8x4xbf16>
    %cst_12 = arith.constant dense<0.000000e+00> : vector<8x8xf32>
    %21 = tpu.matmul %18, %20, %cst_12 {dimension_numbers = #tpu.dot_dimension_numbers<[1], [1], [0], [0], [0, 0, 1, 0], [], []>} : vector<8x4xbf16>, vector<8x4xbf16>, vector<8x8xf32> -> vector<8x8xf32>
    %22 = arith.addf %16, %21 : vector<8x8xf32>
    %23 = vector.extract_strided_slice %9 {offsets = [2, 0, 0], sizes = [1, 8, 4], strides = [1, 1, 1]} : vector<3x8x4xbf16> to vector<1x8x4xbf16>
    %24 = vector.shape_cast %23 : vector<1x8x4xbf16> to vector<8x4xbf16>
    %25 = vector.extract_strided_slice %10 {offsets = [2, 0, 0], sizes = [1, 8, 4], strides = [1, 1, 1]} : vector<3x8x4xbf16> to vector<1x8x4xbf16>
    %26 = vector.shape_cast %25 : vector<1x8x4xbf16> to vector<8x4xbf16>
    %cst_13 = arith.constant dense<0.000000e+00> : vector<8x8xf32>
    %27 = tpu.matmul %24, %26, %cst_13 {dimension_numbers = #tpu.dot_dimension_numbers<[1], [1], [0], [0], [0, 0, 1, 0], [], []>} : vector<8x4xbf16>, vector<8x4xbf16>, vector<8x8xf32> -> vector<8x8xf32>
    %28 = arith.addf %22, %27 : vector<8x8xf32>
    %c0_14 = arith.constant 0 : index
    %c0_15 = arith.constant 0 : index
    %c0_16 = arith.constant 0 : index
    %29 = vector.load %arg7[%c0_14, %c0_15, %c0_16] : memref<2x8x128xf32, #tpu.memory_space<vmem>>, vector<1x8x128xf32>
    %30 = vector.shape_cast %29 : vector<1x8x128xf32> to vector<8x128xf32>
    %c0_17 = arith.constant 0 : index
    %c0_18 = arith.constant 0 : index
    %c0_19 = arith.constant 0 : index
    %31 = vector.load %arg8[%c0_17, %c0_18, %c0_19] : memref<2x8x128xf32, #tpu.memory_space<vmem>>, vector<1x8x128xf32>
    %32 = vector.shape_cast %31 : vector<1x8x128xf32> to vector<8x128xf32>
    %cst_20 = arith.constant dense<0xFF800000> : vector<8xf32>
    %33 = vector.multi_reduction <maximumf>, %28, %cst_20 [1] : vector<8x8xf32> to vector<8xf32>
    %34 = vector.shape_cast %33 : vector<8xf32> to vector<8x1xf32>
    %35 = vector.broadcast %34 : vector<8x1xf32> to vector<8x128xf32>
    %36 = arith.maximumf %30, %35 : vector<8x128xf32>
    %37 = arith.subf %30, %36 : vector<8x128xf32>
    %38 = math.exp %37 : vector<8x128xf32>
    %39 = vector.extract_strided_slice %36 {offsets = [0, 0], sizes = [8, 1], strides = [1, 1]} : vector<8x128xf32> to vector<8x1xf32>
    %40 = vector.broadcast %39 : vector<8x1xf32> to vector<8x8xf32>
    %41 = arith.subf %28, %40 : vector<8x8xf32>
    %42 = math.exp %41 : vector<8x8xf32>
    %43 = arith.mulf %38, %32 : vector<8x128xf32>
    %cst_21 = arith.constant dense<0.000000e+00> : vector<8xf32>
    %44 = vector.multi_reduction <add>, %42, %cst_21 [1] : vector<8x8xf32> to vector<8xf32>
    %45 = vector.shape_cast %44 : vector<8xf32> to vector<8x1xf32>
    %46 = vector.broadcast %45 : vector<8x1xf32> to vector<8x128xf32>
    %47 = arith.addf %43, %46 : vector<8x128xf32>
    %c0_22 = arith.constant 0 : index
    %c0_23 = arith.constant 0 : index
    %c0_24 = arith.constant 0 : index
    %48 = vector.load %arg8[%c0_22, %c0_23, %c0_24] : memref<2x8x128xf32, #tpu.memory_space<vmem>>, vector<1x8x128xf32>
    %49 = vector.shape_cast %48 : vector<1x8x128xf32> to vector<8x128xf32>
    %50 = vector.shape_cast %47 : vector<8x128xf32> to vector<1x8x128xf32>
    tpu.vector_store %arg8[%c0_22, %c0_23, %c0_24], %50 {strides = array<i32>} : memref<2x8x128xf32, #tpu.memory_space<vmem>>, vector<1x8x128xf32>,
    %c0_25 = arith.constant 0 : index
    %c0_26 = arith.constant 0 : index
    %c0_27 = arith.constant 0 : index
    %51 = vector.load %arg7[%c0_25, %c0_26, %c0_27] : memref<2x8x128xf32, #tpu.memory_space<vmem>>, vector<1x8x128xf32>
    %52 = vector.shape_cast %51 : vector<1x8x128xf32> to vector<8x128xf32>
    %53 = vector.shape_cast %36 : vector<8x128xf32> to vector<1x8x128xf32>
    tpu.vector_store %arg7[%c0_25, %c0_26, %c0_27], %53 {strides = array<i32>} : memref<2x8x128xf32, #tpu.memory_space<vmem>>, vector<1x8x128xf32>,
    %54 = vector.extract_strided_slice %38 {offsets = [0, 0], sizes = [8, 1], strides = [1, 1]} : vector<8x128xf32> to vector<8x1xf32>
    %55 = arith.truncf %42 : vector<8x8xf32> to vector<8x8xbf16>
    %c0_28 = arith.constant 0 : index
    %c0_29 = arith.constant 0 : index
    %c0_30 = arith.constant 0 : index
    %56 = vector.load %arg9[%c0_28, %c0_29, %c0_30] : memref<3x8x8xf32, #tpu.memory_space<vmem>>, vector<1x8x4xf32>
    %57 = vector.shape_cast %56 : vector<1x8x4xf32> to vector<8x4xf32>
    %58 = vector.broadcast %54 : vector<8x1xf32> to vector<8x4xf32>
    %59 = arith.mulf %58, %57 : vector<8x4xf32>
    %60 = vector.extract_strided_slice %11 {offsets = [0, 0, 0], sizes = [1, 8, 4], strides = [1, 1, 1]} : vector<3x8x4xbf16> to vector<1x8x4xbf16>
    %61 = vector.shape_cast %60 : vector<1x8x4xbf16> to vector<8x4xbf16>
    %cst_31 = arith.constant dense<0.000000e+00> : vector<8x4xf32>
    %62 = tpu.matmul %55, %61, %cst_31 {dimension_numbers = #tpu.dot_dimension_numbers<[1], [0], [0], [1], [0, 0, 1, 1], [], []>} : vector<8x8xbf16>, vector<8x4xbf16>, vector<8x4xf32> -> vector<8x4xf32>
    %63 = arith.addf %59, %62 : vector<8x4xf32>
    %c0_32 = arith.constant 0 : index
    %c0_33 = arith.constant 0 : index
    %c0_34 = arith.constant 0 : index
    %64 = vector.load %arg9[%c0_32, %c0_33, %c0_34] : memref<3x8x8xf32, #tpu.memory_space<vmem>>, vector<1x8x4xf32>
    %65 = vector.shape_cast %64 : vector<1x8x4xf32> to vector<8x4xf32>
    %66 = vector.shape_cast %63 : vector<8x4xf32> to vector<1x8x4xf32>
    tpu.vector_store %arg9[%c0_32, %c0_33, %c0_34], %66 {strides = array<i32>} : memref<3x8x8xf32, #tpu.memory_space<vmem>>, vector<1x8x4xf32>,
    %c1 = arith.constant 1 : index
    %c0_35 = arith.constant 0 : index
    %c0_36 = arith.constant 0 : index
    %67 = vector.load %arg9[%c1, %c0_35, %c0_36] : memref<3x8x8xf32, #tpu.memory_space<vmem>>, vector<1x8x4xf32>
    %68 = vector.shape_cast %67 : vector<1x8x4xf32> to vector<8x4xf32>
    %69 = vector.broadcast %54 : vector<8x1xf32> to vector<8x4xf32>
    %70 = arith.mulf %69, %68 : vector<8x4xf32>
    %71 = vector.extract_strided_slice %11 {offsets = [1, 0, 0], sizes = [1, 8, 4], strides = [1, 1, 1]} : vector<3x8x4xbf16> to vector<1x8x4xbf16>
    %72 = vector.shape_cast %71 : vector<1x8x4xbf16> to vector<8x4xbf16>
    %cst_37 = arith.constant dense<0.000000e+00> : vector<8x4xf32>
    %73 = tpu.matmul %55, %72, %cst_37 {dimension_numbers = #tpu.dot_dimension_numbers<[1], [0], [0], [1], [0, 0, 1, 1], [], []>} : vector<8x8xbf16>, vector<8x4xbf16>, vector<8x4xf32> -> vector<8x4xf32>
    %74 = arith.addf %70, %73 : vector<8x4xf32>
    %c1_38 = arith.constant 1 : index
    %c0_39 = arith.constant 0 : index
    %c0_40 = arith.constant 0 : index
    %75 = vector.load %arg9[%c1_38, %c0_39, %c0_40] : memref<3x8x8xf32, #tpu.memory_space<vmem>>, vector<1x8x4xf32>
    %76 = vector.shape_cast %75 : vector<1x8x4xf32> to vector<8x4xf32>
    %77 = vector.shape_cast %74 : vector<8x4xf32> to vector<1x8x4xf32>
    tpu.vector_store %arg9[%c1_38, %c0_39, %c0_40], %77 {strides = array<i32>} : memref<3x8x8xf32, #tpu.memory_space<vmem>>, vector<1x8x4xf32>,
    %c2 = arith.constant 2 : index
    %c0_41 = arith.constant 0 : index
    %c0_42 = arith.constant 0 : index
    %78 = vector.load %arg9[%c2, %c0_41, %c0_42] : memref<3x8x8xf32, #tpu.memory_space<vmem>>, vector<1x8x4xf32>
    %79 = vector.shape_cast %78 : vector<1x8x4xf32> to vector<8x4xf32>
    %80 = vector.broadcast %54 : vector<8x1xf32> to vector<8x4xf32>
    %81 = arith.mulf %80, %79 : vector<8x4xf32>
    %82 = vector.extract_strided_slice %11 {offsets = [2, 0, 0], sizes = [1, 8, 4], strides = [1, 1, 1]} : vector<3x8x4xbf16> to vector<1x8x4xbf16>
    %83 = vector.shape_cast %82 : vector<1x8x4xbf16> to vector<8x4xbf16>
    %cst_43 = arith.constant dense<0.000000e+00> : vector<8x4xf32>
    %84 = tpu.matmul %55, %83, %cst_43 {dimension_numbers = #tpu.dot_dimension_numbers<[1], [0], [0], [1], [0, 0, 1, 1], [], []>} : vector<8x8xbf16>, vector<8x4xbf16>, vector<8x4xf32> -> vector<8x4xf32>
    %85 = arith.addf %81, %84 : vector<8x4xf32>
    %c2_44 = arith.constant 2 : index
    %c0_45 = arith.constant 0 : index
    %c0_46 = arith.constant 0 : index
    %86 = vector.load %arg9[%c2_44, %c0_45, %c0_46] : memref<3x8x8xf32, #tpu.memory_space<vmem>>, vector<1x8x4xf32>
    %87 = vector.shape_cast %86 : vector<1x8x4xf32> to vector<8x4xf32>
    %88 = vector.shape_cast %85 : vector<8x4xf32> to vector<1x8x4xf32>
    tpu.vector_store %arg9[%c2_44, %c0_45, %c0_46], %88 {strides = array<i32>} : memref<3x8x8xf32, #tpu.memory_space<vmem>>, vector<1x8x4xf32>,
    %89 = vector.extract_strided_slice %4 {offsets = [0, 0, 4], sizes = [3, 8, 4], strides = [1, 1, 1]} : vector<3x8x8xbf16> to vector<3x8x4xbf16>
    %90 = vector.extract_strided_slice %6 {offsets = [0, 0, 4], sizes = [3, 8, 4], strides = [1, 1, 1]} : vector<3x8x8xbf16> to vector<3x8x4xbf16>
    %91 = vector.extract_strided_slice %8 {offsets = [0, 0, 4], sizes = [3, 8, 4], strides = [1, 1, 1]} : vector<3x8x8xbf16> to vector<3x8x4xbf16>
    %92 = vector.extract_strided_slice %89 {offsets = [0, 0, 0], sizes = [1, 8, 4], strides = [1, 1, 1]} : vector<3x8x4xbf16> to vector<1x8x4xbf16>
    %93 = vector.shape_cast %92 : vector<1x8x4xbf16> to vector<8x4xbf16>
    %94 = vector.extract_strided_slice %90 {offsets = [0, 0, 0], sizes = [1, 8, 4], strides = [1, 1, 1]} : vector<3x8x4xbf16> to vector<1x8x4xbf16>
    %95 = vector.shape_cast %94 : vector<1x8x4xbf16> to vector<8x4xbf16>
    %cst_47 = arith.constant dense<0.000000e+00> : vector<8x8xf32>
    %96 = tpu.matmul %93, %95, %cst_47 {dimension_numbers = #tpu.dot_dimension_numbers<[1], [1], [0], [0], [0, 0, 1, 0], [], []>} : vector<8x4xbf16>, vector<8x4xbf16>, vector<8x8xf32> -> vector<8x8xf32>
    %97 = vector.extract_strided_slice %89 {offsets = [1, 0, 0], sizes = [1, 8, 4], strides = [1, 1, 1]} : vector<3x8x4xbf16> to vector<1x8x4xbf16>
    %98 = vector.shape_cast %97 : vector<1x8x4xbf16> to vector<8x4xbf16>
    %99 = vector.extract_strided_slice %90 {offsets = [1, 0, 0], sizes = [1, 8, 4], strides = [1, 1, 1]} : vector<3x8x4xbf16> to vector<1x8x4xbf16>
    %100 = vector.shape_cast %99 : vector<1x8x4xbf16> to vector<8x4xbf16>
    %cst_48 = arith.constant dense<0.000000e+00> : vector<8x8xf32>
    %101 = tpu.matmul %98, %100, %cst_48 {dimension_numbers = #tpu.dot_dimension_numbers<[1], [1], [0], [0], [0, 0, 1, 0], [], []>} : vector<8x4xbf16>, vector<8x4xbf16>, vector<8x8xf32> -> vector<8x8xf32>
    %102 = arith.addf %96, %101 : vector<8x8xf32>
    %103 = vector.extract_strided_slice %89 {offsets = [2, 0, 0], sizes = [1, 8, 4], strides = [1, 1, 1]} : vector<3x8x4xbf16> to vector<1x8x4xbf16>
    %104 = vector.shape_cast %103 : vector<1x8x4xbf16> to vector<8x4xbf16>
    %105 = vector.extract_strided_slice %90 {offsets = [2, 0, 0], sizes = [1, 8, 4], strides = [1, 1, 1]} : vector<3x8x4xbf16> to vector<1x8x4xbf16>
    %106 = vector.shape_cast %105 : vector<1x8x4xbf16> to vector<8x4xbf16>
    %cst_49 = arith.constant dense<0.000000e+00> : vector<8x8xf32>
    %107 = tpu.matmul %104, %106, %cst_49 {dimension_numbers = #tpu.dot_dimension_numbers<[1], [1], [0], [0], [0, 0, 1, 0], [], []>} : vector<8x4xbf16>, vector<8x4xbf16>, vector<8x8xf32> -> vector<8x8xf32>
    %108 = arith.addf %102, %107 : vector<8x8xf32>
    %c1_50 = arith.constant 1 : index
    %c0_51 = arith.constant 0 : index
    %c0_52 = arith.constant 0 : index
    %109 = vector.load %arg7[%c1_50, %c0_51, %c0_52] : memref<2x8x128xf32, #tpu.memory_space<vmem>>, vector<1x8x128xf32>
    %110 = vector.shape_cast %109 : vector<1x8x128xf32> to vector<8x128xf32>
    %c1_53 = arith.constant 1 : index
    %c0_54 = arith.constant 0 : index
    %c0_55 = arith.constant 0 : index
    %111 = vector.load %arg8[%c1_53, %c0_54, %c0_55] : memref<2x8x128xf32, #tpu.memory_space<vmem>>, vector<1x8x128xf32>
    %112 = vector.shape_cast %111 : vector<1x8x128xf32> to vector<8x128xf32>
    %cst_56 = arith.constant dense<0xFF800000> : vector<8xf32>
    %113 = vector.multi_reduction <maximumf>, %108, %cst_56 [1] : vector<8x8xf32> to vector<8xf32>
    %114 = vector.shape_cast %113 : vector<8xf32> to vector<8x1xf32>
    %115 = vector.broadcast %114 : vector<8x1xf32> to vector<8x128xf32>
    %116 = arith.maximumf %110, %115 : vector<8x128xf32>
    %117 = arith.subf %110, %116 : vector<8x128xf32>
    %118 = math.exp %117 : vector<8x128xf32>
    %119 = vector.extract_strided_slice %116 {offsets = [0, 0], sizes = [8, 1], strides = [1, 1]} : vector<8x128xf32> to vector<8x1xf32>
    %120 = vector.broadcast %119 : vector<8x1xf32> to vector<8x8xf32>
    %121 = arith.subf %108, %120 : vector<8x8xf32>
    %122 = math.exp %121 : vector<8x8xf32>
    %123 = arith.mulf %118, %112 : vector<8x128xf32>
    %cst_57 = arith.constant dense<0.000000e+00> : vector<8xf32>
    %124 = vector.multi_reduction <add>, %122, %cst_57 [1] : vector<8x8xf32> to vector<8xf32>
    %125 = vector.shape_cast %124 : vector<8xf32> to vector<8x1xf32>
    %126 = vector.broadcast %125 : vector<8x1xf32> to vector<8x128xf32>
    %127 = arith.addf %123, %126 : vector<8x128xf32>
    %c1_58 = arith.constant 1 : index
    %c0_59 = arith.constant 0 : index
    %c0_60 = arith.constant 0 : index
    %128 = vector.load %arg8[%c1_58, %c0_59, %c0_60] : memref<2x8x128xf32, #tpu.memory_space<vmem>>, vector<1x8x128xf32>
    %129 = vector.shape_cast %128 : vector<1x8x128xf32> to vector<8x128xf32>
    %130 = vector.shape_cast %127 : vector<8x128xf32> to vector<1x8x128xf32>
    tpu.vector_store %arg8[%c1_58, %c0_59, %c0_60], %130 {strides = array<i32>} : memref<2x8x128xf32, #tpu.memory_space<vmem>>, vector<1x8x128xf32>,
    %c1_61 = arith.constant 1 : index
    %c0_62 = arith.constant 0 : index
    %c0_63 = arith.constant 0 : index
    %131 = vector.load %arg7[%c1_61, %c0_62, %c0_63] : memref<2x8x128xf32, #tpu.memory_space<vmem>>, vector<1x8x128xf32>
    %132 = vector.shape_cast %131 : vector<1x8x128xf32> to vector<8x128xf32>
    %133 = vector.shape_cast %116 : vector<8x128xf32> to vector<1x8x128xf32>
    tpu.vector_store %arg7[%c1_61, %c0_62, %c0_63], %133 {strides = array<i32>} : memref<2x8x128xf32, #tpu.memory_space<vmem>>, vector<1x8x128xf32>,
    %134 = vector.extract_strided_slice %118 {offsets = [0, 0], sizes = [8, 1], strides = [1, 1]} : vector<8x128xf32> to vector<8x1xf32>
    %135 = arith.truncf %122 : vector<8x8xf32> to vector<8x8xbf16>
    %c0_64 = arith.constant 0 : index
    %c0_65 = arith.constant 0 : index
    %c4 = arith.constant 4 : index
    %136 = vector.load %arg9[%c0_64, %c0_65, %c4] : memref<3x8x8xf32, #tpu.memory_space<vmem>>, vector<1x8x4xf32>
    %137 = vector.shape_cast %136 : vector<1x8x4xf32> to vector<8x4xf32>
    %138 = vector.broadcast %134 : vector<8x1xf32> to vector<8x4xf32>
    %139 = arith.mulf %138, %137 : vector<8x4xf32>
    %140 = vector.extract_strided_slice %91 {offsets = [0, 0, 0], sizes = [1, 8, 4], strides = [1, 1, 1]} : vector<3x8x4xbf16> to vector<1x8x4xbf16>
    %141 = vector.shape_cast %140 : vector<1x8x4xbf16> to vector<8x4xbf16>
    %cst_66 = arith.constant dense<0.000000e+00> : vector<8x4xf32>
    %142 = tpu.matmul %135, %141, %cst_66 {dimension_numbers = #tpu.dot_dimension_numbers<[1], [0], [0], [1], [0, 0, 1, 1], [], []>} : vector<8x8xbf16>, vector<8x4xbf16>, vector<8x4xf32> -> vector<8x4xf32>
    %143 = arith.addf %139, %142 : vector<8x4xf32>
    %c0_67 = arith.constant 0 : index
    %c0_68 = arith.constant 0 : index
    %c4_69 = arith.constant 4 : index
    %144 = vector.load %arg9[%c0_67, %c0_68, %c4_69] : memref<3x8x8xf32, #tpu.memory_space<vmem>>, vector<1x8x4xf32>
    %145 = vector.shape_cast %144 : vector<1x8x4xf32> to vector<8x4xf32>
    %146 = vector.shape_cast %143 : vector<8x4xf32> to vector<1x8x4xf32>
    tpu.vector_store %arg9[%c0_67, %c0_68, %c4_69], %146 {strides = array<i32>} : memref<3x8x8xf32, #tpu.memory_space<vmem>>, vector<1x8x4xf32>,
    %c1_70 = arith.constant 1 : index
    %c0_71 = arith.constant 0 : index
    %c4_72 = arith.constant 4 : index
    %147 = vector.load %arg9[%c1_70, %c0_71, %c4_72] : memref<3x8x8xf32, #tpu.memory_space<vmem>>, vector<1x8x4xf32>
    %148 = vector.shape_cast %147 : vector<1x8x4xf32> to vector<8x4xf32>
    %149 = vector.broadcast %134 : vector<8x1xf32> to vector<8x4xf32>
    %150 = arith.mulf %149, %148 : vector<8x4xf32>
    %151 = vector.extract_strided_slice %91 {offsets = [1, 0, 0], sizes = [1, 8, 4], strides = [1, 1, 1]} : vector<3x8x4xbf16> to vector<1x8x4xbf16>
    %152 = vector.shape_cast %151 : vector<1x8x4xbf16> to vector<8x4xbf16>
    %cst_73 = arith.constant dense<0.000000e+00> : vector<8x4xf32>
    %153 = tpu.matmul %135, %152, %cst_73 {dimension_numbers = #tpu.dot_dimension_numbers<[1], [0], [0], [1], [0, 0, 1, 1], [], []>} : vector<8x8xbf16>, vector<8x4xbf16>, vector<8x4xf32> -> vector<8x4xf32>
    %154 = arith.addf %150, %153 : vector<8x4xf32>
    %c1_74 = arith.constant 1 : index
    %c0_75 = arith.constant 0 : index
    %c4_76 = arith.constant 4 : index
    %155 = vector.load %arg9[%c1_74, %c0_75, %c4_76] : memref<3x8x8xf32, #tpu.memory_space<vmem>>, vector<1x8x4xf32>
    %156 = vector.shape_cast %155 : vector<1x8x4xf32> to vector<8x4xf32>
    %157 = vector.shape_cast %154 : vector<8x4xf32> to vector<1x8x4xf32>
    tpu.vector_store %arg9[%c1_74, %c0_75, %c4_76], %157 {strides = array<i32>} : memref<3x8x8xf32, #tpu.memory_space<vmem>>, vector<1x8x4xf32>,
    %c2_77 = arith.constant 2 : index
    %c0_78 = arith.constant 0 : index
    %c4_79 = arith.constant 4 : index
    %158 = vector.load %arg9[%c2_77, %c0_78, %c4_79] : memref<3x8x8xf32, #tpu.memory_space<vmem>>, vector<1x8x4xf32>
    %159 = vector.shape_cast %158 : vector<1x8x4xf32> to vector<8x4xf32>
    %160 = vector.broadcast %134 : vector<8x1xf32> to vector<8x4xf32>
    %161 = arith.mulf %160, %159 : vector<8x4xf32>
    %162 = vector.extract_strided_slice %91 {offsets = [2, 0, 0], sizes = [1, 8, 4], strides = [1, 1, 1]} : vector<3x8x4xbf16> to vector<1x8x4xbf16>
    %163 = vector.shape_cast %162 : vector<1x8x4xbf16> to vector<8x4xbf16>
    %cst_80 = arith.constant dense<0.000000e+00> : vector<8x4xf32>
    %164 = tpu.matmul %135, %163, %cst_80 {dimension_numbers = #tpu.dot_dimension_numbers<[1], [0], [0], [1], [0, 0, 1, 1], [], []>} : vector<8x8xbf16>, vector<8x4xbf16>, vector<8x4xf32> -> vector<8x4xf32>
    %165 = arith.addf %161, %164 : vector<8x4xf32>
    %c2_81 = arith.constant 2 : index
    %c0_82 = arith.constant 0 : index
    %c4_83 = arith.constant 4 : index
    %166 = vector.load %arg9[%c2_81, %c0_82, %c4_83] : memref<3x8x8xf32, #tpu.memory_space<vmem>>, vector<1x8x4xf32>
    %167 = vector.shape_cast %166 : vector<1x8x4xf32> to vector<8x4xf32>
    %168 = vector.shape_cast %165 : vector<8x4xf32> to vector<1x8x4xf32>
    tpu.vector_store %arg9[%c2_81, %c0_82, %c4_83], %168 {strides = array<i32>} : memref<3x8x8xf32, #tpu.memory_space<vmem>>, vector<1x8x4xf32>,
    %c0_i32_84 = arith.constant 0 : i32
    %169 = arith.cmpi eq, %arg2, %c0_i32_84 : i32
    %170 = arith.extui %169 : i1 to i32
    %c0_i32_85 = arith.constant 0 : i32
    %171 = arith.cmpi ne, %170, %c0_i32_85 : i32
    scf.if %171 {
      %c0_86 = arith.constant 0 : index
      %c0_87 = arith.constant 0 : index
      %c0_88 = arith.constant 0 : index
      %172 = vector.load %arg8[%c0_86, %c0_87, %c0_88] : memref<2x8x128xf32, #tpu.memory_space<vmem>>, vector<1x8x128xf32>
      %173 = vector.shape_cast %172 : vector<1x8x128xf32> to vector<8x128xf32>
      %174 = vector.extract_strided_slice %173 {offsets = [0, 0], sizes = [8, 1], strides = [1, 1]} : vector<8x128xf32> to vector<8x1xf32>
      %175 = tpu.reciprocal %174 {approx = true} : vector<8x1xf32> -> vector<8x1xf32>
      %176 = vector.shape_cast %175 : vector<8x1xf32> to vector<8x1xf32>
      %177 = vector.broadcast %176 : vector<8x1xf32> to vector<8x4xf32>
      %c1_89 = arith.constant 1 : index
      %c0_90 = arith.constant 0 : index
      %c0_91 = arith.constant 0 : index
      %178 = vector.load %arg8[%c1_89, %c0_90, %c0_91] : memref<2x8x128xf32, #tpu.memory_space<vmem>>, vector<1x8x128xf32>
      %179 = vector.shape_cast %178 : vector<1x8x128xf32> to vector<8x128xf32>
      %180 = vector.extract_strided_slice %179 {offsets = [0, 0], sizes = [8, 1], strides = [1, 1]} : vector<8x128xf32> to vector<8x1xf32>
      %181 = tpu.reciprocal %180 {approx = true} : vector<8x1xf32> -> vector<8x1xf32>
      %182 = vector.shape_cast %181 : vector<8x1xf32> to vector<8x1xf32>
      %183 = vector.broadcast %182 : vector<8x1xf32> to vector<8x4xf32>
      %184 = tpu.concatenate %177, %183 in 1 : vector<8x4xf32>, vector<8x4xf32> -> vector<8x8xf32>
      %c0_92 = arith.constant 0 : index
      %c0_93 = arith.constant 0 : index
      %c0_94 = arith.constant 0 : index
      %185 = vector.load %arg9[%c0_92, %c0_93, %c0_94] : memref<3x8x8xf32, #tpu.memory_space<vmem>>, vector<3x8x8xf32>
      %186 = vector.shape_cast %184 : vector<8x8xf32> to vector<1x8x8xf32>
      %187 = vector.broadcast %186 : vector<1x8x8xf32> to vector<3x8x8xf32>
      %188 = arith.mulf %185, %187 : vector<3x8x8xf32>
      %189 = vector.shape_cast %188 : vector<3x8x8xf32> to vector<3x1x8x8xf32>
      %190 = arith.truncf %189 : vector<3x1x8x8xf32> to vector<3x1x8x8xbf16>
      %c0_95 = arith.constant 0 : index
      %c0_96 = arith.constant 0 : index
      %c0_97 = arith.constant 0 : index
      %c0_98 = arith.constant 0 : index
      %191 = vector.load %arg6[%c0_95, %c0_96, %c0_97, %c0_98] : memref<3x1x8x8xbf16, #tpu.memory_space<vmem>>, vector<3x1x8x8xbf16>
      tpu.vector_store %arg6[%c0_95, %c0_96, %c0_97, %c0_98], %190 {strides = array<i32>} : memref<3x1x8x8xbf16, #tpu.memory_space<vmem>>, vector<3x1x8x8xbf16>,
    } else {
    }
    return
  }
  func.func @transform_0(%arg0: i32, %arg1: i32, %arg2: i32) -> (i32, i32, i32, i32) {
    %c0_i32 = arith.constant 0 : i32
    %c0_i32_0 = arith.constant 0 : i32
    %c0_i32_1 = arith.constant 0 : i32
    return %c0_i32, %arg0, %arg1, %c0_i32_0 : i32, i32, i32, i32
  }
  func.func @transform_1(%arg0: i32, %arg1: i32, %arg2: i32) -> (i32, i32, i32, i32) {
    %c0_i32 = arith.constant 0 : i32
    %c0_i32_0 = arith.constant 0 : i32
    %c0_i32_1 = arith.constant 0 : i32
    return %c0_i32, %arg0, %arg2, %c0_i32_0 : i32, i32, i32, i32
  }
  func.func @transform_2(%arg0: i32, %arg1: i32, %arg2: i32) -> (i32, i32, i32, i32) {
    %c0_i32 = arith.constant 0 : i32
    %c0_i32_0 = arith.constant 0 : i32
    %c0_i32_1 = arith.constant 0 : i32
    return %c0_i32, %arg0, %arg2, %c0_i32_0 : i32, i32, i32, i32
  }
  func.func @transform_3(%arg0: i32, %arg1: i32, %arg2: i32) -> (i32, i32, i32, i32) {
    %c0_i32 = arith.constant 0 : i32
    %c0_i32_0 = arith.constant 0 : i32
    %c0_i32_1 = arith.constant 0 : i32
    return %c0_i32, %arg0, %arg1, %c0_i32_0 : i32, i32, i32, i32
  }
}

module attributes {stable_mosaic.version = 11 : i64} {
  func.func @_ln_proj_kernel(%arg0: i32, %arg1: memref<3x8x8xf32, #tpu.memory_space<vmem>>, %arg2: memref<8x24xbf16, #tpu.memory_space<vmem>>, %arg3: memref<3x8x8xbf16, #tpu.memory_space<vmem>>, %arg4: memref<3x8x8xbf16, #tpu.memory_space<vmem>>, %arg5: memref<3x8x8xbf16, #tpu.memory_space<vmem>>) attributes {dimension_semantics = [#tpu.dimension_semantics<parallel>], iteration_bounds = array<i64: 2>, scalar_prefetch = 0 : i64, scratch_operands = 0 : i64, tpu.core_type = #tpu.core_type<tc>, window_params = [{transform_indices = @transform_0, window_bounds = array<i64: 3, 8, 8>}, {pipeline_mode = #tpu.pipeline_mode<synchronous>, transform_indices = @transform_1, window_bounds = array<i64: 8, 24>}, {transform_indices = @transform_2, window_bounds = array<i64: 3, 8, 8>}, {transform_indices = @transform_3, window_bounds = array<i64: 3, 8, 8>}, {transform_indices = @transform_4, window_bounds = array<i64: 3, 8, 8>}]} {
    %c0 = arith.constant 0 : index
    %c0_0 = arith.constant 0 : index
    %c0_1 = arith.constant 0 : index
    %0 = vector.load %arg1[%c0, %c0_0, %c0_1] : memref<3x8x8xf32, #tpu.memory_space<vmem>>, vector<3x8x8xf32>
    %1 = arith.mulf %0, %0 : vector<3x8x8xf32>
    %cst = arith.constant dense<0.000000e+00> : vector<8x8xf32>
    %2 = vector.multi_reduction <add>, %1, %cst [0] : vector<3x8x8xf32> to vector<8x8xf32>
    %cst_2 = arith.constant dense<0.000000e+00> : vector<8xf32>
    %3 = vector.multi_reduction <add>, %2, %cst_2 [1] : vector<8x8xf32> to vector<8xf32>
    %4 = vector.shape_cast %3 : vector<8xf32> to vector<8x1xf32>
    %cst_3 = arith.constant 8.000000e+00 : f32
    %5 = vector.broadcast %cst_3 : f32 to vector<8x1xf32>
    %6 = arith.divf %4, %5 : vector<8x1xf32>
    %7 = math.sqrt %6 : vector<8x1xf32>
    %cst_4 = arith.constant 9.99999997E-7 : f32
    %8 = vector.broadcast %cst_4 : f32 to vector<8x1xf32>
    %9 = arith.addf %7, %8 : vector<8x1xf32>
    %cst_5 = arith.constant 1.000000e+00 : f32
    %10 = vector.broadcast %cst_5 : f32 to vector<8x1xf32>
    %11 = arith.divf %10, %9 : vector<8x1xf32>
    %12 = vector.shape_cast %11 : vector<8x1xf32> to vector<1x8x1xf32>
    %13 = vector.broadcast %12 : vector<1x8x1xf32> to vector<3x8x8xf32>
    %14 = arith.mulf %0, %13 : vector<3x8x8xf32>
    %15 = arith.truncf %14 : vector<3x8x8xf32> to vector<3x8x8xbf16>
    %16 = vector.shape_cast %15 : vector<3x8x8xbf16> to vector<24x8xbf16>
    %c0_6 = arith.constant 0 : index
    %c0_7 = arith.constant 0 : index
    %17 = vector.load %arg2[%c0_6, %c0_7] : memref<8x24xbf16, #tpu.memory_space<vmem>>, vector<8x24xbf16>
    %cst_8 = arith.constant dense<0.000000e+00> : vector<24x24xf32>
    %18 = tpu.matmul %16, %17, %cst_8 {dimension_numbers = #tpu.dot_dimension_numbers<[1], [0], [0], [1], [0, 0, 1, 1], [], []>} : vector<24x8xbf16>, vector<8x24xbf16>, vector<24x24xf32> -> vector<24x24xf32>
    %19 = vector.extract_strided_slice %18 {offsets = [0, 0], sizes = [24, 8], strides = [1, 1]} : vector<24x24xf32> to vector<24x8xf32>
    %20 = vector.shape_cast %19 : vector<24x8xf32> to vector<3x8x8xf32>
    %21 = arith.truncf %20 : vector<3x8x8xf32> to vector<3x8x8xbf16>
    %c0_9 = arith.constant 0 : index
    %c0_10 = arith.constant 0 : index
    %c0_11 = arith.constant 0 : index
    %22 = vector.load %arg3[%c0_9, %c0_10, %c0_11] : memref<3x8x8xbf16, #tpu.memory_space<vmem>>, vector<3x8x8xbf16>
    tpu.vector_store %arg3[%c0_9, %c0_10, %c0_11], %21 {strides = array<i32>} : memref<3x8x8xbf16, #tpu.memory_space<vmem>>, vector<3x8x8xbf16>,
    %23 = vector.extract_strided_slice %18 {offsets = [0, 8], sizes = [24, 8], strides = [1, 1]} : vector<24x24xf32> to vector<24x8xf32>
    %24 = vector.shape_cast %23 : vector<24x8xf32> to vector<3x8x8xf32>
    %25 = arith.truncf %24 : vector<3x8x8xf32> to vector<3x8x8xbf16>
    %c0_12 = arith.constant 0 : index
    %c0_13 = arith.constant 0 : index
    %c0_14 = arith.constant 0 : index
    %26 = vector.load %arg4[%c0_12, %c0_13, %c0_14] : memref<3x8x8xbf16, #tpu.memory_space<vmem>>, vector<3x8x8xbf16>
    tpu.vector_store %arg4[%c0_12, %c0_13, %c0_14], %25 {strides = array<i32>} : memref<3x8x8xbf16, #tpu.memory_space<vmem>>, vector<3x8x8xbf16>,
    %27 = vector.extract_strided_slice %18 {offsets = [0, 16], sizes = [24, 8], strides = [1, 1]} : vector<24x24xf32> to vector<24x8xf32>
    %28 = vector.shape_cast %27 : vector<24x8xf32> to vector<3x8x8xf32>
    %29 = arith.truncf %28 : vector<3x8x8xf32> to vector<3x8x8xbf16>
    %c0_15 = arith.constant 0 : index
    %c0_16 = arith.constant 0 : index
    %c0_17 = arith.constant 0 : index
    %30 = vector.load %arg5[%c0_15, %c0_16, %c0_17] : memref<3x8x8xbf16, #tpu.memory_space<vmem>>, vector<3x8x8xbf16>
    tpu.vector_store %arg5[%c0_15, %c0_16, %c0_17], %29 {strides = array<i32>} : memref<3x8x8xbf16, #tpu.memory_space<vmem>>, vector<3x8x8xbf16>,
    return
  }
  func.func @transform_0(%arg0: i32) -> (i32, i32, i32) {
    %c0_i32 = arith.constant 0 : i32
    %c0_i32_0 = arith.constant 0 : i32
    %c0_i32_1 = arith.constant 0 : i32
    return %c0_i32, %arg0, %c0_i32_0 : i32, i32, i32
  }
  func.func @transform_1(%arg0: i32) -> (i32, i32) {
    %c0_i32 = arith.constant 0 : i32
    %c0_i32_0 = arith.constant 0 : i32
    %c0_i32_1 = arith.constant 0 : i32
    return %c0_i32, %c0_i32_0 : i32, i32
  }
  func.func @transform_2(%arg0: i32) -> (i32, i32, i32) {
    %c0_i32 = arith.constant 0 : i32
    %c0_i32_0 = arith.constant 0 : i32
    %c0_i32_1 = arith.constant 0 : i32
    return %c0_i32, %arg0, %c0_i32_0 : i32, i32, i32
  }
  func.func @transform_3(%arg0: i32) -> (i32, i32, i32) {
    %c0_i32 = arith.constant 0 : i32
    %c0_i32_0 = arith.constant 0 : i32
    %c0_i32_1 = arith.constant 0 : i32
    return %c0_i32, %arg0, %c0_i32_0 : i32, i32, i32
  }
  func.func @transform_4(%arg0: i32) -> (i32, i32, i32) {
    %c0_i32 = arith.constant 0 : i32
    %c0_i32_0 = arith.constant 0 : i32
    %c0_i32_1 = arith.constant 0 : i32
    return %c0_i32, %arg0, %c0_i32_0 : i32, i32, i32
  }
}

module attributes {stable_mosaic.version = 11 : i64} {
  func.func @_ln_proj_kernel(%arg0: i32, %arg1: memref<3x8x8xf32, #tpu.memory_space<vmem>>, %arg2: memref<8x8xbf16, #tpu.memory_space<vmem>>, %arg3: memref<3x8x8xbf16, #tpu.memory_space<vmem>>) attributes {dimension_semantics = [#tpu.dimension_semantics<parallel>], iteration_bounds = array<i64: 2>, scalar_prefetch = 0 : i64, scratch_operands = 0 : i64, tpu.core_type = #tpu.core_type<tc>, window_params = [{transform_indices = @transform_0, window_bounds = array<i64: 3, 8, 8>}, {pipeline_mode = #tpu.pipeline_mode<synchronous>, transform_indices = @transform_1, window_bounds = array<i64: 8, 8>}, {transform_indices = @transform_2, window_bounds = array<i64: 3, 8, 8>}]} {
    %c0 = arith.constant 0 : index
    %c0_0 = arith.constant 0 : index
    %c0_1 = arith.constant 0 : index
    %0 = vector.load %arg1[%c0, %c0_0, %c0_1] : memref<3x8x8xf32, #tpu.memory_space<vmem>>, vector<3x8x8xf32>
    %1 = arith.mulf %0, %0 : vector<3x8x8xf32>
    %cst = arith.constant dense<0.000000e+00> : vector<8x8xf32>
    %2 = vector.multi_reduction <add>, %1, %cst [0] : vector<3x8x8xf32> to vector<8x8xf32>
    %cst_2 = arith.constant dense<0.000000e+00> : vector<8xf32>
    %3 = vector.multi_reduction <add>, %2, %cst_2 [1] : vector<8x8xf32> to vector<8xf32>
    %4 = vector.shape_cast %3 : vector<8xf32> to vector<8x1xf32>
    %cst_3 = arith.constant 8.000000e+00 : f32
    %5 = vector.broadcast %cst_3 : f32 to vector<8x1xf32>
    %6 = arith.divf %4, %5 : vector<8x1xf32>
    %7 = math.sqrt %6 : vector<8x1xf32>
    %cst_4 = arith.constant 9.99999997E-7 : f32
    %8 = vector.broadcast %cst_4 : f32 to vector<8x1xf32>
    %9 = arith.addf %7, %8 : vector<8x1xf32>
    %cst_5 = arith.constant 1.000000e+00 : f32
    %10 = vector.broadcast %cst_5 : f32 to vector<8x1xf32>
    %11 = arith.divf %10, %9 : vector<8x1xf32>
    %12 = vector.shape_cast %11 : vector<8x1xf32> to vector<1x8x1xf32>
    %13 = vector.broadcast %12 : vector<1x8x1xf32> to vector<3x8x8xf32>
    %14 = arith.mulf %0, %13 : vector<3x8x8xf32>
    %15 = arith.truncf %14 : vector<3x8x8xf32> to vector<3x8x8xbf16>
    %16 = vector.shape_cast %15 : vector<3x8x8xbf16> to vector<24x8xbf16>
    %c0_6 = arith.constant 0 : index
    %c0_7 = arith.constant 0 : index
    %17 = vector.load %arg2[%c0_6, %c0_7] : memref<8x8xbf16, #tpu.memory_space<vmem>>, vector<8x8xbf16>
    %cst_8 = arith.constant dense<0.000000e+00> : vector<24x8xf32>
    %18 = tpu.matmul %16, %17, %cst_8 {dimension_numbers = #tpu.dot_dimension_numbers<[1], [0], [0], [1], [0, 0, 1, 1], [], []>} : vector<24x8xbf16>, vector<8x8xbf16>, vector<24x8xf32> -> vector<24x8xf32>
    %19 = vector.shape_cast %18 : vector<24x8xf32> to vector<3x8x8xf32>
    %20 = arith.truncf %19 : vector<3x8x8xf32> to vector<3x8x8xbf16>
    %c0_9 = arith.constant 0 : index
    %c0_10 = arith.constant 0 : index
    %c0_11 = arith.constant 0 : index
    %21 = vector.load %arg3[%c0_9, %c0_10, %c0_11] : memref<3x8x8xbf16, #tpu.memory_space<vmem>>, vector<3x8x8xbf16>
    tpu.vector_store %arg3[%c0_9, %c0_10, %c0_11], %20 {strides = array<i32>} : memref<3x8x8xbf16, #tpu.memory_space<vmem>>, vector<3x8x8xbf16>,
    return
  }
  func.func @transform_0(%arg0: i32) -> (i32, i32, i32) {
    %c0_i32 = arith.constant 0 : i32
    %c0_i32_0 = arith.constant 0 : i32
    %c0_i32_1 = arith.constant 0 : i32
    return %c0_i32, %arg0, %c0_i32_0 : i32, i32, i32
  }
  func.func @transform_1(%arg0: i32) -> (i32, i32) {
    %c0_i32 = arith.constant 0 : i32
    %c0_i32_0 = arith.constant 0 : i32
    %c0_i32_1 = arith.constant 0 : i32
    return %c0_i32, %c0_i32_0 : i32, i32
  }
  func.func @transform_2(%arg0: i32) -> (i32, i32, i32) {
    %c0_i32 = arith.constant 0 : i32
    %c0_i32_0 = arith.constant 0 : i32
    %c0_i32_1 = arith.constant 0 : i32
    return %c0_i32, %arg0, %c0_i32_0 : i32, i32, i32
  }
}

module attributes {stable_mosaic.version = 11 : i64} {
  func.func @_ln_proj_kernel(%arg0: i32, %arg1: memref<3x16x8xf32, #tpu.memory_space<vmem>>, %arg2: memref<8x16xbf16, #tpu.memory_space<vmem>>, %arg3: memref<3x16x8xbf16, #tpu.memory_space<vmem>>, %arg4: memref<3x16x8xbf16, #tpu.memory_space<vmem>>) attributes {dimension_semantics = [#tpu.dimension_semantics<parallel>], iteration_bounds = array<i64: 2>, scalar_prefetch = 0 : i64, scratch_operands = 0 : i64, tpu.core_type = #tpu.core_type<tc>, window_params = [{transform_indices = @transform_0, window_bounds = array<i64: 3, 16, 8>}, {pipeline_mode = #tpu.pipeline_mode<synchronous>, transform_indices = @transform_1, window_bounds = array<i64: 8, 16>}, {transform_indices = @transform_2, window_bounds = array<i64: 3, 16, 8>}, {transform_indices = @transform_3, window_bounds = array<i64: 3, 16, 8>}]} {
    %c0 = arith.constant 0 : index
    %c0_0 = arith.constant 0 : index
    %c0_1 = arith.constant 0 : index
    %0 = vector.load %arg1[%c0, %c0_0, %c0_1] : memref<3x16x8xf32, #tpu.memory_space<vmem>>, vector<3x16x8xf32>
    %1 = arith.mulf %0, %0 : vector<3x16x8xf32>
    %cst = arith.constant dense<0.000000e+00> : vector<16x8xf32>
    %2 = vector.multi_reduction <add>, %1, %cst [0] : vector<3x16x8xf32> to vector<16x8xf32>
    %cst_2 = arith.constant dense<0.000000e+00> : vector<16xf32>
    %3 = vector.multi_reduction <add>, %2, %cst_2 [1] : vector<16x8xf32> to vector<16xf32>
    %4 = vector.shape_cast %3 : vector<16xf32> to vector<16x1xf32>
    %cst_3 = arith.constant 8.000000e+00 : f32
    %5 = vector.broadcast %cst_3 : f32 to vector<16x1xf32>
    %6 = arith.divf %4, %5 : vector<16x1xf32>
    %7 = math.sqrt %6 : vector<16x1xf32>
    %cst_4 = arith.constant 9.99999997E-7 : f32
    %8 = vector.broadcast %cst_4 : f32 to vector<16x1xf32>
    %9 = arith.addf %7, %8 : vector<16x1xf32>
    %cst_5 = arith.constant 1.000000e+00 : f32
    %10 = vector.broadcast %cst_5 : f32 to vector<16x1xf32>
    %11 = arith.divf %10, %9 : vector<16x1xf32>
    %12 = vector.shape_cast %11 : vector<16x1xf32> to vector<1x16x1xf32>
    %13 = vector.broadcast %12 : vector<1x16x1xf32> to vector<3x16x8xf32>
    %14 = arith.mulf %0, %13 : vector<3x16x8xf32>
    %15 = arith.truncf %14 : vector<3x16x8xf32> to vector<3x16x8xbf16>
    %16 = vector.shape_cast %15 : vector<3x16x8xbf16> to vector<48x8xbf16>
    %c0_6 = arith.constant 0 : index
    %c0_7 = arith.constant 0 : index
    %17 = vector.load %arg2[%c0_6, %c0_7] : memref<8x16xbf16, #tpu.memory_space<vmem>>, vector<8x16xbf16>
    %cst_8 = arith.constant dense<0.000000e+00> : vector<48x16xf32>
    %18 = tpu.matmul %16, %17, %cst_8 {dimension_numbers = #tpu.dot_dimension_numbers<[1], [0], [0], [1], [0, 0, 1, 1], [], []>} : vector<48x8xbf16>, vector<8x16xbf16>, vector<48x16xf32> -> vector<48x16xf32>
    %19 = vector.extract_strided_slice %18 {offsets = [0, 0], sizes = [48, 8], strides = [1, 1]} : vector<48x16xf32> to vector<48x8xf32>
    %20 = vector.shape_cast %19 : vector<48x8xf32> to vector<3x16x8xf32>
    %21 = arith.truncf %20 : vector<3x16x8xf32> to vector<3x16x8xbf16>
    %c0_9 = arith.constant 0 : index
    %c0_10 = arith.constant 0 : index
    %c0_11 = arith.constant 0 : index
    %22 = vector.load %arg3[%c0_9, %c0_10, %c0_11] : memref<3x16x8xbf16, #tpu.memory_space<vmem>>, vector<3x16x8xbf16>
    tpu.vector_store %arg3[%c0_9, %c0_10, %c0_11], %21 {strides = array<i32>} : memref<3x16x8xbf16, #tpu.memory_space<vmem>>, vector<3x16x8xbf16>,
    %23 = vector.extract_strided_slice %18 {offsets = [0, 8], sizes = [48, 8], strides = [1, 1]} : vector<48x16xf32> to vector<48x8xf32>
    %24 = vector.shape_cast %23 : vector<48x8xf32> to vector<3x16x8xf32>
    %25 = arith.truncf %24 : vector<3x16x8xf32> to vector<3x16x8xbf16>
    %c0_12 = arith.constant 0 : index
    %c0_13 = arith.constant 0 : index
    %c0_14 = arith.constant 0 : index
    %26 = vector.load %arg4[%c0_12, %c0_13, %c0_14] : memref<3x16x8xbf16, #tpu.memory_space<vmem>>, vector<3x16x8xbf16>
    tpu.vector_store %arg4[%c0_12, %c0_13, %c0_14], %25 {strides = array<i32>} : memref<3x16x8xbf16, #tpu.memory_space<vmem>>, vector<3x16x8xbf16>,
    return
  }
  func.func @transform_0(%arg0: i32) -> (i32, i32, i32) {
    %c0_i32 = arith.constant 0 : i32
    %c0_i32_0 = arith.constant 0 : i32
    %c0_i32_1 = arith.constant 0 : i32
    return %c0_i32, %arg0, %c0_i32_0 : i32, i32, i32
  }
  func.func @transform_1(%arg0: i32) -> (i32, i32) {
    %c0_i32 = arith.constant 0 : i32
    %c0_i32_0 = arith.constant 0 : i32
    %c0_i32_1 = arith.constant 0 : i32
    return %c0_i32, %c0_i32_0 : i32, i32
  }
  func.func @transform_2(%arg0: i32) -> (i32, i32, i32) {
    %c0_i32 = arith.constant 0 : i32
    %c0_i32_0 = arith.constant 0 : i32
    %c0_i32_1 = arith.constant 0 : i32
    return %c0_i32, %arg0, %c0_i32_0 : i32, i32, i32
  }
  func.func @transform_3(%arg0: i32) -> (i32, i32, i32) {
    %c0_i32 = arith.constant 0 : i32
    %c0_i32_0 = arith.constant 0 : i32
    %c0_i32_1 = arith.constant 0 : i32
    return %c0_i32, %arg0, %c0_i32_0 : i32, i32, i32
  }
}

module attributes {stable_mosaic.version = 11 : i64} {
  func.func @_ln_mlp_residual_kernel(%arg0: i32, %arg1: memref<3x8x8xf32, #tpu.memory_space<vmem>>, %arg2: memref<8x32xbf16, #tpu.memory_space<vmem>>, %arg3: memref<32x32xbf16, #tpu.memory_space<vmem>>, %arg4: memref<32x8xbf16, #tpu.memory_space<vmem>>, %arg5: memref<3x8x8xf32, #tpu.memory_space<vmem>>) attributes {dimension_semantics = [#tpu.dimension_semantics<parallel>], iteration_bounds = array<i64: 2>, scalar_prefetch = 0 : i64, scratch_operands = 0 : i64, tpu.core_type = #tpu.core_type<tc>, window_params = [{transform_indices = @transform_0, window_bounds = array<i64: 3, 8, 8>}, {pipeline_mode = #tpu.pipeline_mode<synchronous>, transform_indices = @transform_1, window_bounds = array<i64: 8, 32>}, {pipeline_mode = #tpu.pipeline_mode<synchronous>, transform_indices = @transform_2, window_bounds = array<i64: 32, 32>}, {pipeline_mode = #tpu.pipeline_mode<synchronous>, transform_indices = @transform_3, window_bounds = array<i64: 32, 8>}, {transform_indices = @transform_4, window_bounds = array<i64: 3, 8, 8>}]} {
    %c0 = arith.constant 0 : index
    %c0_0 = arith.constant 0 : index
    %c0_1 = arith.constant 0 : index
    %0 = vector.load %arg1[%c0, %c0_0, %c0_1] : memref<3x8x8xf32, #tpu.memory_space<vmem>>, vector<3x8x8xf32>
    %1 = arith.mulf %0, %0 : vector<3x8x8xf32>
    %cst = arith.constant dense<0.000000e+00> : vector<8x8xf32>
    %2 = vector.multi_reduction <add>, %1, %cst [0] : vector<3x8x8xf32> to vector<8x8xf32>
    %cst_2 = arith.constant dense<0.000000e+00> : vector<8xf32>
    %3 = vector.multi_reduction <add>, %2, %cst_2 [1] : vector<8x8xf32> to vector<8xf32>
    %4 = vector.shape_cast %3 : vector<8xf32> to vector<8x1xf32>
    %cst_3 = arith.constant 8.000000e+00 : f32
    %5 = vector.broadcast %cst_3 : f32 to vector<8x1xf32>
    %6 = arith.divf %4, %5 : vector<8x1xf32>
    %7 = math.sqrt %6 : vector<8x1xf32>
    %cst_4 = arith.constant 9.99999997E-7 : f32
    %8 = vector.broadcast %cst_4 : f32 to vector<8x1xf32>
    %9 = arith.addf %7, %8 : vector<8x1xf32>
    %cst_5 = arith.constant 1.000000e+00 : f32
    %10 = vector.broadcast %cst_5 : f32 to vector<8x1xf32>
    %11 = arith.divf %10, %9 : vector<8x1xf32>
    %12 = vector.shape_cast %11 : vector<8x1xf32> to vector<1x8x1xf32>
    %13 = vector.broadcast %12 : vector<1x8x1xf32> to vector<3x8x8xf32>
    %14 = arith.mulf %0, %13 : vector<3x8x8xf32>
    %15 = arith.truncf %14 : vector<3x8x8xf32> to vector<3x8x8xbf16>
    %16 = vector.shape_cast %15 : vector<3x8x8xbf16> to vector<24x8xbf16>
    %c0_6 = arith.constant 0 : index
    %c0_7 = arith.constant 0 : index
    %17 = vector.load %arg2[%c0_6, %c0_7] : memref<8x32xbf16, #tpu.memory_space<vmem>>, vector<8x32xbf16>
    %cst_8 = arith.constant dense<0.000000e+00> : vector<24x32xf32>
    %18 = tpu.matmul %16, %17, %cst_8 {dimension_numbers = #tpu.dot_dimension_numbers<[1], [0], [0], [1], [0, 0, 1, 1], [], []>} : vector<24x8xbf16>, vector<8x32xbf16>, vector<24x32xf32> -> vector<24x32xf32>
    %19 = arith.truncf %18 : vector<24x32xf32> to vector<24x32xbf16>
    %c0_9 = arith.constant 0 : index
    %c0_10 = arith.constant 0 : index
    %20 = vector.load %arg3[%c0_9, %c0_10] : memref<32x32xbf16, #tpu.memory_space<vmem>>, vector<32x32xbf16>
    %cst_11 = arith.constant dense<0.000000e+00> : vector<24x32xf32>
    %21 = tpu.matmul %19, %20, %cst_11 {dimension_numbers = #tpu.dot_dimension_numbers<[1], [0], [0], [1], [0, 0, 1, 1], [], []>} : vector<24x32xbf16>, vector<32x32xbf16>, vector<24x32xf32> -> vector<24x32xf32>
    %22 = vector.shape_cast %18 : vector<24x32xf32> to vector<3x8x32xf32>
    %23 = vector.shape_cast %21 : vector<24x32xf32> to vector<3x8x32xf32>
    %24 = arith.mulf %23, %23 : vector<3x8x32xf32>
    %cst_12 = arith.constant dense<0.000000e+00> : vector<8x32xf32>
    %25 = vector.multi_reduction <add>, %24, %cst_12 [0] : vector<3x8x32xf32> to vector<8x32xf32>
    %26 = math.sqrt %25 : vector<8x32xf32>
    %cst_13 = arith.constant 9.99999997E-7 : f32
    %27 = vector.broadcast %cst_13 : f32 to vector<8x32xf32>
    %28 = arith.addf %26, %27 : vector<8x32xf32>
    %cst_14 = arith.constant 1.000000e+00 : f32
    %29 = vector.broadcast %cst_14 : f32 to vector<8x32xf32>
    %30 = arith.divf %29, %28 : vector<8x32xf32>
    %31 = vector.shape_cast %30 : vector<8x32xf32> to vector<1x8x32xf32>
    %32 = vector.broadcast %31 : vector<1x8x32xf32> to vector<3x8x32xf32>
    %33 = arith.mulf %23, %32 : vector<3x8x32xf32>
    %34 = arith.mulf %22, %33 : vector<3x8x32xf32>
    %cst_15 = arith.constant dense<0.000000e+00> : vector<8x32xf32>
    %35 = vector.multi_reduction <add>, %34, %cst_15 [0] : vector<3x8x32xf32> to vector<8x32xf32>
    %cst_16 = arith.constant 0.000000e+00 : f32
    %36 = vector.broadcast %cst_16 : f32 to vector<8x32xf32>
    %37 = arith.cmpf oge, %35, %36 : vector<8x32xf32>
    %cst_17 = arith.constant -8.000000e-01 : f32
    %38 = vector.broadcast %cst_17 : f32 to vector<8x32xf32>
    %39 = arith.mulf %38, %35 : vector<8x32xf32>
    %cst_18 = arith.constant 0.000000e+00 : f32
    %40 = vector.broadcast %cst_18 : f32 to vector<8x32xf32>
    %41 = arith.select %37, %40, %39 : vector<8x32xi1>, vector<8x32xf32>
    %42 = vector.shape_cast %41 : vector<8x32xf32> to vector<1x8x32xf32>
    %43 = vector.broadcast %42 : vector<1x8x32xf32> to vector<3x8x32xf32>
    %44 = arith.mulf %43, %33 : vector<3x8x32xf32>
    %45 = arith.addf %22, %44 : vector<3x8x32xf32>
    %46 = vector.shape_cast %45 : vector<3x8x32xf32> to vector<24x32xf32>
    %47 = arith.truncf %46 : vector<24x32xf32> to vector<24x32xbf16>
    %c0_19 = arith.constant 0 : index
    %c0_20 = arith.constant 0 : index
    %48 = vector.load %arg4[%c0_19, %c0_20] : memref<32x8xbf16, #tpu.memory_space<vmem>>, vector<32x8xbf16>
    %cst_21 = arith.constant dense<0.000000e+00> : vector<24x8xf32>
    %49 = tpu.matmul %47, %48, %cst_21 {dimension_numbers = #tpu.dot_dimension_numbers<[1], [0], [0], [1], [0, 0, 1, 1], [], []>} : vector<24x32xbf16>, vector<32x8xbf16>, vector<24x8xf32> -> vector<24x8xf32>
    %50 = vector.shape_cast %49 : vector<24x8xf32> to vector<3x8x8xf32>
    %51 = arith.addf %0, %50 : vector<3x8x8xf32>
    %c0_22 = arith.constant 0 : index
    %c0_23 = arith.constant 0 : index
    %c0_24 = arith.constant 0 : index
    %52 = vector.load %arg5[%c0_22, %c0_23, %c0_24] : memref<3x8x8xf32, #tpu.memory_space<vmem>>, vector<3x8x8xf32>
    tpu.vector_store %arg5[%c0_22, %c0_23, %c0_24], %51 {strides = array<i32>} : memref<3x8x8xf32, #tpu.memory_space<vmem>>, vector<3x8x8xf32>,
    return
  }
  func.func @transform_0(%arg0: i32) -> (i32, i32, i32) {
    %c0_i32 = arith.constant 0 : i32
    %c0_i32_0 = arith.constant 0 : i32
    %c0_i32_1 = arith.constant 0 : i32
    return %c0_i32, %arg0, %c0_i32_0 : i32, i32, i32
  }
  func.func @transform_1(%arg0: i32) -> (i32, i32) {
    %c0_i32 = arith.constant 0 : i32
    %c0_i32_0 = arith.constant 0 : i32
    %c0_i32_1 = arith.constant 0 : i32
    return %c0_i32, %c0_i32_0 : i32, i32
  }
  func.func @transform_2(%arg0: i32) -> (i32, i32) {
    %c0_i32 = arith.constant 0 : i32
    %c0_i32_0 = arith.constant 0 : i32
    %c0_i32_1 = arith.constant 0 : i32
    return %c0_i32, %c0_i32_0 : i32, i32
  }
  func.func @transform_3(%arg0: i32) -> (i32, i32) {
    %c0_i32 = arith.constant 0 : i32
    %c0_i32_0 = arith.constant 0 : i32
    %c0_i32_1 = arith.constant 0 : i32
    return %c0_i32, %c0_i32_0 : i32, i32
  }
  func.func @transform_4(%arg0: i32) -> (i32, i32, i32) {
    %c0_i32 = arith.constant 0 : i32
    %c0_i32_0 = arith.constant 0 : i32
    %c0_i32_1 = arith.constant 0 : i32
    return %c0_i32, %arg0, %c0_i32_0 : i32, i32, i32
  }
}

module attributes {stable_mosaic.version = 11 : i64} {
  func.func @_flash_vn_attn_kernel(%arg0: i32, %arg1: i32, %arg2: i32, %arg3: memref<3x1x8x8xbf16, #tpu.memory_space<vmem>>, %arg4: memref<3x1x16x8xbf16, #tpu.memory_space<vmem>>, %arg5: memref<3x1x16x8xbf16, #tpu.memory_space<vmem>>, %arg6: memref<3x1x8x8xbf16, #tpu.memory_space<vmem>>, %arg7: memref<2x8x128xf32, #tpu.memory_space<vmem>>, %arg8: memref<2x8x128xf32, #tpu.memory_space<vmem>>, %arg9: memref<3x8x8xf32, #tpu.memory_space<vmem>>) attributes {dimension_semantics = [#tpu.dimension_semantics<parallel>, #tpu.dimension_semantics<parallel>, #tpu.dimension_semantics<arbitrary>], iteration_bounds = array<i64: 2, 1, 1>, scalar_prefetch = 0 : i64, scratch_operands = 3 : i64, tpu.core_type = #tpu.core_type<tc>, window_params = [{transform_indices = @transform_0, window_bounds = array<i64: 3, 1, 8, 8>}, {transform_indices = @transform_1, window_bounds = array<i64: 3, 1, 16, 8>}, {transform_indices = @transform_2, window_bounds = array<i64: 3, 1, 16, 8>}, {transform_indices = @transform_3, window_bounds = array<i64: 3, 1, 8, 8>}]} {
    %c0_i32 = arith.constant 0 : i32
    %0 = arith.cmpi eq, %arg2, %c0_i32 : i32
    %1 = arith.extui %0 : i1 to i32
    %c0_i32_0 = arith.constant 0 : i32
    %2 = arith.cmpi ne, %1, %c0_i32_0 : i32
    scf.if %2 {
      %cst_86 = arith.constant -1.000000e+30 : f32
      %172 = vector.broadcast %cst_86 : f32 to vector<2x8x128xf32>
      %c0_87 = arith.constant 0 : index
      %c0_88 = arith.constant 0 : index
      %c0_89 = arith.constant 0 : index
      %173 = vector.load %arg7[%c0_87, %c0_88, %c0_89] : memref<2x8x128xf32, #tpu.memory_space<vmem>>, vector<2x8x128xf32>
      tpu.vector_store %arg7[%c0_87, %c0_88, %c0_89], %172 {strides = array<i32>} : memref<2x8x128xf32, #tpu.memory_space<vmem>>, vector<2x8x128xf32>,
      %cst_90 = arith.constant 0.000000e+00 : f32
      %174 = vector.broadcast %cst_90 : f32 to vector<2x8x128xf32>
      %c0_91 = arith.constant 0 : index
      %c0_92 = arith.constant 0 : index
      %c0_93 = arith.constant 0 : index
      %175 = vector.load %arg8[%c0_91, %c0_92, %c0_93] : memref<2x8x128xf32, #tpu.memory_space<vmem>>, vector<2x8x128xf32>
      tpu.vector_store %arg8[%c0_91, %c0_92, %c0_93], %174 {strides = array<i32>} : memref<2x8x128xf32, #tpu.memory_space<vmem>>, vector<2x8x128xf32>,
      %cst_94 = arith.constant 0.000000e+00 : f32
      %176 = vector.broadcast %cst_94 : f32 to vector<3x8x8xf32>
      %c0_95 = arith.constant 0 : index
      %c0_96 = arith.constant 0 : index
      %c0_97 = arith.constant 0 : index
      %177 = vector.load %arg9[%c0_95, %c0_96, %c0_97] : memref<3x8x8xf32, #tpu.memory_space<vmem>>, vector<3x8x8xf32>
      tpu.vector_store %arg9[%c0_95, %c0_96, %c0_97], %176 {strides = array<i32>} : memref<3x8x8xf32, #tpu.memory_space<vmem>>, vector<3x8x8xf32>,
    } else {
    }
    %c0 = arith.constant 0 : index
    %c0_1 = arith.constant 0 : index
    %c0_2 = arith.constant 0 : index
    %c0_3 = arith.constant 0 : index
    %3 = vector.load %arg3[%c0, %c0_1, %c0_2, %c0_3] : memref<3x1x8x8xbf16, #tpu.memory_space<vmem>>, vector<3x1x8x8xbf16>
    %4 = vector.shape_cast %3 : vector<3x1x8x8xbf16> to vector<3x8x8xbf16>
    %c0_4 = arith.constant 0 : index
    %c0_5 = arith.constant 0 : index
    %c0_6 = arith.constant 0 : index
    %c0_7 = arith.constant 0 : index
    %5 = vector.load %arg4[%c0_4, %c0_5, %c0_6, %c0_7] : memref<3x1x16x8xbf16, #tpu.memory_space<vmem>>, vector<3x1x16x8xbf16>
    %6 = vector.shape_cast %5 : vector<3x1x16x8xbf16> to vector<3x16x8xbf16>
    %c0_8 = arith.constant 0 : index
    %c0_9 = arith.constant 0 : index
    %c0_10 = arith.constant 0 : index
    %c0_11 = arith.constant 0 : index
    %7 = vector.load %arg5[%c0_8, %c0_9, %c0_10, %c0_11] : memref<3x1x16x8xbf16, #tpu.memory_space<vmem>>, vector<3x1x16x8xbf16>
    %8 = vector.shape_cast %7 : vector<3x1x16x8xbf16> to vector<3x16x8xbf16>
    %9 = vector.extract_strided_slice %4 {offsets = [0, 0, 0], sizes = [3, 8, 4], strides = [1, 1, 1]} : vector<3x8x8xbf16> to vector<3x8x4xbf16>
    %10 = vector.extract_strided_slice %6 {offsets = [0, 0, 0], sizes = [3, 16, 4], strides = [1, 1, 1]} : vector<3x16x8xbf16> to vector<3x16x4xbf16>
    %11 = vector.extract_strided_slice %8 {offsets = [0, 0, 0], sizes = [3, 16, 4], strides = [1, 1, 1]} : vector<3x16x8xbf16> to vector<3x16x4xbf16>
    %12 = vector.extract_strided_slice %9 {offsets = [0, 0, 0], sizes = [1, 8, 4], strides = [1, 1, 1]} : vector<3x8x4xbf16> to vector<1x8x4xbf16>
    %13 = vector.shape_cast %12 : vector<1x8x4xbf16> to vector<8x4xbf16>
    %14 = vector.extract_strided_slice %10 {offsets = [0, 0, 0], sizes = [1, 16, 4], strides = [1, 1, 1]} : vector<3x16x4xbf16> to vector<1x16x4xbf16>
    %15 = vector.shape_cast %14 : vector<1x16x4xbf16> to vector<16x4xbf16>
    %cst = arith.constant dense<0.000000e+00> : vector<8x16xf32>
    %16 = tpu.matmul %13, %15, %cst {dimension_numbers = #tpu.dot_dimension_numbers<[1], [1], [0], [0], [0, 0, 1, 0], [], []>} : vector<8x4xbf16>, vector<16x4xbf16>, vector<8x16xf32> -> vector<8x16xf32>
    %17 = vector.extract_strided_slice %9 {offsets = [1, 0, 0], sizes = [1, 8, 4], strides = [1, 1, 1]} : vector<3x8x4xbf16> to vector<1x8x4xbf16>
    %18 = vector.shape_cast %17 : vector<1x8x4xbf16> to vector<8x4xbf16>
    %19 = vector.extract_strided_slice %10 {offsets = [1, 0, 0], sizes = [1, 16, 4], strides = [1, 1, 1]} : vector<3x16x4xbf16> to vector<1x16x4xbf16>
    %20 = vector.shape_cast %19 : vector<1x16x4xbf16> to vector<16x4xbf16>
    %cst_12 = arith.constant dense<0.000000e+00> : vector<8x16xf32>
    %21 = tpu.matmul %18, %20, %cst_12 {dimension_numbers = #tpu.dot_dimension_numbers<[1], [1], [0], [0], [0, 0, 1, 0], [], []>} : vector<8x4xbf16>, vector<16x4xbf16>, vector<8x16xf32> -> vector<8x16xf32>
    %22 = arith.addf %16, %21 : vector<8x16xf32>
    %23 = vector.extract_strided_slice %9 {offsets = [2, 0, 0], sizes = [1, 8, 4], strides = [1, 1, 1]} : vector<3x8x4xbf16> to vector<1x8x4xbf16>
    %24 = vector.shape_cast %23 : vector<1x8x4xbf16> to vector<8x4xbf16>
    %25 = vector.extract_strided_slice %10 {offsets = [2, 0, 0], sizes = [1, 16, 4], strides = [1, 1, 1]} : vector<3x16x4xbf16> to vector<1x16x4xbf16>
    %26 = vector.shape_cast %25 : vector<1x16x4xbf16> to vector<16x4xbf16>
    %cst_13 = arith.constant dense<0.000000e+00> : vector<8x16xf32>
    %27 = tpu.matmul %24, %26, %cst_13 {dimension_numbers = #tpu.dot_dimension_numbers<[1], [1], [0], [0], [0, 0, 1, 0], [], []>} : vector<8x4xbf16>, vector<16x4xbf16>, vector<8x16xf32> -> vector<8x16xf32>
    %28 = arith.addf %22, %27 : vector<8x16xf32>
    %c0_14 = arith.constant 0 : index
    %c0_15 = arith.constant 0 : index
    %c0_16 = arith.constant 0 : index
    %29 = vector.load %arg7[%c0_14, %c0_15, %c0_16] : memref<2x8x128xf32, #tpu.memory_space<vmem>>, vector<1x8x128xf32>
    %30 = vector.shape_cast %29 : vector<1x8x128xf32> to vector<8x128xf32>
    %c0_17 = arith.constant 0 : index
    %c0_18 = arith.constant 0 : index
    %c0_19 = arith.constant 0 : index
    %31 = vector.load %arg8[%c0_17, %c0_18, %c0_19] : memref<2x8x128xf32, #tpu.memory_space<vmem>>, vector<1x8x128xf32>
    %32 = vector.shape_cast %31 : vector<1x8x128xf32> to vector<8x128xf32>
    %cst_20 = arith.constant dense<0xFF800000> : vector<8xf32>
    %33 = vector.multi_reduction <maximumf>, %28, %cst_20 [1] : vector<8x16xf32> to vector<8xf32>
    %34 = vector.shape_cast %33 : vector<8xf32> to vector<8x1xf32>
    %35 = vector.broadcast %34 : vector<8x1xf32> to vector<8x128xf32>
    %36 = arith.maximumf %30, %35 : vector<8x128xf32>
    %37 = arith.subf %30, %36 : vector<8x128xf32>
    %38 = math.exp %37 : vector<8x128xf32>
    %39 = vector.extract_strided_slice %36 {offsets = [0, 0], sizes = [8, 1], strides = [1, 1]} : vector<8x128xf32> to vector<8x1xf32>
    %40 = vector.broadcast %39 : vector<8x1xf32> to vector<8x16xf32>
    %41 = arith.subf %28, %40 : vector<8x16xf32>
    %42 = math.exp %41 : vector<8x16xf32>
    %43 = arith.mulf %38, %32 : vector<8x128xf32>
    %cst_21 = arith.constant dense<0.000000e+00> : vector<8xf32>
    %44 = vector.multi_reduction <add>, %42, %cst_21 [1] : vector<8x16xf32> to vector<8xf32>
    %45 = vector.shape_cast %44 : vector<8xf32> to vector<8x1xf32>
    %46 = vector.broadcast %45 : vector<8x1xf32> to vector<8x128xf32>
    %47 = arith.addf %43, %46 : vector<8x128xf32>
    %c0_22 = arith.constant 0 : index
    %c0_23 = arith.constant 0 : index
    %c0_24 = arith.constant 0 : index
    %48 = vector.load %arg8[%c0_22, %c0_23, %c0_24] : memref<2x8x128xf32, #tpu.memory_space<vmem>>, vector<1x8x128xf32>
    %49 = vector.shape_cast %48 : vector<1x8x128xf32> to vector<8x128xf32>
    %50 = vector.shape_cast %47 : vector<8x128xf32> to vector<1x8x128xf32>
    tpu.vector_store %arg8[%c0_22, %c0_23, %c0_24], %50 {strides = array<i32>} : memref<2x8x128xf32, #tpu.memory_space<vmem>>, vector<1x8x128xf32>,
    %c0_25 = arith.constant 0 : index
    %c0_26 = arith.constant 0 : index
    %c0_27 = arith.constant 0 : index
    %51 = vector.load %arg7[%c0_25, %c0_26, %c0_27] : memref<2x8x128xf32, #tpu.memory_space<vmem>>, vector<1x8x128xf32>
    %52 = vector.shape_cast %51 : vector<1x8x128xf32> to vector<8x128xf32>
    %53 = vector.shape_cast %36 : vector<8x128xf32> to vector<1x8x128xf32>
    tpu.vector_store %arg7[%c0_25, %c0_26, %c0_27], %53 {strides = array<i32>} : memref<2x8x128xf32, #tpu.memory_space<vmem>>, vector<1x8x128xf32>,
    %54 = vector.extract_strided_slice %38 {offsets = [0, 0], sizes = [8, 1], strides = [1, 1]} : vector<8x128xf32> to vector<8x1xf32>
    %55 = arith.truncf %42 : vector<8x16xf32> to vector<8x16xbf16>
    %c0_28 = arith.constant 0 : index
    %c0_29 = arith.constant 0 : index
    %c0_30 = arith.constant 0 : index
    %56 = vector.load %arg9[%c0_28, %c0_29, %c0_30] : memref<3x8x8xf32, #tpu.memory_space<vmem>>, vector<1x8x4xf32>
    %57 = vector.shape_cast %56 : vector<1x8x4xf32> to vector<8x4xf32>
    %58 = vector.broadcast %54 : vector<8x1xf32> to vector<8x4xf32>
    %59 = arith.mulf %58, %57 : vector<8x4xf32>
    %60 = vector.extract_strided_slice %11 {offsets = [0, 0, 0], sizes = [1, 16, 4], strides = [1, 1, 1]} : vector<3x16x4xbf16> to vector<1x16x4xbf16>
    %61 = vector.shape_cast %60 : vector<1x16x4xbf16> to vector<16x4xbf16>
    %cst_31 = arith.constant dense<0.000000e+00> : vector<8x4xf32>
    %62 = tpu.matmul %55, %61, %cst_31 {dimension_numbers = #tpu.dot_dimension_numbers<[1], [0], [0], [1], [0, 0, 1, 1], [], []>} : vector<8x16xbf16>, vector<16x4xbf16>, vector<8x4xf32> -> vector<8x4xf32>
    %63 = arith.addf %59, %62 : vector<8x4xf32>
    %c0_32 = arith.constant 0 : index
    %c0_33 = arith.constant 0 : index
    %c0_34 = arith.constant 0 : index
    %64 = vector.load %arg9[%c0_32, %c0_33, %c0_34] : memref<3x8x8xf32, #tpu.memory_space<vmem>>, vector<1x8x4xf32>
    %65 = vector.shape_cast %64 : vector<1x8x4xf32> to vector<8x4xf32>
    %66 = vector.shape_cast %63 : vector<8x4xf32> to vector<1x8x4xf32>
    tpu.vector_store %arg9[%c0_32, %c0_33, %c0_34], %66 {strides = array<i32>} : memref<3x8x8xf32, #tpu.memory_space<vmem>>, vector<1x8x4xf32>,
    %c1 = arith.constant 1 : index
    %c0_35 = arith.constant 0 : index
    %c0_36 = arith.constant 0 : index
    %67 = vector.load %arg9[%c1, %c0_35, %c0_36] : memref<3x8x8xf32, #tpu.memory_space<vmem>>, vector<1x8x4xf32>
    %68 = vector.shape_cast %67 : vector<1x8x4xf32> to vector<8x4xf32>
    %69 = vector.broadcast %54 : vector<8x1xf32> to vector<8x4xf32>
    %70 = arith.mulf %69, %68 : vector<8x4xf32>
    %71 = vector.extract_strided_slice %11 {offsets = [1, 0, 0], sizes = [1, 16, 4], strides = [1, 1, 1]} : vector<3x16x4xbf16> to vector<1x16x4xbf16>
    %72 = vector.shape_cast %71 : vector<1x16x4xbf16> to vector<16x4xbf16>
    %cst_37 = arith.constant dense<0.000000e+00> : vector<8x4xf32>
    %73 = tpu.matmul %55, %72, %cst_37 {dimension_numbers = #tpu.dot_dimension_numbers<[1], [0], [0], [1], [0, 0, 1, 1], [], []>} : vector<8x16xbf16>, vector<16x4xbf16>, vector<8x4xf32> -> vector<8x4xf32>
    %74 = arith.addf %70, %73 : vector<8x4xf32>
    %c1_38 = arith.constant 1 : index
    %c0_39 = arith.constant 0 : index
    %c0_40 = arith.constant 0 : index
    %75 = vector.load %arg9[%c1_38, %c0_39, %c0_40] : memref<3x8x8xf32, #tpu.memory_space<vmem>>, vector<1x8x4xf32>
    %76 = vector.shape_cast %75 : vector<1x8x4xf32> to vector<8x4xf32>
    %77 = vector.shape_cast %74 : vector<8x4xf32> to vector<1x8x4xf32>
    tpu.vector_store %arg9[%c1_38, %c0_39, %c0_40], %77 {strides = array<i32>} : memref<3x8x8xf32, #tpu.memory_space<vmem>>, vector<1x8x4xf32>,
    %c2 = arith.constant 2 : index
    %c0_41 = arith.constant 0 : index
    %c0_42 = arith.constant 0 : index
    %78 = vector.load %arg9[%c2, %c0_41, %c0_42] : memref<3x8x8xf32, #tpu.memory_space<vmem>>, vector<1x8x4xf32>
    %79 = vector.shape_cast %78 : vector<1x8x4xf32> to vector<8x4xf32>
    %80 = vector.broadcast %54 : vector<8x1xf32> to vector<8x4xf32>
    %81 = arith.mulf %80, %79 : vector<8x4xf32>
    %82 = vector.extract_strided_slice %11 {offsets = [2, 0, 0], sizes = [1, 16, 4], strides = [1, 1, 1]} : vector<3x16x4xbf16> to vector<1x16x4xbf16>
    %83 = vector.shape_cast %82 : vector<1x16x4xbf16> to vector<16x4xbf16>
    %cst_43 = arith.constant dense<0.000000e+00> : vector<8x4xf32>
    %84 = tpu.matmul %55, %83, %cst_43 {dimension_numbers = #tpu.dot_dimension_numbers<[1], [0], [0], [1], [0, 0, 1, 1], [], []>} : vector<8x16xbf16>, vector<16x4xbf16>, vector<8x4xf32> -> vector<8x4xf32>
    %85 = arith.addf %81, %84 : vector<8x4xf32>
    %c2_44 = arith.constant 2 : index
    %c0_45 = arith.constant 0 : index
    %c0_46 = arith.constant 0 : index
    %86 = vector.load %arg9[%c2_44, %c0_45, %c0_46] : memref<3x8x8xf32, #tpu.memory_space<vmem>>, vector<1x8x4xf32>
    %87 = vector.shape_cast %86 : vector<1x8x4xf32> to vector<8x4xf32>
    %88 = vector.shape_cast %85 : vector<8x4xf32> to vector<1x8x4xf32>
    tpu.vector_store %arg9[%c2_44, %c0_45, %c0_46], %88 {strides = array<i32>} : memref<3x8x8xf32, #tpu.memory_space<vmem>>, vector<1x8x4xf32>,
    %89 = vector.extract_strided_slice %4 {offsets = [0, 0, 4], sizes = [3, 8, 4], strides = [1, 1, 1]} : vector<3x8x8xbf16> to vector<3x8x4xbf16>
    %90 = vector.extract_strided_slice %6 {offsets = [0, 0, 4], sizes = [3, 16, 4], strides = [1, 1, 1]} : vector<3x16x8xbf16> to vector<3x16x4xbf16>
    %91 = vector.extract_strided_slice %8 {offsets = [0, 0, 4], sizes = [3, 16, 4], strides = [1, 1, 1]} : vector<3x16x8xbf16> to vector<3x16x4xbf16>
    %92 = vector.extract_strided_slice %89 {offsets = [0, 0, 0], sizes = [1, 8, 4], strides = [1, 1, 1]} : vector<3x8x4xbf16> to vector<1x8x4xbf16>
    %93 = vector.shape_cast %92 : vector<1x8x4xbf16> to vector<8x4xbf16>
    %94 = vector.extract_strided_slice %90 {offsets = [0, 0, 0], sizes = [1, 16, 4], strides = [1, 1, 1]} : vector<3x16x4xbf16> to vector<1x16x4xbf16>
    %95 = vector.shape_cast %94 : vector<1x16x4xbf16> to vector<16x4xbf16>
    %cst_47 = arith.constant dense<0.000000e+00> : vector<8x16xf32>
    %96 = tpu.matmul %93, %95, %cst_47 {dimension_numbers = #tpu.dot_dimension_numbers<[1], [1], [0], [0], [0, 0, 1, 0], [], []>} : vector<8x4xbf16>, vector<16x4xbf16>, vector<8x16xf32> -> vector<8x16xf32>
    %97 = vector.extract_strided_slice %89 {offsets = [1, 0, 0], sizes = [1, 8, 4], strides = [1, 1, 1]} : vector<3x8x4xbf16> to vector<1x8x4xbf16>
    %98 = vector.shape_cast %97 : vector<1x8x4xbf16> to vector<8x4xbf16>
    %99 = vector.extract_strided_slice %90 {offsets = [1, 0, 0], sizes = [1, 16, 4], strides = [1, 1, 1]} : vector<3x16x4xbf16> to vector<1x16x4xbf16>
    %100 = vector.shape_cast %99 : vector<1x16x4xbf16> to vector<16x4xbf16>
    %cst_48 = arith.constant dense<0.000000e+00> : vector<8x16xf32>
    %101 = tpu.matmul %98, %100, %cst_48 {dimension_numbers = #tpu.dot_dimension_numbers<[1], [1], [0], [0], [0, 0, 1, 0], [], []>} : vector<8x4xbf16>, vector<16x4xbf16>, vector<8x16xf32> -> vector<8x16xf32>
    %102 = arith.addf %96, %101 : vector<8x16xf32>
    %103 = vector.extract_strided_slice %89 {offsets = [2, 0, 0], sizes = [1, 8, 4], strides = [1, 1, 1]} : vector<3x8x4xbf16> to vector<1x8x4xbf16>
    %104 = vector.shape_cast %103 : vector<1x8x4xbf16> to vector<8x4xbf16>
    %105 = vector.extract_strided_slice %90 {offsets = [2, 0, 0], sizes = [1, 16, 4], strides = [1, 1, 1]} : vector<3x16x4xbf16> to vector<1x16x4xbf16>
    %106 = vector.shape_cast %105 : vector<1x16x4xbf16> to vector<16x4xbf16>
    %cst_49 = arith.constant dense<0.000000e+00> : vector<8x16xf32>
    %107 = tpu.matmul %104, %106, %cst_49 {dimension_numbers = #tpu.dot_dimension_numbers<[1], [1], [0], [0], [0, 0, 1, 0], [], []>} : vector<8x4xbf16>, vector<16x4xbf16>, vector<8x16xf32> -> vector<8x16xf32>
    %108 = arith.addf %102, %107 : vector<8x16xf32>
    %c1_50 = arith.constant 1 : index
    %c0_51 = arith.constant 0 : index
    %c0_52 = arith.constant 0 : index
    %109 = vector.load %arg7[%c1_50, %c0_51, %c0_52] : memref<2x8x128xf32, #tpu.memory_space<vmem>>, vector<1x8x128xf32>
    %110 = vector.shape_cast %109 : vector<1x8x128xf32> to vector<8x128xf32>
    %c1_53 = arith.constant 1 : index
    %c0_54 = arith.constant 0 : index
    %c0_55 = arith.constant 0 : index
    %111 = vector.load %arg8[%c1_53, %c0_54, %c0_55] : memref<2x8x128xf32, #tpu.memory_space<vmem>>, vector<1x8x128xf32>
    %112 = vector.shape_cast %111 : vector<1x8x128xf32> to vector<8x128xf32>
    %cst_56 = arith.constant dense<0xFF800000> : vector<8xf32>
    %113 = vector.multi_reduction <maximumf>, %108, %cst_56 [1] : vector<8x16xf32> to vector<8xf32>
    %114 = vector.shape_cast %113 : vector<8xf32> to vector<8x1xf32>
    %115 = vector.broadcast %114 : vector<8x1xf32> to vector<8x128xf32>
    %116 = arith.maximumf %110, %115 : vector<8x128xf32>
    %117 = arith.subf %110, %116 : vector<8x128xf32>
    %118 = math.exp %117 : vector<8x128xf32>
    %119 = vector.extract_strided_slice %116 {offsets = [0, 0], sizes = [8, 1], strides = [1, 1]} : vector<8x128xf32> to vector<8x1xf32>
    %120 = vector.broadcast %119 : vector<8x1xf32> to vector<8x16xf32>
    %121 = arith.subf %108, %120 : vector<8x16xf32>
    %122 = math.exp %121 : vector<8x16xf32>
    %123 = arith.mulf %118, %112 : vector<8x128xf32>
    %cst_57 = arith.constant dense<0.000000e+00> : vector<8xf32>
    %124 = vector.multi_reduction <add>, %122, %cst_57 [1] : vector<8x16xf32> to vector<8xf32>
    %125 = vector.shape_cast %124 : vector<8xf32> to vector<8x1xf32>
    %126 = vector.broadcast %125 : vector<8x1xf32> to vector<8x128xf32>
    %127 = arith.addf %123, %126 : vector<8x128xf32>
    %c1_58 = arith.constant 1 : index
    %c0_59 = arith.constant 0 : index
    %c0_60 = arith.constant 0 : index
    %128 = vector.load %arg8[%c1_58, %c0_59, %c0_60] : memref<2x8x128xf32, #tpu.memory_space<vmem>>, vector<1x8x128xf32>
    %129 = vector.shape_cast %128 : vector<1x8x128xf32> to vector<8x128xf32>
    %130 = vector.shape_cast %127 : vector<8x128xf32> to vector<1x8x128xf32>
    tpu.vector_store %arg8[%c1_58, %c0_59, %c0_60], %130 {strides = array<i32>} : memref<2x8x128xf32, #tpu.memory_space<vmem>>, vector<1x8x128xf32>,
    %c1_61 = arith.constant 1 : index
    %c0_62 = arith.constant 0 : index
    %c0_63 = arith.constant 0 : index
    %131 = vector.load %arg7[%c1_61, %c0_62, %c0_63] : memref<2x8x128xf32, #tpu.memory_space<vmem>>, vector<1x8x128xf32>
    %132 = vector.shape_cast %131 : vector<1x8x128xf32> to vector<8x128xf32>
    %133 = vector.shape_cast %116 : vector<8x128xf32> to vector<1x8x128xf32>
    tpu.vector_store %arg7[%c1_61, %c0_62, %c0_63], %133 {strides = array<i32>} : memref<2x8x128xf32, #tpu.memory_space<vmem>>, vector<1x8x128xf32>,
    %134 = vector.extract_strided_slice %118 {offsets = [0, 0], sizes = [8, 1], strides = [1, 1]} : vector<8x128xf32> to vector<8x1xf32>
    %135 = arith.truncf %122 : vector<8x16xf32> to vector<8x16xbf16>
    %c0_64 = arith.constant 0 : index
    %c0_65 = arith.constant 0 : index
    %c4 = arith.constant 4 : index
    %136 = vector.load %arg9[%c0_64, %c0_65, %c4] : memref<3x8x8xf32, #tpu.memory_space<vmem>>, vector<1x8x4xf32>
    %137 = vector.shape_cast %136 : vector<1x8x4xf32> to vector<8x4xf32>
    %138 = vector.broadcast %134 : vector<8x1xf32> to vector<8x4xf32>
    %139 = arith.mulf %138, %137 : vector<8x4xf32>
    %140 = vector.extract_strided_slice %91 {offsets = [0, 0, 0], sizes = [1, 16, 4], strides = [1, 1, 1]} : vector<3x16x4xbf16> to vector<1x16x4xbf16>
    %141 = vector.shape_cast %140 : vector<1x16x4xbf16> to vector<16x4xbf16>
    %cst_66 = arith.constant dense<0.000000e+00> : vector<8x4xf32>
    %142 = tpu.matmul %135, %141, %cst_66 {dimension_numbers = #tpu.dot_dimension_numbers<[1], [0], [0], [1], [0, 0, 1, 1], [], []>} : vector<8x16xbf16>, vector<16x4xbf16>, vector<8x4xf32> -> vector<8x4xf32>
    %143 = arith.addf %139, %142 : vector<8x4xf32>
    %c0_67 = arith.constant 0 : index
    %c0_68 = arith.constant 0 : index
    %c4_69 = arith.constant 4 : index
    %144 = vector.load %arg9[%c0_67, %c0_68, %c4_69] : memref<3x8x8xf32, #tpu.memory_space<vmem>>, vector<1x8x4xf32>
    %145 = vector.shape_cast %144 : vector<1x8x4xf32> to vector<8x4xf32>
    %146 = vector.shape_cast %143 : vector<8x4xf32> to vector<1x8x4xf32>
    tpu.vector_store %arg9[%c0_67, %c0_68, %c4_69], %146 {strides = array<i32>} : memref<3x8x8xf32, #tpu.memory_space<vmem>>, vector<1x8x4xf32>,
    %c1_70 = arith.constant 1 : index
    %c0_71 = arith.constant 0 : index
    %c4_72 = arith.constant 4 : index
    %147 = vector.load %arg9[%c1_70, %c0_71, %c4_72] : memref<3x8x8xf32, #tpu.memory_space<vmem>>, vector<1x8x4xf32>
    %148 = vector.shape_cast %147 : vector<1x8x4xf32> to vector<8x4xf32>
    %149 = vector.broadcast %134 : vector<8x1xf32> to vector<8x4xf32>
    %150 = arith.mulf %149, %148 : vector<8x4xf32>
    %151 = vector.extract_strided_slice %91 {offsets = [1, 0, 0], sizes = [1, 16, 4], strides = [1, 1, 1]} : vector<3x16x4xbf16> to vector<1x16x4xbf16>
    %152 = vector.shape_cast %151 : vector<1x16x4xbf16> to vector<16x4xbf16>
    %cst_73 = arith.constant dense<0.000000e+00> : vector<8x4xf32>
    %153 = tpu.matmul %135, %152, %cst_73 {dimension_numbers = #tpu.dot_dimension_numbers<[1], [0], [0], [1], [0, 0, 1, 1], [], []>} : vector<8x16xbf16>, vector<16x4xbf16>, vector<8x4xf32> -> vector<8x4xf32>
    %154 = arith.addf %150, %153 : vector<8x4xf32>
    %c1_74 = arith.constant 1 : index
    %c0_75 = arith.constant 0 : index
    %c4_76 = arith.constant 4 : index
    %155 = vector.load %arg9[%c1_74, %c0_75, %c4_76] : memref<3x8x8xf32, #tpu.memory_space<vmem>>, vector<1x8x4xf32>
    %156 = vector.shape_cast %155 : vector<1x8x4xf32> to vector<8x4xf32>
    %157 = vector.shape_cast %154 : vector<8x4xf32> to vector<1x8x4xf32>
    tpu.vector_store %arg9[%c1_74, %c0_75, %c4_76], %157 {strides = array<i32>} : memref<3x8x8xf32, #tpu.memory_space<vmem>>, vector<1x8x4xf32>,
    %c2_77 = arith.constant 2 : index
    %c0_78 = arith.constant 0 : index
    %c4_79 = arith.constant 4 : index
    %158 = vector.load %arg9[%c2_77, %c0_78, %c4_79] : memref<3x8x8xf32, #tpu.memory_space<vmem>>, vector<1x8x4xf32>
    %159 = vector.shape_cast %158 : vector<1x8x4xf32> to vector<8x4xf32>
    %160 = vector.broadcast %134 : vector<8x1xf32> to vector<8x4xf32>
    %161 = arith.mulf %160, %159 : vector<8x4xf32>
    %162 = vector.extract_strided_slice %91 {offsets = [2, 0, 0], sizes = [1, 16, 4], strides = [1, 1, 1]} : vector<3x16x4xbf16> to vector<1x16x4xbf16>
    %163 = vector.shape_cast %162 : vector<1x16x4xbf16> to vector<16x4xbf16>
    %cst_80 = arith.constant dense<0.000000e+00> : vector<8x4xf32>
    %164 = tpu.matmul %135, %163, %cst_80 {dimension_numbers = #tpu.dot_dimension_numbers<[1], [0], [0], [1], [0, 0, 1, 1], [], []>} : vector<8x16xbf16>, vector<16x4xbf16>, vector<8x4xf32> -> vector<8x4xf32>
    %165 = arith.addf %161, %164 : vector<8x4xf32>
    %c2_81 = arith.constant 2 : index
    %c0_82 = arith.constant 0 : index
    %c4_83 = arith.constant 4 : index
    %166 = vector.load %arg9[%c2_81, %c0_82, %c4_83] : memref<3x8x8xf32, #tpu.memory_space<vmem>>, vector<1x8x4xf32>
    %167 = vector.shape_cast %166 : vector<1x8x4xf32> to vector<8x4xf32>
    %168 = vector.shape_cast %165 : vector<8x4xf32> to vector<1x8x4xf32>
    tpu.vector_store %arg9[%c2_81, %c0_82, %c4_83], %168 {strides = array<i32>} : memref<3x8x8xf32, #tpu.memory_space<vmem>>, vector<1x8x4xf32>,
    %c0_i32_84 = arith.constant 0 : i32
    %169 = arith.cmpi eq, %arg2, %c0_i32_84 : i32
    %170 = arith.extui %169 : i1 to i32
    %c0_i32_85 = arith.constant 0 : i32
    %171 = arith.cmpi ne, %170, %c0_i32_85 : i32
    scf.if %171 {
      %c0_86 = arith.constant 0 : index
      %c0_87 = arith.constant 0 : index
      %c0_88 = arith.constant 0 : index
      %172 = vector.load %arg8[%c0_86, %c0_87, %c0_88] : memref<2x8x128xf32, #tpu.memory_space<vmem>>, vector<1x8x128xf32>
      %173 = vector.shape_cast %172 : vector<1x8x128xf32> to vector<8x128xf32>
      %174 = vector.extract_strided_slice %173 {offsets = [0, 0], sizes = [8, 1], strides = [1, 1]} : vector<8x128xf32> to vector<8x1xf32>
      %175 = tpu.reciprocal %174 {approx = true} : vector<8x1xf32> -> vector<8x1xf32>
      %176 = vector.shape_cast %175 : vector<8x1xf32> to vector<8x1xf32>
      %177 = vector.broadcast %176 : vector<8x1xf32> to vector<8x4xf32>
      %c1_89 = arith.constant 1 : index
      %c0_90 = arith.constant 0 : index
      %c0_91 = arith.constant 0 : index
      %178 = vector.load %arg8[%c1_89, %c0_90, %c0_91] : memref<2x8x128xf32, #tpu.memory_space<vmem>>, vector<1x8x128xf32>
      %179 = vector.shape_cast %178 : vector<1x8x128xf32> to vector<8x128xf32>
      %180 = vector.extract_strided_slice %179 {offsets = [0, 0], sizes = [8, 1], strides = [1, 1]} : vector<8x128xf32> to vector<8x1xf32>
      %181 = tpu.reciprocal %180 {approx = true} : vector<8x1xf32> -> vector<8x1xf32>
      %182 = vector.shape_cast %181 : vector<8x1xf32> to vector<8x1xf32>
      %183 = vector.broadcast %182 : vector<8x1xf32> to vector<8x4xf32>
      %184 = tpu.concatenate %177, %183 in 1 : vector<8x4xf32>, vector<8x4xf32> -> vector<8x8xf32>
      %c0_92 = arith.constant 0 : index
      %c0_93 = arith.constant 0 : index
      %c0_94 = arith.constant 0 : index
      %185 = vector.load %arg9[%c0_92, %c0_93, %c0_94] : memref<3x8x8xf32, #tpu.memory_space<vmem>>, vector<3x8x8xf32>
      %186 = vector.shape_cast %184 : vector<8x8xf32> to vector<1x8x8xf32>
      %187 = vector.broadcast %186 : vector<1x8x8xf32> to vector<3x8x8xf32>
      %188 = arith.mulf %185, %187 : vector<3x8x8xf32>
      %189 = vector.shape_cast %188 : vector<3x8x8xf32> to vector<3x1x8x8xf32>
      %190 = arith.truncf %189 : vector<3x1x8x8xf32> to vector<3x1x8x8xbf16>
      %c0_95 = arith.constant 0 : index
      %c0_96 = arith.constant 0 : index
      %c0_97 = arith.constant 0 : index
      %c0_98 = arith.constant 0 : index
      %191 = vector.load %arg6[%c0_95, %c0_96, %c0_97, %c0_98] : memref<3x1x8x8xbf16, #tpu.memory_space<vmem>>, vector<3x1x8x8xbf16>
      tpu.vector_store %arg6[%c0_95, %c0_96, %c0_97, %c0_98], %190 {strides = array<i32>} : memref<3x1x8x8xbf16, #tpu.memory_space<vmem>>, vector<3x1x8x8xbf16>,
    } else {
    }
    return
  }
  func.func @transform_0(%arg0: i32, %arg1: i32, %arg2: i32) -> (i32, i32, i32, i32) {
    %c0_i32 = arith.constant 0 : i32
    %c0_i32_0 = arith.constant 0 : i32
    %c0_i32_1 = arith.constant 0 : i32
    return %c0_i32, %arg0, %arg1, %c0_i32_0 : i32, i32, i32, i32
  }
  func.func @transform_1(%arg0: i32, %arg1: i32, %arg2: i32) -> (i32, i32, i32, i32) {
    %c0_i32 = arith.constant 0 : i32
    %c0_i32_0 = arith.constant 0 : i32
    %c0_i32_1 = arith.constant 0 : i32
    return %c0_i32, %arg0, %arg2, %c0_i32_0 : i32, i32, i32, i32
  }
  func.func @transform_2(%arg0: i32, %arg1: i32, %arg2: i32) -> (i32, i32, i32, i32) {
    %c0_i32 = arith.constant 0 : i32
    %c0_i32_0 = arith.constant 0 : i32
    %c0_i32_1 = arith.constant 0 : i32
    return %c0_i32, %arg0, %arg2, %c0_i32_0 : i32, i32, i32, i32
  }
  func.func @transform_3(%arg0: i32, %arg1: i32, %arg2: i32) -> (i32, i32, i32, i32) {
    %c0_i32 = arith.constant 0 : i32
    %c0_i32_0 = arith.constant 0 : i32
    %c0_i32_1 = arith.constant 0 : i32
    return %c0_i32, %arg0, %arg1, %c0_i32_0 : i32, i32, i32, i32
  }
}

</mosaic_0001>

<llo_original>
// kernel: vec_cross_attn_block_forward.9
$region0: #{vec_cross_attn_block_forward.9}
  #allocation0 [shape = 'u32[]', space=smem, size = 0x4, offset = 0x4, fixed_abs, tag = 'smem constant byte address 0x4 - core index']
  #allocation1 [shape = 'u32[72,128]{1,0:T(1,128)}', space=vmem, size = 0x9000, scoped, tag = 'internal scratch']
  #allocation2 [shape = 'f32[2,8,128]{2,1,0:T(8,128)}', space=vmem, size = 0x2000, scoped, tag = 'scratch operand']
  #allocation3 [shape = 'f32[2,8,128]{2,1,0:T(8,128)}', space=vmem, size = 0x2000, scoped, tag = 'scratch operand']
  #allocation4 [shape = 'f32[3,8,8]{2,1,0:T(8,128)}', space=vmem, size = 0x3000, scoped, tag = 'scratch operand']
  %s0 = inlined_call_operand.vmem [shape: bf16[3,2,8,8], index: 0, kind: input, shape index: {}]
  %s1 = inlined_call_operand.vmem [shape: bf16[3,2,8,8], index: 1, kind: input, shape index: {}]
  %s2 = inlined_call_operand.vmem [shape: bf16[3,2,8,8], index: 2, kind: input, shape index: {}]
  %s3 = inlined_call_operand.vmem [shape: bf16[3,2,8,8], index: 3, kind: output, shape index: {}]
  %s4 = sld [smem:[#allocation0]]
  $region213: #{vec_cross_attn_block_forward.9} parent=0
    _
  %s6 = ssub.s32 1, %s4
  %s7 = scalar_select 0, %s6, %s4
  $region1: #{vec_cross_attn_block_forward.9} parent=0
    #allocation5 [shape = 'u8[12288]{0}', space=vmem, size = 0x3000, scoped, tag = 'input window, operand 0']
    #allocation6 [shape = 'u8[12288]{0}', space=vmem, size = 0x3000, scoped, tag = 'input window, operand 1']
    #allocation7 [shape = 'u8[12288]{0}', space=vmem, size = 0x3000, scoped, tag = 'input window, operand 2']
    #allocation8 [shape = 'u8[12288]{0}', space=vmem, size = 0x3000, scoped, tag = 'output window, operand 0']
    loop: start=0, step=1, limit=4
    $region2: #{vec_cross_attn_block_forward.9} parent=1 // loop_pre_header
      _
    $region3: #{vec_cross_attn_block_forward.9} parent=1 // loop_header
      %s9 = sphi 0, %s13
      %p10 = scmp.ge.s32.totalorder %s9, 4
      %s16 = sphi 0, %s35
      %s17 = sphi 0, %s31
      %s18 = sphi 0, %s27
      %s19 = sphi 0, %s16
      %s20 = sphi 0, %s17
      %s21 = sphi 0, %s18
      %s22 = sphi 0, %s19
      %s23 = sphi 0, %s20
      %s24 = sphi 0, %s21
      %s40 = sphi 0, %s42
      %s43 = sphi 0, %s40
      %s44 = sphi 0, %s43
      %s60 = sphi 0, %s44
      %s68 = sphi 0, %s70
      %s71 = sphi 0, %s68
      %s72 = sphi 0, %s71
      %s88 = sphi 0, %s72
      %s96 = sphi 0, %s98
      %s99 = sphi 0, %s96
      %s100 = sphi 0, %s99
      %s116 = sphi 0, %s100
      %s124 = sphi 0, %s126
      %s127 = sphi 0, %s124
      %s128 = sphi 0, %s127
      %s144 = sphi 0, %s128
    $region4: #{vec_cross_attn_block_forward.9} parent=1 // loop_header_branch
      %12 = sbr.rel (%p10) target = $region8
    $region5: #{vec_cross_attn_block_forward.9} parent=1 // loop_body
      %s14 = ssub.s32 %s9, 1
      %s15 = ssub.s32 %s9, 2
      %s25 = sadd.s32 1, %s18
      %p26 = scmp.ge.s32.totalorder %s25, 1
      %s27 = scalar_select %p26, 0, %s25
      %s28 = sadd.s32 1, %s17
      %s29 = scalar_select %p26, %s28, %s17
      %p30 = scmp.ge.s32.totalorder %s29, 1
      %s31 = scalar_select %p30, 0, %s29
      %s32 = sadd.s32 1, %s16
      %s33 = scalar_select %p30, %s32, %s16
      %p34 = scmp.ge.s32.totalorder %s33, 2
      %s35 = scalar_select %p34, 0, %s33
      %s36 = ssub.s32 %s16, %s35
      %s37 = ssub.s32 %s17, %s31
      %s38 = sor.u32 %s36, %s37
      %p39 = scmp.eq.s32.totalorder %s38, 0
      %s41 = sadd.s32 %s40, 1
      %s42 = scalar_select %p39, %s40, %s41
      %p45 = pneg %p39
      %p46 = scmp.eq.s32.totalorder %s9, 1
      %p47 = por %p45, %p46
      %p48 = scmp.ne.s32.totalorder %s40, %s43
      %p49 = scmp.eq.s32.totalorder %s9, 0
      %p50 = por %p48, %p49
      %p51 = scmp.ne.s32.totalorder %s40, %s43
      %p52 = scmp.eq.s32.totalorder %s14, 1
      %p53 = por %p51, %p52
      %p54 = scmp.ne.s32.totalorder %s43, %s44
      %p55 = scmp.eq.s32.totalorder %s14, 0
      %p56 = por %p54, %p55
      %p57 = scmp.ne.s32.totalorder %s43, %s44
      %p58 = scmp.eq.s32.totalorder %s15, 1
      %p59 = por %p57, %p58
      %p61 = scmp.ne.s32.totalorder %s44, %s60
      %p62 = scmp.eq.s32.totalorder %s15, 0
      %p63 = por %p61, %p62
      %s64 = ssub.s32 %s16, %s35
      %s65 = ssub.s32 %s18, %s27
      %s66 = sor.u32 %s64, %s65
      %p67 = scmp.eq.s32.totalorder %s66, 0
      %s69 = sadd.s32 %s68, 1
      %s70 = scalar_select %p67, %s68, %s69
      %p73 = pneg %p67
      %p74 = scmp.eq.s32.totalorder %s9, 1
      %p75 = por %p73, %p74
      %p76 = scmp.ne.s32.totalorder %s68, %s71
      %p77 = scmp.eq.s32.totalorder %s9, 0
      %p78 = por %p76, %p77
      %p79 = scmp.ne.s32.totalorder %s68, %s71
      %p80 = scmp.eq.s32.totalorder %s14, 1
      %p81 = por %p79, %p80
      %p82 = scmp.ne.s32.totalorder %s71, %s72
      %p83 = scmp.eq.s32.totalorder %s14, 0
      %p84 = por %p82, %p83
      %p85 = scmp.ne.s32.totalorder %s71, %s72
      %p86 = scmp.eq.s32.totalorder %s15, 1
      %p87 = por %p85, %p86
      %p89 = scmp.ne.s32.totalorder %s72, %s88
      %p90 = scmp.eq.s32.totalorder %s15, 0
      %p91 = por %p89, %p90
      %s92 = ssub.s32 %s16, %s35
      %s93 = ssub.s32 %s18, %s27
      %s94 = sor.u32 %s92, %s93
      %p95 = scmp.eq.s32.totalorder %s94, 0
      %s97 = sadd.s32 %s96, 1
      %s98 = scalar_select %p95, %s96, %s97
      %p101 = pneg %p95
      %p102 = scmp.eq.s32.totalorder %s9, 1
      %p103 = por %p101, %p102
      %p104 = scmp.ne.s32.totalorder %s96, %s99
      %p105 = scmp.eq.s32.totalorder %s9, 0
      %p106 = por %p104, %p105
      %p107 = scmp.ne.s32.totalorder %s96, %s99
      %p108 = scmp.eq.s32.totalorder %s14, 1
      %p109 = por %p107, %p108
      %p110 = scmp.ne.s32.totalorder %s99, %s100
      %p111 = scmp.eq.s32.totalorder %s14, 0
      %p112 = por %p110, %p111
      %p113 = scmp.ne.s32.totalorder %s99, %s100
      %p114 = scmp.eq.s32.totalorder %s15, 1
      %p115 = por %p113, %p114
      %p117 = scmp.ne.s32.totalorder %s100, %s116
      %p118 = scmp.eq.s32.totalorder %s15, 0
      %p119 = por %p117, %p118
      %s120 = ssub.s32 %s16, %s35
      %s121 = ssub.s32 %s17, %s31
      %s122 = sor.u32 %s120, %s121
      %p123 = scmp.eq.s32.totalorder %s122, 0
      %s125 = sadd.s32 %s124, 1
      %s126 = scalar_select %p123, %s124, %s125
      %p129 = pneg %p123
      %p130 = scmp.eq.s32.totalorder %s9, 1
      %p131 = por %p129, %p130
      %p132 = scmp.ne.s32.totalorder %s124, %s127
      %p133 = scmp.eq.s32.totalorder %s9, 0
      %p134 = por %p132, %p133
      %p135 = scmp.ne.s32.totalorder %s124, %s127
      %p136 = scmp.eq.s32.totalorder %s14, 1
      %p137 = por %p135, %p136
      %p138 = scmp.ne.s32.totalorder %s127, %s128
      %p139 = scmp.eq.s32.totalorder %s14, 0
      %p140 = por %p138, %p139
      %p141 = scmp.ne.s32.totalorder %s127, %s128
      %p142 = scmp.eq.s32.totalorder %s15, 1
      %p143 = por %p141, %p142
      %p145 = scmp.ne.s32.totalorder %s128, %s144
      %p146 = scmp.eq.s32.totalorder %s15, 0
      %p147 = por %p145, %p146
      %p148 = scmp.le.s32.totalorder 1, %s9
      %p149 = scmp.lt.s32.totalorder %s9, 3
      %p150 = pnand %p148, %p149
      %p151 = pneg %p150
      // Predicated region
      $region9: #{vec_cross_attn_block_forward.9} parent=5 // pred_check
        _
      $region10: #{vec_cross_attn_block_forward.9} parent=5 // pred_check_branch
        %153 = sbr.rel (%p150) target = $region12
      $region11: #{vec_cross_attn_block_forward.9} parent=5 // pred_region
        %s154 = ssub.s32 %s9, 1
      $region12: #{vec_cross_attn_block_forward.9} parent=5 // pred_fallthru
        _
      %p155 = scmp.lt.s32.totalorder %s9, 2
      // Predicated region
      $region13: #{vec_cross_attn_block_forward.9} parent=5 // pred_check
        %p156 = pneg %p155
      $region14: #{vec_cross_attn_block_forward.9} parent=5 // pred_check_branch
        %158 = sbr.rel (%p156) target = $region16
      $region15: #{vec_cross_attn_block_forward.9} parent=5 // pred_region
        // Predicated region
        $region17: #{vec_cross_attn_block_forward.9} parent=15 // pred_check
          %p159 = pneg %p50
        $region18: #{vec_cross_attn_block_forward.9} parent=15 // pred_check_branch
          %161 = sbr.rel (%p159) target = $region20
        $region19: #{vec_cross_attn_block_forward.9} parent=15 // pred_region
          %s162 = sand.u32 %s40, 1
          %s163 = sand.u32 %s40, 1
          %s164 = smul.addr %s163, 12
          %s165 = scalar_lea.vmem [#allocation5], %s164
          %s166 = sadd.s32 %s17, %s16
          %s167 = smul.addr %s166, 4
          %s168 = scalar_lea.vmem %s0, %s167
          // Predicated region
          $region21: #{vec_cross_attn_block_forward.9} parent=19 // pred_check
            _
          $region22: #{vec_cross_attn_block_forward.9} parent=19 // pred_check_branch
            %170 = sbr.rel (0) target = $region24
          $region23: #{vec_cross_attn_block_forward.9} parent=19 // pred_region
            // Predicated region
            $region25: #{vec_cross_attn_block_forward.9} parent=23 // pred_check
              _
            $region26: #{vec_cross_attn_block_forward.9} parent=23 // pred_check_branch
              %172 = sbr.rel target = $region28
            $region27: #{vec_cross_attn_block_forward.9} parent=23 // pred_region
              // Predicated region
              $region40: #{vec_cross_attn_block_forward.9} parent=27 // pred_check
                _
              $region41: #{vec_cross_attn_block_forward.9} parent=27 // pred_check_branch
                %192 = sbr.rel (0) target = $region43
              $region42: #{vec_cross_attn_block_forward.9} parent=27 // pred_region
                loop: start=0, step=1, limit=1
                $region44: #{vec_cross_attn_block_forward.9} parent=42 // loop_pre_header
                  _
                $region45: #{vec_cross_attn_block_forward.9} parent=42 // loop_header
                  %s194 = sphi 0, %s198
                  %p195 = scmp.ge.s32.totalorder %s194, 1
                  %s199 = sphi %s168, %s168
                  %s200 = sphi %s165, %s165
                $region46: #{vec_cross_attn_block_forward.9} parent=42 // loop_header_branch
                  %197 = sbr.rel (%p195) target = $region50
                $region47: #{vec_cross_attn_block_forward.9} parent=42 // loop_body
                  _
                $region48: #{vec_cross_attn_block_forward.9} parent=42 // loop_footer
                  %s198 = sadd.s32 1, %s194
                $region49: #{vec_cross_attn_block_forward.9} parent=42 // loop_footer_branch
                  %193 = sbr.rel target = $region45
                $region50: #{vec_cross_attn_block_forward.9} parent=42 // loop_exit
                  _
                %s202 = ssub.s32 16, 1
                loop: start=0, step=1, limit=1
                $region51: #{vec_cross_attn_block_forward.9} parent=42 // loop_pre_header
                  _
                $region52: #{vec_cross_attn_block_forward.9} parent=42 // loop_header
                  %s204 = sphi 0, %s208
                  %p205 = scmp.ge.s32.totalorder %s204, 1
                  %s209 = sphi %s168, %s168
                  %s210 = sphi %s165, %s165
                $region53: #{vec_cross_attn_block_forward.9} parent=42 // loop_header_branch
                  %207 = sbr.rel (%p205) target = $region57
                $region54: #{vec_cross_attn_block_forward.9} parent=42 // loop_body
                  %v211 = vld [vmem:[%s209] sm:%s202]
                  %212 = vst [vmem:[%s210] sm:%s202] %v211
                  %v213 = vld [vmem:[%s209 + $0x8] sm:%s202]
                  %214 = vst [vmem:[%s210 + $0x4] sm:%s202] %v213
                  %v215 = vld [vmem:[%s209 + $0x10] sm:%s202]
                  %216 = vst [vmem:[%s210 + $0x8] sm:%s202] %v215
                $region55: #{vec_cross_attn_block_forward.9} parent=42 // loop_footer
                  %s208 = sadd.s32 1, %s204
                $region56: #{vec_cross_attn_block_forward.9} parent=42 // loop_footer_branch
                  %203 = sbr.rel target = $region52
                $region57: #{vec_cross_attn_block_forward.9} parent=42 // loop_exit
                  _
              $region43: #{vec_cross_attn_block_forward.9} parent=27 // pred_fallthru
                _
            $region28: #{vec_cross_attn_block_forward.9} parent=23 // pred_fallthru
              _
            // Predicated region
            $region29: #{vec_cross_attn_block_forward.9} parent=23 // pred_check
              _
            $region30: #{vec_cross_attn_block_forward.9} parent=23 // pred_check_branch
              %174 = sbr.rel (0) target = $region32
            $region31: #{vec_cross_attn_block_forward.9} parent=23 // pred_region
              %s176 = ssub.s32 16, 1
              loop: start=0, step=1, limit=1
              $region33: #{vec_cross_attn_block_forward.9} parent=31 // loop_pre_header
                _
              $region34: #{vec_cross_attn_block_forward.9} parent=31 // loop_header
                %s178 = sphi 0, %s182
                %p179 = scmp.ge.s32.totalorder %s178, 1
                %s183 = sphi %s168, %s168
                %s184 = sphi %s165, %s165
              $region35: #{vec_cross_attn_block_forward.9} parent=31 // loop_header_branch
                %181 = sbr.rel (%p179) target = $region39
              $region36: #{vec_cross_attn_block_forward.9} parent=31 // loop_body
                %v185 = vld [vmem:[%s183] sm:%s176]
                %186 = vst [vmem:[%s184] sm:%s176] %v185
                %v187 = vld [vmem:[%s183 + $0x8] sm:%s176]
                %188 = vst [vmem:[%s184 + $0x4] sm:%s176] %v187
                %v189 = vld [vmem:[%s183 + $0x10] sm:%s176]
                %190 = vst [vmem:[%s184 + $0x8] sm:%s176] %v189
              $region37: #{vec_cross_attn_block_forward.9} parent=31 // loop_footer
                %s182 = sadd.s32 1, %s178
              $region38: #{vec_cross_attn_block_forward.9} parent=31 // loop_footer_branch
                %177 = sbr.rel target = $region34
              $region39: #{vec_cross_attn_block_forward.9} parent=31 // loop_exit
                _
            $region32: #{vec_cross_attn_block_forward.9} parent=23 // pred_fallthru
              _
          $region24: #{vec_cross_attn_block_forward.9} parent=19 // pred_fallthru
            _
          %217 = vnop
        $region20: #{vec_cross_attn_block_forward.9} parent=15 // pred_fallthru
          _
        // Predicated region
        $region58: #{vec_cross_attn_block_forward.9} parent=15 // pred_check
          %p218 = pneg %p78
        $region59: #{vec_cross_attn_block_forward.9} parent=15 // pred_check_branch
          %220 = sbr.rel (%p218) target = $region61
        $region60: #{vec_cross_attn_block_forward.9} parent=15 // pred_region
          %s221 = sand.u32 %s68, 1
          %s222 = sand.u32 %s68, 1
          %s223 = smul.addr %s222, 12
          %s224 = scalar_lea.vmem [#allocation6], %s223
          %s225 = sadd.s32 %s18, %s16
          %s226 = smul.addr %s225, 4
          %s227 = scalar_lea.vmem %s1, %s226
          // Predicated region
          $region62: #{vec_cross_attn_block_forward.9} parent=60 // pred_check
            _
          $region63: #{vec_cross_attn_block_forward.9} parent=60 // pred_check_branch
            %229 = sbr.rel (0) target = $region65
          $region64: #{vec_cross_attn_block_forward.9} parent=60 // pred_region
            // Predicated region
            $region66: #{vec_cross_attn_block_forward.9} parent=64 // pred_check
              _
            $region67: #{vec_cross_attn_block_forward.9} parent=64 // pred_check_branch
              %231 = sbr.rel target = $region69
            $region68: #{vec_cross_attn_block_forward.9} parent=64 // pred_region
              // Predicated region
              $region81: #{vec_cross_attn_block_forward.9} parent=68 // pred_check
                _
              $region82: #{vec_cross_attn_block_forward.9} parent=68 // pred_check_branch
                %251 = sbr.rel (0) target = $region84
              $region83: #{vec_cross_attn_block_forward.9} parent=68 // pred_region
                loop: start=0, step=1, limit=1
                $region85: #{vec_cross_attn_block_forward.9} parent=83 // loop_pre_header
                  _
                $region86: #{vec_cross_attn_block_forward.9} parent=83 // loop_header
                  %s253 = sphi 0, %s257
                  %p254 = scmp.ge.s32.totalorder %s253, 1
                  %s258 = sphi %s227, %s227
                  %s259 = sphi %s224, %s224
                $region87: #{vec_cross_attn_block_forward.9} parent=83 // loop_header_branch
                  %256 = sbr.rel (%p254) target = $region91
                $region88: #{vec_cross_attn_block_forward.9} parent=83 // loop_body
                  _
                $region89: #{vec_cross_attn_block_forward.9} parent=83 // loop_footer
                  %s257 = sadd.s32 1, %s253
                $region90: #{vec_cross_attn_block_forward.9} parent=83 // loop_footer_branch
                  %252 = sbr.rel target = $region86
                $region91: #{vec_cross_attn_block_forward.9} parent=83 // loop_exit
                  _
                %s261 = ssub.s32 16, 1
                loop: start=0, step=1, limit=1
                $region92: #{vec_cross_attn_block_forward.9} parent=83 // loop_pre_header
                  _
                $region93: #{vec_cross_attn_block_forward.9} parent=83 // loop_header
                  %s263 = sphi 0, %s267
                  %p264 = scmp.ge.s32.totalorder %s263, 1
                  %s268 = sphi %s227, %s227
                  %s269 = sphi %s224, %s224
                $region94: #{vec_cross_attn_block_forward.9} parent=83 // loop_header_branch
                  %266 = sbr.rel (%p264) target = $region98
                $region95: #{vec_cross_attn_block_forward.9} parent=83 // loop_body
                  %v270 = vld [vmem:[%s268] sm:%s261]
                  %271 = vst [vmem:[%s269] sm:%s261] %v270
                  %v272 = vld [vmem:[%s268 + $0x8] sm:%s261]
                  %273 = vst [vmem:[%s269 + $0x4] sm:%s261] %v272
                  %v274 = vld [vmem:[%s268 + $0x10] sm:%s261]
                  %275 = vst [vmem:[%s269 + $0x8] sm:%s261] %v274
                $region96: #{vec_cross_attn_block_forward.9} parent=83 // loop_footer
                  %s267 = sadd.s32 1, %s263
                $region97: #{vec_cross_attn_block_forward.9} parent=83 // loop_footer_branch
                  %262 = sbr.rel target = $region93
                $region98: #{vec_cross_attn_block_forward.9} parent=83 // loop_exit
                  _
              $region84: #{vec_cross_attn_block_forward.9} parent=68 // pred_fallthru
                _
            $region69: #{vec_cross_attn_block_forward.9} parent=64 // pred_fallthru
              _
            // Predicated region
            $region70: #{vec_cross_attn_block_forward.9} parent=64 // pred_check
              _
            $region71: #{vec_cross_attn_block_forward.9} parent=64 // pred_check_branch
              %233 = sbr.rel (0) target = $region73
            $region72: #{vec_cross_attn_block_forward.9} parent=64 // pred_region
              %s235 = ssub.s32 16, 1
              loop: start=0, step=1, limit=1
              $region74: #{vec_cross_attn_block_forward.9} parent=72 // loop_pre_header
                _
              $region75: #{vec_cross_attn_block_forward.9} parent=72 // loop_header
                %s237 = sphi 0, %s241
                %p238 = scmp.ge.s32.totalorder %s237, 1
                %s242 = sphi %s227, %s227
                %s243 = sphi %s224, %s224
              $region76: #{vec_cross_attn_block_forward.9} parent=72 // loop_header_branch
                %240 = sbr.rel (%p238) target = $region80
              $region77: #{vec_cross_attn_block_forward.9} parent=72 // loop_body
                %v244 = vld [vmem:[%s242] sm:%s235]
                %245 = vst [vmem:[%s243] sm:%s235] %v244
                %v246 = vld [vmem:[%s242 + $0x8] sm:%s235]
                %247 = vst [vmem:[%s243 + $0x4] sm:%s235] %v246
                %v248 = vld [vmem:[%s242 + $0x10] sm:%s235]
                %249 = vst [vmem:[%s243 + $0x8] sm:%s235] %v248
              $region78: #{vec_cross_attn_block_forward.9} parent=72 // loop_footer
                %s241 = sadd.s32 1, %s237
              $region79: #{vec_cross_attn_block_forward.9} parent=72 // loop_footer_branch
                %236 = sbr.rel target = $region75
              $region80: #{vec_cross_attn_block_forward.9} parent=72 // loop_exit
                _
            $region73: #{vec_cross_attn_block_forward.9} parent=64 // pred_fallthru
              _
          $region65: #{vec_cross_attn_block_forward.9} parent=60 // pred_fallthru
            _
          %276 = vnop
        $region61: #{vec_cross_attn_block_forward.9} parent=15 // pred_fallthru
          _
        // Predicated region
        $region99: #{vec_cross_attn_block_forward.9} parent=15 // pred_check
          %p277 = pneg %p106
        $region100: #{vec_cross_attn_block_forward.9} parent=15 // pred_check_branch
          %279 = sbr.rel (%p277) target = $region102
        $region101: #{vec_cross_attn_block_forward.9} parent=15 // pred_region
          %s280 = sand.u32 %s96, 1
          %s281 = sand.u32 %s96, 1
          %s282 = smul.addr %s281, 12
          %s283 = scalar_lea.vmem [#allocation7], %s282
          %s284 = sadd.s32 %s18, %s16
          %s285 = smul.addr %s284, 4
          %s286 = scalar_lea.vmem %s2, %s285
          // Predicated region
          $region103: #{vec_cross_attn_block_forward.9} parent=101 // pred_check
            _
          $region104: #{vec_cross_attn_block_forward.9} parent=101 // pred_check_branch
            %288 = sbr.rel (0) target = $region106
          $region105: #{vec_cross_attn_block_forward.9} parent=101 // pred_region
            // Predicated region
            $region107: #{vec_cross_attn_block_forward.9} parent=105 // pred_check
              _
            $region108: #{vec_cross_attn_block_forward.9} parent=105 // pred_check_branch
              %290 = sbr.rel target = $region110
            $region109: #{vec_cross_attn_block_forward.9} parent=105 // pred_region
              // Predicated region
              $region122: #{vec_cross_attn_block_forward.9} parent=109 // pred_check
                _
              $region123: #{vec_cross_attn_block_forward.9} parent=109 // pred_check_branch
                %310 = sbr.rel (0) target = $region125
              $region124: #{vec_cross_attn_block_forward.9} parent=109 // pred_region
                loop: start=0, step=1, limit=1
                $region126: #{vec_cross_attn_block_forward.9} parent=124 // loop_pre_header
                  _
                $region127: #{vec_cross_attn_block_forward.9} parent=124 // loop_header
                  %s312 = sphi 0, %s316
                  %p313 = scmp.ge.s32.totalorder %s312, 1
                  %s317 = sphi %s286, %s286
                  %s318 = sphi %s283, %s283
                $region128: #{vec_cross_attn_block_forward.9} parent=124 // loop_header_branch
                  %315 = sbr.rel (%p313) target = $region132
                $region129: #{vec_cross_attn_block_forward.9} parent=124 // loop_body
                  _
                $region130: #{vec_cross_attn_block_forward.9} parent=124 // loop_footer
                  %s316 = sadd.s32 1, %s312
                $region131: #{vec_cross_attn_block_forward.9} parent=124 // loop_footer_branch
                  %311 = sbr.rel target = $region127
                $region132: #{vec_cross_attn_block_forward.9} parent=124 // loop_exit
                  _
                %s320 = ssub.s32 16, 1
                loop: start=0, step=1, limit=1
                $region133: #{vec_cross_attn_block_forward.9} parent=124 // loop_pre_header
                  _
                $region134: #{vec_cross_attn_block_forward.9} parent=124 // loop_header
                  %s322 = sphi 0, %s326
                  %p323 = scmp.ge.s32.totalorder %s322, 1
                  %s327 = sphi %s286, %s286
                  %s328 = sphi %s283, %s283
                $region135: #{vec_cross_attn_block_forward.9} parent=124 // loop_header_branch
                  %325 = sbr.rel (%p323) target = $region139
                $region136: #{vec_cross_attn_block_forward.9} parent=124 // loop_body
                  %v329 = vld [vmem:[%s327] sm:%s320]
                  %330 = vst [vmem:[%s328] sm:%s320] %v329
                  %v331 = vld [vmem:[%s327 + $0x8] sm:%s320]
                  %332 = vst [vmem:[%s328 + $0x4] sm:%s320] %v331
                  %v333 = vld [vmem:[%s327 + $0x10] sm:%s320]
                  %334 = vst [vmem:[%s328 + $0x8] sm:%s320] %v333
                $region137: #{vec_cross_attn_block_forward.9} parent=124 // loop_footer
                  %s326 = sadd.s32 1, %s322
                $region138: #{vec_cross_attn_block_forward.9} parent=124 // loop_footer_branch
                  %321 = sbr.rel target = $region134
                $region139: #{vec_cross_attn_block_forward.9} parent=124 // loop_exit
                  _
              $region125: #{vec_cross_attn_block_forward.9} parent=109 // pred_fallthru
                _
            $region110: #{vec_cross_attn_block_forward.9} parent=105 // pred_fallthru
              _
            // Predicated region
            $region111: #{vec_cross_attn_block_forward.9} parent=105 // pred_check
              _
            $region112: #{vec_cross_attn_block_forward.9} parent=105 // pred_check_branch
              %292 = sbr.rel (0) target = $region114
            $region113: #{vec_cross_attn_block_forward.9} parent=105 // pred_region
              %s294 = ssub.s32 16, 1
              loop: start=0, step=1, limit=1
              $region115: #{vec_cross_attn_block_forward.9} parent=113 // loop_pre_header
                _
              $region116: #{vec_cross_attn_block_forward.9} parent=113 // loop_header
                %s296 = sphi 0, %s300
                %p297 = scmp.ge.s32.totalorder %s296, 1
                %s301 = sphi %s286, %s286
                %s302 = sphi %s283, %s283
              $region117: #{vec_cross_attn_block_forward.9} parent=113 // loop_header_branch
                %299 = sbr.rel (%p297) target = $region121
              $region118: #{vec_cross_attn_block_forward.9} parent=113 // loop_body
                %v303 = vld [vmem:[%s301] sm:%s294]
                %304 = vst [vmem:[%s302] sm:%s294] %v303
                %v305 = vld [vmem:[%s301 + $0x8] sm:%s294]
                %306 = vst [vmem:[%s302 + $0x4] sm:%s294] %v305
                %v307 = vld [vmem:[%s301 + $0x10] sm:%s294]
                %308 = vst [vmem:[%s302 + $0x8] sm:%s294] %v307
              $region119: #{vec_cross_attn_block_forward.9} parent=113 // loop_footer
                %s300 = sadd.s32 1, %s296
              $region120: #{vec_cross_attn_block_forward.9} parent=113 // loop_footer_branch
                %295 = sbr.rel target = $region116
              $region121: #{vec_cross_attn_block_forward.9} parent=113 // loop_exit
                _
            $region114: #{vec_cross_attn_block_forward.9} parent=105 // pred_fallthru
              _
          $region106: #{vec_cross_attn_block_forward.9} parent=101 // pred_fallthru
            _
          %335 = vnop
        $region102: #{vec_cross_attn_block_forward.9} parent=15 // pred_fallthru
          _
      $region16: #{vec_cross_attn_block_forward.9} parent=5 // pred_fallthru
        _
      %p336 = scmp.le.s32.totalorder 1, %s9
      %p337 = scmp.lt.s32.totalorder %s9, 3
      %p338 = pnand %p336, %p337
      %p339 = pneg %p338
      // Predicated region
      $region140: #{vec_cross_attn_block_forward.9} parent=5 // pred_check
        _
      $region141: #{vec_cross_attn_block_forward.9} parent=5 // pred_check_branch
        %341 = sbr.rel (%p338) target = $region143
      $region142: #{vec_cross_attn_block_forward.9} parent=5 // pred_region
        %s342 = ssub.s32 %s9, 1
        %s343 = sand.u32 %s43, 1
        %s344 = sand.u32 %s43, 1
        %s345 = smul.addr %s344, 12
        %s346 = scalar_lea.vmem [#allocation5], %s345
        // Predicated region
        $region144: #{vec_cross_attn_block_forward.9} parent=142 // pred_check
          %p347 = pneg %p56
        $region145: #{vec_cross_attn_block_forward.9} parent=142 // pred_check_branch
          %349 = sbr.rel (%p347) target = $region147
        $region146: #{vec_cross_attn_block_forward.9} parent=142 // pred_region
          _
        $region147: #{vec_cross_attn_block_forward.9} parent=142 // pred_fallthru
          _
        %s350 = sand.u32 %s71, 1
        %s351 = sand.u32 %s71, 1
        %s352 = smul.addr %s351, 12
        %s353 = scalar_lea.vmem [#allocation6], %s352
        // Predicated region
        $region148: #{vec_cross_attn_block_forward.9} parent=142 // pred_check
          %p354 = pneg %p84
        $region149: #{vec_cross_attn_block_forward.9} parent=142 // pred_check_branch
          %356 = sbr.rel (%p354) target = $region151
        $region150: #{vec_cross_attn_block_forward.9} parent=142 // pred_region
          _
        $region151: #{vec_cross_attn_block_forward.9} parent=142 // pred_fallthru
          _
        %s357 = sand.u32 %s99, 1
        %s358 = sand.u32 %s99, 1
        %s359 = smul.addr %s358, 12
        %s360 = scalar_lea.vmem [#allocation7], %s359
        // Predicated region
        $region152: #{vec_cross_attn_block_forward.9} parent=142 // pred_check
          %p361 = pneg %p112
        $region153: #{vec_cross_attn_block_forward.9} parent=142 // pred_check_branch
          %363 = sbr.rel (%p361) target = $region155
        $region154: #{vec_cross_attn_block_forward.9} parent=142 // pred_region
          _
        $region155: #{vec_cross_attn_block_forward.9} parent=142 // pred_fallthru
          _
        %s364 = sand.u32 %s43, 1
        %s365 = sand.u32 %s43, 1
        %s366 = smul.addr %s365, 12
        %s367 = scalar_lea.vmem [#allocation5], %s366
        %p368 = pneg %p56
        %p369 = pneg %p53
        %s370 = sand.u32 %s71, 1
        %s371 = sand.u32 %s71, 1
        %s372 = smul.addr %s371, 12
        %s373 = scalar_lea.vmem [#allocation6], %s372
        %p374 = pneg %p84
        %p375 = pneg %p81
        %s376 = sand.u32 %s99, 1
        %s377 = sand.u32 %s99, 1
        %s378 = smul.addr %s377, 12
        %s379 = scalar_lea.vmem [#allocation7], %s378
        %p380 = pneg %p112
        %p381 = pneg %p109
        %p382 = pneg %p140
        %p383 = pneg %p137
        %s384 = sand.u32 %s127, 1
        %s385 = sand.u32 %s127, 1
        %s386 = smul.addr %s385, 12
        %s387 = scalar_lea.vmem [#allocation8], %s386
        %p389 = scmp.eq.s32.totalorder %s21, 0
        // Predicated region
        $region156: #{vec_cross_attn_block_forward.9} parent=142 // pred_check
          %p390 = pneg %p389
        $region157: #{vec_cross_attn_block_forward.9} parent=142 // pred_check_branch
          %392 = sbr.rel (%p390) target = $region159
        $region158: #{vec_cross_attn_block_forward.9} parent=142 // pred_region
          %393 = vst [vmem:[#allocation2] sm:$0xff] -1e+30
          %394 = vst [vmem:[#allocation2 + $0x8] sm:$0xff] -1e+30
          %395 = vst [vmem:[#allocation3] sm:$0xff] 0.0
          %396 = vst [vmem:[#allocation3 + $0x8] sm:$0xff] 0.0
          %vm397 = vcmask 64512
          %398 = vst.msk [vmem:[#allocation4] sm:$0xff] %vm397, 0.0
          %399 = vst.msk [vmem:[#allocation4 + $0x8] sm:$0xff] %vm397, 0.0
          %400 = vst.msk [vmem:[#allocation4 + $0x10] sm:$0xff] %vm397, 0.0
        $region159: #{vec_cross_attn_block_forward.9} parent=142 // pred_fallthru
          _
        %v401 = vld [vmem:[%s346] sm:$0xf]
        %v402 = vld [vmem:[%s346 + $0x4] sm:$0xf]
        %v403 = vld [vmem:[%s346 + $0x8] sm:$0xf]
        %v404 = vld [vmem:[%s353] sm:$0xf]
        %v405 = vld [vmem:[%s353 + $0x4] sm:$0xf]
        %v406 = vld [vmem:[%s353 + $0x8] sm:$0xf]
        %v407 = vld [vmem:[%s360] sm:$0xf]
        %v408 = vld [vmem:[%s360 + $0x4] sm:$0xf]
        %v409 = vld [vmem:[%s360 + $0x8] sm:$0xf]
        %vm410 = vcmask 31744
        %v412 = vsel %vm410, %v402, 0
        %v415 = vsel %vm410, %v405, 0
        %417 = vmatpush.bf16.xpose.msra.mxu0 0
        %418 = vmatpush.bf16.xpose.msra.mxu0 0
        %419 = vmatpush.bf16.xpose.msra.mxu0 0
        %420 = vmatpush.bf16.xpose.msra.mxu0 0
        %421 = vmatpush.bf16.xpose.msra.mxu0 0
        %422 = vmatpush.bf16.xpose.msra.mxu0 0
        %423 = vmatpush.bf16.xpose.msra.mxu0 0
        %424 = vmatpush.bf16.xpose.msra.mxu0 %v415
        %425 = vmatmul.bf16.gmra.mxu0 %v412
        %v426 = vpop.f32.mrf.mxu0
        %v427 = vadd.f32 0.0, %v426
        %v428 = vpop.f32.mrf.mxu0
        %429 = vdwg.mxu0
        %v431 = vsel %vm410, %v401, 0
        %v434 = vsel %vm410, %v404, 0
        %436 = vmatpush.bf16.xpose.msra.mxu0 0
        %437 = vmatpush.bf16.xpose.msra.mxu0 0
        %438 = vmatpush.bf16.xpose.msra.mxu0 0
        %439 = vmatpush.bf16.xpose.msra.mxu0 0
        %440 = vmatpush.bf16.xpose.msra.mxu0 0
        %441 = vmatpush.bf16.xpose.msra.mxu0 0
        %442 = vmatpush.bf16.xpose.msra.mxu0 0
        %443 = vmatpush.bf16.xpose.msra.mxu0 %v434
        %444 = vmatmul.bf16.gmra.mxu0 %v431
        %v445 = vpop.f32.mrf.mxu0
        %v446 = vadd.f32 %v427, %v445
        %v447 = vpop.f32.mrf.mxu0
        %448 = vdwg.mxu0
        %v450 = vsel %vm410, %v403, 0
        %v453 = vsel %vm410, %v406, 0
        %455 = vmatpush.bf16.xpose.msra.mxu0 0
        %456 = vmatpush.bf16.xpose.msra.mxu0 0
        %457 = vmatpush.bf16.xpose.msra.mxu0 0
        %458 = vmatpush.bf16.xpose.msra.mxu0 0
        %459 = vmatpush.bf16.xpose.msra.mxu0 0
        %460 = vmatpush.bf16.xpose.msra.mxu0 0
        %461 = vmatpush.bf16.xpose.msra.mxu0 0
        %462 = vmatpush.bf16.xpose.msra.mxu0 %v453
        %463 = vmatmul.bf16.gmra.mxu0 %v450
        %v464 = vpop.f32.mrf.mxu0
        %v465 = vadd.f32 0.0, %v464
        %v466 = vpop.f32.mrf.mxu0
        %467 = vdwg.mxu0
        %v468 = vadd.f32 %v446, %v465
        %v469 = vld [vmem:[#allocation2] sm:$0xff]
        %v470 = vld [vmem:[#allocation3] sm:$0xff]
        %vm471 = vcmask 64512
        %v472 = vsel %vm471, %v468, -inf
        %473 = vmax.xlane.f32.xlu0 %v472
        %v474 = vpop.xlane.xlu0 %473
        %v475 = vmax.f32 %v469, %v474
        %v476 = vsub.f32 %v469, %v475
        %v477 = vmul.f32 %v476, 1.442695
        %v478 = vpow.pop %v477
        %480 = vset.pattern.permute.xlu0 0
        %481 = vperm.xlu0 %480, %v475
        %v482 = vpop.permute.xlu0 %481
        %v484 = vsub.f32 %v468, %v482
        %v485 = vmul.f32 %v484, 1.442695
        %v486 = vpow.pop %v485
        %v487 = vmul.f32 %v478, %v470
        %v488 = vsel %vm471, %v486, 0.0
        %489 = vadd.xlane.f32.xlu0 %v488
        %v490 = vpop.xlane.xlu0 %489
        %v491 = vadd.f32 %v487, %v490
        %492 = vst [vmem:[#allocation3] sm:$0xff] %v491
        %493 = vst [vmem:[#allocation2] sm:$0xff] %v475
        %v494 = vpack.c.bf16 %v486, %v486
        %v495 = vld [vmem:[#allocation4] sm:$0xff]
        %497 = vset.pattern.permute.xlu0 0
        %498 = vperm.xlu0 %497, %v478
        %v499 = vpop.permute.xlu0 %498
        %v501 = vmul.f32 %v499, %v495
        %v503 = vsel %vm471, %v494, 0
        %vm505 = vcmask 1043456
        %v507 = vsel %vm505, %v407, 0
        %509 = vmatpush.bf16.msra.mxu0 0
        %510 = vmatpush.bf16.msra.mxu0 0
        %511 = vmatpush.bf16.msra.mxu0 0
        %512 = vmatpush.bf16.msra.mxu0 0
        %513 = vmatpush.bf16.msra.mxu0 0
        %514 = vmatpush.bf16.msra.mxu0 0
        %515 = vmatpush.bf16.msra.mxu0 0
        %516 = vmatpush.bf16.msra.mxu0 %v507
        %517 = vmatmul.bf16.gmra.mxu0 %v503
        %v518 = vpop.f32.mrf.mxu0
        %v519 = vadd.f32 0.0, %v518
        %v520 = vpop.f32.mrf.mxu0
        %521 = vdwg.mxu0
        %v522 = vadd.f32 %v501, %v519
        %523 = vst.msk [vmem:[#allocation4] sm:$0xff] %vm410, %v522
        %s524 = scalar_lea.vmem [#allocation4], 8
        %v525 = vld [vmem:[%s524] sm:$0xff]
        %v526 = vmul.f32 %v499, %v525
        %v528 = vsel %vm505, %v408, 0
        %530 = vmatpush.bf16.msra.mxu0 0
        %531 = vmatpush.bf16.msra.mxu0 0
        %532 = vmatpush.bf16.msra.mxu0 0
        %533 = vmatpush.bf16.msra.mxu0 0
        %534 = vmatpush.bf16.msra.mxu0 0
        %535 = vmatpush.bf16.msra.mxu0 0
        %536 = vmatpush.bf16.msra.mxu0 0
        %537 = vmatpush.bf16.msra.mxu0 %v528
        %538 = vmatmul.bf16.gmra.mxu0 %v503
        %v539 = vpop.f32.mrf.mxu0
        %v540 = vadd.f32 0.0, %v539
        %v541 = vpop.f32.mrf.mxu0
        %542 = vdwg.mxu0
        %v543 = vadd.f32 %v526, %v540
        %544 = vst.msk [vmem:[%s524] sm:$0xff] %vm410, %v543
        %s545 = scalar_lea.vmem [#allocation4], 16
        %v546 = vld [vmem:[%s545] sm:$0xff]
        %v547 = vmul.f32 %v499, %v546
        %v549 = vsel %vm505, %v409, 0
        %551 = vmatpush.bf16.msra.mxu0 0
        %552 = vmatpush.bf16.msra.mxu0 0
        %553 = vmatpush.bf16.msra.mxu0 0
        %554 = vmatpush.bf16.msra.mxu0 0
        %555 = vmatpush.bf16.msra.mxu0 0
        %556 = vmatpush.bf16.msra.mxu0 0
        %557 = vmatpush.bf16.msra.mxu0 0
        %558 = vmatpush.bf16.msra.mxu0 %v549
        %559 = vmatmul.bf16.gmra.mxu0 %v503
        %v560 = vpop.f32.mrf.mxu0
        %v561 = vadd.f32 0.0, %v560
        %v562 = vpop.f32.mrf.mxu0
        %563 = vdwg.mxu0
        %v564 = vadd.f32 %v547, %v561
        %565 = vst.msk [vmem:[%s545] sm:$0xff] %vm410, %v564
        %v567 = vunpack.c.l.b16 %v402
        %v568 = vpack.c.b16 %v567, %v567
        %569 = vrot.lane.b32.xlu0 %v568, 124
        %v570 = vpop.permute.xlu0 %569
        %v572 = vunpack.c.l.b16 %v405
        %v573 = vpack.c.b16 %v572, %v572
        %574 = vrot.lane.b32.xlu0 %v573, 124
        %v575 = vpop.permute.xlu0 %574
        %v577 = vsel %vm410, %v570, 0
        %v580 = vsel %vm410, %v575, 0
        %582 = vmatpush.bf16.xpose.msra.mxu0 0
        %583 = vmatpush.bf16.xpose.msra.mxu0 0
        %584 = vmatpush.bf16.xpose.msra.mxu0 0
        %585 = vmatpush.bf16.xpose.msra.mxu0 0
        %586 = vmatpush.bf16.xpose.msra.mxu0 0
        %587 = vmatpush.bf16.xpose.msra.mxu0 0
        %588 = vmatpush.bf16.xpose.msra.mxu0 0
        %589 = vmatpush.bf16.xpose.msra.mxu0 %v580
        %590 = vmatmul.bf16.gmra.mxu0 %v577
        %v591 = vpop.f32.mrf.mxu0
        %v592 = vadd.f32 0.0, %v591
        %v593 = vpop.f32.mrf.mxu0
        %594 = vdwg.mxu0
        %v596 = vunpack.c.l.b16 %v401
        %v597 = vpack.c.b16 %v596, %v596
        %598 = vrot.lane.b32.xlu0 %v597, 124
        %v599 = vpop.permute.xlu0 %598
        %v601 = vunpack.c.l.b16 %v404
        %v602 = vpack.c.b16 %v601, %v601
        %603 = vrot.lane.b32.xlu0 %v602, 124
        %v604 = vpop.permute.xlu0 %603
        %v606 = vsel %vm410, %v599, 0
        %v609 = vsel %vm410, %v604, 0
        %611 = vmatpush.bf16.xpose.msra.mxu0 0
        %612 = vmatpush.bf16.xpose.msra.mxu0 0
        %613 = vmatpush.bf16.xpose.msra.mxu0 0
        %614 = vmatpush.bf16.xpose.msra.mxu0 0
        %615 = vmatpush.bf16.xpose.msra.mxu0 0
        %616 = vmatpush.bf16.xpose.msra.mxu0 0
        %617 = vmatpush.bf16.xpose.msra.mxu0 0
        %618 = vmatpush.bf16.xpose.msra.mxu0 %v609
        %619 = vmatmul.bf16.gmra.mxu0 %v606
        %v620 = vpop.f32.mrf.mxu0
        %v621 = vadd.f32 %v592, %v620
        %v622 = vpop.f32.mrf.mxu0
        %623 = vdwg.mxu0
        %v625 = vunpack.c.l.b16 %v403
        %v626 = vpack.c.b16 %v625, %v625
        %627 = vrot.lane.b32.xlu0 %v626, 124
        %v628 = vpop.permute.xlu0 %627
        %v630 = vunpack.c.l.b16 %v406
        %v631 = vpack.c.b16 %v630, %v630
        %632 = vrot.lane.b32.xlu0 %v631, 124
        %v633 = vpop.permute.xlu0 %632
        %v635 = vsel %vm410, %v628, 0
        %v638 = vsel %vm410, %v633, 0
        %640 = vmatpush.bf16.xpose.msra.mxu0 0
        %641 = vmatpush.bf16.xpose.msra.mxu0 0
        %642 = vmatpush.bf16.xpose.msra.mxu0 0
        %643 = vmatpush.bf16.xpose.msra.mxu0 0
        %644 = vmatpush.bf16.xpose.msra.mxu0 0
        %645 = vmatpush.bf16.xpose.msra.mxu0 0
        %646 = vmatpush.bf16.xpose.msra.mxu0 0
        %647 = vmatpush.bf16.xpose.msra.mxu0 %v638
        %648 = vmatmul.bf16.gmra.mxu0 %v635
        %v649 = vpop.f32.mrf.mxu0
        %v650 = vadd.f32 0.0, %v649
        %v651 = vpop.f32.mrf.mxu0
        %652 = vdwg.mxu0
        %v653 = vadd.f32 %v621, %v650
        %s654 = scalar_lea.vmem [#allocation2], 8
        %v655 = vld [vmem:[%s654] sm:$0xff]
        %s656 = scalar_lea.vmem [#allocation3], 8
        %v657 = vld [vmem:[%s656] sm:$0xff]
        %v658 = vsel %vm471, %v653, -inf
        %659 = vmax.xlane.f32.xlu0 %v658
        %v660 = vpop.xlane.xlu0 %659
        %v661 = vmax.f32 %v655, %v660
        %v662 = vsub.f32 %v655, %v661
        %v663 = vmul.f32 %v662, 1.442695
        %v664 = vpow.pop %v663
        %666 = vset.pattern.permute.xlu0 0
        %667 = vperm.xlu0 %666, %v661
        %v668 = vpop.permute.xlu0 %667
        %v670 = vsub.f32 %v653, %v668
        %v671 = vmul.f32 %v670, 1.442695
        %v672 = vpow.pop %v671
        %v673 = vmul.f32 %v664, %v657
        %v674 = vsel %vm471, %v672, 0.0
        %675 = vadd.xlane.f32.xlu0 %v674
        %v676 = vpop.xlane.xlu0 %675
        %v677 = vadd.f32 %v673, %v676
        %678 = vst [vmem:[%s656] sm:$0xff] %v677
        %679 = vst [vmem:[%s654] sm:$0xff] %v661
        %v680 = vpack.c.bf16 %v672, %v672
        %v681 = vld [vmem:[#allocation4] sm:$0xff]
        %683 = vset.pattern.permute.xlu0 0
        %684 = vperm.xlu0 %683, %v664
        %v685 = vpop.permute.xlu0 %684
        %v687 = vmul.f32 %v685, %v681
        %v689 = vunpack.c.l.b16 %v407
        %v690 = vpack.c.b16 %v689, %v689
        %691 = vrot.lane.b32.xlu0 %v690, 124
        %v692 = vpop.permute.xlu0 %691
        %v694 = vsel %vm471, %v680, 0
        %v697 = vsel %vm505, %v692, 0
        %699 = vmatpush.bf16.msra.mxu0 0
        %700 = vmatpush.bf16.msra.mxu0 0
        %701 = vmatpush.bf16.msra.mxu0 0
        %702 = vmatpush.bf16.msra.mxu0 0
        %703 = vmatpush.bf16.msra.mxu0 0
        %704 = vmatpush.bf16.msra.mxu0 0
        %705 = vmatpush.bf16.msra.mxu0 0
        %706 = vmatpush.bf16.msra.mxu0 %v697
        %707 = vmatmul.bf16.gmra.mxu0 %v694
        %v708 = vpop.f32.mrf.mxu0
        %v709 = vadd.f32 0.0, %v708
        %v710 = vpop.f32.mrf.mxu0
        %711 = vdwg.mxu0
        %713 = vrot.lane.b32.xlu0 %v709, 4
        %v714 = vpop.permute.xlu0 %713
        %v716 = vadd.f32 %v687, %v714
        %vm717 = vcmask 64544
        %718 = vst.msk [vmem:[#allocation4] sm:$0xff] %vm717, %v716
        %v719 = vld [vmem:[%s524] sm:$0xff]
        %v720 = vmul.f32 %v685, %v719
        %v722 = vunpack.c.l.b16 %v408
        %v723 = vpack.c.b16 %v722, %v722
        %724 = vrot.lane.b32.xlu0 %v723, 124
        %v725 = vpop.permute.xlu0 %724
        %v727 = vsel %vm505, %v725, 0
        %729 = vmatpush.bf16.msra.mxu0 0
        %730 = vmatpush.bf16.msra.mxu0 0
        %731 = vmatpush.bf16.msra.mxu0 0
        %732 = vmatpush.bf16.msra.mxu0 0
        %733 = vmatpush.bf16.msra.mxu0 0
        %734 = vmatpush.bf16.msra.mxu0 0
        %735 = vmatpush.bf16.msra.mxu0 0
        %736 = vmatpush.bf16.msra.mxu0 %v727
        %737 = vmatmul.bf16.gmra.mxu0 %v694
        %v738 = vpop.f32.mrf.mxu0
        %v739 = vadd.f32 0.0, %v738
        %v740 = vpop.f32.mrf.mxu0
        %741 = vdwg.mxu0
        %743 = vrot.lane.b32.xlu0 %v739, 4
        %v744 = vpop.permute.xlu0 %743
        %v746 = vadd.f32 %v720, %v744
        %747 = vst.msk [vmem:[%s524] sm:$0xff] %vm717, %v746
        %v748 = vld [vmem:[%s545] sm:$0xff]
        %v749 = vmul.f32 %v685, %v748
        %v751 = vunpack.c.l.b16 %v409
        %v752 = vpack.c.b16 %v751, %v751
        %753 = vrot.lane.b32.xlu0 %v752, 124
        %v754 = vpop.permute.xlu0 %753
        %v756 = vsel %vm505, %v754, 0
        %758 = vmatpush.bf16.msra.mxu0 0
        %759 = vmatpush.bf16.msra.mxu0 0
        %760 = vmatpush.bf16.msra.mxu0 0
        %761 = vmatpush.bf16.msra.mxu0 0
        %762 = vmatpush.bf16.msra.mxu0 0
        %763 = vmatpush.bf16.msra.mxu0 0
        %764 = vmatpush.bf16.msra.mxu0 0
        %765 = vmatpush.bf16.msra.mxu0 %v756
        %766 = vmatmul.bf16.gmra.mxu0 %v694
        %v767 = vpop.f32.mrf.mxu0
        %v768 = vadd.f32 0.0, %v767
        %v769 = vpop.f32.mrf.mxu0
        %770 = vdwg.mxu0
        %772 = vrot.lane.b32.xlu0 %v768, 4
        %v773 = vpop.permute.xlu0 %772
        %v775 = vadd.f32 %v749, %v773
        %776 = vst.msk [vmem:[%s545] sm:$0xff] %vm717, %v775
        // Predicated region
        $region160: #{vec_cross_attn_block_forward.9} parent=142 // pred_check
          %p777 = pneg %p389
        $region161: #{vec_cross_attn_block_forward.9} parent=142 // pred_check_branch
          %779 = sbr.rel (%p777) target = $region163
        $region162: #{vec_cross_attn_block_forward.9} parent=142 // pred_region
          %v780 = vld [vmem:[#allocation3] sm:$0xff]
          %v781 = vrcp.pop %v780
          %783 = vset.pattern.permute.xlu0 0
          %784 = vperm.xlu0 %783, %v781
          %v785 = vpop.permute.xlu0 %784
          %v787 = vld [vmem:[%s656] sm:$0xff]
          %v788 = vrcp.pop %v787
          %790 = vset.pattern.permute.xlu0 0
          %791 = vperm.xlu0 %790, %v788
          %v792 = vpop.permute.xlu0 %791
          %v794 = vsel %vm410, %v785, %v792
          %v795 = vld [vmem:[#allocation4] sm:$0xff]
          %v796 = vld [vmem:[#allocation4 + $0x8] sm:$0xff]
          %v797 = vld [vmem:[#allocation4 + $0x10] sm:$0xff]
          %v798 = vmul.f32 %v795, %v794
          %v799 = vmul.f32 %v796, %v794
          %v800 = vmul.f32 %v797, %v794
          %v801 = vpack.c.bf16 %v798, %v798
          %v802 = vpack.c.bf16 %v799, %v799
          %v803 = vpack.c.bf16 %v800, %v800
          %vm804 = vcmask 60416
          %805 = vst.msk [vmem:[%s387] sm:$0xf] %vm804, %v801
          %806 = vst.msk [vmem:[%s387 + $0x4] sm:$0xf] %vm804, %v802
          %807 = vst.msk [vmem:[%s387 + $0x8] sm:$0xf] %vm804, %v803
        $region163: #{vec_cross_attn_block_forward.9} parent=142 // pred_fallthru
          _
        %s808 = sand.u32 %s127, 1
        %s809 = sand.u32 %s127, 1
        %s810 = smul.addr %s809, 12
        %s811 = scalar_lea.vmem [#allocation8], %s810
        // Predicated region
        $region164: #{vec_cross_attn_block_forward.9} parent=142 // pred_check
          %p812 = pneg %p137
        $region165: #{vec_cross_attn_block_forward.9} parent=142 // pred_check_branch
          %814 = sbr.rel (%p812) target = $region167
        $region166: #{vec_cross_attn_block_forward.9} parent=142 // pred_region
          %s815 = sadd.s32 %s20, %s19
          %s816 = smul.addr %s815, 4
          %s817 = scalar_lea.vmem %s3, %s816
          // Predicated region
          $region168: #{vec_cross_attn_block_forward.9} parent=166 // pred_check
            _
          $region169: #{vec_cross_attn_block_forward.9} parent=166 // pred_check_branch
            %819 = sbr.rel (0) target = $region171
          $region170: #{vec_cross_attn_block_forward.9} parent=166 // pred_region
            // Predicated region
            $region172: #{vec_cross_attn_block_forward.9} parent=170 // pred_check
              _
            $region173: #{vec_cross_attn_block_forward.9} parent=170 // pred_check_branch
              %821 = sbr.rel target = $region175
            $region174: #{vec_cross_attn_block_forward.9} parent=170 // pred_region
              // Predicated region
              $region187: #{vec_cross_attn_block_forward.9} parent=174 // pred_check
                _
              $region188: #{vec_cross_attn_block_forward.9} parent=174 // pred_check_branch
                %841 = sbr.rel (0) target = $region190
              $region189: #{vec_cross_attn_block_forward.9} parent=174 // pred_region
                loop: start=0, step=1, limit=1
                $region191: #{vec_cross_attn_block_forward.9} parent=189 // loop_pre_header
                  _
                $region192: #{vec_cross_attn_block_forward.9} parent=189 // loop_header
                  %s843 = sphi 0, %s847
                  %p844 = scmp.ge.s32.totalorder %s843, 1
                  %s848 = sphi %s811, %s811
                  %s849 = sphi %s817, %s817
                $region193: #{vec_cross_attn_block_forward.9} parent=189 // loop_header_branch
                  %846 = sbr.rel (%p844) target = $region197
                $region194: #{vec_cross_attn_block_forward.9} parent=189 // loop_body
                  _
                $region195: #{vec_cross_attn_block_forward.9} parent=189 // loop_footer
                  %s847 = sadd.s32 1, %s843
                $region196: #{vec_cross_attn_block_forward.9} parent=189 // loop_footer_branch
                  %842 = sbr.rel target = $region192
                $region197: #{vec_cross_attn_block_forward.9} parent=189 // loop_exit
                  _
                %s851 = ssub.s32 16, 1
                loop: start=0, step=1, limit=1
                $region198: #{vec_cross_attn_block_forward.9} parent=189 // loop_pre_header
                  _
                $region199: #{vec_cross_attn_block_forward.9} parent=189 // loop_header
                  %s853 = sphi 0, %s857
                  %p854 = scmp.ge.s32.totalorder %s853, 1
                  %s858 = sphi %s811, %s811
                  %s859 = sphi %s817, %s817
                $region200: #{vec_cross_attn_block_forward.9} parent=189 // loop_header_branch
                  %856 = sbr.rel (%p854) target = $region204
                $region201: #{vec_cross_attn_block_forward.9} parent=189 // loop_body
                  %v860 = vld [vmem:[%s858] sm:%s851]
                  %861 = vst [vmem:[%s859] sm:%s851] %v860
                  %v862 = vld [vmem:[%s858 + $0x4] sm:%s851]
                  %863 = vst [vmem:[%s859 + $0x8] sm:%s851] %v862
                  %v864 = vld [vmem:[%s858 + $0x8] sm:%s851]
                  %865 = vst [vmem:[%s859 + $0x10] sm:%s851] %v864
                $region202: #{vec_cross_attn_block_forward.9} parent=189 // loop_footer
                  %s857 = sadd.s32 1, %s853
                $region203: #{vec_cross_attn_block_forward.9} parent=189 // loop_footer_branch
                  %852 = sbr.rel target = $region199
                $region204: #{vec_cross_attn_block_forward.9} parent=189 // loop_exit
                  _
              $region190: #{vec_cross_attn_block_forward.9} parent=174 // pred_fallthru
                _
            $region175: #{vec_cross_attn_block_forward.9} parent=170 // pred_fallthru
              _
            // Predicated region
            $region176: #{vec_cross_attn_block_forward.9} parent=170 // pred_check
              _
            $region177: #{vec_cross_attn_block_forward.9} parent=170 // pred_check_branch
              %823 = sbr.rel (0) target = $region179
            $region178: #{vec_cross_attn_block_forward.9} parent=170 // pred_region
              %s825 = ssub.s32 16, 1
              loop: start=0, step=1, limit=1
              $region180: #{vec_cross_attn_block_forward.9} parent=178 // loop_pre_header
                _
              $region181: #{vec_cross_attn_block_forward.9} parent=178 // loop_header
                %s827 = sphi 0, %s831
                %p828 = scmp.ge.s32.totalorder %s827, 1
                %s832 = sphi %s811, %s811
                %s833 = sphi %s817, %s817
              $region182: #{vec_cross_attn_block_forward.9} parent=178 // loop_header_branch
                %830 = sbr.rel (%p828) target = $region186
              $region183: #{vec_cross_attn_block_forward.9} parent=178 // loop_body
                %v834 = vld [vmem:[%s832] sm:%s825]
                %835 = vst [vmem:[%s833] sm:%s825] %v834
                %v836 = vld [vmem:[%s832 + $0x4] sm:%s825]
                %837 = vst [vmem:[%s833 + $0x8] sm:%s825] %v836
                %v838 = vld [vmem:[%s832 + $0x8] sm:%s825]
                %839 = vst [vmem:[%s833 + $0x10] sm:%s825] %v838
              $region184: #{vec_cross_attn_block_forward.9} parent=178 // loop_footer
                %s831 = sadd.s32 1, %s827
              $region185: #{vec_cross_attn_block_forward.9} parent=178 // loop_footer_branch
                %826 = sbr.rel target = $region181
              $region186: #{vec_cross_attn_block_forward.9} parent=178 // loop_exit
                _
            $region179: #{vec_cross_attn_block_forward.9} parent=170 // pred_fallthru
              _
          $region171: #{vec_cross_attn_block_forward.9} parent=166 // pred_fallthru
            _
          %866 = vnop
        $region167: #{vec_cross_attn_block_forward.9} parent=142 // pred_fallthru
          _
      $region143: #{vec_cross_attn_block_forward.9} parent=5 // pred_fallthru
        _
      %p867 = scmp.le.s32.totalorder 2, %s9
      // Predicated region
      $region205: #{vec_cross_attn_block_forward.9} parent=5 // pred_check
        %p868 = pneg %p867
      $region206: #{vec_cross_attn_block_forward.9} parent=5 // pred_check_branch
        %870 = sbr.rel (%p868) target = $region208
      $region207: #{vec_cross_attn_block_forward.9} parent=5 // pred_region
        %s871 = ssub.s32 %s9, 2
        // Predicated region
        $region209: #{vec_cross_attn_block_forward.9} parent=207 // pred_check
          %p872 = pneg %p143
        $region210: #{vec_cross_attn_block_forward.9} parent=207 // pred_check_branch
          %874 = sbr.rel (%p872) target = $region212
        $region211: #{vec_cross_attn_block_forward.9} parent=207 // pred_region
          %s875 = sand.u32 %s128, 1
          %s876 = sand.u32 %s128, 1
          %s877 = smul.addr %s876, 12
          %s878 = scalar_lea.vmem [#allocation8], %s877
        $region212: #{vec_cross_attn_block_forward.9} parent=207 // pred_fallthru
          _
      $region208: #{vec_cross_attn_block_forward.9} parent=5 // pred_fallthru
        _
    $region6: #{vec_cross_attn_block_forward.9} parent=1 // loop_footer
      %s13 = sadd.s32 1, %s9
    $region7: #{vec_cross_attn_block_forward.9} parent=1 // loop_footer_branch
      %8 = sbr.rel target = $region3
    $region8: #{vec_cross_attn_block_forward.9} parent=1 // loop_exit
      _

// kernel: vec_cross_attn_block_forward.10
$region0: #{vec_cross_attn_block_forward.10}
  #allocation0 [shape = 'u32[]', space=smem, size = 0x4, offset = 0x4, fixed_abs, tag = 'smem constant byte address 0x4 - core index']
  #allocation1 [shape = 'u32[72,128]{1,0:T(1,128)}', space=vmem, size = 0x9000, scoped, tag = 'internal scratch']
  %s0 = inlined_call_operand.vmem [shape: bf16[3,16,8], index: 0, kind: input, shape index: {}]
  %s1 = inlined_call_operand.vmem [shape: bf16[8,8], index: 1, kind: input, shape index: {}]
  %s2 = inlined_call_operand.vmem [shape: f32[3,16,8], index: 2, kind: input, shape index: {}, may-alias: {2,3}]
  %s3 = inlined_call_operand.vmem [shape: f32[3,16,8], index: 3, kind: output, shape index: {}, may-alias: {2,3}]
  %s4 = sld [smem:[#allocation0]]
  $region158: #{vec_cross_attn_block_forward.10} parent=0
    _
  %s6 = ssub.s32 1, %s4
  %s7 = scalar_select 0, %s6, %s4
  $region1: #{vec_cross_attn_block_forward.10} parent=0
    #allocation2 [shape = 'u8[12288]{0}', space=vmem, size = 0x3000, scoped, tag = 'input window, operand 0']
    #allocation3 [shape = 'u8[24576]{0}', space=vmem, size = 0x6000, scoped, tag = 'input window, operand 2']
    #allocation4 [shape = 'u8[24576]{0}', space=vmem, size = 0x6000, scoped, tag = 'output window, operand 0']
    loop: start=0, step=1, limit=4
    $region2: #{vec_cross_attn_block_forward.10} parent=1 // loop_pre_header
      _
    $region3: #{vec_cross_attn_block_forward.10} parent=1 // loop_header
      %s9 = sphi 0, %s13
      %p10 = scmp.ge.s32.totalorder %s9, 4
      %s19 = sphi 0, %s21
      %s22 = sphi 0, %s19
      %s23 = sphi 0, %s22
      %s39 = sphi 0, %s23
      %s43 = sphi 0, %s43
      %s45 = sphi 0, %s43
      %s46 = sphi 0, %s45
      %s60 = sphi 0, %s46
      %s66 = sphi 0, %s68
      %s69 = sphi 0, %s66
      %s70 = sphi 0, %s69
      %s86 = sphi 0, %s70
      %s92 = sphi 0, %s94
      %s95 = sphi 0, %s92
      %s96 = sphi 0, %s95
      %s112 = sphi 0, %s96
    $region4: #{vec_cross_attn_block_forward.10} parent=1 // loop_header_branch
      %12 = sbr.rel (%p10) target = $region8
    $region5: #{vec_cross_attn_block_forward.10} parent=1 // loop_body
      %s14 = ssub.s32 %s9, 1
      %s15 = ssub.s32 %s9, 2
      %s16 = sadd.s32 %s9, 1
      %s17 = ssub.s32 %s9, %s16
      %p18 = scmp.eq.s32.totalorder %s17, 0
      %s20 = sadd.s32 %s19, 1
      %s21 = scalar_select %p18, %s19, %s20
      %p24 = pneg %p18
      %p25 = scmp.eq.s32.totalorder %s9, 1
      %p26 = por %p24, %p25
      %p27 = scmp.ne.s32.totalorder %s19, %s22
      %p28 = scmp.eq.s32.totalorder %s9, 0
      %p29 = por %p27, %p28
      %p30 = scmp.ne.s32.totalorder %s19, %s22
      %p31 = scmp.eq.s32.totalorder %s14, 1
      %p32 = por %p30, %p31
      %p33 = scmp.ne.s32.totalorder %s22, %s23
      %p34 = scmp.eq.s32.totalorder %s14, 0
      %p35 = por %p33, %p34
      %p36 = scmp.ne.s32.totalorder %s22, %s23
      %p37 = scmp.eq.s32.totalorder %s15, 1
      %p38 = por %p36, %p37
      %p40 = scmp.ne.s32.totalorder %s23, %s39
      %p41 = scmp.eq.s32.totalorder %s15, 0
      %p42 = por %p40, %p41
      %s44 = sadd.s32 %s43, 1
      %p47 = scmp.eq.s32.totalorder %s9, 1
      %p48 = scmp.ne.s32.totalorder %s43, %s45
      %p49 = scmp.eq.s32.totalorder %s9, 0
      %p50 = por %p48, %p49
      %p51 = scmp.ne.s32.totalorder %s43, %s45
      %p52 = scmp.eq.s32.totalorder %s14, 1
      %p53 = por %p51, %p52
      %p54 = scmp.ne.s32.totalorder %s45, %s46
      %p55 = scmp.eq.s32.totalorder %s14, 0
      %p56 = por %p54, %p55
      %p57 = scmp.ne.s32.totalorder %s45, %s46
      %p58 = scmp.eq.s32.totalorder %s15, 1
      %p59 = por %p57, %p58
      %p61 = scmp.ne.s32.totalorder %s46, %s60
      %p62 = scmp.eq.s32.totalorder %s15, 0
      %p63 = por %p61, %p62
      %s64 = ssub.s32 %s9, %s16
      %p65 = scmp.eq.s32.totalorder %s64, 0
      %s67 = sadd.s32 %s66, 1
      %s68 = scalar_select %p65, %s66, %s67
      %p71 = pneg %p65
      %p72 = scmp.eq.s32.totalorder %s9, 1
      %p73 = por %p71, %p72
      %p74 = scmp.ne.s32.totalorder %s66, %s69
      %p75 = scmp.eq.s32.totalorder %s9, 0
      %p76 = por %p74, %p75
      %p77 = scmp.ne.s32.totalorder %s66, %s69
      %p78 = scmp.eq.s32.totalorder %s14, 1
      %p79 = por %p77, %p78
      %p80 = scmp.ne.s32.totalorder %s69, %s70
      %p81 = scmp.eq.s32.totalorder %s14, 0
      %p82 = por %p80, %p81
      %p83 = scmp.ne.s32.totalorder %s69, %s70
      %p84 = scmp.eq.s32.totalorder %s15, 1
      %p85 = por %p83, %p84
      %p87 = scmp.ne.s32.totalorder %s70, %s86
      %p88 = scmp.eq.s32.totalorder %s15, 0
      %p89 = por %p87, %p88
      %s90 = ssub.s32 %s9, %s16
      %p91 = scmp.eq.s32.totalorder %s90, 0
      %s93 = sadd.s32 %s92, 1
      %s94 = scalar_select %p91, %s92, %s93
      %p97 = pneg %p91
      %p98 = scmp.eq.s32.totalorder %s9, 1
      %p99 = por %p97, %p98
      %p100 = scmp.ne.s32.totalorder %s92, %s95
      %p101 = scmp.eq.s32.totalorder %s9, 0
      %p102 = por %p100, %p101
      %p103 = scmp.ne.s32.totalorder %s92, %s95
      %p104 = scmp.eq.s32.totalorder %s14, 1
      %p105 = por %p103, %p104
      %p106 = scmp.ne.s32.totalorder %s95, %s96
      %p107 = scmp.eq.s32.totalorder %s14, 0
      %p108 = por %p106, %p107
      %p109 = scmp.ne.s32.totalorder %s95, %s96
      %p110 = scmp.eq.s32.totalorder %s15, 1
      %p111 = por %p109, %p110
      %p113 = scmp.ne.s32.totalorder %s96, %s112
      %p114 = scmp.eq.s32.totalorder %s15, 0
      %p115 = por %p113, %p114
      %p116 = scmp.le.s32.totalorder 1, %s9
      %p117 = scmp.lt.s32.totalorder %s9, 3
      %p118 = pnand %p116, %p117
      %p119 = pneg %p118
      // Predicated region
      $region9: #{vec_cross_attn_block_forward.10} parent=5 // pred_check
        _
      $region10: #{vec_cross_attn_block_forward.10} parent=5 // pred_check_branch
        %121 = sbr.rel (%p118) target = $region12
      $region11: #{vec_cross_attn_block_forward.10} parent=5 // pred_region
        %s122 = ssub.s32 %s9, 1
        // Predicated region
        $region13: #{vec_cross_attn_block_forward.10} parent=11 // pred_check
          %p123 = pneg %p56
        $region14: #{vec_cross_attn_block_forward.10} parent=11 // pred_check_branch
          %125 = sbr.rel (%p123) target = $region16
        $region15: #{vec_cross_attn_block_forward.10} parent=11 // pred_region
          _
        $region16: #{vec_cross_attn_block_forward.10} parent=11 // pred_fallthru
          _
      $region12: #{vec_cross_attn_block_forward.10} parent=5 // pred_fallthru
        _
      %p126 = scmp.lt.s32.totalorder %s9, 2
      // Predicated region
      $region17: #{vec_cross_attn_block_forward.10} parent=5 // pred_check
        %p127 = pneg %p126
      $region18: #{vec_cross_attn_block_forward.10} parent=5 // pred_check_branch
        %129 = sbr.rel (%p127) target = $region20
      $region19: #{vec_cross_attn_block_forward.10} parent=5 // pred_region
        // Predicated region
        $region21: #{vec_cross_attn_block_forward.10} parent=19 // pred_check
          %p130 = pneg %p29
        $region22: #{vec_cross_attn_block_forward.10} parent=19 // pred_check_branch
          %132 = sbr.rel (%p130) target = $region24
        $region23: #{vec_cross_attn_block_forward.10} parent=19 // pred_region
          %s133 = sand.u32 %s19, 1
          %s134 = sand.u32 %s19, 1
          %s135 = smul.addr %s134, 12
          %s136 = scalar_lea.vmem [#allocation2], %s135
          %s137 = smul.addr %s9, 4
          %s138 = scalar_lea.vmem %s0, %s137
          // Predicated region
          $region25: #{vec_cross_attn_block_forward.10} parent=23 // pred_check
            _
          $region26: #{vec_cross_attn_block_forward.10} parent=23 // pred_check_branch
            %140 = sbr.rel (0) target = $region28
          $region27: #{vec_cross_attn_block_forward.10} parent=23 // pred_region
            // Predicated region
            $region29: #{vec_cross_attn_block_forward.10} parent=27 // pred_check
              _
            $region30: #{vec_cross_attn_block_forward.10} parent=27 // pred_check_branch
              %142 = sbr.rel target = $region32
            $region31: #{vec_cross_attn_block_forward.10} parent=27 // pred_region
              // Predicated region
              $region44: #{vec_cross_attn_block_forward.10} parent=31 // pred_check
                _
              $region45: #{vec_cross_attn_block_forward.10} parent=31 // pred_check_branch
                %162 = sbr.rel (0) target = $region47
              $region46: #{vec_cross_attn_block_forward.10} parent=31 // pred_region
                loop: start=0, step=1, limit=1
                $region48: #{vec_cross_attn_block_forward.10} parent=46 // loop_pre_header
                  _
                $region49: #{vec_cross_attn_block_forward.10} parent=46 // loop_header
                  %s164 = sphi 0, %s168
                  %p165 = scmp.ge.s32.totalorder %s164, 1
                  %s169 = sphi %s138, %s138
                  %s170 = sphi %s136, %s136
                $region50: #{vec_cross_attn_block_forward.10} parent=46 // loop_header_branch
                  %167 = sbr.rel (%p165) target = $region54
                $region51: #{vec_cross_attn_block_forward.10} parent=46 // loop_body
                  _
                $region52: #{vec_cross_attn_block_forward.10} parent=46 // loop_footer
                  %s168 = sadd.s32 1, %s164
                $region53: #{vec_cross_attn_block_forward.10} parent=46 // loop_footer_branch
                  %163 = sbr.rel target = $region49
                $region54: #{vec_cross_attn_block_forward.10} parent=46 // loop_exit
                  _
                %s172 = ssub.s32 16, 1
                loop: start=0, step=1, limit=1
                $region55: #{vec_cross_attn_block_forward.10} parent=46 // loop_pre_header
                  _
                $region56: #{vec_cross_attn_block_forward.10} parent=46 // loop_header
                  %s174 = sphi 0, %s178
                  %p175 = scmp.ge.s32.totalorder %s174, 1
                  %s179 = sphi %s138, %s138
                  %s180 = sphi %s136, %s136
                $region57: #{vec_cross_attn_block_forward.10} parent=46 // loop_header_branch
                  %177 = sbr.rel (%p175) target = $region61
                $region58: #{vec_cross_attn_block_forward.10} parent=46 // loop_body
                  %v181 = vld [vmem:[%s179] sm:%s172]
                  %182 = vst [vmem:[%s180] sm:%s172] %v181
                  %v183 = vld [vmem:[%s179 + $0x8] sm:%s172]
                  %184 = vst [vmem:[%s180 + $0x4] sm:%s172] %v183
                  %v185 = vld [vmem:[%s179 + $0x10] sm:%s172]
                  %186 = vst [vmem:[%s180 + $0x8] sm:%s172] %v185
                $region59: #{vec_cross_attn_block_forward.10} parent=46 // loop_footer
                  %s178 = sadd.s32 1, %s174
                $region60: #{vec_cross_attn_block_forward.10} parent=46 // loop_footer_branch
                  %173 = sbr.rel target = $region56
                $region61: #{vec_cross_attn_block_forward.10} parent=46 // loop_exit
                  _
              $region47: #{vec_cross_attn_block_forward.10} parent=31 // pred_fallthru
                _
            $region32: #{vec_cross_attn_block_forward.10} parent=27 // pred_fallthru
              _
            // Predicated region
            $region33: #{vec_cross_attn_block_forward.10} parent=27 // pred_check
              _
            $region34: #{vec_cross_attn_block_forward.10} parent=27 // pred_check_branch
              %144 = sbr.rel (0) target = $region36
            $region35: #{vec_cross_attn_block_forward.10} parent=27 // pred_region
              %s146 = ssub.s32 16, 1
              loop: start=0, step=1, limit=1
              $region37: #{vec_cross_attn_block_forward.10} parent=35 // loop_pre_header
                _
              $region38: #{vec_cross_attn_block_forward.10} parent=35 // loop_header
                %s148 = sphi 0, %s152
                %p149 = scmp.ge.s32.totalorder %s148, 1
                %s153 = sphi %s138, %s138
                %s154 = sphi %s136, %s136
              $region39: #{vec_cross_attn_block_forward.10} parent=35 // loop_header_branch
                %151 = sbr.rel (%p149) target = $region43
              $region40: #{vec_cross_attn_block_forward.10} parent=35 // loop_body
                %v155 = vld [vmem:[%s153] sm:%s146]
                %156 = vst [vmem:[%s154] sm:%s146] %v155
                %v157 = vld [vmem:[%s153 + $0x8] sm:%s146]
                %158 = vst [vmem:[%s154 + $0x4] sm:%s146] %v157
                %v159 = vld [vmem:[%s153 + $0x10] sm:%s146]
                %160 = vst [vmem:[%s154 + $0x8] sm:%s146] %v159
              $region41: #{vec_cross_attn_block_forward.10} parent=35 // loop_footer
                %s152 = sadd.s32 1, %s148
              $region42: #{vec_cross_attn_block_forward.10} parent=35 // loop_footer_branch
                %147 = sbr.rel target = $region38
              $region43: #{vec_cross_attn_block_forward.10} parent=35 // loop_exit
                _
            $region36: #{vec_cross_attn_block_forward.10} parent=27 // pred_fallthru
              _
          $region28: #{vec_cross_attn_block_forward.10} parent=23 // pred_fallthru
            _
          %187 = vnop
        $region24: #{vec_cross_attn_block_forward.10} parent=19 // pred_fallthru
          _
        // Predicated region
        $region62: #{vec_cross_attn_block_forward.10} parent=19 // pred_check
          %p188 = pneg %p76
        $region63: #{vec_cross_attn_block_forward.10} parent=19 // pred_check_branch
          %190 = sbr.rel (%p188) target = $region65
        $region64: #{vec_cross_attn_block_forward.10} parent=19 // pred_region
          %s191 = sand.u32 %s66, 1
          %s192 = sand.u32 %s66, 1
          %s193 = smul.addr %s192, 24
          %s194 = scalar_lea.vmem [#allocation3], %s193
          %s195 = smul.addr %s9, 8
          %s196 = scalar_lea.vmem %s2, %s195
          // Predicated region
          $region66: #{vec_cross_attn_block_forward.10} parent=64 // pred_check
            _
          $region67: #{vec_cross_attn_block_forward.10} parent=64 // pred_check_branch
            %198 = sbr.rel (0) target = $region69
          $region68: #{vec_cross_attn_block_forward.10} parent=64 // pred_region
            // Predicated region
            $region70: #{vec_cross_attn_block_forward.10} parent=68 // pred_check
              _
            $region71: #{vec_cross_attn_block_forward.10} parent=68 // pred_check_branch
              %200 = sbr.rel (0) target = $region73
            $region72: #{vec_cross_attn_block_forward.10} parent=68 // pred_region
              // Predicated region
              $region85: #{vec_cross_attn_block_forward.10} parent=72 // pred_check
                _
              $region86: #{vec_cross_attn_block_forward.10} parent=72 // pred_check_branch
                %220 = sbr.rel (0) target = $region88
              $region87: #{vec_cross_attn_block_forward.10} parent=72 // pred_region
                loop: start=0, step=1, limit=1
                $region89: #{vec_cross_attn_block_forward.10} parent=87 // loop_pre_header
                  _
                $region90: #{vec_cross_attn_block_forward.10} parent=87 // loop_header
                  %s222 = sphi 0, %s226
                  %p223 = scmp.ge.s32.totalorder %s222, 1
                  %s227 = sphi %s196, %s196
                  %s228 = sphi %s194, %s194
                $region91: #{vec_cross_attn_block_forward.10} parent=87 // loop_header_branch
                  %225 = sbr.rel (%p223) target = $region95
                $region92: #{vec_cross_attn_block_forward.10} parent=87 // loop_body
                  %v229 = vld [vmem:[%s227] sm:$0xff]
                  %230 = vst [vmem:[%s228] sm:$0xff] %v229
                  %v231 = vld [vmem:[%s227 + $0x10] sm:$0xff]
                  %232 = vst [vmem:[%s228 + $0x8] sm:$0xff] %v231
                  %v233 = vld [vmem:[%s227 + $0x20] sm:$0xff]
                  %234 = vst [vmem:[%s228 + $0x10] sm:$0xff] %v233
                $region93: #{vec_cross_attn_block_forward.10} parent=87 // loop_footer
                  %s226 = sadd.s32 1, %s222
                $region94: #{vec_cross_attn_block_forward.10} parent=87 // loop_footer_branch
                  %221 = sbr.rel target = $region90
                $region95: #{vec_cross_attn_block_forward.10} parent=87 // loop_exit
                  _
              $region88: #{vec_cross_attn_block_forward.10} parent=72 // pred_fallthru
                _
              // Predicated region
              $region96: #{vec_cross_attn_block_forward.10} parent=72 // pred_check
                _
              $region97: #{vec_cross_attn_block_forward.10} parent=72 // pred_check_branch
                %236 = sbr.rel target = $region99
              $region98: #{vec_cross_attn_block_forward.10} parent=72 // pred_region
                _
              $region99: #{vec_cross_attn_block_forward.10} parent=72 // pred_fallthru
                _
            $region73: #{vec_cross_attn_block_forward.10} parent=68 // pred_fallthru
              _
            // Predicated region
            $region74: #{vec_cross_attn_block_forward.10} parent=68 // pred_check
              _
            $region75: #{vec_cross_attn_block_forward.10} parent=68 // pred_check_branch
              %202 = sbr.rel target = $region77
            $region76: #{vec_cross_attn_block_forward.10} parent=68 // pred_region
              %s204 = ssub.s32 256, 1
              loop: start=0, step=1, limit=1
              $region78: #{vec_cross_attn_block_forward.10} parent=76 // loop_pre_header
                _
              $region79: #{vec_cross_attn_block_forward.10} parent=76 // loop_header
                %s206 = sphi 0, %s210
                %p207 = scmp.ge.s32.totalorder %s206, 1
                %s211 = sphi %s196, %s196
                %s212 = sphi %s194, %s194
              $region80: #{vec_cross_attn_block_forward.10} parent=76 // loop_header_branch
                %209 = sbr.rel (%p207) target = $region84
              $region81: #{vec_cross_attn_block_forward.10} parent=76 // loop_body
                %v213 = vld [vmem:[%s211] sm:%s204]
                %214 = vst [vmem:[%s212] sm:%s204] %v213
                %v215 = vld [vmem:[%s211 + $0x10] sm:%s204]
                %216 = vst [vmem:[%s212 + $0x8] sm:%s204] %v215
                %v217 = vld [vmem:[%s211 + $0x20] sm:%s204]
                %218 = vst [vmem:[%s212 + $0x10] sm:%s204] %v217
              $region82: #{vec_cross_attn_block_forward.10} parent=76 // loop_footer
                %s210 = sadd.s32 1, %s206
              $region83: #{vec_cross_attn_block_forward.10} parent=76 // loop_footer_branch
                %205 = sbr.rel target = $region79
              $region84: #{vec_cross_attn_block_forward.10} parent=76 // loop_exit
                _
            $region77: #{vec_cross_attn_block_forward.10} parent=68 // pred_fallthru
              _
          $region69: #{vec_cross_attn_block_forward.10} parent=64 // pred_fallthru
            _
          %237 = vnop
        $region65: #{vec_cross_attn_block_forward.10} parent=19 // pred_fallthru
          _
      $region20: #{vec_cross_attn_block_forward.10} parent=5 // pred_fallthru
        _
      %p238 = scmp.le.s32.totalorder 1, %s9
      %p239 = scmp.lt.s32.totalorder %s9, 3
      %p240 = pnand %p238, %p239
      %p241 = pneg %p240
      // Predicated region
      $region100: #{vec_cross_attn_block_forward.10} parent=5 // pred_check
        _
      $region101: #{vec_cross_attn_block_forward.10} parent=5 // pred_check_branch
        %243 = sbr.rel (%p240) target = $region103
      $region102: #{vec_cross_attn_block_forward.10} parent=5 // pred_region
        %s244 = ssub.s32 %s9, 1
        %s245 = sand.u32 %s22, 1
        %s246 = sand.u32 %s22, 1
        %s247 = smul.addr %s246, 12
        %s248 = scalar_lea.vmem [#allocation2], %s247
        // Predicated region
        $region104: #{vec_cross_attn_block_forward.10} parent=102 // pred_check
          %p249 = pneg %p35
        $region105: #{vec_cross_attn_block_forward.10} parent=102 // pred_check_branch
          %251 = sbr.rel (%p249) target = $region107
        $region106: #{vec_cross_attn_block_forward.10} parent=102 // pred_region
          _
        $region107: #{vec_cross_attn_block_forward.10} parent=102 // pred_fallthru
          _
        %s252 = sand.u32 %s69, 1
        %s253 = sand.u32 %s69, 1
        %s254 = smul.addr %s253, 24
        %s255 = scalar_lea.vmem [#allocation3], %s254
        // Predicated region
        $region108: #{vec_cross_attn_block_forward.10} parent=102 // pred_check
          %p256 = pneg %p82
        $region109: #{vec_cross_attn_block_forward.10} parent=102 // pred_check_branch
          %258 = sbr.rel (%p256) target = $region111
        $region110: #{vec_cross_attn_block_forward.10} parent=102 // pred_region
          _
        $region111: #{vec_cross_attn_block_forward.10} parent=102 // pred_fallthru
          _
        %s259 = sand.u32 %s22, 1
        %s260 = sand.u32 %s22, 1
        %s261 = smul.addr %s260, 12
        %s262 = scalar_lea.vmem [#allocation2], %s261
        %p263 = pneg %p35
        %p264 = pneg %p32
        %p265 = pneg %p56
        %p266 = pneg %p53
        %s267 = sand.u32 %s69, 1
        %s268 = sand.u32 %s69, 1
        %s269 = smul.addr %s268, 24
        %s270 = scalar_lea.vmem [#allocation3], %s269
        %p271 = pneg %p82
        %p272 = pneg %p79
        %p273 = pneg %p108
        %p274 = pneg %p105
        %s275 = sand.u32 %s95, 1
        %s276 = sand.u32 %s95, 1
        %s277 = smul.addr %s276, 24
        %s278 = scalar_lea.vmem [#allocation4], %s277
        %v280 = vld [vmem:[%s248] sm:$0xf]
        %v281 = vld [vmem:[%s248 + $0x4] sm:$0xf]
        %v282 = vld [vmem:[%s248 + $0x8] sm:$0xf]
        %v283 = vld [vmem:[%s1] sm:$0xf]
        %v287 = vunpack.c.l.b16 %v280
        %v288 = vunpack.c.l.b16 %v281
        %v289 = vunpack.c.l.b16 %v282
        %v290 = vpack.c.b16 %v288, %v287
        %v291 = vpack.c.b16 %v289, %v289
        %vm292 = vcmask 64512
        %v294 = vsel %vm292, %v290, 0
        %v297 = vsel %vm292, %v291, 0
        %vm299 = vcmask 1043456
        %v301 = vsel %vm299, %v283, 0
        %303 = vmatpush.bf16.msra.mxu0 0
        %304 = vmatpush.bf16.msra.mxu0 0
        %305 = vmatpush.bf16.msra.mxu0 0
        %306 = vmatpush.bf16.msra.mxu0 0
        %307 = vmatpush.bf16.msra.mxu0 0
        %308 = vmatpush.bf16.msra.mxu0 0
        %309 = vmatpush.bf16.msra.mxu0 0
        %310 = vmatpush.bf16.msra.mxu0 %v301
        %311 = vmatmul.bf16.gmra.mxu0 %v294
        %v312 = vpop.f32.mrf.mxu0
        %v313 = vadd.f32 0.0, %v312
        %v314 = vpop.f32.mrf.mxu0
        %v315 = vadd.f32 0.0, %v314
        %316 = vmatmul.bf16.gmra.mxu0 %v297
        %v317 = vpop.f32.mrf.mxu0
        %v318 = vadd.f32 0.0, %v317
        %v319 = vpop.f32.mrf.mxu0
        %320 = vdwg.mxu0
        %v321 = vld [vmem:[%s255] sm:$0xff]
        %v322 = vld [vmem:[%s255 + $0x8] sm:$0xff]
        %v323 = vld [vmem:[%s255 + $0x10] sm:$0xff]
        %v324 = vadd.f32 %v321, %v313
        %v325 = vadd.f32 %v322, %v315
        %v326 = vadd.f32 %v323, %v318
        %327 = vst.msk [vmem:[%s278] sm:$0xff] %vm292, %v324
        %328 = vst.msk [vmem:[%s278 + $0x8] sm:$0xff] %vm292, %v325
        %329 = vst.msk [vmem:[%s278 + $0x10] sm:$0xff] %vm292, %v326
        %s330 = sand.u32 %s95, 1
        %s331 = sand.u32 %s95, 1
        %s332 = smul.addr %s331, 24
        %s333 = scalar_lea.vmem [#allocation4], %s332
        // Predicated region
        $region112: #{vec_cross_attn_block_forward.10} parent=102 // pred_check
          %p334 = pneg %p105
        $region113: #{vec_cross_attn_block_forward.10} parent=102 // pred_check_branch
          %336 = sbr.rel (%p334) target = $region115
        $region114: #{vec_cross_attn_block_forward.10} parent=102 // pred_region
          %s337 = smul.addr %s14, 8
          %s338 = scalar_lea.vmem %s3, %s337
          // Predicated region
          $region116: #{vec_cross_attn_block_forward.10} parent=114 // pred_check
            _
          $region117: #{vec_cross_attn_block_forward.10} parent=114 // pred_check_branch
            %340 = sbr.rel (0) target = $region119
          $region118: #{vec_cross_attn_block_forward.10} parent=114 // pred_region
            // Predicated region
            $region120: #{vec_cross_attn_block_forward.10} parent=118 // pred_check
              _
            $region121: #{vec_cross_attn_block_forward.10} parent=118 // pred_check_branch
              %342 = sbr.rel (0) target = $region123
            $region122: #{vec_cross_attn_block_forward.10} parent=118 // pred_region
              // Predicated region
              $region135: #{vec_cross_attn_block_forward.10} parent=122 // pred_check
                _
              $region136: #{vec_cross_attn_block_forward.10} parent=122 // pred_check_branch
                %362 = sbr.rel (0) target = $region138
              $region137: #{vec_cross_attn_block_forward.10} parent=122 // pred_region
                loop: start=0, step=1, limit=1
                $region139: #{vec_cross_attn_block_forward.10} parent=137 // loop_pre_header
                  _
                $region140: #{vec_cross_attn_block_forward.10} parent=137 // loop_header
                  %s364 = sphi 0, %s368
                  %p365 = scmp.ge.s32.totalorder %s364, 1
                  %s369 = sphi %s333, %s333
                  %s370 = sphi %s338, %s338
                $region141: #{vec_cross_attn_block_forward.10} parent=137 // loop_header_branch
                  %367 = sbr.rel (%p365) target = $region145
                $region142: #{vec_cross_attn_block_forward.10} parent=137 // loop_body
                  %v371 = vld [vmem:[%s369] sm:$0xff]
                  %372 = vst [vmem:[%s370] sm:$0xff] %v371
                  %v373 = vld [vmem:[%s369 + $0x8] sm:$0xff]
                  %374 = vst [vmem:[%s370 + $0x10] sm:$0xff] %v373
                  %v375 = vld [vmem:[%s369 + $0x10] sm:$0xff]
                  %376 = vst [vmem:[%s370 + $0x20] sm:$0xff] %v375
                $region143: #{vec_cross_attn_block_forward.10} parent=137 // loop_footer
                  %s368 = sadd.s32 1, %s364
                $region144: #{vec_cross_attn_block_forward.10} parent=137 // loop_footer_branch
                  %363 = sbr.rel target = $region140
                $region145: #{vec_cross_attn_block_forward.10} parent=137 // loop_exit
                  _
              $region138: #{vec_cross_attn_block_forward.10} parent=122 // pred_fallthru
                _
              // Predicated region
              $region146: #{vec_cross_attn_block_forward.10} parent=122 // pred_check
                _
              $region147: #{vec_cross_attn_block_forward.10} parent=122 // pred_check_branch
                %378 = sbr.rel target = $region149
              $region148: #{vec_cross_attn_block_forward.10} parent=122 // pred_region
                _
              $region149: #{vec_cross_attn_block_forward.10} parent=122 // pred_fallthru
                _
            $region123: #{vec_cross_attn_block_forward.10} parent=118 // pred_fallthru
              _
            // Predicated region
            $region124: #{vec_cross_attn_block_forward.10} parent=118 // pred_check
              _
            $region125: #{vec_cross_attn_block_forward.10} parent=118 // pred_check_branch
              %344 = sbr.rel target = $region127
            $region126: #{vec_cross_attn_block_forward.10} parent=118 // pred_region
              %s346 = ssub.s32 256, 1
              loop: start=0, step=1, limit=1
              $region128: #{vec_cross_attn_block_forward.10} parent=126 // loop_pre_header
                _
              $region129: #{vec_cross_attn_block_forward.10} parent=126 // loop_header
                %s348 = sphi 0, %s352
                %p349 = scmp.ge.s32.totalorder %s348, 1
                %s353 = sphi %s333, %s333
                %s354 = sphi %s338, %s338
              $region130: #{vec_cross_attn_block_forward.10} parent=126 // loop_header_branch
                %351 = sbr.rel (%p349) target = $region134
              $region131: #{vec_cross_attn_block_forward.10} parent=126 // loop_body
                %v355 = vld [vmem:[%s353] sm:%s346]
                %356 = vst [vmem:[%s354] sm:%s346] %v355
                %v357 = vld [vmem:[%s353 + $0x8] sm:%s346]
                %358 = vst [vmem:[%s354 + $0x10] sm:%s346] %v357
                %v359 = vld [vmem:[%s353 + $0x10] sm:%s346]
                %360 = vst [vmem:[%s354 + $0x20] sm:%s346] %v359
              $region132: #{vec_cross_attn_block_forward.10} parent=126 // loop_footer
                %s352 = sadd.s32 1, %s348
              $region133: #{vec_cross_attn_block_forward.10} parent=126 // loop_footer_branch
                %347 = sbr.rel target = $region129
              $region134: #{vec_cross_attn_block_forward.10} parent=126 // loop_exit
                _
            $region127: #{vec_cross_attn_block_forward.10} parent=118 // pred_fallthru
              _
          $region119: #{vec_cross_attn_block_forward.10} parent=114 // pred_fallthru
            _
          %379 = vnop
        $region115: #{vec_cross_attn_block_forward.10} parent=102 // pred_fallthru
          _
      $region103: #{vec_cross_attn_block_forward.10} parent=5 // pred_fallthru
        _
      %p380 = scmp.le.s32.totalorder 2, %s9
      // Predicated region
      $region150: #{vec_cross_attn_block_forward.10} parent=5 // pred_check
        %p381 = pneg %p380
      $region151: #{vec_cross_attn_block_forward.10} parent=5 // pred_check_branch
        %383 = sbr.rel (%p381) target = $region153
      $region152: #{vec_cross_attn_block_forward.10} parent=5 // pred_region
        %s384 = ssub.s32 %s9, 2
        // Predicated region
        $region154: #{vec_cross_attn_block_forward.10} parent=152 // pred_check
          %p385 = pneg %p111
        $region155: #{vec_cross_attn_block_forward.10} parent=152 // pred_check_branch
          %387 = sbr.rel (%p385) target = $region157
        $region156: #{vec_cross_attn_block_forward.10} parent=152 // pred_region
          %s388 = sand.u32 %s96, 1
          %s389 = sand.u32 %s96, 1
          %s390 = smul.addr %s389, 24
          %s391 = scalar_lea.vmem [#allocation4], %s390
        $region157: #{vec_cross_attn_block_forward.10} parent=152 // pred_fallthru
          _
      $region153: #{vec_cross_attn_block_forward.10} parent=5 // pred_fallthru
        _
    $region6: #{vec_cross_attn_block_forward.10} parent=1 // loop_footer
      %s13 = sadd.s32 1, %s9
    $region7: #{vec_cross_attn_block_forward.10} parent=1 // loop_footer_branch
      %8 = sbr.rel target = $region3
    $region8: #{vec_cross_attn_block_forward.10} parent=1 // loop_exit
      _

// kernel: vec_cross_attn_block_forward.8
$region0: #{vec_cross_attn_block_forward.8}
  #allocation0 [shape = 'u32[]', space=smem, size = 0x4, offset = 0x4, fixed_abs, tag = 'smem constant byte address 0x4 - core index']
  #allocation1 [shape = 'u32[72,128]{1,0:T(1,128)}', space=vmem, size = 0x9000, scoped, tag = 'internal scratch']
  %s0 = inlined_call_operand.vmem [shape: f32[3,16,8], index: 0, kind: input, shape index: {}]
  %s1 = inlined_call_operand.vmem [shape: bf16[8,24], index: 1, kind: input, shape index: {}]
  %s2 = inlined_call_operand.vmem [shape: bf16[3,16,8], index: 2, kind: output, shape index: {0}]
  %s3 = inlined_call_operand.vmem [shape: bf16[3,16,8], index: 3, kind: output, shape index: {1}]
  %s4 = inlined_call_operand.vmem [shape: bf16[3,16,8], index: 4, kind: output, shape index: {2}]
  %5 = xla_tuple %s2, %s3, %s4
  %s6 = sld [smem:[#allocation0]]
  $region206: #{vec_cross_attn_block_forward.8} parent=0
    _
  %s8 = ssub.s32 1, %s6
  %s9 = scalar_select 0, %s8, %s6
  $region1: #{vec_cross_attn_block_forward.8} parent=0
    #allocation2 [shape = 'u8[24576]{0}', space=vmem, size = 0x6000, scoped, tag = 'input window, operand 0']
    #allocation3 [shape = 'u8[12288]{0}', space=vmem, size = 0x3000, scoped, tag = 'output window, operand 0']
    #allocation4 [shape = 'u8[12288]{0}', space=vmem, size = 0x3000, scoped, tag = 'output window, operand 1']
    #allocation5 [shape = 'u8[12288]{0}', space=vmem, size = 0x3000, scoped, tag = 'output window, operand 2']
    loop: start=0, step=1, limit=4
    $region2: #{vec_cross_attn_block_forward.8} parent=1 // loop_pre_header
      _
    $region3: #{vec_cross_attn_block_forward.8} parent=1 // loop_header
      %s11 = sphi 0, %s15
      %p12 = scmp.ge.s32.totalorder %s11, 4
      %s21 = sphi 0, %s23
      %s24 = sphi 0, %s21
      %s25 = sphi 0, %s24
      %s41 = sphi 0, %s25
      %s45 = sphi 0, %s45
      %s47 = sphi 0, %s45
      %s48 = sphi 0, %s47
      %s62 = sphi 0, %s48
      %s68 = sphi 0, %s70
      %s71 = sphi 0, %s68
      %s72 = sphi 0, %s71
      %s88 = sphi 0, %s72
      %s94 = sphi 0, %s96
      %s97 = sphi 0, %s94
      %s98 = sphi 0, %s97
      %s114 = sphi 0, %s98
      %s120 = sphi 0, %s122
      %s123 = sphi 0, %s120
      %s124 = sphi 0, %s123
      %s140 = sphi 0, %s124
    $region4: #{vec_cross_attn_block_forward.8} parent=1 // loop_header_branch
      %14 = sbr.rel (%p12) target = $region8
    $region5: #{vec_cross_attn_block_forward.8} parent=1 // loop_body
      %s16 = ssub.s32 %s11, 1
      %s17 = ssub.s32 %s11, 2
      %s18 = sadd.s32 %s11, 1
      %s19 = ssub.s32 %s11, %s18
      %p20 = scmp.eq.s32.totalorder %s19, 0
      %s22 = sadd.s32 %s21, 1
      %s23 = scalar_select %p20, %s21, %s22
      %p26 = pneg %p20
      %p27 = scmp.eq.s32.totalorder %s11, 1
      %p28 = por %p26, %p27
      %p29 = scmp.ne.s32.totalorder %s21, %s24
      %p30 = scmp.eq.s32.totalorder %s11, 0
      %p31 = por %p29, %p30
      %p32 = scmp.ne.s32.totalorder %s21, %s24
      %p33 = scmp.eq.s32.totalorder %s16, 1
      %p34 = por %p32, %p33
      %p35 = scmp.ne.s32.totalorder %s24, %s25
      %p36 = scmp.eq.s32.totalorder %s16, 0
      %p37 = por %p35, %p36
      %p38 = scmp.ne.s32.totalorder %s24, %s25
      %p39 = scmp.eq.s32.totalorder %s17, 1
      %p40 = por %p38, %p39
      %p42 = scmp.ne.s32.totalorder %s25, %s41
      %p43 = scmp.eq.s32.totalorder %s17, 0
      %p44 = por %p42, %p43
      %s46 = sadd.s32 %s45, 1
      %p49 = scmp.eq.s32.totalorder %s11, 1
      %p50 = scmp.ne.s32.totalorder %s45, %s47
      %p51 = scmp.eq.s32.totalorder %s11, 0
      %p52 = por %p50, %p51
      %p53 = scmp.ne.s32.totalorder %s45, %s47
      %p54 = scmp.eq.s32.totalorder %s16, 1
      %p55 = por %p53, %p54
      %p56 = scmp.ne.s32.totalorder %s47, %s48
      %p57 = scmp.eq.s32.totalorder %s16, 0
      %p58 = por %p56, %p57
      %p59 = scmp.ne.s32.totalorder %s47, %s48
      %p60 = scmp.eq.s32.totalorder %s17, 1
      %p61 = por %p59, %p60
      %p63 = scmp.ne.s32.totalorder %s48, %s62
      %p64 = scmp.eq.s32.totalorder %s17, 0
      %p65 = por %p63, %p64
      %s66 = ssub.s32 %s11, %s18
      %p67 = scmp.eq.s32.totalorder %s66, 0
      %s69 = sadd.s32 %s68, 1
      %s70 = scalar_select %p67, %s68, %s69
      %p73 = pneg %p67
      %p74 = scmp.eq.s32.totalorder %s11, 1
      %p75 = por %p73, %p74
      %p76 = scmp.ne.s32.totalorder %s68, %s71
      %p77 = scmp.eq.s32.totalorder %s11, 0
      %p78 = por %p76, %p77
      %p79 = scmp.ne.s32.totalorder %s68, %s71
      %p80 = scmp.eq.s32.totalorder %s16, 1
      %p81 = por %p79, %p80
      %p82 = scmp.ne.s32.totalorder %s71, %s72
      %p83 = scmp.eq.s32.totalorder %s16, 0
      %p84 = por %p82, %p83
      %p85 = scmp.ne.s32.totalorder %s71, %s72
      %p86 = scmp.eq.s32.totalorder %s17, 1
      %p87 = por %p85, %p86
      %p89 = scmp.ne.s32.totalorder %s72, %s88
      %p90 = scmp.eq.s32.totalorder %s17, 0
      %p91 = por %p89, %p90
      %s92 = ssub.s32 %s11, %s18
      %p93 = scmp.eq.s32.totalorder %s92, 0
      %s95 = sadd.s32 %s94, 1
      %s96 = scalar_select %p93, %s94, %s95
      %p99 = pneg %p93
      %p100 = scmp.eq.s32.totalorder %s11, 1
      %p101 = por %p99, %p100
      %p102 = scmp.ne.s32.totalorder %s94, %s97
      %p103 = scmp.eq.s32.totalorder %s11, 0
      %p104 = por %p102, %p103
      %p105 = scmp.ne.s32.totalorder %s94, %s97
      %p106 = scmp.eq.s32.totalorder %s16, 1
      %p107 = por %p105, %p106
      %p108 = scmp.ne.s32.totalorder %s97, %s98
      %p109 = scmp.eq.s32.totalorder %s16, 0
      %p110 = por %p108, %p109
      %p111 = scmp.ne.s32.totalorder %s97, %s98
      %p112 = scmp.eq.s32.totalorder %s17, 1
      %p113 = por %p111, %p112
      %p115 = scmp.ne.s32.totalorder %s98, %s114
      %p116 = scmp.eq.s32.totalorder %s17, 0
      %p117 = por %p115, %p116
      %s118 = ssub.s32 %s11, %s18
      %p119 = scmp.eq.s32.totalorder %s118, 0
      %s121 = sadd.s32 %s120, 1
      %s122 = scalar_select %p119, %s120, %s121
      %p125 = pneg %p119
      %p126 = scmp.eq.s32.totalorder %s11, 1
      %p127 = por %p125, %p126
      %p128 = scmp.ne.s32.totalorder %s120, %s123
      %p129 = scmp.eq.s32.totalorder %s11, 0
      %p130 = por %p128, %p129
      %p131 = scmp.ne.s32.totalorder %s120, %s123
      %p132 = scmp.eq.s32.totalorder %s16, 1
      %p133 = por %p131, %p132
      %p134 = scmp.ne.s32.totalorder %s123, %s124
      %p135 = scmp.eq.s32.totalorder %s16, 0
      %p136 = por %p134, %p135
      %p137 = scmp.ne.s32.totalorder %s123, %s124
      %p138 = scmp.eq.s32.totalorder %s17, 1
      %p139 = por %p137, %p138
      %p141 = scmp.ne.s32.totalorder %s124, %s140
      %p142 = scmp.eq.s32.totalorder %s17, 0
      %p143 = por %p141, %p142
      %p144 = scmp.le.s32.totalorder 1, %s11
      %p145 = scmp.lt.s32.totalorder %s11, 3
      %p146 = pnand %p144, %p145
      %p147 = pneg %p146
      // Predicated region
      $region9: #{vec_cross_attn_block_forward.8} parent=5 // pred_check
        _
      $region10: #{vec_cross_attn_block_forward.8} parent=5 // pred_check_branch
        %149 = sbr.rel (%p146) target = $region12
      $region11: #{vec_cross_attn_block_forward.8} parent=5 // pred_region
        %s150 = ssub.s32 %s11, 1
        // Predicated region
        $region13: #{vec_cross_attn_block_forward.8} parent=11 // pred_check
          %p151 = pneg %p58
        $region14: #{vec_cross_attn_block_forward.8} parent=11 // pred_check_branch
          %153 = sbr.rel (%p151) target = $region16
        $region15: #{vec_cross_attn_block_forward.8} parent=11 // pred_region
          _
        $region16: #{vec_cross_attn_block_forward.8} parent=11 // pred_fallthru
          _
      $region12: #{vec_cross_attn_block_forward.8} parent=5 // pred_fallthru
        _
      %p154 = scmp.lt.s32.totalorder %s11, 2
      // Predicated region
      $region17: #{vec_cross_attn_block_forward.8} parent=5 // pred_check
        %p155 = pneg %p154
      $region18: #{vec_cross_attn_block_forward.8} parent=5 // pred_check_branch
        %157 = sbr.rel (%p155) target = $region20
      $region19: #{vec_cross_attn_block_forward.8} parent=5 // pred_region
        // Predicated region
        $region21: #{vec_cross_attn_block_forward.8} parent=19 // pred_check
          %p158 = pneg %p31
        $region22: #{vec_cross_attn_block_forward.8} parent=19 // pred_check_branch
          %160 = sbr.rel (%p158) target = $region24
        $region23: #{vec_cross_attn_block_forward.8} parent=19 // pred_region
          %s161 = sand.u32 %s21, 1
          %s162 = sand.u32 %s21, 1
          %s163 = smul.addr %s162, 24
          %s164 = scalar_lea.vmem [#allocation2], %s163
          %s165 = smul.addr %s11, 8
          %s166 = scalar_lea.vmem %s0, %s165
          // Predicated region
          $region25: #{vec_cross_attn_block_forward.8} parent=23 // pred_check
            _
          $region26: #{vec_cross_attn_block_forward.8} parent=23 // pred_check_branch
            %168 = sbr.rel (0) target = $region28
          $region27: #{vec_cross_attn_block_forward.8} parent=23 // pred_region
            // Predicated region
            $region29: #{vec_cross_attn_block_forward.8} parent=27 // pred_check
              _
            $region30: #{vec_cross_attn_block_forward.8} parent=27 // pred_check_branch
              %170 = sbr.rel (0) target = $region32
            $region31: #{vec_cross_attn_block_forward.8} parent=27 // pred_region
              // Predicated region
              $region44: #{vec_cross_attn_block_forward.8} parent=31 // pred_check
                _
              $region45: #{vec_cross_attn_block_forward.8} parent=31 // pred_check_branch
                %190 = sbr.rel (0) target = $region47
              $region46: #{vec_cross_attn_block_forward.8} parent=31 // pred_region
                loop: start=0, step=1, limit=1
                $region48: #{vec_cross_attn_block_forward.8} parent=46 // loop_pre_header
                  _
                $region49: #{vec_cross_attn_block_forward.8} parent=46 // loop_header
                  %s192 = sphi 0, %s196
                  %p193 = scmp.ge.s32.totalorder %s192, 1
                  %s197 = sphi %s166, %s166
                  %s198 = sphi %s164, %s164
                $region50: #{vec_cross_attn_block_forward.8} parent=46 // loop_header_branch
                  %195 = sbr.rel (%p193) target = $region54
                $region51: #{vec_cross_attn_block_forward.8} parent=46 // loop_body
                  %v199 = vld [vmem:[%s197] sm:$0xff]
                  %200 = vst [vmem:[%s198] sm:$0xff] %v199
                  %v201 = vld [vmem:[%s197 + $0x10] sm:$0xff]
                  %202 = vst [vmem:[%s198 + $0x8] sm:$0xff] %v201
                  %v203 = vld [vmem:[%s197 + $0x20] sm:$0xff]
                  %204 = vst [vmem:[%s198 + $0x10] sm:$0xff] %v203
                $region52: #{vec_cross_attn_block_forward.8} parent=46 // loop_footer
                  %s196 = sadd.s32 1, %s192
                $region53: #{vec_cross_attn_block_forward.8} parent=46 // loop_footer_branch
                  %191 = sbr.rel target = $region49
                $region54: #{vec_cross_attn_block_forward.8} parent=46 // loop_exit
                  _
              $region47: #{vec_cross_attn_block_forward.8} parent=31 // pred_fallthru
                _
              // Predicated region
              $region55: #{vec_cross_attn_block_forward.8} parent=31 // pred_check
                _
              $region56: #{vec_cross_attn_block_forward.8} parent=31 // pred_check_branch
                %206 = sbr.rel target = $region58
              $region57: #{vec_cross_attn_block_forward.8} parent=31 // pred_region
                _
              $region58: #{vec_cross_attn_block_forward.8} parent=31 // pred_fallthru
                _
            $region32: #{vec_cross_attn_block_forward.8} parent=27 // pred_fallthru
              _
            // Predicated region
            $region33: #{vec_cross_attn_block_forward.8} parent=27 // pred_check
              _
            $region34: #{vec_cross_attn_block_forward.8} parent=27 // pred_check_branch
              %172 = sbr.rel target = $region36
            $region35: #{vec_cross_attn_block_forward.8} parent=27 // pred_region
              %s174 = ssub.s32 256, 1
              loop: start=0, step=1, limit=1
              $region37: #{vec_cross_attn_block_forward.8} parent=35 // loop_pre_header
                _
              $region38: #{vec_cross_attn_block_forward.8} parent=35 // loop_header
                %s176 = sphi 0, %s180
                %p177 = scmp.ge.s32.totalorder %s176, 1
                %s181 = sphi %s166, %s166
                %s182 = sphi %s164, %s164
              $region39: #{vec_cross_attn_block_forward.8} parent=35 // loop_header_branch
                %179 = sbr.rel (%p177) target = $region43
              $region40: #{vec_cross_attn_block_forward.8} parent=35 // loop_body
                %v183 = vld [vmem:[%s181] sm:%s174]
                %184 = vst [vmem:[%s182] sm:%s174] %v183
                %v185 = vld [vmem:[%s181 + $0x10] sm:%s174]
                %186 = vst [vmem:[%s182 + $0x8] sm:%s174] %v185
                %v187 = vld [vmem:[%s181 + $0x20] sm:%s174]
                %188 = vst [vmem:[%s182 + $0x10] sm:%s174] %v187
              $region41: #{vec_cross_attn_block_forward.8} parent=35 // loop_footer
                %s180 = sadd.s32 1, %s176
              $region42: #{vec_cross_attn_block_forward.8} parent=35 // loop_footer_branch
                %175 = sbr.rel target = $region38
              $region43: #{vec_cross_attn_block_forward.8} parent=35 // loop_exit
                _
            $region36: #{vec_cross_attn_block_forward.8} parent=27 // pred_fallthru
              _
          $region28: #{vec_cross_attn_block_forward.8} parent=23 // pred_fallthru
            _
          %207 = vnop
        $region24: #{vec_cross_attn_block_forward.8} parent=19 // pred_fallthru
          _
      $region20: #{vec_cross_attn_block_forward.8} parent=5 // pred_fallthru
        _
      %p208 = scmp.le.s32.totalorder 1, %s11
      %p209 = scmp.lt.s32.totalorder %s11, 3
      %p210 = pnand %p208, %p209
      %p211 = pneg %p210
      // Predicated region
      $region59: #{vec_cross_attn_block_forward.8} parent=5 // pred_check
        _
      $region60: #{vec_cross_attn_block_forward.8} parent=5 // pred_check_branch
        %213 = sbr.rel (%p210) target = $region62
      $region61: #{vec_cross_attn_block_forward.8} parent=5 // pred_region
        %s214 = ssub.s32 %s11, 1
        %s215 = sand.u32 %s24, 1
        %s216 = sand.u32 %s24, 1
        %s217 = smul.addr %s216, 24
        %s218 = scalar_lea.vmem [#allocation2], %s217
        // Predicated region
        $region63: #{vec_cross_attn_block_forward.8} parent=61 // pred_check
          %p219 = pneg %p37
        $region64: #{vec_cross_attn_block_forward.8} parent=61 // pred_check_branch
          %221 = sbr.rel (%p219) target = $region66
        $region65: #{vec_cross_attn_block_forward.8} parent=61 // pred_region
          _
        $region66: #{vec_cross_attn_block_forward.8} parent=61 // pred_fallthru
          _
        %s222 = sand.u32 %s24, 1
        %s223 = sand.u32 %s24, 1
        %s224 = smul.addr %s223, 24
        %s225 = scalar_lea.vmem [#allocation2], %s224
        %p226 = pneg %p37
        %p227 = pneg %p34
        %p228 = pneg %p58
        %p229 = pneg %p55
        %p230 = pneg %p84
        %p231 = pneg %p81
        %s232 = sand.u32 %s71, 1
        %s233 = sand.u32 %s71, 1
        %s234 = smul.addr %s233, 12
        %s235 = scalar_lea.vmem [#allocation3], %s234
        %p236 = pneg %p110
        %p237 = pneg %p107
        %s238 = sand.u32 %s97, 1
        %s239 = sand.u32 %s97, 1
        %s240 = smul.addr %s239, 12
        %s241 = scalar_lea.vmem [#allocation4], %s240
        %p242 = pneg %p136
        %p243 = pneg %p133
        %s244 = sand.u32 %s123, 1
        %s245 = sand.u32 %s123, 1
        %s246 = smul.addr %s245, 12
        %s247 = scalar_lea.vmem [#allocation5], %s246
        %v249 = vld [vmem:[%s218] sm:$0xff]
        %v250 = vld [vmem:[%s218 + $0x8] sm:$0xff]
        %v251 = vld [vmem:[%s218 + $0x10] sm:$0xff]
        %v252 = vmul.f32 %v249, %v249
        %v253 = vmul.f32 %v250, %v250
        %v254 = vmul.f32 %v251, %v251
        %vm255 = vcmask 64512
        %v256 = vsel %vm255, %v252, 0.0
        %v257 = vsel %vm255, %v253, 0.0
        %v258 = vadd.f32 %v256, %v257
        %v259 = vsel %vm255, %v254, 0.0
        %v260 = vadd.f32 %v258, %v259
        %v261 = vsel %vm255, %v260, 0.0
        %262 = vadd.xlane.f32.xlu0 %v261
        %v263 = vpop.xlane.xlu0 %262
        %v264 = vrcp.pop 8.0
        %v265 = vmul.f32 8.0, %v264
        %v266 = vsub.f32 1.0, %v265
        %v267 = vmul.f32 %v264, %v266
        %v268 = vadd.f32 %v264, %v267
        %vm269 = vweird.f32 %v264
        %v270 = vsel %vm269, %v264, %v268
        %v271 = vmul.f32 %v263, %v270
        %v272 = vrsqrt.pop %v271
        %v273 = vmul.f32 %v272, %v271
        %v274 = vmul.f32 %v273, %v272
        %v275 = vmul.f32 0.5, %v274
        %v276 = vsub.f32 1.5, %v275
        %v277 = vmul.f32 %v272, %v276
        %v278 = vmul.f32 %v271, %v277
        %vm279 = vcmp.eq.f32.partialorder %v271, inf
        %v280 = vsel %vm279, %v271, %v278
        %vm281 = vcmp.eq.f32.partialorder %v271, 0.0
        %v282 = vand.u32 %v271, 2147483648
        %v283 = vsel %vm281, %v282, %v280
        %v284 = vadd.f32 %v283, 1e-06
        %v285 = vrcp.pop %v284
        %v286 = vmul.f32 %v284, %v285
        %v287 = vsub.f32 1.0, %v286
        %v288 = vmul.f32 %v285, %v287
        %v289 = vadd.f32 %v285, %v288
        %vm290 = vweird.f32 %v284
        %vm291 = vweird.f32 %v285
        %vm292 = vmor %vm290, %vm291
        %v293 = vsel %vm292, %v285, %v289
        %v294 = vand.u32 2147483647, %v284
        %vm295 = vcmp.eq.f32.partialorder %v294, 8.507059e+37
        %v296 = vand.u32 %v284, 2147483648
        %v297 = vor.u32 1.1754944e-38, %v296
        %v298 = vsel %vm295, %v297, %v293
        %v299 = vmul.f32 1.0, %v298
        %v300 = vmul.f32 %v249, %v299
        %v301 = vmul.f32 %v250, %v299
        %v302 = vmul.f32 %v251, %v299
        %v303 = vpack.c.bf16 %v300, %v300
        %v304 = vpack.c.bf16 %v301, %v301
        %v305 = vpack.c.bf16 %v302, %v302
        %v306 = vld [vmem:[%s1] sm:$0xf]
        %v310 = vunpack.c.l.b16 %v303
        %v311 = vunpack.c.l.b16 %v304
        %v312 = vunpack.c.l.b16 %v305
        %v313 = vpack.c.b16 %v311, %v310
        %v314 = vpack.c.b16 %v312, %v312
        %v316 = vsel %vm255, %v313, 0
        %v319 = vsel %vm255, %v314, 0
        %vm321 = vcmask 1043456
        %v323 = vsel %vm321, %v306, 0
        %325 = vmatpush.bf16.msra.mxu0 0
        %326 = vmatpush.bf16.msra.mxu0 0
        %327 = vmatpush.bf16.msra.mxu0 0
        %328 = vmatpush.bf16.msra.mxu0 0
        %329 = vmatpush.bf16.msra.mxu0 0
        %330 = vmatpush.bf16.msra.mxu0 0
        %331 = vmatpush.bf16.msra.mxu0 0
        %332 = vmatpush.bf16.msra.mxu0 %v323
        %333 = vmatmul.bf16.gmra.mxu0 %v316
        %v334 = vpop.f32.mrf.mxu0
        %v335 = vadd.f32 0.0, %v334
        %v336 = vpop.f32.mrf.mxu0
        %v337 = vadd.f32 0.0, %v336
        %338 = vmatmul.bf16.gmra.mxu0 %v319
        %v339 = vpop.f32.mrf.mxu0
        %v340 = vadd.f32 0.0, %v339
        %v341 = vpop.f32.mrf.mxu0
        %342 = vdwg.mxu0
        %v343 = vpack.c.bf16 %v335, %v335
        %v344 = vpack.c.bf16 %v337, %v337
        %v345 = vpack.c.bf16 %v340, %v340
        %vm346 = vcmask 60416
        %347 = vst.msk [vmem:[%s235] sm:$0xf] %vm346, %v343
        %348 = vst.msk [vmem:[%s235 + $0x4] sm:$0xf] %vm346, %v344
        %349 = vst.msk [vmem:[%s235 + $0x8] sm:$0xf] %vm346, %v345
        %353 = vrot.lane.b32.xlu0 %v343, 120
        %v354 = vpop.permute.xlu0 %353
        %355 = vrot.lane.b32.xlu0 %v344, 120
        %v356 = vpop.permute.xlu0 %355
        %357 = vrot.lane.b32.xlu0 %v345, 120
        %v358 = vpop.permute.xlu0 %357
        %362 = vst.msk [vmem:[%s241] sm:$0xf] %vm346, %v354
        %363 = vst.msk [vmem:[%s241 + $0x4] sm:$0xf] %vm346, %v356
        %364 = vst.msk [vmem:[%s241 + $0x8] sm:$0xf] %vm346, %v358
        %365 = vrot.lane.b32.xlu0 %v343, 112
        %v366 = vpop.permute.xlu0 %365
        %367 = vrot.lane.b32.xlu0 %v344, 112
        %v368 = vpop.permute.xlu0 %367
        %369 = vrot.lane.b32.xlu0 %v345, 112
        %v370 = vpop.permute.xlu0 %369
        %374 = vst.msk [vmem:[%s247] sm:$0xf] %vm346, %v366
        %375 = vst.msk [vmem:[%s247 + $0x4] sm:$0xf] %vm346, %v368
        %376 = vst.msk [vmem:[%s247 + $0x8] sm:$0xf] %vm346, %v370
        %s377 = sand.u32 %s71, 1
        %s378 = sand.u32 %s71, 1
        %s379 = smul.addr %s378, 12
        %s380 = scalar_lea.vmem [#allocation3], %s379
        %s381 = sand.u32 %s97, 1
        %s382 = sand.u32 %s97, 1
        %s383 = smul.addr %s382, 12
        %s384 = scalar_lea.vmem [#allocation4], %s383
        %s385 = sand.u32 %s123, 1
        %s386 = sand.u32 %s123, 1
        %s387 = smul.addr %s386, 12
        %s388 = scalar_lea.vmem [#allocation5], %s387
        // Predicated region
        $region67: #{vec_cross_attn_block_forward.8} parent=61 // pred_check
          %p389 = pneg %p81
        $region68: #{vec_cross_attn_block_forward.8} parent=61 // pred_check_branch
          %391 = sbr.rel (%p389) target = $region70
        $region69: #{vec_cross_attn_block_forward.8} parent=61 // pred_region
          %s392 = smul.addr %s16, 4
          %s393 = scalar_lea.vmem %s2, %s392
          // Predicated region
          $region71: #{vec_cross_attn_block_forward.8} parent=69 // pred_check
            _
          $region72: #{vec_cross_attn_block_forward.8} parent=69 // pred_check_branch
            %395 = sbr.rel (0) target = $region74
          $region73: #{vec_cross_attn_block_forward.8} parent=69 // pred_region
            // Predicated region
            $region75: #{vec_cross_attn_block_forward.8} parent=73 // pred_check
              _
            $region76: #{vec_cross_attn_block_forward.8} parent=73 // pred_check_branch
              %397 = sbr.rel target = $region78
            $region77: #{vec_cross_attn_block_forward.8} parent=73 // pred_region
              // Predicated region
              $region90: #{vec_cross_attn_block_forward.8} parent=77 // pred_check
                _
              $region91: #{vec_cross_attn_block_forward.8} parent=77 // pred_check_branch
                %417 = sbr.rel (0) target = $region93
              $region92: #{vec_cross_attn_block_forward.8} parent=77 // pred_region
                loop: start=0, step=1, limit=1
                $region94: #{vec_cross_attn_block_forward.8} parent=92 // loop_pre_header
                  _
                $region95: #{vec_cross_attn_block_forward.8} parent=92 // loop_header
                  %s419 = sphi 0, %s423
                  %p420 = scmp.ge.s32.totalorder %s419, 1
                  %s424 = sphi %s380, %s380
                  %s425 = sphi %s393, %s393
                $region96: #{vec_cross_attn_block_forward.8} parent=92 // loop_header_branch
                  %422 = sbr.rel (%p420) target = $region100
                $region97: #{vec_cross_attn_block_forward.8} parent=92 // loop_body
                  _
                $region98: #{vec_cross_attn_block_forward.8} parent=92 // loop_footer
                  %s423 = sadd.s32 1, %s419
                $region99: #{vec_cross_attn_block_forward.8} parent=92 // loop_footer_branch
                  %418 = sbr.rel target = $region95
                $region100: #{vec_cross_attn_block_forward.8} parent=92 // loop_exit
                  _
                %s427 = ssub.s32 16, 1
                loop: start=0, step=1, limit=1
                $region101: #{vec_cross_attn_block_forward.8} parent=92 // loop_pre_header
                  _
                $region102: #{vec_cross_attn_block_forward.8} parent=92 // loop_header
                  %s429 = sphi 0, %s433
                  %p430 = scmp.ge.s32.totalorder %s429, 1
                  %s434 = sphi %s380, %s380
                  %s435 = sphi %s393, %s393
                $region103: #{vec_cross_attn_block_forward.8} parent=92 // loop_header_branch
                  %432 = sbr.rel (%p430) target = $region107
                $region104: #{vec_cross_attn_block_forward.8} parent=92 // loop_body
                  %v436 = vld [vmem:[%s434] sm:%s427]
                  %437 = vst [vmem:[%s435] sm:%s427] %v436
                  %v438 = vld [vmem:[%s434 + $0x4] sm:%s427]
                  %439 = vst [vmem:[%s435 + $0x8] sm:%s427] %v438
                  %v440 = vld [vmem:[%s434 + $0x8] sm:%s427]
                  %441 = vst [vmem:[%s435 + $0x10] sm:%s427] %v440
                $region105: #{vec_cross_attn_block_forward.8} parent=92 // loop_footer
                  %s433 = sadd.s32 1, %s429
                $region106: #{vec_cross_attn_block_forward.8} parent=92 // loop_footer_branch
                  %428 = sbr.rel target = $region102
                $region107: #{vec_cross_attn_block_forward.8} parent=92 // loop_exit
                  _
              $region93: #{vec_cross_attn_block_forward.8} parent=77 // pred_fallthru
                _
            $region78: #{vec_cross_attn_block_forward.8} parent=73 // pred_fallthru
              _
            // Predicated region
            $region79: #{vec_cross_attn_block_forward.8} parent=73 // pred_check
              _
            $region80: #{vec_cross_attn_block_forward.8} parent=73 // pred_check_branch
              %399 = sbr.rel (0) target = $region82
            $region81: #{vec_cross_attn_block_forward.8} parent=73 // pred_region
              %s401 = ssub.s32 16, 1
              loop: start=0, step=1, limit=1
              $region83: #{vec_cross_attn_block_forward.8} parent=81 // loop_pre_header
                _
              $region84: #{vec_cross_attn_block_forward.8} parent=81 // loop_header
                %s403 = sphi 0, %s407
                %p404 = scmp.ge.s32.totalorder %s403, 1
                %s408 = sphi %s380, %s380
                %s409 = sphi %s393, %s393
              $region85: #{vec_cross_attn_block_forward.8} parent=81 // loop_header_branch
                %406 = sbr.rel (%p404) target = $region89
              $region86: #{vec_cross_attn_block_forward.8} parent=81 // loop_body
                %v410 = vld [vmem:[%s408] sm:%s401]
                %411 = vst [vmem:[%s409] sm:%s401] %v410
                %v412 = vld [vmem:[%s408 + $0x4] sm:%s401]
                %413 = vst [vmem:[%s409 + $0x8] sm:%s401] %v412
                %v414 = vld [vmem:[%s408 + $0x8] sm:%s401]
                %415 = vst [vmem:[%s409 + $0x10] sm:%s401] %v414
              $region87: #{vec_cross_attn_block_forward.8} parent=81 // loop_footer
                %s407 = sadd.s32 1, %s403
              $region88: #{vec_cross_attn_block_forward.8} parent=81 // loop_footer_branch
                %402 = sbr.rel target = $region84
              $region89: #{vec_cross_attn_block_forward.8} parent=81 // loop_exit
                _
            $region82: #{vec_cross_attn_block_forward.8} parent=73 // pred_fallthru
              _
          $region74: #{vec_cross_attn_block_forward.8} parent=69 // pred_fallthru
            _
          %442 = vnop
        $region70: #{vec_cross_attn_block_forward.8} parent=61 // pred_fallthru
          _
        // Predicated region
        $region108: #{vec_cross_attn_block_forward.8} parent=61 // pred_check
          %p443 = pneg %p107
        $region109: #{vec_cross_attn_block_forward.8} parent=61 // pred_check_branch
          %445 = sbr.rel (%p443) target = $region111
        $region110: #{vec_cross_attn_block_forward.8} parent=61 // pred_region
          %s446 = smul.addr %s16, 4
          %s447 = scalar_lea.vmem %s3, %s446
          // Predicated region
          $region112: #{vec_cross_attn_block_forward.8} parent=110 // pred_check
            _
          $region113: #{vec_cross_attn_block_forward.8} parent=110 // pred_check_branch
            %449 = sbr.rel (0) target = $region115
          $region114: #{vec_cross_attn_block_forward.8} parent=110 // pred_region
            // Predicated region
            $region116: #{vec_cross_attn_block_forward.8} parent=114 // pred_check
              _
            $region117: #{vec_cross_attn_block_forward.8} parent=114 // pred_check_branch
              %451 = sbr.rel target = $region119
            $region118: #{vec_cross_attn_block_forward.8} parent=114 // pred_region
              // Predicated region
              $region131: #{vec_cross_attn_block_forward.8} parent=118 // pred_check
                _
              $region132: #{vec_cross_attn_block_forward.8} parent=118 // pred_check_branch
                %471 = sbr.rel (0) target = $region134
              $region133: #{vec_cross_attn_block_forward.8} parent=118 // pred_region
                loop: start=0, step=1, limit=1
                $region135: #{vec_cross_attn_block_forward.8} parent=133 // loop_pre_header
                  _
                $region136: #{vec_cross_attn_block_forward.8} parent=133 // loop_header
                  %s473 = sphi 0, %s477
                  %p474 = scmp.ge.s32.totalorder %s473, 1
                  %s478 = sphi %s384, %s384
                  %s479 = sphi %s447, %s447
                $region137: #{vec_cross_attn_block_forward.8} parent=133 // loop_header_branch
                  %476 = sbr.rel (%p474) target = $region141
                $region138: #{vec_cross_attn_block_forward.8} parent=133 // loop_body
                  _
                $region139: #{vec_cross_attn_block_forward.8} parent=133 // loop_footer
                  %s477 = sadd.s32 1, %s473
                $region140: #{vec_cross_attn_block_forward.8} parent=133 // loop_footer_branch
                  %472 = sbr.rel target = $region136
                $region141: #{vec_cross_attn_block_forward.8} parent=133 // loop_exit
                  _
                %s481 = ssub.s32 16, 1
                loop: start=0, step=1, limit=1
                $region142: #{vec_cross_attn_block_forward.8} parent=133 // loop_pre_header
                  _
                $region143: #{vec_cross_attn_block_forward.8} parent=133 // loop_header
                  %s483 = sphi 0, %s487
                  %p484 = scmp.ge.s32.totalorder %s483, 1
                  %s488 = sphi %s384, %s384
                  %s489 = sphi %s447, %s447
                $region144: #{vec_cross_attn_block_forward.8} parent=133 // loop_header_branch
                  %486 = sbr.rel (%p484) target = $region148
                $region145: #{vec_cross_attn_block_forward.8} parent=133 // loop_body
                  %v490 = vld [vmem:[%s488] sm:%s481]
                  %491 = vst [vmem:[%s489] sm:%s481] %v490
                  %v492 = vld [vmem:[%s488 + $0x4] sm:%s481]
                  %493 = vst [vmem:[%s489 + $0x8] sm:%s481] %v492
                  %v494 = vld [vmem:[%s488 + $0x8] sm:%s481]
                  %495 = vst [vmem:[%s489 + $0x10] sm:%s481] %v494
                $region146: #{vec_cross_attn_block_forward.8} parent=133 // loop_footer
                  %s487 = sadd.s32 1, %s483
                $region147: #{vec_cross_attn_block_forward.8} parent=133 // loop_footer_branch
                  %482 = sbr.rel target = $region143
                $region148: #{vec_cross_attn_block_forward.8} parent=133 // loop_exit
                  _
              $region134: #{vec_cross_attn_block_forward.8} parent=118 // pred_fallthru
                _
            $region119: #{vec_cross_attn_block_forward.8} parent=114 // pred_fallthru
              _
            // Predicated region
            $region120: #{vec_cross_attn_block_forward.8} parent=114 // pred_check
              _
            $region121: #{vec_cross_attn_block_forward.8} parent=114 // pred_check_branch
              %453 = sbr.rel (0) target = $region123
            $region122: #{vec_cross_attn_block_forward.8} parent=114 // pred_region
              %s455 = ssub.s32 16, 1
              loop: start=0, step=1, limit=1
              $region124: #{vec_cross_attn_block_forward.8} parent=122 // loop_pre_header
                _
              $region125: #{vec_cross_attn_block_forward.8} parent=122 // loop_header
                %s457 = sphi 0, %s461
                %p458 = scmp.ge.s32.totalorder %s457, 1
                %s462 = sphi %s384, %s384
                %s463 = sphi %s447, %s447
              $region126: #{vec_cross_attn_block_forward.8} parent=122 // loop_header_branch
                %460 = sbr.rel (%p458) target = $region130
              $region127: #{vec_cross_attn_block_forward.8} parent=122 // loop_body
                %v464 = vld [vmem:[%s462] sm:%s455]
                %465 = vst [vmem:[%s463] sm:%s455] %v464
                %v466 = vld [vmem:[%s462 + $0x4] sm:%s455]
                %467 = vst [vmem:[%s463 + $0x8] sm:%s455] %v466
                %v468 = vld [vmem:[%s462 + $0x8] sm:%s455]
                %469 = vst [vmem:[%s463 + $0x10] sm:%s455] %v468
              $region128: #{vec_cross_attn_block_forward.8} parent=122 // loop_footer
                %s461 = sadd.s32 1, %s457
              $region129: #{vec_cross_attn_block_forward.8} parent=122 // loop_footer_branch
                %456 = sbr.rel target = $region125
              $region130: #{vec_cross_attn_block_forward.8} parent=122 // loop_exit
                _
            $region123: #{vec_cross_attn_block_forward.8} parent=114 // pred_fallthru
              _
          $region115: #{vec_cross_attn_block_forward.8} parent=110 // pred_fallthru
            _
          %496 = vnop
        $region111: #{vec_cross_attn_block_forward.8} parent=61 // pred_fallthru
          _
        // Predicated region
        $region149: #{vec_cross_attn_block_forward.8} parent=61 // pred_check
          %p497 = pneg %p133
        $region150: #{vec_cross_attn_block_forward.8} parent=61 // pred_check_branch
          %499 = sbr.rel (%p497) target = $region152
        $region151: #{vec_cross_attn_block_forward.8} parent=61 // pred_region
          %s500 = smul.addr %s16, 4
          %s501 = scalar_lea.vmem %s4, %s500
          // Predicated region
          $region153: #{vec_cross_attn_block_forward.8} parent=151 // pred_check
            _
          $region154: #{vec_cross_attn_block_forward.8} parent=151 // pred_check_branch
            %503 = sbr.rel (0) target = $region156
          $region155: #{vec_cross_attn_block_forward.8} parent=151 // pred_region
            // Predicated region
            $region157: #{vec_cross_attn_block_forward.8} parent=155 // pred_check
              _
            $region158: #{vec_cross_attn_block_forward.8} parent=155 // pred_check_branch
              %505 = sbr.rel target = $region160
            $region159: #{vec_cross_attn_block_forward.8} parent=155 // pred_region
              // Predicated region
              $region172: #{vec_cross_attn_block_forward.8} parent=159 // pred_check
                _
              $region173: #{vec_cross_attn_block_forward.8} parent=159 // pred_check_branch
                %525 = sbr.rel (0) target = $region175
              $region174: #{vec_cross_attn_block_forward.8} parent=159 // pred_region
                loop: start=0, step=1, limit=1
                $region176: #{vec_cross_attn_block_forward.8} parent=174 // loop_pre_header
                  _
                $region177: #{vec_cross_attn_block_forward.8} parent=174 // loop_header
                  %s527 = sphi 0, %s531
                  %p528 = scmp.ge.s32.totalorder %s527, 1
                  %s532 = sphi %s388, %s388
                  %s533 = sphi %s501, %s501
                $region178: #{vec_cross_attn_block_forward.8} parent=174 // loop_header_branch
                  %530 = sbr.rel (%p528) target = $region182
                $region179: #{vec_cross_attn_block_forward.8} parent=174 // loop_body
                  _
                $region180: #{vec_cross_attn_block_forward.8} parent=174 // loop_footer
                  %s531 = sadd.s32 1, %s527
                $region181: #{vec_cross_attn_block_forward.8} parent=174 // loop_footer_branch
                  %526 = sbr.rel target = $region177
                $region182: #{vec_cross_attn_block_forward.8} parent=174 // loop_exit
                  _
                %s535 = ssub.s32 16, 1
                loop: start=0, step=1, limit=1
                $region183: #{vec_cross_attn_block_forward.8} parent=174 // loop_pre_header
                  _
                $region184: #{vec_cross_attn_block_forward.8} parent=174 // loop_header
                  %s537 = sphi 0, %s541
                  %p538 = scmp.ge.s32.totalorder %s537, 1
                  %s542 = sphi %s388, %s388
                  %s543 = sphi %s501, %s501
                $region185: #{vec_cross_attn_block_forward.8} parent=174 // loop_header_branch
                  %540 = sbr.rel (%p538) target = $region189
                $region186: #{vec_cross_attn_block_forward.8} parent=174 // loop_body
                  %v544 = vld [vmem:[%s542] sm:%s535]
                  %545 = vst [vmem:[%s543] sm:%s535] %v544
                  %v546 = vld [vmem:[%s542 + $0x4] sm:%s535]
                  %547 = vst [vmem:[%s543 + $0x8] sm:%s535] %v546
                  %v548 = vld [vmem:[%s542 + $0x8] sm:%s535]
                  %549 = vst [vmem:[%s543 + $0x10] sm:%s535] %v548
                $region187: #{vec_cross_attn_block_forward.8} parent=174 // loop_footer
                  %s541 = sadd.s32 1, %s537
                $region188: #{vec_cross_attn_block_forward.8} parent=174 // loop_footer_branch
                  %536 = sbr.rel target = $region184
                $region189: #{vec_cross_attn_block_forward.8} parent=174 // loop_exit
                  _
              $region175: #{vec_cross_attn_block_forward.8} parent=159 // pred_fallthru
                _
            $region160: #{vec_cross_attn_block_forward.8} parent=155 // pred_fallthru
              _
            // Predicated region
            $region161: #{vec_cross_attn_block_forward.8} parent=155 // pred_check
              _
            $region162: #{vec_cross_attn_block_forward.8} parent=155 // pred_check_branch
              %507 = sbr.rel (0) target = $region164
            $region163: #{vec_cross_attn_block_forward.8} parent=155 // pred_region
              %s509 = ssub.s32 16, 1
              loop: start=0, step=1, limit=1
              $region165: #{vec_cross_attn_block_forward.8} parent=163 // loop_pre_header
                _
              $region166: #{vec_cross_attn_block_forward.8} parent=163 // loop_header
                %s511 = sphi 0, %s515
                %p512 = scmp.ge.s32.totalorder %s511, 1
                %s516 = sphi %s388, %s388
                %s517 = sphi %s501, %s501
              $region167: #{vec_cross_attn_block_forward.8} parent=163 // loop_header_branch
                %514 = sbr.rel (%p512) target = $region171
              $region168: #{vec_cross_attn_block_forward.8} parent=163 // loop_body
                %v518 = vld [vmem:[%s516] sm:%s509]
                %519 = vst [vmem:[%s517] sm:%s509] %v518
                %v520 = vld [vmem:[%s516 + $0x4] sm:%s509]
                %521 = vst [vmem:[%s517 + $0x8] sm:%s509] %v520
                %v522 = vld [vmem:[%s516 + $0x8] sm:%s509]
                %523 = vst [vmem:[%s517 + $0x10] sm:%s509] %v522
              $region169: #{vec_cross_attn_block_forward.8} parent=163 // loop_footer
                %s515 = sadd.s32 1, %s511
              $region170: #{vec_cross_attn_block_forward.8} parent=163 // loop_footer_branch
                %510 = sbr.rel target = $region166
              $region171: #{vec_cross_attn_block_forward.8} parent=163 // loop_exit
                _
            $region164: #{vec_cross_attn_block_forward.8} parent=155 // pred_fallthru
              _
          $region156: #{vec_cross_attn_block_forward.8} parent=151 // pred_fallthru
            _
          %550 = vnop
        $region152: #{vec_cross_attn_block_forward.8} parent=61 // pred_fallthru
          _
      $region62: #{vec_cross_attn_block_forward.8} parent=5 // pred_fallthru
        _
      %p551 = scmp.le.s32.totalorder 2, %s11
      // Predicated region
      $region190: #{vec_cross_attn_block_forward.8} parent=5 // pred_check
        %p552 = pneg %p551
      $region191: #{vec_cross_attn_block_forward.8} parent=5 // pred_check_branch
        %554 = sbr.rel (%p552) target = $region193
      $region192: #{vec_cross_attn_block_forward.8} parent=5 // pred_region
        %s555 = ssub.s32 %s11, 2
        // Predicated region
        $region194: #{vec_cross_attn_block_forward.8} parent=192 // pred_check
          %p556 = pneg %p87
        $region195: #{vec_cross_attn_block_forward.8} parent=192 // pred_check_branch
          %558 = sbr.rel (%p556) target = $region197
        $region196: #{vec_cross_attn_block_forward.8} parent=192 // pred_region
          %s559 = sand.u32 %s72, 1
          %s560 = sand.u32 %s72, 1
          %s561 = smul.addr %s560, 12
          %s562 = scalar_lea.vmem [#allocation3], %s561
        $region197: #{vec_cross_attn_block_forward.8} parent=192 // pred_fallthru
          _
        // Predicated region
        $region198: #{vec_cross_attn_block_forward.8} parent=192 // pred_check
          %p563 = pneg %p113
        $region199: #{vec_cross_attn_block_forward.8} parent=192 // pred_check_branch
          %565 = sbr.rel (%p563) target = $region201
        $region200: #{vec_cross_attn_block_forward.8} parent=192 // pred_region
          %s566 = sand.u32 %s98, 1
          %s567 = sand.u32 %s98, 1
          %s568 = smul.addr %s567, 12
          %s569 = scalar_lea.vmem [#allocation4], %s568
        $region201: #{vec_cross_attn_block_forward.8} parent=192 // pred_fallthru
          _
        // Predicated region
        $region202: #{vec_cross_attn_block_forward.8} parent=192 // pred_check
          %p570 = pneg %p139
        $region203: #{vec_cross_attn_block_forward.8} parent=192 // pred_check_branch
          %572 = sbr.rel (%p570) target = $region205
        $region204: #{vec_cross_attn_block_forward.8} parent=192 // pred_region
          %s573 = sand.u32 %s124, 1
          %s574 = sand.u32 %s124, 1
          %s575 = smul.addr %s574, 12
          %s576 = scalar_lea.vmem [#allocation5], %s575
        $region205: #{vec_cross_attn_block_forward.8} parent=192 // pred_fallthru
          _
      $region193: #{vec_cross_attn_block_forward.8} parent=5 // pred_fallthru
        _
    $region6: #{vec_cross_attn_block_forward.8} parent=1 // loop_footer
      %s15 = sadd.s32 1, %s11
    $region7: #{vec_cross_attn_block_forward.8} parent=1 // loop_footer_branch
      %10 = sbr.rel target = $region3
    $region8: #{vec_cross_attn_block_forward.8} parent=1 // loop_exit
      _

// kernel: vec_cross_attn_block_forward.11
$region0: #{vec_cross_attn_block_forward.11}
  #allocation0 [shape = 'u32[]', space=smem, size = 0x4, offset = 0x4, fixed_abs, tag = 'smem constant byte address 0x4 - core index']
  #allocation1 [shape = 'u32[72,128]{1,0:T(1,128)}', space=vmem, size = 0x9000, scoped, tag = 'internal scratch']
  %s0 = inlined_call_operand.vmem [shape: f32[3,16,8], index: 0, kind: input, shape index: {}]
  %s1 = inlined_call_operand.vmem [shape: bf16[8,8], index: 1, kind: input, shape index: {}]
  %s2 = inlined_call_operand.vmem [shape: bf16[3,16,8], index: 2, kind: output, shape index: {}]
  %s3 = sld [smem:[#allocation0]]
  $region116: #{vec_cross_attn_block_forward.11} parent=0
    _
  %s5 = ssub.s32 1, %s3
  %s6 = scalar_select 0, %s5, %s3
  $region1: #{vec_cross_attn_block_forward.11} parent=0
    #allocation2 [shape = 'u8[24576]{0}', space=vmem, size = 0x6000, scoped, tag = 'input window, operand 0']
    #allocation3 [shape = 'u8[12288]{0}', space=vmem, size = 0x3000, scoped, tag = 'output window, operand 0']
    loop: start=0, step=1, limit=4
    $region2: #{vec_cross_attn_block_forward.11} parent=1 // loop_pre_header
      _
    $region3: #{vec_cross_attn_block_forward.11} parent=1 // loop_header
      %s8 = sphi 0, %s12
      %p9 = scmp.ge.s32.totalorder %s8, 4
      %s18 = sphi 0, %s20
      %s21 = sphi 0, %s18
      %s22 = sphi 0, %s21
      %s38 = sphi 0, %s22
      %s42 = sphi 0, %s42
      %s44 = sphi 0, %s42
      %s45 = sphi 0, %s44
      %s59 = sphi 0, %s45
      %s65 = sphi 0, %s67
      %s68 = sphi 0, %s65
      %s69 = sphi 0, %s68
      %s85 = sphi 0, %s69
    $region4: #{vec_cross_attn_block_forward.11} parent=1 // loop_header_branch
      %11 = sbr.rel (%p9) target = $region8
    $region5: #{vec_cross_attn_block_forward.11} parent=1 // loop_body
      %s13 = ssub.s32 %s8, 1
      %s14 = ssub.s32 %s8, 2
      %s15 = sadd.s32 %s8, 1
      %s16 = ssub.s32 %s8, %s15
      %p17 = scmp.eq.s32.totalorder %s16, 0
      %s19 = sadd.s32 %s18, 1
      %s20 = scalar_select %p17, %s18, %s19
      %p23 = pneg %p17
      %p24 = scmp.eq.s32.totalorder %s8, 1
      %p25 = por %p23, %p24
      %p26 = scmp.ne.s32.totalorder %s18, %s21
      %p27 = scmp.eq.s32.totalorder %s8, 0
      %p28 = por %p26, %p27
      %p29 = scmp.ne.s32.totalorder %s18, %s21
      %p30 = scmp.eq.s32.totalorder %s13, 1
      %p31 = por %p29, %p30
      %p32 = scmp.ne.s32.totalorder %s21, %s22
      %p33 = scmp.eq.s32.totalorder %s13, 0
      %p34 = por %p32, %p33
      %p35 = scmp.ne.s32.totalorder %s21, %s22
      %p36 = scmp.eq.s32.totalorder %s14, 1
      %p37 = por %p35, %p36
      %p39 = scmp.ne.s32.totalorder %s22, %s38
      %p40 = scmp.eq.s32.totalorder %s14, 0
      %p41 = por %p39, %p40
      %s43 = sadd.s32 %s42, 1
      %p46 = scmp.eq.s32.totalorder %s8, 1
      %p47 = scmp.ne.s32.totalorder %s42, %s44
      %p48 = scmp.eq.s32.totalorder %s8, 0
      %p49 = por %p47, %p48
      %p50 = scmp.ne.s32.totalorder %s42, %s44
      %p51 = scmp.eq.s32.totalorder %s13, 1
      %p52 = por %p50, %p51
      %p53 = scmp.ne.s32.totalorder %s44, %s45
      %p54 = scmp.eq.s32.totalorder %s13, 0
      %p55 = por %p53, %p54
      %p56 = scmp.ne.s32.totalorder %s44, %s45
      %p57 = scmp.eq.s32.totalorder %s14, 1
      %p58 = por %p56, %p57
      %p60 = scmp.ne.s32.totalorder %s45, %s59
      %p61 = scmp.eq.s32.totalorder %s14, 0
      %p62 = por %p60, %p61
      %s63 = ssub.s32 %s8, %s15
      %p64 = scmp.eq.s32.totalorder %s63, 0
      %s66 = sadd.s32 %s65, 1
      %s67 = scalar_select %p64, %s65, %s66
      %p70 = pneg %p64
      %p71 = scmp.eq.s32.totalorder %s8, 1
      %p72 = por %p70, %p71
      %p73 = scmp.ne.s32.totalorder %s65, %s68
      %p74 = scmp.eq.s32.totalorder %s8, 0
      %p75 = por %p73, %p74
      %p76 = scmp.ne.s32.totalorder %s65, %s68
      %p77 = scmp.eq.s32.totalorder %s13, 1
      %p78 = por %p76, %p77
      %p79 = scmp.ne.s32.totalorder %s68, %s69
      %p80 = scmp.eq.s32.totalorder %s13, 0
      %p81 = por %p79, %p80
      %p82 = scmp.ne.s32.totalorder %s68, %s69
      %p83 = scmp.eq.s32.totalorder %s14, 1
      %p84 = por %p82, %p83
      %p86 = scmp.ne.s32.totalorder %s69, %s85
      %p87 = scmp.eq.s32.totalorder %s14, 0
      %p88 = por %p86, %p87
      %p89 = scmp.le.s32.totalorder 1, %s8
      %p90 = scmp.lt.s32.totalorder %s8, 3
      %p91 = pnand %p89, %p90
      %p92 = pneg %p91
      // Predicated region
      $region9: #{vec_cross_attn_block_forward.11} parent=5 // pred_check
        _
      $region10: #{vec_cross_attn_block_forward.11} parent=5 // pred_check_branch
        %94 = sbr.rel (%p91) target = $region12
      $region11: #{vec_cross_attn_block_forward.11} parent=5 // pred_region
        %s95 = ssub.s32 %s8, 1
        // Predicated region
        $region13: #{vec_cross_attn_block_forward.11} parent=11 // pred_check
          %p96 = pneg %p55
        $region14: #{vec_cross_attn_block_forward.11} parent=11 // pred_check_branch
          %98 = sbr.rel (%p96) target = $region16
        $region15: #{vec_cross_attn_block_forward.11} parent=11 // pred_region
          _
        $region16: #{vec_cross_attn_block_forward.11} parent=11 // pred_fallthru
          _
      $region12: #{vec_cross_attn_block_forward.11} parent=5 // pred_fallthru
        _
      %p99 = scmp.lt.s32.totalorder %s8, 2
      // Predicated region
      $region17: #{vec_cross_attn_block_forward.11} parent=5 // pred_check
        %p100 = pneg %p99
      $region18: #{vec_cross_attn_block_forward.11} parent=5 // pred_check_branch
        %102 = sbr.rel (%p100) target = $region20
      $region19: #{vec_cross_attn_block_forward.11} parent=5 // pred_region
        // Predicated region
        $region21: #{vec_cross_attn_block_forward.11} parent=19 // pred_check
          %p103 = pneg %p28
        $region22: #{vec_cross_attn_block_forward.11} parent=19 // pred_check_branch
          %105 = sbr.rel (%p103) target = $region24
        $region23: #{vec_cross_attn_block_forward.11} parent=19 // pred_region
          %s106 = sand.u32 %s18, 1
          %s107 = sand.u32 %s18, 1
          %s108 = smul.addr %s107, 24
          %s109 = scalar_lea.vmem [#allocation2], %s108
          %s110 = smul.addr %s8, 8
          %s111 = scalar_lea.vmem %s0, %s110
          // Predicated region
          $region25: #{vec_cross_attn_block_forward.11} parent=23 // pred_check
            _
          $region26: #{vec_cross_attn_block_forward.11} parent=23 // pred_check_branch
            %113 = sbr.rel (0) target = $region28
          $region27: #{vec_cross_attn_block_forward.11} parent=23 // pred_region
            // Predicated region
            $region29: #{vec_cross_attn_block_forward.11} parent=27 // pred_check
              _
            $region30: #{vec_cross_attn_block_forward.11} parent=27 // pred_check_branch
              %115 = sbr.rel (0) target = $region32
            $region31: #{vec_cross_attn_block_forward.11} parent=27 // pred_region
              // Predicated region
              $region44: #{vec_cross_attn_block_forward.11} parent=31 // pred_check
                _
              $region45: #{vec_cross_attn_block_forward.11} parent=31 // pred_check_branch
                %135 = sbr.rel (0) target = $region47
              $region46: #{vec_cross_attn_block_forward.11} parent=31 // pred_region
                loop: start=0, step=1, limit=1
                $region48: #{vec_cross_attn_block_forward.11} parent=46 // loop_pre_header
                  _
                $region49: #{vec_cross_attn_block_forward.11} parent=46 // loop_header
                  %s137 = sphi 0, %s141
                  %p138 = scmp.ge.s32.totalorder %s137, 1
                  %s142 = sphi %s111, %s111
                  %s143 = sphi %s109, %s109
                $region50: #{vec_cross_attn_block_forward.11} parent=46 // loop_header_branch
                  %140 = sbr.rel (%p138) target = $region54
                $region51: #{vec_cross_attn_block_forward.11} parent=46 // loop_body
                  %v144 = vld [vmem:[%s142] sm:$0xff]
                  %145 = vst [vmem:[%s143] sm:$0xff] %v144
                  %v146 = vld [vmem:[%s142 + $0x10] sm:$0xff]
                  %147 = vst [vmem:[%s143 + $0x8] sm:$0xff] %v146
                  %v148 = vld [vmem:[%s142 + $0x20] sm:$0xff]
                  %149 = vst [vmem:[%s143 + $0x10] sm:$0xff] %v148
                $region52: #{vec_cross_attn_block_forward.11} parent=46 // loop_footer
                  %s141 = sadd.s32 1, %s137
                $region53: #{vec_cross_attn_block_forward.11} parent=46 // loop_footer_branch
                  %136 = sbr.rel target = $region49
                $region54: #{vec_cross_attn_block_forward.11} parent=46 // loop_exit
                  _
              $region47: #{vec_cross_attn_block_forward.11} parent=31 // pred_fallthru
                _
              // Predicated region
              $region55: #{vec_cross_attn_block_forward.11} parent=31 // pred_check
                _
              $region56: #{vec_cross_attn_block_forward.11} parent=31 // pred_check_branch
                %151 = sbr.rel target = $region58
              $region57: #{vec_cross_attn_block_forward.11} parent=31 // pred_region
                _
              $region58: #{vec_cross_attn_block_forward.11} parent=31 // pred_fallthru
                _
            $region32: #{vec_cross_attn_block_forward.11} parent=27 // pred_fallthru
              _
            // Predicated region
            $region33: #{vec_cross_attn_block_forward.11} parent=27 // pred_check
              _
            $region34: #{vec_cross_attn_block_forward.11} parent=27 // pred_check_branch
              %117 = sbr.rel target = $region36
            $region35: #{vec_cross_attn_block_forward.11} parent=27 // pred_region
              %s119 = ssub.s32 256, 1
              loop: start=0, step=1, limit=1
              $region37: #{vec_cross_attn_block_forward.11} parent=35 // loop_pre_header
                _
              $region38: #{vec_cross_attn_block_forward.11} parent=35 // loop_header
                %s121 = sphi 0, %s125
                %p122 = scmp.ge.s32.totalorder %s121, 1
                %s126 = sphi %s111, %s111
                %s127 = sphi %s109, %s109
              $region39: #{vec_cross_attn_block_forward.11} parent=35 // loop_header_branch
                %124 = sbr.rel (%p122) target = $region43
              $region40: #{vec_cross_attn_block_forward.11} parent=35 // loop_body
                %v128 = vld [vmem:[%s126] sm:%s119]
                %129 = vst [vmem:[%s127] sm:%s119] %v128
                %v130 = vld [vmem:[%s126 + $0x10] sm:%s119]
                %131 = vst [vmem:[%s127 + $0x8] sm:%s119] %v130
                %v132 = vld [vmem:[%s126 + $0x20] sm:%s119]
                %133 = vst [vmem:[%s127 + $0x10] sm:%s119] %v132
              $region41: #{vec_cross_attn_block_forward.11} parent=35 // loop_footer
                %s125 = sadd.s32 1, %s121
              $region42: #{vec_cross_attn_block_forward.11} parent=35 // loop_footer_branch
                %120 = sbr.rel target = $region38
              $region43: #{vec_cross_attn_block_forward.11} parent=35 // loop_exit
                _
            $region36: #{vec_cross_attn_block_forward.11} parent=27 // pred_fallthru
              _
          $region28: #{vec_cross_attn_block_forward.11} parent=23 // pred_fallthru
            _
          %152 = vnop
        $region24: #{vec_cross_attn_block_forward.11} parent=19 // pred_fallthru
          _
      $region20: #{vec_cross_attn_block_forward.11} parent=5 // pred_fallthru
        _
      %p153 = scmp.le.s32.totalorder 1, %s8
      %p154 = scmp.lt.s32.totalorder %s8, 3
      %p155 = pnand %p153, %p154
      %p156 = pneg %p155
      // Predicated region
      $region59: #{vec_cross_attn_block_forward.11} parent=5 // pred_check
        _
      $region60: #{vec_cross_attn_block_forward.11} parent=5 // pred_check_branch
        %158 = sbr.rel (%p155) target = $region62
      $region61: #{vec_cross_attn_block_forward.11} parent=5 // pred_region
        %s159 = ssub.s32 %s8, 1
        %s160 = sand.u32 %s21, 1
        %s161 = sand.u32 %s21, 1
        %s162 = smul.addr %s161, 24
        %s163 = scalar_lea.vmem [#allocation2], %s162
        // Predicated region
        $region63: #{vec_cross_attn_block_forward.11} parent=61 // pred_check
          %p164 = pneg %p34
        $region64: #{vec_cross_attn_block_forward.11} parent=61 // pred_check_branch
          %166 = sbr.rel (%p164) target = $region66
        $region65: #{vec_cross_attn_block_forward.11} parent=61 // pred_region
          _
        $region66: #{vec_cross_attn_block_forward.11} parent=61 // pred_fallthru
          _
        %s167 = sand.u32 %s21, 1
        %s168 = sand.u32 %s21, 1
        %s169 = smul.addr %s168, 24
        %s170 = scalar_lea.vmem [#allocation2], %s169
        %p171 = pneg %p34
        %p172 = pneg %p31
        %p173 = pneg %p55
        %p174 = pneg %p52
        %p175 = pneg %p81
        %p176 = pneg %p78
        %s177 = sand.u32 %s68, 1
        %s178 = sand.u32 %s68, 1
        %s179 = smul.addr %s178, 12
        %s180 = scalar_lea.vmem [#allocation3], %s179
        %v182 = vld [vmem:[%s163] sm:$0xff]
        %v183 = vld [vmem:[%s163 + $0x8] sm:$0xff]
        %v184 = vld [vmem:[%s163 + $0x10] sm:$0xff]
        %v185 = vmul.f32 %v182, %v182
        %v186 = vmul.f32 %v183, %v183
        %v187 = vmul.f32 %v184, %v184
        %vm188 = vcmask 64512
        %v189 = vsel %vm188, %v185, 0.0
        %v190 = vsel %vm188, %v186, 0.0
        %v191 = vadd.f32 %v189, %v190
        %v192 = vsel %vm188, %v187, 0.0
        %v193 = vadd.f32 %v191, %v192
        %v194 = vsel %vm188, %v193, 0.0
        %195 = vadd.xlane.f32.xlu0 %v194
        %v196 = vpop.xlane.xlu0 %195
        %v197 = vrcp.pop 8.0
        %v198 = vmul.f32 8.0, %v197
        %v199 = vsub.f32 1.0, %v198
        %v200 = vmul.f32 %v197, %v199
        %v201 = vadd.f32 %v197, %v200
        %vm202 = vweird.f32 %v197
        %v203 = vsel %vm202, %v197, %v201
        %v204 = vmul.f32 %v196, %v203
        %v205 = vrsqrt.pop %v204
        %v206 = vmul.f32 %v205, %v204
        %v207 = vmul.f32 %v206, %v205
        %v208 = vmul.f32 0.5, %v207
        %v209 = vsub.f32 1.5, %v208
        %v210 = vmul.f32 %v205, %v209
        %v211 = vmul.f32 %v204, %v210
        %vm212 = vcmp.eq.f32.partialorder %v204, inf
        %v213 = vsel %vm212, %v204, %v211
        %vm214 = vcmp.eq.f32.partialorder %v204, 0.0
        %v215 = vand.u32 %v204, 2147483648
        %v216 = vsel %vm214, %v215, %v213
        %v217 = vadd.f32 %v216, 1e-06
        %v218 = vrcp.pop %v217
        %v219 = vmul.f32 %v217, %v218
        %v220 = vsub.f32 1.0, %v219
        %v221 = vmul.f32 %v218, %v220
        %v222 = vadd.f32 %v218, %v221
        %vm223 = vweird.f32 %v217
        %vm224 = vweird.f32 %v218
        %vm225 = vmor %vm223, %vm224
        %v226 = vsel %vm225, %v218, %v222
        %v227 = vand.u32 2147483647, %v217
        %vm228 = vcmp.eq.f32.partialorder %v227, 8.507059e+37
        %v229 = vand.u32 %v217, 2147483648
        %v230 = vor.u32 1.1754944e-38, %v229
        %v231 = vsel %vm228, %v230, %v226
        %v232 = vmul.f32 1.0, %v231
        %v233 = vmul.f32 %v182, %v232
        %v234 = vmul.f32 %v183, %v232
        %v235 = vmul.f32 %v184, %v232
        %v236 = vpack.c.bf16 %v233, %v233
        %v237 = vpack.c.bf16 %v234, %v234
        %v238 = vpack.c.bf16 %v235, %v235
        %v239 = vld [vmem:[%s1] sm:$0xf]
        %v243 = vunpack.c.l.b16 %v236
        %v244 = vunpack.c.l.b16 %v237
        %v245 = vunpack.c.l.b16 %v238
        %v246 = vpack.c.b16 %v244, %v243
        %v247 = vpack.c.b16 %v245, %v245
        %v249 = vsel %vm188, %v246, 0
        %v252 = vsel %vm188, %v247, 0
        %vm254 = vcmask 1043456
        %v256 = vsel %vm254, %v239, 0
        %258 = vmatpush.bf16.msra.mxu0 0
        %259 = vmatpush.bf16.msra.mxu0 0
        %260 = vmatpush.bf16.msra.mxu0 0
        %261 = vmatpush.bf16.msra.mxu0 0
        %262 = vmatpush.bf16.msra.mxu0 0
        %263 = vmatpush.bf16.msra.mxu0 0
        %264 = vmatpush.bf16.msra.mxu0 0
        %265 = vmatpush.bf16.msra.mxu0 %v256
        %266 = vmatmul.bf16.gmra.mxu0 %v249
        %v267 = vpop.f32.mrf.mxu0
        %v268 = vadd.f32 0.0, %v267
        %v269 = vpop.f32.mrf.mxu0
        %v270 = vadd.f32 0.0, %v269
        %271 = vmatmul.bf16.gmra.mxu0 %v252
        %v272 = vpop.f32.mrf.mxu0
        %v273 = vadd.f32 0.0, %v272
        %v274 = vpop.f32.mrf.mxu0
        %275 = vdwg.mxu0
        %v276 = vpack.c.bf16 %v268, %v268
        %v277 = vpack.c.bf16 %v270, %v270
        %v278 = vpack.c.bf16 %v273, %v273
        %vm279 = vcmask 60416
        %280 = vst.msk [vmem:[%s180] sm:$0xf] %vm279, %v276
        %281 = vst.msk [vmem:[%s180 + $0x4] sm:$0xf] %vm279, %v277
        %282 = vst.msk [vmem:[%s180 + $0x8] sm:$0xf] %vm279, %v278
        %s283 = sand.u32 %s68, 1
        %s284 = sand.u32 %s68, 1
        %s285 = smul.addr %s284, 12
        %s286 = scalar_lea.vmem [#allocation3], %s285
        // Predicated region
        $region67: #{vec_cross_attn_block_forward.11} parent=61 // pred_check
          %p287 = pneg %p78
        $region68: #{vec_cross_attn_block_forward.11} parent=61 // pred_check_branch
          %289 = sbr.rel (%p287) target = $region70
        $region69: #{vec_cross_attn_block_forward.11} parent=61 // pred_region
          %s290 = smul.addr %s13, 4
          %s291 = scalar_lea.vmem %s2, %s290
          // Predicated region
          $region71: #{vec_cross_attn_block_forward.11} parent=69 // pred_check
            _
          $region72: #{vec_cross_attn_block_forward.11} parent=69 // pred_check_branch
            %293 = sbr.rel (0) target = $region74
          $region73: #{vec_cross_attn_block_forward.11} parent=69 // pred_region
            // Predicated region
            $region75: #{vec_cross_attn_block_forward.11} parent=73 // pred_check
              _
            $region76: #{vec_cross_attn_block_forward.11} parent=73 // pred_check_branch
              %295 = sbr.rel target = $region78
            $region77: #{vec_cross_attn_block_forward.11} parent=73 // pred_region
              // Predicated region
              $region90: #{vec_cross_attn_block_forward.11} parent=77 // pred_check
                _
              $region91: #{vec_cross_attn_block_forward.11} parent=77 // pred_check_branch
                %315 = sbr.rel (0) target = $region93
              $region92: #{vec_cross_attn_block_forward.11} parent=77 // pred_region
                loop: start=0, step=1, limit=1
                $region94: #{vec_cross_attn_block_forward.11} parent=92 // loop_pre_header
                  _
                $region95: #{vec_cross_attn_block_forward.11} parent=92 // loop_header
                  %s317 = sphi 0, %s321
                  %p318 = scmp.ge.s32.totalorder %s317, 1
                  %s322 = sphi %s286, %s286
                  %s323 = sphi %s291, %s291
                $region96: #{vec_cross_attn_block_forward.11} parent=92 // loop_header_branch
                  %320 = sbr.rel (%p318) target = $region100
                $region97: #{vec_cross_attn_block_forward.11} parent=92 // loop_body
                  _
                $region98: #{vec_cross_attn_block_forward.11} parent=92 // loop_footer
                  %s321 = sadd.s32 1, %s317
                $region99: #{vec_cross_attn_block_forward.11} parent=92 // loop_footer_branch
                  %316 = sbr.rel target = $region95
                $region100: #{vec_cross_attn_block_forward.11} parent=92 // loop_exit
                  _
                %s325 = ssub.s32 16, 1
                loop: start=0, step=1, limit=1
                $region101: #{vec_cross_attn_block_forward.11} parent=92 // loop_pre_header
                  _
                $region102: #{vec_cross_attn_block_forward.11} parent=92 // loop_header
                  %s327 = sphi 0, %s331
                  %p328 = scmp.ge.s32.totalorder %s327, 1
                  %s332 = sphi %s286, %s286
                  %s333 = sphi %s291, %s291
                $region103: #{vec_cross_attn_block_forward.11} parent=92 // loop_header_branch
                  %330 = sbr.rel (%p328) target = $region107
                $region104: #{vec_cross_attn_block_forward.11} parent=92 // loop_body
                  %v334 = vld [vmem:[%s332] sm:%s325]
                  %335 = vst [vmem:[%s333] sm:%s325] %v334
                  %v336 = vld [vmem:[%s332 + $0x4] sm:%s325]
                  %337 = vst [vmem:[%s333 + $0x8] sm:%s325] %v336
                  %v338 = vld [vmem:[%s332 + $0x8] sm:%s325]
                  %339 = vst [vmem:[%s333 + $0x10] sm:%s325] %v338
                $region105: #{vec_cross_attn_block_forward.11} parent=92 // loop_footer
                  %s331 = sadd.s32 1, %s327
                $region106: #{vec_cross_attn_block_forward.11} parent=92 // loop_footer_branch
                  %326 = sbr.rel target = $region102
                $region107: #{vec_cross_attn_block_forward.11} parent=92 // loop_exit
                  _
              $region93: #{vec_cross_attn_block_forward.11} parent=77 // pred_fallthru
                _
            $region78: #{vec_cross_attn_block_forward.11} parent=73 // pred_fallthru
              _
            // Predicated region
            $region79: #{vec_cross_attn_block_forward.11} parent=73 // pred_check
              _
            $region80: #{vec_cross_attn_block_forward.11} parent=73 // pred_check_branch
              %297 = sbr.rel (0) target = $region82
            $region81: #{vec_cross_attn_block_forward.11} parent=73 // pred_region
              %s299 = ssub.s32 16, 1
              loop: start=0, step=1, limit=1
              $region83: #{vec_cross_attn_block_forward.11} parent=81 // loop_pre_header
                _
              $region84: #{vec_cross_attn_block_forward.11} parent=81 // loop_header
                %s301 = sphi 0, %s305
                %p302 = scmp.ge.s32.totalorder %s301, 1
                %s306 = sphi %s286, %s286
                %s307 = sphi %s291, %s291
              $region85: #{vec_cross_attn_block_forward.11} parent=81 // loop_header_branch
                %304 = sbr.rel (%p302) target = $region89
              $region86: #{vec_cross_attn_block_forward.11} parent=81 // loop_body
                %v308 = vld [vmem:[%s306] sm:%s299]
                %309 = vst [vmem:[%s307] sm:%s299] %v308
                %v310 = vld [vmem:[%s306 + $0x4] sm:%s299]
                %311 = vst [vmem:[%s307 + $0x8] sm:%s299] %v310
                %v312 = vld [vmem:[%s306 + $0x8] sm:%s299]
                %313 = vst [vmem:[%s307 + $0x10] sm:%s299] %v312
              $region87: #{vec_cross_attn_block_forward.11} parent=81 // loop_footer
                %s305 = sadd.s32 1, %s301
              $region88: #{vec_cross_attn_block_forward.11} parent=81 // loop_footer_branch
                %300 = sbr.rel target = $region84
              $region89: #{vec_cross_attn_block_forward.11} parent=81 // loop_exit
                _
            $region82: #{vec_cross_attn_block_forward.11} parent=73 // pred_fallthru
              _
          $region74: #{vec_cross_attn_block_forward.11} parent=69 // pred_fallthru
            _
          %340 = vnop
        $region70: #{vec_cross_attn_block_forward.11} parent=61 // pred_fallthru
          _
      $region62: #{vec_cross_attn_block_forward.11} parent=5 // pred_fallthru
        _
      %p341 = scmp.le.s32.totalorder 2, %s8
      // Predicated region
      $region108: #{vec_cross_attn_block_forward.11} parent=5 // pred_check
        %p342 = pneg %p341
      $region109: #{vec_cross_attn_block_forward.11} parent=5 // pred_check_branch
        %344 = sbr.rel (%p342) target = $region111
      $region110: #{vec_cross_attn_block_forward.11} parent=5 // pred_region
        %s345 = ssub.s32 %s8, 2
        // Predicated region
        $region112: #{vec_cross_attn_block_forward.11} parent=110 // pred_check
          %p346 = pneg %p84
        $region113: #{vec_cross_attn_block_forward.11} parent=110 // pred_check_branch
          %348 = sbr.rel (%p346) target = $region115
        $region114: #{vec_cross_attn_block_forward.11} parent=110 // pred_region
          %s349 = sand.u32 %s69, 1
          %s350 = sand.u32 %s69, 1
          %s351 = smul.addr %s350, 12
          %s352 = scalar_lea.vmem [#allocation3], %s351
        $region115: #{vec_cross_attn_block_forward.11} parent=110 // pred_fallthru
          _
      $region111: #{vec_cross_attn_block_forward.11} parent=5 // pred_fallthru
        _
    $region6: #{vec_cross_attn_block_forward.11} parent=1 // loop_footer
      %s12 = sadd.s32 1, %s8
    $region7: #{vec_cross_attn_block_forward.11} parent=1 // loop_footer_branch
      %7 = sbr.rel target = $region3
    $region8: #{vec_cross_attn_block_forward.11} parent=1 // loop_exit
      _

// kernel: vec_cross_attn_block_forward.12
$region0: #{vec_cross_attn_block_forward.12}
  #allocation0 [shape = 'u32[]', space=smem, size = 0x4, offset = 0x4, fixed_abs, tag = 'smem constant byte address 0x4 - core index']
  #allocation1 [shape = 'u32[72,128]{1,0:T(1,128)}', space=vmem, size = 0x9000, scoped, tag = 'internal scratch']
  %s0 = inlined_call_operand.vmem [shape: f32[3,32,8], index: 0, kind: input, shape index: {}]
  %s1 = inlined_call_operand.vmem [shape: bf16[8,16], index: 1, kind: input, shape index: {}]
  %s2 = inlined_call_operand.vmem [shape: bf16[3,32,8], index: 2, kind: output, shape index: {0}]
  %s3 = inlined_call_operand.vmem [shape: bf16[3,32,8], index: 3, kind: output, shape index: {1}]
  %4 = xla_tuple %s2, %s3
  %s5 = sld [smem:[#allocation0]]
  $region161: #{vec_cross_attn_block_forward.12} parent=0
    _
  %s7 = ssub.s32 1, %s5
  %s8 = scalar_select 0, %s7, %s5
  $region1: #{vec_cross_attn_block_forward.12} parent=0
    #allocation2 [shape = 'u8[49152]{0}', space=vmem, size = 0xc000, scoped, tag = 'input window, operand 0']
    #allocation3 [shape = 'u8[24576]{0}', space=vmem, size = 0x6000, scoped, tag = 'output window, operand 0']
    #allocation4 [shape = 'u8[24576]{0}', space=vmem, size = 0x6000, scoped, tag = 'output window, operand 1']
    loop: start=0, step=1, limit=4
    $region2: #{vec_cross_attn_block_forward.12} parent=1 // loop_pre_header
      _
    $region3: #{vec_cross_attn_block_forward.12} parent=1 // loop_header
      %s10 = sphi 0, %s14
      %p11 = scmp.ge.s32.totalorder %s10, 4
      %s20 = sphi 0, %s22
      %s23 = sphi 0, %s20
      %s24 = sphi 0, %s23
      %s40 = sphi 0, %s24
      %s44 = sphi 0, %s44
      %s46 = sphi 0, %s44
      %s47 = sphi 0, %s46
      %s61 = sphi 0, %s47
      %s67 = sphi 0, %s69
      %s70 = sphi 0, %s67
      %s71 = sphi 0, %s70
      %s87 = sphi 0, %s71
      %s93 = sphi 0, %s95
      %s96 = sphi 0, %s93
      %s97 = sphi 0, %s96
      %s113 = sphi 0, %s97
    $region4: #{vec_cross_attn_block_forward.12} parent=1 // loop_header_branch
      %13 = sbr.rel (%p11) target = $region8
    $region5: #{vec_cross_attn_block_forward.12} parent=1 // loop_body
      %s15 = ssub.s32 %s10, 1
      %s16 = ssub.s32 %s10, 2
      %s17 = sadd.s32 %s10, 1
      %s18 = ssub.s32 %s10, %s17
      %p19 = scmp.eq.s32.totalorder %s18, 0
      %s21 = sadd.s32 %s20, 1
      %s22 = scalar_select %p19, %s20, %s21
      %p25 = pneg %p19
      %p26 = scmp.eq.s32.totalorder %s10, 1
      %p27 = por %p25, %p26
      %p28 = scmp.ne.s32.totalorder %s20, %s23
      %p29 = scmp.eq.s32.totalorder %s10, 0
      %p30 = por %p28, %p29
      %p31 = scmp.ne.s32.totalorder %s20, %s23
      %p32 = scmp.eq.s32.totalorder %s15, 1
      %p33 = por %p31, %p32
      %p34 = scmp.ne.s32.totalorder %s23, %s24
      %p35 = scmp.eq.s32.totalorder %s15, 0
      %p36 = por %p34, %p35
      %p37 = scmp.ne.s32.totalorder %s23, %s24
      %p38 = scmp.eq.s32.totalorder %s16, 1
      %p39 = por %p37, %p38
      %p41 = scmp.ne.s32.totalorder %s24, %s40
      %p42 = scmp.eq.s32.totalorder %s16, 0
      %p43 = por %p41, %p42
      %s45 = sadd.s32 %s44, 1
      %p48 = scmp.eq.s32.totalorder %s10, 1
      %p49 = scmp.ne.s32.totalorder %s44, %s46
      %p50 = scmp.eq.s32.totalorder %s10, 0
      %p51 = por %p49, %p50
      %p52 = scmp.ne.s32.totalorder %s44, %s46
      %p53 = scmp.eq.s32.totalorder %s15, 1
      %p54 = por %p52, %p53
      %p55 = scmp.ne.s32.totalorder %s46, %s47
      %p56 = scmp.eq.s32.totalorder %s15, 0
      %p57 = por %p55, %p56
      %p58 = scmp.ne.s32.totalorder %s46, %s47
      %p59 = scmp.eq.s32.totalorder %s16, 1
      %p60 = por %p58, %p59
      %p62 = scmp.ne.s32.totalorder %s47, %s61
      %p63 = scmp.eq.s32.totalorder %s16, 0
      %p64 = por %p62, %p63
      %s65 = ssub.s32 %s10, %s17
      %p66 = scmp.eq.s32.totalorder %s65, 0
      %s68 = sadd.s32 %s67, 1
      %s69 = scalar_select %p66, %s67, %s68
      %p72 = pneg %p66
      %p73 = scmp.eq.s32.totalorder %s10, 1
      %p74 = por %p72, %p73
      %p75 = scmp.ne.s32.totalorder %s67, %s70
      %p76 = scmp.eq.s32.totalorder %s10, 0
      %p77 = por %p75, %p76
      %p78 = scmp.ne.s32.totalorder %s67, %s70
      %p79 = scmp.eq.s32.totalorder %s15, 1
      %p80 = por %p78, %p79
      %p81 = scmp.ne.s32.totalorder %s70, %s71
      %p82 = scmp.eq.s32.totalorder %s15, 0
      %p83 = por %p81, %p82
      %p84 = scmp.ne.s32.totalorder %s70, %s71
      %p85 = scmp.eq.s32.totalorder %s16, 1
      %p86 = por %p84, %p85
      %p88 = scmp.ne.s32.totalorder %s71, %s87
      %p89 = scmp.eq.s32.totalorder %s16, 0
      %p90 = por %p88, %p89
      %s91 = ssub.s32 %s10, %s17
      %p92 = scmp.eq.s32.totalorder %s91, 0
      %s94 = sadd.s32 %s93, 1
      %s95 = scalar_select %p92, %s93, %s94
      %p98 = pneg %p92
      %p99 = scmp.eq.s32.totalorder %s10, 1
      %p100 = por %p98, %p99
      %p101 = scmp.ne.s32.totalorder %s93, %s96
      %p102 = scmp.eq.s32.totalorder %s10, 0
      %p103 = por %p101, %p102
      %p104 = scmp.ne.s32.totalorder %s93, %s96
      %p105 = scmp.eq.s32.totalorder %s15, 1
      %p106 = por %p104, %p105
      %p107 = scmp.ne.s32.totalorder %s96, %s97
      %p108 = scmp.eq.s32.totalorder %s15, 0
      %p109 = por %p107, %p108
      %p110 = scmp.ne.s32.totalorder %s96, %s97
      %p111 = scmp.eq.s32.totalorder %s16, 1
      %p112 = por %p110, %p111
      %p114 = scmp.ne.s32.totalorder %s97, %s113
      %p115 = scmp.eq.s32.totalorder %s16, 0
      %p116 = por %p114, %p115
      %p117 = scmp.le.s32.totalorder 1, %s10
      %p118 = scmp.lt.s32.totalorder %s10, 3
      %p119 = pnand %p117, %p118
      %p120 = pneg %p119
      // Predicated region
      $region9: #{vec_cross_attn_block_forward.12} parent=5 // pred_check
        _
      $region10: #{vec_cross_attn_block_forward.12} parent=5 // pred_check_branch
        %122 = sbr.rel (%p119) target = $region12
      $region11: #{vec_cross_attn_block_forward.12} parent=5 // pred_region
        %s123 = ssub.s32 %s10, 1
        // Predicated region
        $region13: #{vec_cross_attn_block_forward.12} parent=11 // pred_check
          %p124 = pneg %p57
        $region14: #{vec_cross_attn_block_forward.12} parent=11 // pred_check_branch
          %126 = sbr.rel (%p124) target = $region16
        $region15: #{vec_cross_attn_block_forward.12} parent=11 // pred_region
          _
        $region16: #{vec_cross_attn_block_forward.12} parent=11 // pred_fallthru
          _
      $region12: #{vec_cross_attn_block_forward.12} parent=5 // pred_fallthru
        _
      %p127 = scmp.lt.s32.totalorder %s10, 2
      // Predicated region
      $region17: #{vec_cross_attn_block_forward.12} parent=5 // pred_check
        %p128 = pneg %p127
      $region18: #{vec_cross_attn_block_forward.12} parent=5 // pred_check_branch
        %130 = sbr.rel (%p128) target = $region20
      $region19: #{vec_cross_attn_block_forward.12} parent=5 // pred_region
        // Predicated region
        $region21: #{vec_cross_attn_block_forward.12} parent=19 // pred_check
          %p131 = pneg %p30
        $region22: #{vec_cross_attn_block_forward.12} parent=19 // pred_check_branch
          %133 = sbr.rel (%p131) target = $region24
        $region23: #{vec_cross_attn_block_forward.12} parent=19 // pred_region
          %s134 = sand.u32 %s20, 1
          %s135 = sand.u32 %s20, 1
          %s136 = smul.addr %s135, 48
          %s137 = scalar_lea.vmem [#allocation2], %s136
          %s138 = smul.u32 2, %s10
          %s139 = smul.addr %s138, 8
          %s140 = scalar_lea.vmem %s0, %s139
          // Predicated region
          $region25: #{vec_cross_attn_block_forward.12} parent=23 // pred_check
            _
          $region26: #{vec_cross_attn_block_forward.12} parent=23 // pred_check_branch
            %142 = sbr.rel (0) target = $region28
          $region27: #{vec_cross_attn_block_forward.12} parent=23 // pred_region
            // Predicated region
            $region29: #{vec_cross_attn_block_forward.12} parent=27 // pred_check
              _
            $region30: #{vec_cross_attn_block_forward.12} parent=27 // pred_check_branch
              %144 = sbr.rel (0) target = $region32
            $region31: #{vec_cross_attn_block_forward.12} parent=27 // pred_region
              // Predicated region
              $region44: #{vec_cross_attn_block_forward.12} parent=31 // pred_check
                _
              $region45: #{vec_cross_attn_block_forward.12} parent=31 // pred_check_branch
                %170 = sbr.rel (0) target = $region47
              $region46: #{vec_cross_attn_block_forward.12} parent=31 // pred_region
                loop: start=0, step=1, limit=1
                $region48: #{vec_cross_attn_block_forward.12} parent=46 // loop_pre_header
                  _
                $region49: #{vec_cross_attn_block_forward.12} parent=46 // loop_header
                  %s172 = sphi 0, %s176
                  %p173 = scmp.ge.s32.totalorder %s172, 1
                  %s177 = sphi %s140, %s140
                  %s178 = sphi %s137, %s137
                $region50: #{vec_cross_attn_block_forward.12} parent=46 // loop_header_branch
                  %175 = sbr.rel (%p173) target = $region54
                $region51: #{vec_cross_attn_block_forward.12} parent=46 // loop_body
                  %v179 = vld [vmem:[%s177] sm:$0xff]
                  %180 = vst [vmem:[%s178] sm:$0xff] %v179
                  %v181 = vld [vmem:[%s177 + $0x8] sm:$0xff]
                  %182 = vst [vmem:[%s178 + $0x8] sm:$0xff] %v181
                  %v183 = vld [vmem:[%s177 + $0x20] sm:$0xff]
                  %184 = vst [vmem:[%s178 + $0x10] sm:$0xff] %v183
                  %v185 = vld [vmem:[%s177 + $0x28] sm:$0xff]
                  %186 = vst [vmem:[%s178 + $0x18] sm:$0xff] %v185
                  %v187 = vld [vmem:[%s177 + $0x40] sm:$0xff]
                  %188 = vst [vmem:[%s178 + $0x20] sm:$0xff] %v187
                  %v189 = vld [vmem:[%s177 + $0x48] sm:$0xff]
                  %190 = vst [vmem:[%s178 + $0x28] sm:$0xff] %v189
                $region52: #{vec_cross_attn_block_forward.12} parent=46 // loop_footer
                  %s176 = sadd.s32 1, %s172
                $region53: #{vec_cross_attn_block_forward.12} parent=46 // loop_footer_branch
                  %171 = sbr.rel target = $region49
                $region54: #{vec_cross_attn_block_forward.12} parent=46 // loop_exit
                  _
              $region47: #{vec_cross_attn_block_forward.12} parent=31 // pred_fallthru
                _
              // Predicated region
              $region55: #{vec_cross_attn_block_forward.12} parent=31 // pred_check
                _
              $region56: #{vec_cross_attn_block_forward.12} parent=31 // pred_check_branch
                %192 = sbr.rel target = $region58
              $region57: #{vec_cross_attn_block_forward.12} parent=31 // pred_region
                _
              $region58: #{vec_cross_attn_block_forward.12} parent=31 // pred_fallthru
                _
            $region32: #{vec_cross_attn_block_forward.12} parent=27 // pred_fallthru
              _
            // Predicated region
            $region33: #{vec_cross_attn_block_forward.12} parent=27 // pred_check
              _
            $region34: #{vec_cross_attn_block_forward.12} parent=27 // pred_check_branch
              %146 = sbr.rel target = $region36
            $region35: #{vec_cross_attn_block_forward.12} parent=27 // pred_region
              %s148 = ssub.s32 256, 1
              loop: start=0, step=1, limit=1
              $region37: #{vec_cross_attn_block_forward.12} parent=35 // loop_pre_header
                _
              $region38: #{vec_cross_attn_block_forward.12} parent=35 // loop_header
                %s150 = sphi 0, %s154
                %p151 = scmp.ge.s32.totalorder %s150, 1
                %s155 = sphi %s140, %s140
                %s156 = sphi %s137, %s137
              $region39: #{vec_cross_attn_block_forward.12} parent=35 // loop_header_branch
                %153 = sbr.rel (%p151) target = $region43
              $region40: #{vec_cross_attn_block_forward.12} parent=35 // loop_body
                %v157 = vld [vmem:[%s155] sm:%s148]
                %158 = vst [vmem:[%s156] sm:%s148] %v157
                %v159 = vld [vmem:[%s155 + $0x8] sm:%s148]
                %160 = vst [vmem:[%s156 + $0x8] sm:%s148] %v159
                %v161 = vld [vmem:[%s155 + $0x20] sm:%s148]
                %162 = vst [vmem:[%s156 + $0x10] sm:%s148] %v161
                %v163 = vld [vmem:[%s155 + $0x28] sm:%s148]
                %164 = vst [vmem:[%s156 + $0x18] sm:%s148] %v163
                %v165 = vld [vmem:[%s155 + $0x40] sm:%s148]
                %166 = vst [vmem:[%s156 + $0x20] sm:%s148] %v165
                %v167 = vld [vmem:[%s155 + $0x48] sm:%s148]
                %168 = vst [vmem:[%s156 + $0x28] sm:%s148] %v167
              $region41: #{vec_cross_attn_block_forward.12} parent=35 // loop_footer
                %s154 = sadd.s32 1, %s150
              $region42: #{vec_cross_attn_block_forward.12} parent=35 // loop_footer_branch
                %149 = sbr.rel target = $region38
              $region43: #{vec_cross_attn_block_forward.12} parent=35 // loop_exit
                _
            $region36: #{vec_cross_attn_block_forward.12} parent=27 // pred_fallthru
              _
          $region28: #{vec_cross_attn_block_forward.12} parent=23 // pred_fallthru
            _
          %193 = vnop
        $region24: #{vec_cross_attn_block_forward.12} parent=19 // pred_fallthru
          _
      $region20: #{vec_cross_attn_block_forward.12} parent=5 // pred_fallthru
        _
      %p194 = scmp.le.s32.totalorder 1, %s10
      %p195 = scmp.lt.s32.totalorder %s10, 3
      %p196 = pnand %p194, %p195
      %p197 = pneg %p196
      // Predicated region
      $region59: #{vec_cross_attn_block_forward.12} parent=5 // pred_check
        _
      $region60: #{vec_cross_attn_block_forward.12} parent=5 // pred_check_branch
        %199 = sbr.rel (%p196) target = $region62
      $region61: #{vec_cross_attn_block_forward.12} parent=5 // pred_region
        %s200 = ssub.s32 %s10, 1
        %s201 = sand.u32 %s23, 1
        %s202 = sand.u32 %s23, 1
        %s203 = smul.addr %s202, 48
        %s204 = scalar_lea.vmem [#allocation2], %s203
        // Predicated region
        $region63: #{vec_cross_attn_block_forward.12} parent=61 // pred_check
          %p205 = pneg %p36
        $region64: #{vec_cross_attn_block_forward.12} parent=61 // pred_check_branch
          %207 = sbr.rel (%p205) target = $region66
        $region65: #{vec_cross_attn_block_forward.12} parent=61 // pred_region
          _
        $region66: #{vec_cross_attn_block_forward.12} parent=61 // pred_fallthru
          _
        %s208 = sand.u32 %s23, 1
        %s209 = sand.u32 %s23, 1
        %s210 = smul.addr %s209, 48
        %s211 = scalar_lea.vmem [#allocation2], %s210
        %p212 = pneg %p36
        %p213 = pneg %p33
        %p214 = pneg %p57
        %p215 = pneg %p54
        %p216 = pneg %p83
        %p217 = pneg %p80
        %s218 = sand.u32 %s70, 1
        %s219 = sand.u32 %s70, 1
        %s220 = smul.addr %s219, 24
        %s221 = scalar_lea.vmem [#allocation3], %s220
        %p222 = pneg %p109
        %p223 = pneg %p106
        %s224 = sand.u32 %s96, 1
        %s225 = sand.u32 %s96, 1
        %s226 = smul.addr %s225, 24
        %s227 = scalar_lea.vmem [#allocation4], %s226
        %s228 = smul.u32 2, %s15
        %s229 = smul.u32 2, %s15
        %s230 = smul.u32 2, %s15
        %v232 = vld [vmem:[%s204] sm:$0xff]
        %v233 = vld [vmem:[%s204 + $0x8] sm:$0xff]
        %v234 = vld [vmem:[%s204 + $0x10] sm:$0xff]
        %v235 = vld [vmem:[%s204 + $0x18] sm:$0xff]
        %v236 = vld [vmem:[%s204 + $0x20] sm:$0xff]
        %v237 = vld [vmem:[%s204 + $0x28] sm:$0xff]
        %v238 = vmul.f32 %v232, %v232
        %v239 = vmul.f32 %v233, %v233
        %v240 = vmul.f32 %v234, %v234
        %v241 = vmul.f32 %v235, %v235
        %v242 = vmul.f32 %v236, %v236
        %v243 = vmul.f32 %v237, %v237
        %vm244 = vcmask 64512
        %v245 = vsel %vm244, %v238, 0.0
        %v246 = vsel %vm244, %v240, 0.0
        %v247 = vadd.f32 %v245, %v246
        %v248 = vsel %vm244, %v242, 0.0
        %v249 = vadd.f32 %v247, %v248
        %v250 = vsel %vm244, %v239, 0.0
        %v251 = vsel %vm244, %v241, 0.0
        %v252 = vadd.f32 %v250, %v251
        %v253 = vsel %vm244, %v243, 0.0
        %v254 = vadd.f32 %v252, %v253
        %v255 = vsel %vm244, %v249, 0.0
        %256 = vadd.xlane.f32.xlu0 %v255
        %v257 = vpop.xlane.xlu0 %256
        %v258 = vsel %vm244, %v254, 0.0
        %259 = vadd.xlane.f32.xlu0 %v258
        %v260 = vpop.xlane.xlu0 %259
        %v261 = vrcp.pop 8.0
        %v262 = vmul.f32 8.0, %v261
        %v263 = vsub.f32 1.0, %v262
        %v264 = vmul.f32 %v261, %v263
        %v265 = vadd.f32 %v261, %v264
        %vm266 = vweird.f32 %v261
        %v267 = vsel %vm266, %v261, %v265
        %v268 = vmul.f32 %v257, %v267
        %v269 = vmul.f32 %v260, %v267
        %v270 = vrsqrt.pop %v268
        %v271 = vmul.f32 %v270, %v268
        %v272 = vmul.f32 %v271, %v270
        %v273 = vmul.f32 0.5, %v272
        %v274 = vsub.f32 1.5, %v273
        %v275 = vmul.f32 %v270, %v274
        %v276 = vmul.f32 %v268, %v275
        %vm277 = vcmp.eq.f32.partialorder %v268, inf
        %v278 = vsel %vm277, %v268, %v276
        %vm279 = vcmp.eq.f32.partialorder %v268, 0.0
        %v280 = vand.u32 %v268, 2147483648
        %v281 = vsel %vm279, %v280, %v278
        %v282 = vrsqrt.pop %v269
        %v283 = vmul.f32 %v282, %v269
        %v284 = vmul.f32 %v283, %v282
        %v285 = vmul.f32 0.5, %v284
        %v286 = vsub.f32 1.5, %v285
        %v287 = vmul.f32 %v282, %v286
        %v288 = vmul.f32 %v269, %v287
        %vm289 = vcmp.eq.f32.partialorder %v269, inf
        %v290 = vsel %vm289, %v269, %v288
        %vm291 = vcmp.eq.f32.partialorder %v269, 0.0
        %v292 = vand.u32 %v269, 2147483648
        %v293 = vsel %vm291, %v292, %v290
        %v294 = vadd.f32 %v281, 1e-06
        %v295 = vadd.f32 %v293, 1e-06
        %v296 = vrcp.pop %v294
        %v297 = vmul.f32 %v294, %v296
        %v298 = vsub.f32 1.0, %v297
        %v299 = vmul.f32 %v296, %v298
        %v300 = vadd.f32 %v296, %v299
        %vm301 = vweird.f32 %v294
        %vm302 = vweird.f32 %v296
        %vm303 = vmor %vm301, %vm302
        %v304 = vsel %vm303, %v296, %v300
        %v305 = vand.u32 2147483647, %v294
        %vm306 = vcmp.eq.f32.partialorder %v305, 8.507059e+37
        %v307 = vand.u32 %v294, 2147483648
        %v308 = vor.u32 1.1754944e-38, %v307
        %v309 = vsel %vm306, %v308, %v304
        %v310 = vmul.f32 1.0, %v309
        %v311 = vrcp.pop %v295
        %v312 = vmul.f32 %v295, %v311
        %v313 = vsub.f32 1.0, %v312
        %v314 = vmul.f32 %v311, %v313
        %v315 = vadd.f32 %v311, %v314
        %vm316 = vweird.f32 %v295
        %vm317 = vweird.f32 %v311
        %vm318 = vmor %vm316, %vm317
        %v319 = vsel %vm318, %v311, %v315
        %v320 = vand.u32 2147483647, %v295
        %vm321 = vcmp.eq.f32.partialorder %v320, 8.507059e+37
        %v322 = vand.u32 %v295, 2147483648
        %v323 = vor.u32 1.1754944e-38, %v322
        %v324 = vsel %vm321, %v323, %v319
        %v325 = vmul.f32 1.0, %v324
        %v326 = vmul.f32 %v232, %v310
        %v327 = vmul.f32 %v233, %v325
        %v328 = vmul.f32 %v234, %v310
        %v329 = vmul.f32 %v235, %v325
        %v330 = vmul.f32 %v236, %v310
        %v331 = vmul.f32 %v237, %v325
        %v332 = vpack.c.bf16 %v326, %v326
        %v333 = vpack.c.bf16 %v327, %v327
        %v334 = vpack.c.bf16 %v328, %v328
        %v335 = vpack.c.bf16 %v329, %v329
        %v336 = vpack.c.bf16 %v330, %v330
        %v337 = vpack.c.bf16 %v331, %v331
        %v338 = vld [vmem:[%s1] sm:$0xf]
        %v345 = vunpack.c.l.b16 %v332
        %v346 = vunpack.c.l.b16 %v333
        %v347 = vunpack.c.l.b16 %v334
        %v348 = vunpack.c.l.b16 %v335
        %v349 = vunpack.c.l.b16 %v336
        %v350 = vunpack.c.l.b16 %v337
        %v351 = vpack.c.b16 %v346, %v345
        %v352 = vpack.c.b16 %v348, %v347
        %v353 = vpack.c.b16 %v350, %v349
        %v355 = vsel %vm244, %v351, 0
        %v358 = vsel %vm244, %v352, 0
        %v361 = vsel %vm244, %v353, 0
        %vm363 = vcmask 1043456
        %v365 = vsel %vm363, %v338, 0
        %367 = vmatpush.bf16.msra.mxu0 0
        %368 = vmatpush.bf16.msra.mxu0 0
        %369 = vmatpush.bf16.msra.mxu0 0
        %370 = vmatpush.bf16.msra.mxu0 0
        %371 = vmatpush.bf16.msra.mxu0 0
        %372 = vmatpush.bf16.msra.mxu0 0
        %373 = vmatpush.bf16.msra.mxu0 0
        %374 = vmatpush.bf16.msra.mxu0 %v365
        %375 = vmatmul.bf16.gmra.mxu0 %v355
        %v376 = vpop.f32.mrf.mxu0
        %v377 = vadd.f32 0.0, %v376
        %v378 = vpop.f32.mrf.mxu0
        %v379 = vadd.f32 0.0, %v378
        %380 = vmatmul.bf16.gmra.mxu0 %v358
        %v381 = vpop.f32.mrf.mxu0
        %v382 = vadd.f32 0.0, %v381
        %v383 = vpop.f32.mrf.mxu0
        %v384 = vadd.f32 0.0, %v383
        %385 = vmatmul.bf16.gmra.mxu0 %v361
        %v386 = vpop.f32.mrf.mxu0
        %v387 = vadd.f32 0.0, %v386
        %v388 = vpop.f32.mrf.mxu0
        %v389 = vadd.f32 0.0, %v388
        %390 = vdwg.mxu0
        %v391 = vpack.c.bf16 %v377, %v377
        %v392 = vpack.c.bf16 %v379, %v379
        %v393 = vpack.c.bf16 %v382, %v382
        %v394 = vpack.c.bf16 %v384, %v384
        %v395 = vpack.c.bf16 %v387, %v387
        %v396 = vpack.c.bf16 %v389, %v389
        %vm397 = vcmask 60416
        %398 = vst.msk [vmem:[%s221] sm:$0xf] %vm397, %v391
        %399 = vst.msk [vmem:[%s221 + $0x4] sm:$0xf] %vm397, %v392
        %400 = vst.msk [vmem:[%s221 + $0x8] sm:$0xf] %vm397, %v393
        %401 = vst.msk [vmem:[%s221 + $0xc] sm:$0xf] %vm397, %v394
        %402 = vst.msk [vmem:[%s221 + $0x10] sm:$0xf] %vm397, %v395
        %403 = vst.msk [vmem:[%s221 + $0x14] sm:$0xf] %vm397, %v396
        %410 = vrot.lane.b32.xlu0 %v391, 120
        %v411 = vpop.permute.xlu0 %410
        %412 = vrot.lane.b32.xlu0 %v392, 120
        %v413 = vpop.permute.xlu0 %412
        %414 = vrot.lane.b32.xlu0 %v393, 120
        %v415 = vpop.permute.xlu0 %414
        %416 = vrot.lane.b32.xlu0 %v394, 120
        %v417 = vpop.permute.xlu0 %416
        %418 = vrot.lane.b32.xlu0 %v395, 120
        %v419 = vpop.permute.xlu0 %418
        %420 = vrot.lane.b32.xlu0 %v396, 120
        %v421 = vpop.permute.xlu0 %420
        %428 = vst.msk [vmem:[%s227] sm:$0xf] %vm397, %v411
        %429 = vst.msk [vmem:[%s227 + $0x4] sm:$0xf] %vm397, %v413
        %430 = vst.msk [vmem:[%s227 + $0x8] sm:$0xf] %vm397, %v415
        %431 = vst.msk [vmem:[%s227 + $0xc] sm:$0xf] %vm397, %v417
        %432 = vst.msk [vmem:[%s227 + $0x10] sm:$0xf] %vm397, %v419
        %433 = vst.msk [vmem:[%s227 + $0x14] sm:$0xf] %vm397, %v421
        %s434 = sand.u32 %s70, 1
        %s435 = sand.u32 %s70, 1
        %s436 = smul.addr %s435, 24
        %s437 = scalar_lea.vmem [#allocation3], %s436
        %s438 = sand.u32 %s96, 1
        %s439 = sand.u32 %s96, 1
        %s440 = smul.addr %s439, 24
        %s441 = scalar_lea.vmem [#allocation4], %s440
        // Predicated region
        $region67: #{vec_cross_attn_block_forward.12} parent=61 // pred_check
          %p442 = pneg %p80
        $region68: #{vec_cross_attn_block_forward.12} parent=61 // pred_check_branch
          %444 = sbr.rel (%p442) target = $region70
        $region69: #{vec_cross_attn_block_forward.12} parent=61 // pred_region
          %s445 = smul.u32 2, %s15
          %s446 = smul.addr %s445, 4
          %s447 = scalar_lea.vmem %s2, %s446
          // Predicated region
          $region71: #{vec_cross_attn_block_forward.12} parent=69 // pred_check
            _
          $region72: #{vec_cross_attn_block_forward.12} parent=69 // pred_check_branch
            %449 = sbr.rel (0) target = $region74
          $region73: #{vec_cross_attn_block_forward.12} parent=69 // pred_region
            // Predicated region
            $region75: #{vec_cross_attn_block_forward.12} parent=73 // pred_check
              _
            $region76: #{vec_cross_attn_block_forward.12} parent=73 // pred_check_branch
              %451 = sbr.rel target = $region78
            $region77: #{vec_cross_attn_block_forward.12} parent=73 // pred_region
              // Predicated region
              $region90: #{vec_cross_attn_block_forward.12} parent=77 // pred_check
                _
              $region91: #{vec_cross_attn_block_forward.12} parent=77 // pred_check_branch
                %477 = sbr.rel (0) target = $region93
              $region92: #{vec_cross_attn_block_forward.12} parent=77 // pred_region
                loop: start=0, step=1, limit=1
                $region94: #{vec_cross_attn_block_forward.12} parent=92 // loop_pre_header
                  _
                $region95: #{vec_cross_attn_block_forward.12} parent=92 // loop_header
                  %s479 = sphi 0, %s483
                  %p480 = scmp.ge.s32.totalorder %s479, 1
                  %s484 = sphi %s437, %s437
                  %s485 = sphi %s447, %s447
                $region96: #{vec_cross_attn_block_forward.12} parent=92 // loop_header_branch
                  %482 = sbr.rel (%p480) target = $region100
                $region97: #{vec_cross_attn_block_forward.12} parent=92 // loop_body
                  _
                $region98: #{vec_cross_attn_block_forward.12} parent=92 // loop_footer
                  %s483 = sadd.s32 1, %s479
                $region99: #{vec_cross_attn_block_forward.12} parent=92 // loop_footer_branch
                  %478 = sbr.rel target = $region95
                $region100: #{vec_cross_attn_block_forward.12} parent=92 // loop_exit
                  _
                %s487 = ssub.s32 16, 1
                loop: start=0, step=1, limit=1
                $region101: #{vec_cross_attn_block_forward.12} parent=92 // loop_pre_header
                  _
                $region102: #{vec_cross_attn_block_forward.12} parent=92 // loop_header
                  %s489 = sphi 0, %s493
                  %p490 = scmp.ge.s32.totalorder %s489, 1
                  %s494 = sphi %s437, %s437
                  %s495 = sphi %s447, %s447
                $region103: #{vec_cross_attn_block_forward.12} parent=92 // loop_header_branch
                  %492 = sbr.rel (%p490) target = $region107
                $region104: #{vec_cross_attn_block_forward.12} parent=92 // loop_body
                  %v496 = vld [vmem:[%s494] sm:%s487]
                  %497 = vst [vmem:[%s495] sm:%s487] %v496
                  %v498 = vld [vmem:[%s494 + $0x4] sm:%s487]
                  %499 = vst [vmem:[%s495 + $0x4] sm:%s487] %v498
                  %v500 = vld [vmem:[%s494 + $0x8] sm:%s487]
                  %501 = vst [vmem:[%s495 + $0x10] sm:%s487] %v500
                  %v502 = vld [vmem:[%s494 + $0xc] sm:%s487]
                  %503 = vst [vmem:[%s495 + $0x14] sm:%s487] %v502
                  %v504 = vld [vmem:[%s494 + $0x10] sm:%s487]
                  %505 = vst [vmem:[%s495 + $0x20] sm:%s487] %v504
                  %v506 = vld [vmem:[%s494 + $0x14] sm:%s487]
                  %507 = vst [vmem:[%s495 + $0x24] sm:%s487] %v506
                $region105: #{vec_cross_attn_block_forward.12} parent=92 // loop_footer
                  %s493 = sadd.s32 1, %s489
                $region106: #{vec_cross_attn_block_forward.12} parent=92 // loop_footer_branch
                  %488 = sbr.rel target = $region102
                $region107: #{vec_cross_attn_block_forward.12} parent=92 // loop_exit
                  _
              $region93: #{vec_cross_attn_block_forward.12} parent=77 // pred_fallthru
                _
            $region78: #{vec_cross_attn_block_forward.12} parent=73 // pred_fallthru
              _
            // Predicated region
            $region79: #{vec_cross_attn_block_forward.12} parent=73 // pred_check
              _
            $region80: #{vec_cross_attn_block_forward.12} parent=73 // pred_check_branch
              %453 = sbr.rel (0) target = $region82
            $region81: #{vec_cross_attn_block_forward.12} parent=73 // pred_region
              %s455 = ssub.s32 16, 1
              loop: start=0, step=1, limit=1
              $region83: #{vec_cross_attn_block_forward.12} parent=81 // loop_pre_header
                _
              $region84: #{vec_cross_attn_block_forward.12} parent=81 // loop_header
                %s457 = sphi 0, %s461
                %p458 = scmp.ge.s32.totalorder %s457, 1
                %s462 = sphi %s437, %s437
                %s463 = sphi %s447, %s447
              $region85: #{vec_cross_attn_block_forward.12} parent=81 // loop_header_branch
                %460 = sbr.rel (%p458) target = $region89
              $region86: #{vec_cross_attn_block_forward.12} parent=81 // loop_body
                %v464 = vld [vmem:[%s462] sm:%s455]
                %465 = vst [vmem:[%s463] sm:%s455] %v464
                %v466 = vld [vmem:[%s462 + $0x4] sm:%s455]
                %467 = vst [vmem:[%s463 + $0x4] sm:%s455] %v466
                %v468 = vld [vmem:[%s462 + $0x8] sm:%s455]
                %469 = vst [vmem:[%s463 + $0x10] sm:%s455] %v468
                %v470 = vld [vmem:[%s462 + $0xc] sm:%s455]
                %471 = vst [vmem:[%s463 + $0x14] sm:%s455] %v470
                %v472 = vld [vmem:[%s462 + $0x10] sm:%s455]
                %473 = vst [vmem:[%s463 + $0x20] sm:%s455] %v472
                %v474 = vld [vmem:[%s462 + $0x14] sm:%s455]
                %475 = vst [vmem:[%s463 + $0x24] sm:%s455] %v474
              $region87: #{vec_cross_attn_block_forward.12} parent=81 // loop_footer
                %s461 = sadd.s32 1, %s457
              $region88: #{vec_cross_attn_block_forward.12} parent=81 // loop_footer_branch
                %456 = sbr.rel target = $region84
              $region89: #{vec_cross_attn_block_forward.12} parent=81 // loop_exit
                _
            $region82: #{vec_cross_attn_block_forward.12} parent=73 // pred_fallthru
              _
          $region74: #{vec_cross_attn_block_forward.12} parent=69 // pred_fallthru
            _
          %508 = vnop
        $region70: #{vec_cross_attn_block_forward.12} parent=61 // pred_fallthru
          _
        // Predicated region
        $region108: #{vec_cross_attn_block_forward.12} parent=61 // pred_check
          %p509 = pneg %p106
        $region109: #{vec_cross_attn_block_forward.12} parent=61 // pred_check_branch
          %511 = sbr.rel (%p509) target = $region111
        $region110: #{vec_cross_attn_block_forward.12} parent=61 // pred_region
          %s512 = smul.u32 2, %s15
          %s513 = smul.addr %s512, 4
          %s514 = scalar_lea.vmem %s3, %s513
          // Predicated region
          $region112: #{vec_cross_attn_block_forward.12} parent=110 // pred_check
            _
          $region113: #{vec_cross_attn_block_forward.12} parent=110 // pred_check_branch
            %516 = sbr.rel (0) target = $region115
          $region114: #{vec_cross_attn_block_forward.12} parent=110 // pred_region
            // Predicated region
            $region116: #{vec_cross_attn_block_forward.12} parent=114 // pred_check
              _
            $region117: #{vec_cross_attn_block_forward.12} parent=114 // pred_check_branch
              %518 = sbr.rel target = $region119
            $region118: #{vec_cross_attn_block_forward.12} parent=114 // pred_region
              // Predicated region
              $region131: #{vec_cross_attn_block_forward.12} parent=118 // pred_check
                _
              $region132: #{vec_cross_attn_block_forward.12} parent=118 // pred_check_branch
                %544 = sbr.rel (0) target = $region134
              $region133: #{vec_cross_attn_block_forward.12} parent=118 // pred_region
                loop: start=0, step=1, limit=1
                $region135: #{vec_cross_attn_block_forward.12} parent=133 // loop_pre_header
                  _
                $region136: #{vec_cross_attn_block_forward.12} parent=133 // loop_header
                  %s546 = sphi 0, %s550
                  %p547 = scmp.ge.s32.totalorder %s546, 1
                  %s551 = sphi %s441, %s441
                  %s552 = sphi %s514, %s514
                $region137: #{vec_cross_attn_block_forward.12} parent=133 // loop_header_branch
                  %549 = sbr.rel (%p547) target = $region141
                $region138: #{vec_cross_attn_block_forward.12} parent=133 // loop_body
                  _
                $region139: #{vec_cross_attn_block_forward.12} parent=133 // loop_footer
                  %s550 = sadd.s32 1, %s546
                $region140: #{vec_cross_attn_block_forward.12} parent=133 // loop_footer_branch
                  %545 = sbr.rel target = $region136
                $region141: #{vec_cross_attn_block_forward.12} parent=133 // loop_exit
                  _
                %s554 = ssub.s32 16, 1
                loop: start=0, step=1, limit=1
                $region142: #{vec_cross_attn_block_forward.12} parent=133 // loop_pre_header
                  _
                $region143: #{vec_cross_attn_block_forward.12} parent=133 // loop_header
                  %s556 = sphi 0, %s560
                  %p557 = scmp.ge.s32.totalorder %s556, 1
                  %s561 = sphi %s441, %s441
                  %s562 = sphi %s514, %s514
                $region144: #{vec_cross_attn_block_forward.12} parent=133 // loop_header_branch
                  %559 = sbr.rel (%p557) target = $region148
                $region145: #{vec_cross_attn_block_forward.12} parent=133 // loop_body
                  %v563 = vld [vmem:[%s561] sm:%s554]
                  %564 = vst [vmem:[%s562] sm:%s554] %v563
                  %v565 = vld [vmem:[%s561 + $0x4] sm:%s554]
                  %566 = vst [vmem:[%s562 + $0x4] sm:%s554] %v565
                  %v567 = vld [vmem:[%s561 + $0x8] sm:%s554]
                  %568 = vst [vmem:[%s562 + $0x10] sm:%s554] %v567
                  %v569 = vld [vmem:[%s561 + $0xc] sm:%s554]
                  %570 = vst [vmem:[%s562 + $0x14] sm:%s554] %v569
                  %v571 = vld [vmem:[%s561 + $0x10] sm:%s554]
                  %572 = vst [vmem:[%s562 + $0x20] sm:%s554] %v571
                  %v573 = vld [vmem:[%s561 + $0x14] sm:%s554]
                  %574 = vst [vmem:[%s562 + $0x24] sm:%s554] %v573
                $region146: #{vec_cross_attn_block_forward.12} parent=133 // loop_footer
                  %s560 = sadd.s32 1, %s556
                $region147: #{vec_cross_attn_block_forward.12} parent=133 // loop_footer_branch
                  %555 = sbr.rel target = $region143
                $region148: #{vec_cross_attn_block_forward.12} parent=133 // loop_exit
                  _
              $region134: #{vec_cross_attn_block_forward.12} parent=118 // pred_fallthru
                _
            $region119: #{vec_cross_attn_block_forward.12} parent=114 // pred_fallthru
              _
            // Predicated region
            $region120: #{vec_cross_attn_block_forward.12} parent=114 // pred_check
              _
            $region121: #{vec_cross_attn_block_forward.12} parent=114 // pred_check_branch
              %520 = sbr.rel (0) target = $region123
            $region122: #{vec_cross_attn_block_forward.12} parent=114 // pred_region
              %s522 = ssub.s32 16, 1
              loop: start=0, step=1, limit=1
              $region124: #{vec_cross_attn_block_forward.12} parent=122 // loop_pre_header
                _
              $region125: #{vec_cross_attn_block_forward.12} parent=122 // loop_header
                %s524 = sphi 0, %s528
                %p525 = scmp.ge.s32.totalorder %s524, 1
                %s529 = sphi %s441, %s441
                %s530 = sphi %s514, %s514
              $region126: #{vec_cross_attn_block_forward.12} parent=122 // loop_header_branch
                %527 = sbr.rel (%p525) target = $region130
              $region127: #{vec_cross_attn_block_forward.12} parent=122 // loop_body
                %v531 = vld [vmem:[%s529] sm:%s522]
                %532 = vst [vmem:[%s530] sm:%s522] %v531
                %v533 = vld [vmem:[%s529 + $0x4] sm:%s522]
                %534 = vst [vmem:[%s530 + $0x4] sm:%s522] %v533
                %v535 = vld [vmem:[%s529 + $0x8] sm:%s522]
                %536 = vst [vmem:[%s530 + $0x10] sm:%s522] %v535
                %v537 = vld [vmem:[%s529 + $0xc] sm:%s522]
                %538 = vst [vmem:[%s530 + $0x14] sm:%s522] %v537
                %v539 = vld [vmem:[%s529 + $0x10] sm:%s522]
                %540 = vst [vmem:[%s530 + $0x20] sm:%s522] %v539
                %v541 = vld [vmem:[%s529 + $0x14] sm:%s522]
                %542 = vst [vmem:[%s530 + $0x24] sm:%s522] %v541
              $region128: #{vec_cross_attn_block_forward.12} parent=122 // loop_footer
                %s528 = sadd.s32 1, %s524
              $region129: #{vec_cross_attn_block_forward.12} parent=122 // loop_footer_branch
                %523 = sbr.rel target = $region125
              $region130: #{vec_cross_attn_block_forward.12} parent=122 // loop_exit
                _
            $region123: #{vec_cross_attn_block_forward.12} parent=114 // pred_fallthru
              _
          $region115: #{vec_cross_attn_block_forward.12} parent=110 // pred_fallthru
            _
          %575 = vnop
        $region111: #{vec_cross_attn_block_forward.12} parent=61 // pred_fallthru
          _
      $region62: #{vec_cross_attn_block_forward.12} parent=5 // pred_fallthru
        _
      %p576 = scmp.le.s32.totalorder 2, %s10
      // Predicated region
      $region149: #{vec_cross_attn_block_forward.12} parent=5 // pred_check
        %p577 = pneg %p576
      $region150: #{vec_cross_attn_block_forward.12} parent=5 // pred_check_branch
        %579 = sbr.rel (%p577) target = $region152
      $region151: #{vec_cross_attn_block_forward.12} parent=5 // pred_region
        %s580 = ssub.s32 %s10, 2
        // Predicated region
        $region153: #{vec_cross_attn_block_forward.12} parent=151 // pred_check
          %p581 = pneg %p86
        $region154: #{vec_cross_attn_block_forward.12} parent=151 // pred_check_branch
          %583 = sbr.rel (%p581) target = $region156
        $region155: #{vec_cross_attn_block_forward.12} parent=151 // pred_region
          %s584 = sand.u32 %s71, 1
          %s585 = sand.u32 %s71, 1
          %s586 = smul.addr %s585, 24
          %s587 = scalar_lea.vmem [#allocation3], %s586
        $region156: #{vec_cross_attn_block_forward.12} parent=151 // pred_fallthru
          _
        // Predicated region
        $region157: #{vec_cross_attn_block_forward.12} parent=151 // pred_check
          %p588 = pneg %p112
        $region158: #{vec_cross_attn_block_forward.12} parent=151 // pred_check_branch
          %590 = sbr.rel (%p588) target = $region160
        $region159: #{vec_cross_attn_block_forward.12} parent=151 // pred_region
          %s591 = sand.u32 %s97, 1
          %s592 = sand.u32 %s97, 1
          %s593 = smul.addr %s592, 24
          %s594 = scalar_lea.vmem [#allocation4], %s593
        $region160: #{vec_cross_attn_block_forward.12} parent=151 // pred_fallthru
          _
      $region152: #{vec_cross_attn_block_forward.12} parent=5 // pred_fallthru
        _
    $region6: #{vec_cross_attn_block_forward.12} parent=1 // loop_footer
      %s14 = sadd.s32 1, %s10
    $region7: #{vec_cross_attn_block_forward.12} parent=1 // loop_footer_branch
      %9 = sbr.rel target = $region3
    $region8: #{vec_cross_attn_block_forward.12} parent=1 // loop_exit
      _

// kernel: vec_cross_attn_block_forward.15
$region0: #{vec_cross_attn_block_forward.15}
  #allocation0 [shape = 'u32[]', space=smem, size = 0x4, offset = 0x4, fixed_abs, tag = 'smem constant byte address 0x4 - core index']
  #allocation1 [shape = 'u32[72,128]{1,0:T(1,128)}', space=vmem, size = 0x9000, scoped, tag = 'internal scratch']
  %s0 = inlined_call_operand.vmem [shape: f32[3,16,8], index: 0, kind: input, shape index: {}, may-alias: {0,4}]
  %s1 = inlined_call_operand.vmem [shape: bf16[8,32], index: 1, kind: input, shape index: {}]
  %s2 = inlined_call_operand.vmem [shape: bf16[32,32], index: 2, kind: input, shape index: {}]
  %s3 = inlined_call_operand.vmem [shape: bf16[32,8], index: 3, kind: input, shape index: {}]
  %s4 = inlined_call_operand.vmem [shape: f32[3,16,8], index: 4, kind: output, shape index: {}, may-alias: {0,4}]
  %s5 = sld [smem:[#allocation0]]
  $region121: #{vec_cross_attn_block_forward.15} parent=0
    _
  %s7 = ssub.s32 1, %s5
  %s8 = scalar_select 0, %s7, %s5
  $region1: #{vec_cross_attn_block_forward.15} parent=0
    #allocation2 [shape = 'u8[24576]{0}', space=vmem, size = 0x6000, scoped, tag = 'input window, operand 0']
    #allocation3 [shape = 'u8[24576]{0}', space=vmem, size = 0x6000, scoped, tag = 'output window, operand 0']
    loop: start=0, step=1, limit=4
    $region2: #{vec_cross_attn_block_forward.15} parent=1 // loop_pre_header
      _
    $region3: #{vec_cross_attn_block_forward.15} parent=1 // loop_header
      %s10 = sphi 0, %s14
      %p11 = scmp.ge.s32.totalorder %s10, 4
      %s20 = sphi 0, %s22
      %s23 = sphi 0, %s20
      %s24 = sphi 0, %s23
      %s40 = sphi 0, %s24
      %s44 = sphi 0, %s44
      %s46 = sphi 0, %s44
      %s47 = sphi 0, %s46
      %s61 = sphi 0, %s47
      %s65 = sphi 0, %s65
      %s67 = sphi 0, %s65
      %s68 = sphi 0, %s67
      %s82 = sphi 0, %s68
      %s86 = sphi 0, %s86
      %s88 = sphi 0, %s86
      %s89 = sphi 0, %s88
      %s103 = sphi 0, %s89
      %s109 = sphi 0, %s111
      %s112 = sphi 0, %s109
      %s113 = sphi 0, %s112
      %s129 = sphi 0, %s113
    $region4: #{vec_cross_attn_block_forward.15} parent=1 // loop_header_branch
      %13 = sbr.rel (%p11) target = $region8
    $region5: #{vec_cross_attn_block_forward.15} parent=1 // loop_body
      %s15 = ssub.s32 %s10, 1
      %s16 = ssub.s32 %s10, 2
      %s17 = sadd.s32 %s10, 1
      %s18 = ssub.s32 %s10, %s17
      %p19 = scmp.eq.s32.totalorder %s18, 0
      %s21 = sadd.s32 %s20, 1
      %s22 = scalar_select %p19, %s20, %s21
      %p25 = pneg %p19
      %p26 = scmp.eq.s32.totalorder %s10, 1
      %p27 = por %p25, %p26
      %p28 = scmp.ne.s32.totalorder %s20, %s23
      %p29 = scmp.eq.s32.totalorder %s10, 0
      %p30 = por %p28, %p29
      %p31 = scmp.ne.s32.totalorder %s20, %s23
      %p32 = scmp.eq.s32.totalorder %s15, 1
      %p33 = por %p31, %p32
      %p34 = scmp.ne.s32.totalorder %s23, %s24
      %p35 = scmp.eq.s32.totalorder %s15, 0
      %p36 = por %p34, %p35
      %p37 = scmp.ne.s32.totalorder %s23, %s24
      %p38 = scmp.eq.s32.totalorder %s16, 1
      %p39 = por %p37, %p38
      %p41 = scmp.ne.s32.totalorder %s24, %s40
      %p42 = scmp.eq.s32.totalorder %s16, 0
      %p43 = por %p41, %p42
      %s45 = sadd.s32 %s44, 1
      %p48 = scmp.eq.s32.totalorder %s10, 1
      %p49 = scmp.ne.s32.totalorder %s44, %s46
      %p50 = scmp.eq.s32.totalorder %s10, 0
      %p51 = por %p49, %p50
      %p52 = scmp.ne.s32.totalorder %s44, %s46
      %p53 = scmp.eq.s32.totalorder %s15, 1
      %p54 = por %p52, %p53
      %p55 = scmp.ne.s32.totalorder %s46, %s47
      %p56 = scmp.eq.s32.totalorder %s15, 0
      %p57 = por %p55, %p56
      %p58 = scmp.ne.s32.totalorder %s46, %s47
      %p59 = scmp.eq.s32.totalorder %s16, 1
      %p60 = por %p58, %p59
      %p62 = scmp.ne.s32.totalorder %s47, %s61
      %p63 = scmp.eq.s32.totalorder %s16, 0
      %p64 = por %p62, %p63
      %s66 = sadd.s32 %s65, 1
      %p69 = scmp.eq.s32.totalorder %s10, 1
      %p70 = scmp.ne.s32.totalorder %s65, %s67
      %p71 = scmp.eq.s32.totalorder %s10, 0
      %p72 = por %p70, %p71
      %p73 = scmp.ne.s32.totalorder %s65, %s67
      %p74 = scmp.eq.s32.totalorder %s15, 1
      %p75 = por %p73, %p74
      %p76 = scmp.ne.s32.totalorder %s67, %s68
      %p77 = scmp.eq.s32.totalorder %s15, 0
      %p78 = por %p76, %p77
      %p79 = scmp.ne.s32.totalorder %s67, %s68
      %p80 = scmp.eq.s32.totalorder %s16, 1
      %p81 = por %p79, %p80
      %p83 = scmp.ne.s32.totalorder %s68, %s82
      %p84 = scmp.eq.s32.totalorder %s16, 0
      %p85 = por %p83, %p84
      %s87 = sadd.s32 %s86, 1
      %p90 = scmp.eq.s32.totalorder %s10, 1
      %p91 = scmp.ne.s32.totalorder %s86, %s88
      %p92 = scmp.eq.s32.totalorder %s10, 0
      %p93 = por %p91, %p92
      %p94 = scmp.ne.s32.totalorder %s86, %s88
      %p95 = scmp.eq.s32.totalorder %s15, 1
      %p96 = por %p94, %p95
      %p97 = scmp.ne.s32.totalorder %s88, %s89
      %p98 = scmp.eq.s32.totalorder %s15, 0
      %p99 = por %p97, %p98
      %p100 = scmp.ne.s32.totalorder %s88, %s89
      %p101 = scmp.eq.s32.totalorder %s16, 1
      %p102 = por %p100, %p101
      %p104 = scmp.ne.s32.totalorder %s89, %s103
      %p105 = scmp.eq.s32.totalorder %s16, 0
      %p106 = por %p104, %p105
      %s107 = ssub.s32 %s10, %s17
      %p108 = scmp.eq.s32.totalorder %s107, 0
      %s110 = sadd.s32 %s109, 1
      %s111 = scalar_select %p108, %s109, %s110
      %p114 = pneg %p108
      %p115 = scmp.eq.s32.totalorder %s10, 1
      %p116 = por %p114, %p115
      %p117 = scmp.ne.s32.totalorder %s109, %s112
      %p118 = scmp.eq.s32.totalorder %s10, 0
      %p119 = por %p117, %p118
      %p120 = scmp.ne.s32.totalorder %s109, %s112
      %p121 = scmp.eq.s32.totalorder %s15, 1
      %p122 = por %p120, %p121
      %p123 = scmp.ne.s32.totalorder %s112, %s113
      %p124 = scmp.eq.s32.totalorder %s15, 0
      %p125 = por %p123, %p124
      %p126 = scmp.ne.s32.totalorder %s112, %s113
      %p127 = scmp.eq.s32.totalorder %s16, 1
      %p128 = por %p126, %p127
      %p130 = scmp.ne.s32.totalorder %s113, %s129
      %p131 = scmp.eq.s32.totalorder %s16, 0
      %p132 = por %p130, %p131
      %p133 = scmp.le.s32.totalorder 1, %s10
      %p134 = scmp.lt.s32.totalorder %s10, 3
      %p135 = pnand %p133, %p134
      %p136 = pneg %p135
      // Predicated region
      $region9: #{vec_cross_attn_block_forward.15} parent=5 // pred_check
        _
      $region10: #{vec_cross_attn_block_forward.15} parent=5 // pred_check_branch
        %138 = sbr.rel (%p135) target = $region12
      $region11: #{vec_cross_attn_block_forward.15} parent=5 // pred_region
        %s139 = ssub.s32 %s10, 1
        // Predicated region
        $region13: #{vec_cross_attn_block_forward.15} parent=11 // pred_check
          %p140 = pneg %p57
        $region14: #{vec_cross_attn_block_forward.15} parent=11 // pred_check_branch
          %142 = sbr.rel (%p140) target = $region16
        $region15: #{vec_cross_attn_block_forward.15} parent=11 // pred_region
          _
        $region16: #{vec_cross_attn_block_forward.15} parent=11 // pred_fallthru
          _
        // Predicated region
        $region17: #{vec_cross_attn_block_forward.15} parent=11 // pred_check
          %p143 = pneg %p78
        $region18: #{vec_cross_attn_block_forward.15} parent=11 // pred_check_branch
          %145 = sbr.rel (%p143) target = $region20
        $region19: #{vec_cross_attn_block_forward.15} parent=11 // pred_region
          _
        $region20: #{vec_cross_attn_block_forward.15} parent=11 // pred_fallthru
          _
        // Predicated region
        $region21: #{vec_cross_attn_block_forward.15} parent=11 // pred_check
          %p146 = pneg %p99
        $region22: #{vec_cross_attn_block_forward.15} parent=11 // pred_check_branch
          %148 = sbr.rel (%p146) target = $region24
        $region23: #{vec_cross_attn_block_forward.15} parent=11 // pred_region
          _
        $region24: #{vec_cross_attn_block_forward.15} parent=11 // pred_fallthru
          _
      $region12: #{vec_cross_attn_block_forward.15} parent=5 // pred_fallthru
        _
      %p149 = scmp.lt.s32.totalorder %s10, 2
      // Predicated region
      $region25: #{vec_cross_attn_block_forward.15} parent=5 // pred_check
        %p150 = pneg %p149
      $region26: #{vec_cross_attn_block_forward.15} parent=5 // pred_check_branch
        %152 = sbr.rel (%p150) target = $region28
      $region27: #{vec_cross_attn_block_forward.15} parent=5 // pred_region
        // Predicated region
        $region29: #{vec_cross_attn_block_forward.15} parent=27 // pred_check
          %p153 = pneg %p30
        $region30: #{vec_cross_attn_block_forward.15} parent=27 // pred_check_branch
          %155 = sbr.rel (%p153) target = $region32
        $region31: #{vec_cross_attn_block_forward.15} parent=27 // pred_region
          %s156 = sand.u32 %s20, 1
          %s157 = sand.u32 %s20, 1
          %s158 = smul.addr %s157, 24
          %s159 = scalar_lea.vmem [#allocation2], %s158
          %s160 = smul.addr %s10, 8
          %s161 = scalar_lea.vmem %s0, %s160
          // Predicated region
          $region33: #{vec_cross_attn_block_forward.15} parent=31 // pred_check
            _
          $region34: #{vec_cross_attn_block_forward.15} parent=31 // pred_check_branch
            %163 = sbr.rel (0) target = $region36
          $region35: #{vec_cross_attn_block_forward.15} parent=31 // pred_region
            // Predicated region
            $region37: #{vec_cross_attn_block_forward.15} parent=35 // pred_check
              _
            $region38: #{vec_cross_attn_block_forward.15} parent=35 // pred_check_branch
              %165 = sbr.rel (0) target = $region40
            $region39: #{vec_cross_attn_block_forward.15} parent=35 // pred_region
              // Predicated region
              $region52: #{vec_cross_attn_block_forward.15} parent=39 // pred_check
                _
              $region53: #{vec_cross_attn_block_forward.15} parent=39 // pred_check_branch
                %185 = sbr.rel (0) target = $region55
              $region54: #{vec_cross_attn_block_forward.15} parent=39 // pred_region
                loop: start=0, step=1, limit=1
                $region56: #{vec_cross_attn_block_forward.15} parent=54 // loop_pre_header
                  _
                $region57: #{vec_cross_attn_block_forward.15} parent=54 // loop_header
                  %s187 = sphi 0, %s191
                  %p188 = scmp.ge.s32.totalorder %s187, 1
                  %s192 = sphi %s161, %s161
                  %s193 = sphi %s159, %s159
                $region58: #{vec_cross_attn_block_forward.15} parent=54 // loop_header_branch
                  %190 = sbr.rel (%p188) target = $region62
                $region59: #{vec_cross_attn_block_forward.15} parent=54 // loop_body
                  %v194 = vld [vmem:[%s192] sm:$0xff]
                  %195 = vst [vmem:[%s193] sm:$0xff] %v194
                  %v196 = vld [vmem:[%s192 + $0x10] sm:$0xff]
                  %197 = vst [vmem:[%s193 + $0x8] sm:$0xff] %v196
                  %v198 = vld [vmem:[%s192 + $0x20] sm:$0xff]
                  %199 = vst [vmem:[%s193 + $0x10] sm:$0xff] %v198
                $region60: #{vec_cross_attn_block_forward.15} parent=54 // loop_footer
                  %s191 = sadd.s32 1, %s187
                $region61: #{vec_cross_attn_block_forward.15} parent=54 // loop_footer_branch
                  %186 = sbr.rel target = $region57
                $region62: #{vec_cross_attn_block_forward.15} parent=54 // loop_exit
                  _
              $region55: #{vec_cross_attn_block_forward.15} parent=39 // pred_fallthru
                _
              // Predicated region
              $region63: #{vec_cross_attn_block_forward.15} parent=39 // pred_check
                _
              $region64: #{vec_cross_attn_block_forward.15} parent=39 // pred_check_branch
                %201 = sbr.rel target = $region66
              $region65: #{vec_cross_attn_block_forward.15} parent=39 // pred_region
                _
              $region66: #{vec_cross_attn_block_forward.15} parent=39 // pred_fallthru
                _
            $region40: #{vec_cross_attn_block_forward.15} parent=35 // pred_fallthru
              _
            // Predicated region
            $region41: #{vec_cross_attn_block_forward.15} parent=35 // pred_check
              _
            $region42: #{vec_cross_attn_block_forward.15} parent=35 // pred_check_branch
              %167 = sbr.rel target = $region44
            $region43: #{vec_cross_attn_block_forward.15} parent=35 // pred_region
              %s169 = ssub.s32 256, 1
              loop: start=0, step=1, limit=1
              $region45: #{vec_cross_attn_block_forward.15} parent=43 // loop_pre_header
                _
              $region46: #{vec_cross_attn_block_forward.15} parent=43 // loop_header
                %s171 = sphi 0, %s175
                %p172 = scmp.ge.s32.totalorder %s171, 1
                %s176 = sphi %s161, %s161
                %s177 = sphi %s159, %s159
              $region47: #{vec_cross_attn_block_forward.15} parent=43 // loop_header_branch
                %174 = sbr.rel (%p172) target = $region51
              $region48: #{vec_cross_attn_block_forward.15} parent=43 // loop_body
                %v178 = vld [vmem:[%s176] sm:%s169]
                %179 = vst [vmem:[%s177] sm:%s169] %v178
                %v180 = vld [vmem:[%s176 + $0x10] sm:%s169]
                %181 = vst [vmem:[%s177 + $0x8] sm:%s169] %v180
                %v182 = vld [vmem:[%s176 + $0x20] sm:%s169]
                %183 = vst [vmem:[%s177 + $0x10] sm:%s169] %v182
              $region49: #{vec_cross_attn_block_forward.15} parent=43 // loop_footer
                %s175 = sadd.s32 1, %s171
              $region50: #{vec_cross_attn_block_forward.15} parent=43 // loop_footer_branch
                %170 = sbr.rel target = $region46
              $region51: #{vec_cross_attn_block_forward.15} parent=43 // loop_exit
                _
            $region44: #{vec_cross_attn_block_forward.15} parent=35 // pred_fallthru
              _
          $region36: #{vec_cross_attn_block_forward.15} parent=31 // pred_fallthru
            _
          %202 = vnop
        $region32: #{vec_cross_attn_block_forward.15} parent=27 // pred_fallthru
          _
      $region28: #{vec_cross_attn_block_forward.15} parent=5 // pred_fallthru
        _
      %p203 = scmp.le.s32.totalorder 1, %s10
      %p204 = scmp.lt.s32.totalorder %s10, 3
      %p205 = pnand %p203, %p204
      %p206 = pneg %p205
      // Predicated region
      $region67: #{vec_cross_attn_block_forward.15} parent=5 // pred_check
        _
      $region68: #{vec_cross_attn_block_forward.15} parent=5 // pred_check_branch
        %208 = sbr.rel (%p205) target = $region70
      $region69: #{vec_cross_attn_block_forward.15} parent=5 // pred_region
        %s209 = ssub.s32 %s10, 1
        %s210 = sand.u32 %s23, 1
        %s211 = sand.u32 %s23, 1
        %s212 = smul.addr %s211, 24
        %s213 = scalar_lea.vmem [#allocation2], %s212
        // Predicated region
        $region71: #{vec_cross_attn_block_forward.15} parent=69 // pred_check
          %p214 = pneg %p36
        $region72: #{vec_cross_attn_block_forward.15} parent=69 // pred_check_branch
          %216 = sbr.rel (%p214) target = $region74
        $region73: #{vec_cross_attn_block_forward.15} parent=69 // pred_region
          _
        $region74: #{vec_cross_attn_block_forward.15} parent=69 // pred_fallthru
          _
        %s217 = sand.u32 %s23, 1
        %s218 = sand.u32 %s23, 1
        %s219 = smul.addr %s218, 24
        %s220 = scalar_lea.vmem [#allocation2], %s219
        %p221 = pneg %p36
        %p222 = pneg %p33
        %p223 = pneg %p57
        %p224 = pneg %p54
        %p225 = pneg %p78
        %p226 = pneg %p75
        %p227 = pneg %p99
        %p228 = pneg %p96
        %p229 = pneg %p125
        %p230 = pneg %p122
        %s231 = sand.u32 %s112, 1
        %s232 = sand.u32 %s112, 1
        %s233 = smul.addr %s232, 24
        %s234 = scalar_lea.vmem [#allocation3], %s233
        %v236 = vld [vmem:[%s213] sm:$0xff]
        %v237 = vld [vmem:[%s213 + $0x8] sm:$0xff]
        %v238 = vld [vmem:[%s213 + $0x10] sm:$0xff]
        %v239 = vmul.f32 %v236, %v236
        %v240 = vmul.f32 %v237, %v237
        %v241 = vmul.f32 %v238, %v238
        %vm242 = vcmask 64512
        %v243 = vsel %vm242, %v239, 0.0
        %v244 = vsel %vm242, %v240, 0.0
        %v245 = vadd.f32 %v243, %v244
        %v246 = vsel %vm242, %v241, 0.0
        %v247 = vadd.f32 %v245, %v246
        %v248 = vsel %vm242, %v247, 0.0
        %249 = vadd.xlane.f32.xlu0 %v248
        %v250 = vpop.xlane.xlu0 %249
        %v251 = vrcp.pop 8.0
        %v252 = vmul.f32 8.0, %v251
        %v253 = vsub.f32 1.0, %v252
        %v254 = vmul.f32 %v251, %v253
        %v255 = vadd.f32 %v251, %v254
        %vm256 = vweird.f32 %v251
        %v257 = vsel %vm256, %v251, %v255
        %v258 = vmul.f32 %v250, %v257
        %v259 = vrsqrt.pop %v258
        %v260 = vmul.f32 %v259, %v258
        %v261 = vmul.f32 %v260, %v259
        %v262 = vmul.f32 0.5, %v261
        %v263 = vsub.f32 1.5, %v262
        %v264 = vmul.f32 %v259, %v263
        %v265 = vmul.f32 %v258, %v264
        %vm266 = vcmp.eq.f32.partialorder %v258, inf
        %v267 = vsel %vm266, %v258, %v265
        %vm268 = vcmp.eq.f32.partialorder %v258, 0.0
        %v269 = vand.u32 %v258, 2147483648
        %v270 = vsel %vm268, %v269, %v267
        %v271 = vadd.f32 %v270, 1e-06
        %v272 = vrcp.pop %v271
        %v273 = vmul.f32 %v271, %v272
        %v274 = vsub.f32 1.0, %v273
        %v275 = vmul.f32 %v272, %v274
        %v276 = vadd.f32 %v272, %v275
        %vm277 = vweird.f32 %v271
        %vm278 = vweird.f32 %v272
        %vm279 = vmor %vm277, %vm278
        %v280 = vsel %vm279, %v272, %v276
        %v281 = vand.u32 2147483647, %v271
        %vm282 = vcmp.eq.f32.partialorder %v281, 8.507059e+37
        %v283 = vand.u32 %v271, 2147483648
        %v284 = vor.u32 1.1754944e-38, %v283
        %v285 = vsel %vm282, %v284, %v280
        %v286 = vmul.f32 1.0, %v285
        %v287 = vmul.f32 %v236, %v286
        %v288 = vmul.f32 %v237, %v286
        %v289 = vmul.f32 %v238, %v286
        %v290 = vpack.c.bf16 %v287, %v287
        %v291 = vpack.c.bf16 %v288, %v288
        %v292 = vpack.c.bf16 %v289, %v289
        %v293 = vld [vmem:[%s1] sm:$0xf]
        %v297 = vunpack.c.l.b16 %v290
        %v298 = vunpack.c.l.b16 %v291
        %v299 = vunpack.c.l.b16 %v292
        %v300 = vpack.c.b16 %v298, %v297
        %v301 = vpack.c.b16 %v299, %v299
        %v303 = vsel %vm242, %v300, 0
        %v306 = vsel %vm242, %v301, 0
        %vm308 = vcmask 1043456
        %v310 = vsel %vm308, %v293, 0
        %312 = vmatpush.bf16.msra.mxu0 0
        %313 = vmatpush.bf16.msra.mxu0 0
        %314 = vmatpush.bf16.msra.mxu0 0
        %315 = vmatpush.bf16.msra.mxu0 0
        %316 = vmatpush.bf16.msra.mxu0 0
        %317 = vmatpush.bf16.msra.mxu0 0
        %318 = vmatpush.bf16.msra.mxu0 0
        %319 = vmatpush.bf16.msra.mxu0 %v310
        %320 = vmatmul.bf16.gmra.mxu0 %v303
        %v321 = vpop.f32.mrf.mxu0
        %v322 = vadd.f32 0.0, %v321
        %v323 = vpop.f32.mrf.mxu0
        %v324 = vadd.f32 0.0, %v323
        %325 = vmatmul.bf16.gmra.mxu0 %v306
        %v326 = vpop.f32.mrf.mxu0
        %v327 = vadd.f32 0.0, %v326
        %v328 = vpop.f32.mrf.mxu0
        %329 = vdwg.mxu0
        %v330 = vpack.c.bf16 %v324, %v322
        %v331 = vpack.c.bf16 %v327, %v327
        %v332 = vld [vmem:[%s2] sm:$0xf]
        %v333 = vld [vmem:[%s2 + $0x4] sm:$0xf]
        %v334 = vld [vmem:[%s2 + $0x8] sm:$0xf]
        %v335 = vld [vmem:[%s2 + $0xc] sm:$0xf]
        %v340 = vunpack.c.l.b16 %v332
        %v341 = vunpack.c.l.b16 %v333
        %v342 = vunpack.c.l.b16 %v334
        %v343 = vunpack.c.l.b16 %v335
        %v344 = vpack.c.b16 %v341, %v340
        %v345 = vpack.c.b16 %v343, %v342
        %vm348 = vcmask 261120
        %v350 = vsel %vm348, %v330, 0
        %v353 = vsel %vm348, %v331, 0
        %355 = vmatpush.bf16.msra.mxu0 0
        %356 = vmatpush.bf16.msra.mxu0 0
        %357 = vmatpush.bf16.msra.mxu0 0
        %358 = vmatpush.bf16.msra.mxu0 0
        %359 = vmatpush.bf16.msra.mxu0 0
        %360 = vmatpush.bf16.msra.mxu0 0
        %361 = vmatpush.bf16.msra.mxu0 %v345
        %362 = vmatpush.bf16.msra.mxu0 %v344
        %363 = vmatmul.bf16.gmra.mxu0 %v350
        %v364 = vpop.f32.mrf.mxu0
        %v365 = vadd.f32 0.0, %v364
        %v366 = vpop.f32.mrf.mxu0
        %v367 = vadd.f32 0.0, %v366
        %368 = vmatmul.bf16.gmra.mxu0 %v353
        %v369 = vpop.f32.mrf.mxu0
        %v370 = vadd.f32 0.0, %v369
        %v371 = vpop.f32.mrf.mxu0
        %372 = vdwg.mxu0
        %v373 = vmul.f32 %v365, %v365
        %v374 = vmul.f32 %v367, %v367
        %v375 = vmul.f32 %v370, %v370
        %v376 = vsel %vm348, %v373, 0.0
        %v377 = vsel %vm348, %v374, 0.0
        %v378 = vadd.f32 %v376, %v377
        %v379 = vsel %vm348, %v375, 0.0
        %v380 = vadd.f32 %v378, %v379
        %v381 = vrsqrt.pop %v380
        %v382 = vmul.f32 %v381, %v380
        %v383 = vmul.f32 %v382, %v381
        %v384 = vmul.f32 0.5, %v383
        %v385 = vsub.f32 1.5, %v384
        %v386 = vmul.f32 %v381, %v385
        %v387 = vmul.f32 %v380, %v386
        %vm388 = vcmp.eq.f32.partialorder %v380, inf
        %v389 = vsel %vm388, %v380, %v387
        %vm390 = vcmp.eq.f32.partialorder %v380, 0.0
        %v391 = vand.u32 %v380, 2147483648
        %v392 = vsel %vm390, %v391, %v389
        %v393 = vadd.f32 %v392, 1e-06
        %v394 = vrcp.pop %v393
        %v395 = vmul.f32 %v393, %v394
        %v396 = vsub.f32 1.0, %v395
        %v397 = vmul.f32 %v394, %v396
        %v398 = vadd.f32 %v394, %v397
        %vm399 = vweird.f32 %v393
        %vm400 = vweird.f32 %v394
        %vm401 = vmor %vm399, %vm400
        %v402 = vsel %vm401, %v394, %v398
        %v403 = vand.u32 2147483647, %v393
        %vm404 = vcmp.eq.f32.partialorder %v403, 8.507059e+37
        %v405 = vand.u32 %v393, 2147483648
        %v406 = vor.u32 1.1754944e-38, %v405
        %v407 = vsel %vm404, %v406, %v402
        %v408 = vmul.f32 1.0, %v407
        %v409 = vmul.f32 %v365, %v408
        %v410 = vmul.f32 %v367, %v408
        %v411 = vmul.f32 %v370, %v408
        %v412 = vmul.f32 %v322, %v409
        %v413 = vmul.f32 %v324, %v410
        %v414 = vmul.f32 %v327, %v411
        %v415 = vsel %vm348, %v412, 0.0
        %v416 = vsel %vm348, %v413, 0.0
        %v417 = vadd.f32 %v415, %v416
        %v418 = vsel %vm348, %v414, 0.0
        %v419 = vadd.f32 %v417, %v418
        %vm420 = vcmp.ge.f32.partialorder %v419, 0.0
        %v421 = vmul.f32 %v419, -0.8
        %v422 = vsel %vm420, 0.0, %v421
        %v423 = vmul.f32 %v422, %v409
        %v424 = vmul.f32 %v422, %v410
        %v425 = vmul.f32 %v422, %v411
        %v426 = vadd.f32 %v322, %v423
        %v427 = vadd.f32 %v324, %v424
        %v428 = vadd.f32 %v327, %v425
        %v429 = vpack.c.bf16 %v427, %v426
        %v430 = vpack.c.bf16 %v428, %v428
        %v431 = vld [vmem:[%s3] sm:$0xf]
        %v432 = vld [vmem:[%s3 + $0x4] sm:$0xf]
        %v433 = vld [vmem:[%s3 + $0x8] sm:$0xf]
        %v434 = vld [vmem:[%s3 + $0xc] sm:$0xf]
        %v439 = vunpack.c.l.b16 %v431
        %v440 = vunpack.c.l.b16 %v432
        %v441 = vunpack.c.l.b16 %v433
        %v442 = vunpack.c.l.b16 %v434
        %v443 = vpack.c.b16 %v440, %v439
        %v444 = vpack.c.b16 %v442, %v441
        %v448 = vsel %vm348, %v429, 0
        %v451 = vsel %vm348, %v430, 0
        %453 = vmatpush.bf16.msra.mxu0 0
        %454 = vmatpush.bf16.msra.mxu0 0
        %455 = vmatpush.bf16.msra.mxu0 0
        %456 = vmatpush.bf16.msra.mxu0 0
        %457 = vmatpush.bf16.msra.mxu0 0
        %458 = vmatpush.bf16.msra.mxu0 0
        %459 = vmatpush.bf16.msra.mxu0 %v444
        %460 = vmatpush.bf16.msra.mxu0 %v443
        %461 = vmatmul.bf16.gmra.mxu0 %v448
        %v462 = vpop.f32.mrf.mxu0
        %v463 = vadd.f32 0.0, %v462
        %v464 = vpop.f32.mrf.mxu0
        %v465 = vadd.f32 0.0, %v464
        %466 = vmatmul.bf16.gmra.mxu0 %v451
        %v467 = vpop.f32.mrf.mxu0
        %v468 = vadd.f32 0.0, %v467
        %v469 = vpop.f32.mrf.mxu0
        %470 = vdwg.mxu0
        %v471 = vadd.f32 %v236, %v463
        %v472 = vadd.f32 %v237, %v465
        %v473 = vadd.f32 %v238, %v468
        %474 = vst.msk [vmem:[%s234] sm:$0xff] %vm242, %v471
        %475 = vst.msk [vmem:[%s234 + $0x8] sm:$0xff] %vm242, %v472
        %476 = vst.msk [vmem:[%s234 + $0x10] sm:$0xff] %vm242, %v473
        %s477 = sand.u32 %s112, 1
        %s478 = sand.u32 %s112, 1
        %s479 = smul.addr %s478, 24
        %s480 = scalar_lea.vmem [#allocation3], %s479
        // Predicated region
        $region75: #{vec_cross_attn_block_forward.15} parent=69 // pred_check
          %p481 = pneg %p122
        $region76: #{vec_cross_attn_block_forward.15} parent=69 // pred_check_branch
          %483 = sbr.rel (%p481) target = $region78
        $region77: #{vec_cross_attn_block_forward.15} parent=69 // pred_region
          %s484 = smul.addr %s15, 8
          %s485 = scalar_lea.vmem %s4, %s484
          // Predicated region
          $region79: #{vec_cross_attn_block_forward.15} parent=77 // pred_check
            _
          $region80: #{vec_cross_attn_block_forward.15} parent=77 // pred_check_branch
            %487 = sbr.rel (0) target = $region82
          $region81: #{vec_cross_attn_block_forward.15} parent=77 // pred_region
            // Predicated region
            $region83: #{vec_cross_attn_block_forward.15} parent=81 // pred_check
              _
            $region84: #{vec_cross_attn_block_forward.15} parent=81 // pred_check_branch
              %489 = sbr.rel (0) target = $region86
            $region85: #{vec_cross_attn_block_forward.15} parent=81 // pred_region
              // Predicated region
              $region98: #{vec_cross_attn_block_forward.15} parent=85 // pred_check
                _
              $region99: #{vec_cross_attn_block_forward.15} parent=85 // pred_check_branch
                %509 = sbr.rel (0) target = $region101
              $region100: #{vec_cross_attn_block_forward.15} parent=85 // pred_region
                loop: start=0, step=1, limit=1
                $region102: #{vec_cross_attn_block_forward.15} parent=100 // loop_pre_header
                  _
                $region103: #{vec_cross_attn_block_forward.15} parent=100 // loop_header
                  %s511 = sphi 0, %s515
                  %p512 = scmp.ge.s32.totalorder %s511, 1
                  %s516 = sphi %s480, %s480
                  %s517 = sphi %s485, %s485
                $region104: #{vec_cross_attn_block_forward.15} parent=100 // loop_header_branch
                  %514 = sbr.rel (%p512) target = $region108
                $region105: #{vec_cross_attn_block_forward.15} parent=100 // loop_body
                  %v518 = vld [vmem:[%s516] sm:$0xff]
                  %519 = vst [vmem:[%s517] sm:$0xff] %v518
                  %v520 = vld [vmem:[%s516 + $0x8] sm:$0xff]
                  %521 = vst [vmem:[%s517 + $0x10] sm:$0xff] %v520
                  %v522 = vld [vmem:[%s516 + $0x10] sm:$0xff]
                  %523 = vst [vmem:[%s517 + $0x20] sm:$0xff] %v522
                $region106: #{vec_cross_attn_block_forward.15} parent=100 // loop_footer
                  %s515 = sadd.s32 1, %s511
                $region107: #{vec_cross_attn_block_forward.15} parent=100 // loop_footer_branch
                  %510 = sbr.rel target = $region103
                $region108: #{vec_cross_attn_block_forward.15} parent=100 // loop_exit
                  _
              $region101: #{vec_cross_attn_block_forward.15} parent=85 // pred_fallthru
                _
              // Predicated region
              $region109: #{vec_cross_attn_block_forward.15} parent=85 // pred_check
                _
              $region110: #{vec_cross_attn_block_forward.15} parent=85 // pred_check_branch
                %525 = sbr.rel target = $region112
              $region111: #{vec_cross_attn_block_forward.15} parent=85 // pred_region
                _
              $region112: #{vec_cross_attn_block_forward.15} parent=85 // pred_fallthru
                _
            $region86: #{vec_cross_attn_block_forward.15} parent=81 // pred_fallthru
              _
            // Predicated region
            $region87: #{vec_cross_attn_block_forward.15} parent=81 // pred_check
              _
            $region88: #{vec_cross_attn_block_forward.15} parent=81 // pred_check_branch
              %491 = sbr.rel target = $region90
            $region89: #{vec_cross_attn_block_forward.15} parent=81 // pred_region
              %s493 = ssub.s32 256, 1
              loop: start=0, step=1, limit=1
              $region91: #{vec_cross_attn_block_forward.15} parent=89 // loop_pre_header
                _
              $region92: #{vec_cross_attn_block_forward.15} parent=89 // loop_header
                %s495 = sphi 0, %s499
                %p496 = scmp.ge.s32.totalorder %s495, 1
                %s500 = sphi %s480, %s480
                %s501 = sphi %s485, %s485
              $region93: #{vec_cross_attn_block_forward.15} parent=89 // loop_header_branch
                %498 = sbr.rel (%p496) target = $region97
              $region94: #{vec_cross_attn_block_forward.15} parent=89 // loop_body
                %v502 = vld [vmem:[%s500] sm:%s493]
                %503 = vst [vmem:[%s501] sm:%s493] %v502
                %v504 = vld [vmem:[%s500 + $0x8] sm:%s493]
                %505 = vst [vmem:[%s501 + $0x10] sm:%s493] %v504
                %v506 = vld [vmem:[%s500 + $0x10] sm:%s493]
                %507 = vst [vmem:[%s501 + $0x20] sm:%s493] %v506
              $region95: #{vec_cross_attn_block_forward.15} parent=89 // loop_footer
                %s499 = sadd.s32 1, %s495
              $region96: #{vec_cross_attn_block_forward.15} parent=89 // loop_footer_branch
                %494 = sbr.rel target = $region92
              $region97: #{vec_cross_attn_block_forward.15} parent=89 // loop_exit
                _
            $region90: #{vec_cross_attn_block_forward.15} parent=81 // pred_fallthru
              _
          $region82: #{vec_cross_attn_block_forward.15} parent=77 // pred_fallthru
            _
          %526 = vnop
        $region78: #{vec_cross_attn_block_forward.15} parent=69 // pred_fallthru
          _
      $region70: #{vec_cross_attn_block_forward.15} parent=5 // pred_fallthru
        _
      %p527 = scmp.le.s32.totalorder 2, %s10
      // Predicated region
      $region113: #{vec_cross_attn_block_forward.15} parent=5 // pred_check
        %p528 = pneg %p527
      $region114: #{vec_cross_attn_block_forward.15} parent=5 // pred_check_branch
        %530 = sbr.rel (%p528) target = $region116
      $region115: #{vec_cross_attn_block_forward.15} parent=5 // pred_region
        %s531 = ssub.s32 %s10, 2
        // Predicated region
        $region117: #{vec_cross_attn_block_forward.15} parent=115 // pred_check
          %p532 = pneg %p128
        $region118: #{vec_cross_attn_block_forward.15} parent=115 // pred_check_branch
          %534 = sbr.rel (%p532) target = $region120
        $region119: #{vec_cross_attn_block_forward.15} parent=115 // pred_region
          %s535 = sand.u32 %s113, 1
          %s536 = sand.u32 %s113, 1
          %s537 = smul.addr %s536, 24
          %s538 = scalar_lea.vmem [#allocation3], %s537
        $region120: #{vec_cross_attn_block_forward.15} parent=115 // pred_fallthru
          _
      $region116: #{vec_cross_attn_block_forward.15} parent=5 // pred_fallthru
        _
    $region6: #{vec_cross_attn_block_forward.15} parent=1 // loop_footer
      %s14 = sadd.s32 1, %s10
    $region7: #{vec_cross_attn_block_forward.15} parent=1 // loop_footer_branch
      %9 = sbr.rel target = $region3
    $region8: #{vec_cross_attn_block_forward.15} parent=1 // loop_exit
      _

// kernel: vec_cross_attn_block_forward.13
$region0: #{vec_cross_attn_block_forward.13}
  #allocation0 [shape = 'u32[]', space=smem, size = 0x4, offset = 0x4, fixed_abs, tag = 'smem constant byte address 0x4 - core index']
  #allocation1 [shape = 'u32[72,128]{1,0:T(1,128)}', space=vmem, size = 0x9000, scoped, tag = 'internal scratch']
  #allocation2 [shape = 'f32[2,8,128]{2,1,0:T(8,128)}', space=vmem, size = 0x2000, scoped, tag = 'scratch operand']
  #allocation3 [shape = 'f32[2,8,128]{2,1,0:T(8,128)}', space=vmem, size = 0x2000, scoped, tag = 'scratch operand']
  #allocation4 [shape = 'f32[3,8,8]{2,1,0:T(8,128)}', space=vmem, size = 0x3000, scoped, tag = 'scratch operand']
  %s0 = inlined_call_operand.vmem [shape: bf16[3,2,8,8], index: 0, kind: input, shape index: {}]
  %s1 = inlined_call_operand.vmem [shape: bf16[3,2,16,8], index: 1, kind: input, shape index: {}]
  %s2 = inlined_call_operand.vmem [shape: bf16[3,2,16,8], index: 2, kind: input, shape index: {}]
  %s3 = inlined_call_operand.vmem [shape: bf16[3,2,8,8], index: 3, kind: output, shape index: {}]
  %s4 = sld [smem:[#allocation0]]
  $region213: #{vec_cross_attn_block_forward.13} parent=0
    _
  %s6 = ssub.s32 1, %s4
  %s7 = scalar_select 0, %s6, %s4
  $region1: #{vec_cross_attn_block_forward.13} parent=0
    #allocation5 [shape = 'u8[12288]{0}', space=vmem, size = 0x3000, scoped, tag = 'input window, operand 0']
    #allocation6 [shape = 'u8[24576]{0}', space=vmem, size = 0x6000, scoped, tag = 'input window, operand 1']
    #allocation7 [shape = 'u8[24576]{0}', space=vmem, size = 0x6000, scoped, tag = 'input window, operand 2']
    #allocation8 [shape = 'u8[12288]{0}', space=vmem, size = 0x3000, scoped, tag = 'output window, operand 0']
    loop: start=0, step=1, limit=4
    $region2: #{vec_cross_attn_block_forward.13} parent=1 // loop_pre_header
      _
    $region3: #{vec_cross_attn_block_forward.13} parent=1 // loop_header
      %s9 = sphi 0, %s13
      %p10 = scmp.ge.s32.totalorder %s9, 4
      %s16 = sphi 0, %s35
      %s17 = sphi 0, %s31
      %s18 = sphi 0, %s27
      %s19 = sphi 0, %s16
      %s20 = sphi 0, %s17
      %s21 = sphi 0, %s18
      %s22 = sphi 0, %s19
      %s23 = sphi 0, %s20
      %s24 = sphi 0, %s21
      %s40 = sphi 0, %s42
      %s43 = sphi 0, %s40
      %s44 = sphi 0, %s43
      %s60 = sphi 0, %s44
      %s68 = sphi 0, %s70
      %s71 = sphi 0, %s68
      %s72 = sphi 0, %s71
      %s88 = sphi 0, %s72
      %s96 = sphi 0, %s98
      %s99 = sphi 0, %s96
      %s100 = sphi 0, %s99
      %s116 = sphi 0, %s100
      %s124 = sphi 0, %s126
      %s127 = sphi 0, %s124
      %s128 = sphi 0, %s127
      %s144 = sphi 0, %s128
    $region4: #{vec_cross_attn_block_forward.13} parent=1 // loop_header_branch
      %12 = sbr.rel (%p10) target = $region8
    $region5: #{vec_cross_attn_block_forward.13} parent=1 // loop_body
      %s14 = ssub.s32 %s9, 1
      %s15 = ssub.s32 %s9, 2
      %s25 = sadd.s32 1, %s18
      %p26 = scmp.ge.s32.totalorder %s25, 1
      %s27 = scalar_select %p26, 0, %s25
      %s28 = sadd.s32 1, %s17
      %s29 = scalar_select %p26, %s28, %s17
      %p30 = scmp.ge.s32.totalorder %s29, 1
      %s31 = scalar_select %p30, 0, %s29
      %s32 = sadd.s32 1, %s16
      %s33 = scalar_select %p30, %s32, %s16
      %p34 = scmp.ge.s32.totalorder %s33, 2
      %s35 = scalar_select %p34, 0, %s33
      %s36 = ssub.s32 %s16, %s35
      %s37 = ssub.s32 %s17, %s31
      %s38 = sor.u32 %s36, %s37
      %p39 = scmp.eq.s32.totalorder %s38, 0
      %s41 = sadd.s32 %s40, 1
      %s42 = scalar_select %p39, %s40, %s41
      %p45 = pneg %p39
      %p46 = scmp.eq.s32.totalorder %s9, 1
      %p47 = por %p45, %p46
      %p48 = scmp.ne.s32.totalorder %s40, %s43
      %p49 = scmp.eq.s32.totalorder %s9, 0
      %p50 = por %p48, %p49
      %p51 = scmp.ne.s32.totalorder %s40, %s43
      %p52 = scmp.eq.s32.totalorder %s14, 1
      %p53 = por %p51, %p52
      %p54 = scmp.ne.s32.totalorder %s43, %s44
      %p55 = scmp.eq.s32.totalorder %s14, 0
      %p56 = por %p54, %p55
      %p57 = scmp.ne.s32.totalorder %s43, %s44
      %p58 = scmp.eq.s32.totalorder %s15, 1
      %p59 = por %p57, %p58
      %p61 = scmp.ne.s32.totalorder %s44, %s60
      %p62 = scmp.eq.s32.totalorder %s15, 0
      %p63 = por %p61, %p62
      %s64 = ssub.s32 %s16, %s35
      %s65 = ssub.s32 %s18, %s27
      %s66 = sor.u32 %s64, %s65
      %p67 = scmp.eq.s32.totalorder %s66, 0
      %s69 = sadd.s32 %s68, 1
      %s70 = scalar_select %p67, %s68, %s69
      %p73 = pneg %p67
      %p74 = scmp.eq.s32.totalorder %s9, 1
      %p75 = por %p73, %p74
      %p76 = scmp.ne.s32.totalorder %s68, %s71
      %p77 = scmp.eq.s32.totalorder %s9, 0
      %p78 = por %p76, %p77
      %p79 = scmp.ne.s32.totalorder %s68, %s71
      %p80 = scmp.eq.s32.totalorder %s14, 1
      %p81 = por %p79, %p80
      %p82 = scmp.ne.s32.totalorder %s71, %s72
      %p83 = scmp.eq.s32.totalorder %s14, 0
      %p84 = por %p82, %p83
      %p85 = scmp.ne.s32.totalorder %s71, %s72
      %p86 = scmp.eq.s32.totalorder %s15, 1
      %p87 = por %p85, %p86
      %p89 = scmp.ne.s32.totalorder %s72, %s88
      %p90 = scmp.eq.s32.totalorder %s15, 0
      %p91 = por %p89, %p90
      %s92 = ssub.s32 %s16, %s35
      %s93 = ssub.s32 %s18, %s27
      %s94 = sor.u32 %s92, %s93
      %p95 = scmp.eq.s32.totalorder %s94, 0
      %s97 = sadd.s32 %s96, 1
      %s98 = scalar_select %p95, %s96, %s97
      %p101 = pneg %p95
      %p102 = scmp.eq.s32.totalorder %s9, 1
      %p103 = por %p101, %p102
      %p104 = scmp.ne.s32.totalorder %s96, %s99
      %p105 = scmp.eq.s32.totalorder %s9, 0
      %p106 = por %p104, %p105
      %p107 = scmp.ne.s32.totalorder %s96, %s99
      %p108 = scmp.eq.s32.totalorder %s14, 1
      %p109 = por %p107, %p108
      %p110 = scmp.ne.s32.totalorder %s99, %s100
      %p111 = scmp.eq.s32.totalorder %s14, 0
      %p112 = por %p110, %p111
      %p113 = scmp.ne.s32.totalorder %s99, %s100
      %p114 = scmp.eq.s32.totalorder %s15, 1
      %p115 = por %p113, %p114
      %p117 = scmp.ne.s32.totalorder %s100, %s116
      %p118 = scmp.eq.s32.totalorder %s15, 0
      %p119 = por %p117, %p118
      %s120 = ssub.s32 %s16, %s35
      %s121 = ssub.s32 %s17, %s31
      %s122 = sor.u32 %s120, %s121
      %p123 = scmp.eq.s32.totalorder %s122, 0
      %s125 = sadd.s32 %s124, 1
      %s126 = scalar_select %p123, %s124, %s125
      %p129 = pneg %p123
      %p130 = scmp.eq.s32.totalorder %s9, 1
      %p131 = por %p129, %p130
      %p132 = scmp.ne.s32.totalorder %s124, %s127
      %p133 = scmp.eq.s32.totalorder %s9, 0
      %p134 = por %p132, %p133
      %p135 = scmp.ne.s32.totalorder %s124, %s127
      %p136 = scmp.eq.s32.totalorder %s14, 1
      %p137 = por %p135, %p136
      %p138 = scmp.ne.s32.totalorder %s127, %s128
      %p139 = scmp.eq.s32.totalorder %s14, 0
      %p140 = por %p138, %p139
      %p141 = scmp.ne.s32.totalorder %s127, %s128
      %p142 = scmp.eq.s32.totalorder %s15, 1
      %p143 = por %p141, %p142
      %p145 = scmp.ne.s32.totalorder %s128, %s144
      %p146 = scmp.eq.s32.totalorder %s15, 0
      %p147 = por %p145, %p146
      %p148 = scmp.le.s32.totalorder 1, %s9
      %p149 = scmp.lt.s32.totalorder %s9, 3
      %p150 = pnand %p148, %p149
      %p151 = pneg %p150
      // Predicated region
      $region9: #{vec_cross_attn_block_forward.13} parent=5 // pred_check
        _
      $region10: #{vec_cross_attn_block_forward.13} parent=5 // pred_check_branch
        %153 = sbr.rel (%p150) target = $region12
      $region11: #{vec_cross_attn_block_forward.13} parent=5 // pred_region
        %s154 = ssub.s32 %s9, 1
      $region12: #{vec_cross_attn_block_forward.13} parent=5 // pred_fallthru
        _
      %p155 = scmp.lt.s32.totalorder %s9, 2
      // Predicated region
      $region13: #{vec_cross_attn_block_forward.13} parent=5 // pred_check
        %p156 = pneg %p155
      $region14: #{vec_cross_attn_block_forward.13} parent=5 // pred_check_branch
        %158 = sbr.rel (%p156) target = $region16
      $region15: #{vec_cross_attn_block_forward.13} parent=5 // pred_region
        // Predicated region
        $region17: #{vec_cross_attn_block_forward.13} parent=15 // pred_check
          %p159 = pneg %p50
        $region18: #{vec_cross_attn_block_forward.13} parent=15 // pred_check_branch
          %161 = sbr.rel (%p159) target = $region20
        $region19: #{vec_cross_attn_block_forward.13} parent=15 // pred_region
          %s162 = sand.u32 %s40, 1
          %s163 = sand.u32 %s40, 1
          %s164 = smul.addr %s163, 12
          %s165 = scalar_lea.vmem [#allocation5], %s164
          %s166 = sadd.s32 %s17, %s16
          %s167 = smul.addr %s166, 4
          %s168 = scalar_lea.vmem %s0, %s167
          // Predicated region
          $region21: #{vec_cross_attn_block_forward.13} parent=19 // pred_check
            _
          $region22: #{vec_cross_attn_block_forward.13} parent=19 // pred_check_branch
            %170 = sbr.rel (0) target = $region24
          $region23: #{vec_cross_attn_block_forward.13} parent=19 // pred_region
            // Predicated region
            $region25: #{vec_cross_attn_block_forward.13} parent=23 // pred_check
              _
            $region26: #{vec_cross_attn_block_forward.13} parent=23 // pred_check_branch
              %172 = sbr.rel target = $region28
            $region27: #{vec_cross_attn_block_forward.13} parent=23 // pred_region
              // Predicated region
              $region40: #{vec_cross_attn_block_forward.13} parent=27 // pred_check
                _
              $region41: #{vec_cross_attn_block_forward.13} parent=27 // pred_check_branch
                %192 = sbr.rel (0) target = $region43
              $region42: #{vec_cross_attn_block_forward.13} parent=27 // pred_region
                loop: start=0, step=1, limit=1
                $region44: #{vec_cross_attn_block_forward.13} parent=42 // loop_pre_header
                  _
                $region45: #{vec_cross_attn_block_forward.13} parent=42 // loop_header
                  %s194 = sphi 0, %s198
                  %p195 = scmp.ge.s32.totalorder %s194, 1
                  %s199 = sphi %s168, %s168
                  %s200 = sphi %s165, %s165
                $region46: #{vec_cross_attn_block_forward.13} parent=42 // loop_header_branch
                  %197 = sbr.rel (%p195) target = $region50
                $region47: #{vec_cross_attn_block_forward.13} parent=42 // loop_body
                  _
                $region48: #{vec_cross_attn_block_forward.13} parent=42 // loop_footer
                  %s198 = sadd.s32 1, %s194
                $region49: #{vec_cross_attn_block_forward.13} parent=42 // loop_footer_branch
                  %193 = sbr.rel target = $region45
                $region50: #{vec_cross_attn_block_forward.13} parent=42 // loop_exit
                  _
                %s202 = ssub.s32 16, 1
                loop: start=0, step=1, limit=1
                $region51: #{vec_cross_attn_block_forward.13} parent=42 // loop_pre_header
                  _
                $region52: #{vec_cross_attn_block_forward.13} parent=42 // loop_header
                  %s204 = sphi 0, %s208
                  %p205 = scmp.ge.s32.totalorder %s204, 1
                  %s209 = sphi %s168, %s168
                  %s210 = sphi %s165, %s165
                $region53: #{vec_cross_attn_block_forward.13} parent=42 // loop_header_branch
                  %207 = sbr.rel (%p205) target = $region57
                $region54: #{vec_cross_attn_block_forward.13} parent=42 // loop_body
                  %v211 = vld [vmem:[%s209] sm:%s202]
                  %212 = vst [vmem:[%s210] sm:%s202] %v211
                  %v213 = vld [vmem:[%s209 + $0x8] sm:%s202]
                  %214 = vst [vmem:[%s210 + $0x4] sm:%s202] %v213
                  %v215 = vld [vmem:[%s209 + $0x10] sm:%s202]
                  %216 = vst [vmem:[%s210 + $0x8] sm:%s202] %v215
                $region55: #{vec_cross_attn_block_forward.13} parent=42 // loop_footer
                  %s208 = sadd.s32 1, %s204
                $region56: #{vec_cross_attn_block_forward.13} parent=42 // loop_footer_branch
                  %203 = sbr.rel target = $region52
                $region57: #{vec_cross_attn_block_forward.13} parent=42 // loop_exit
                  _
              $region43: #{vec_cross_attn_block_forward.13} parent=27 // pred_fallthru
                _
            $region28: #{vec_cross_attn_block_forward.13} parent=23 // pred_fallthru
              _
            // Predicated region
            $region29: #{vec_cross_attn_block_forward.13} parent=23 // pred_check
              _
            $region30: #{vec_cross_attn_block_forward.13} parent=23 // pred_check_branch
              %174 = sbr.rel (0) target = $region32
            $region31: #{vec_cross_attn_block_forward.13} parent=23 // pred_region
              %s176 = ssub.s32 16, 1
              loop: start=0, step=1, limit=1
              $region33: #{vec_cross_attn_block_forward.13} parent=31 // loop_pre_header
                _
              $region34: #{vec_cross_attn_block_forward.13} parent=31 // loop_header
                %s178 = sphi 0, %s182
                %p179 = scmp.ge.s32.totalorder %s178, 1
                %s183 = sphi %s168, %s168
                %s184 = sphi %s165, %s165
              $region35: #{vec_cross_attn_block_forward.13} parent=31 // loop_header_branch
                %181 = sbr.rel (%p179) target = $region39
              $region36: #{vec_cross_attn_block_forward.13} parent=31 // loop_body
                %v185 = vld [vmem:[%s183] sm:%s176]
                %186 = vst [vmem:[%s184] sm:%s176] %v185
                %v187 = vld [vmem:[%s183 + $0x8] sm:%s176]
                %188 = vst [vmem:[%s184 + $0x4] sm:%s176] %v187
                %v189 = vld [vmem:[%s183 + $0x10] sm:%s176]
                %190 = vst [vmem:[%s184 + $0x8] sm:%s176] %v189
              $region37: #{vec_cross_attn_block_forward.13} parent=31 // loop_footer
                %s182 = sadd.s32 1, %s178
              $region38: #{vec_cross_attn_block_forward.13} parent=31 // loop_footer_branch
                %177 = sbr.rel target = $region34
              $region39: #{vec_cross_attn_block_forward.13} parent=31 // loop_exit
                _
            $region32: #{vec_cross_attn_block_forward.13} parent=23 // pred_fallthru
              _
          $region24: #{vec_cross_attn_block_forward.13} parent=19 // pred_fallthru
            _
          %217 = vnop
        $region20: #{vec_cross_attn_block_forward.13} parent=15 // pred_fallthru
          _
        // Predicated region
        $region58: #{vec_cross_attn_block_forward.13} parent=15 // pred_check
          %p218 = pneg %p78
        $region59: #{vec_cross_attn_block_forward.13} parent=15 // pred_check_branch
          %220 = sbr.rel (%p218) target = $region61
        $region60: #{vec_cross_attn_block_forward.13} parent=15 // pred_region
          %s221 = sand.u32 %s68, 1
          %s222 = sand.u32 %s68, 1
          %s223 = smul.addr %s222, 24
          %s224 = scalar_lea.vmem [#allocation6], %s223
          %s225 = smul.u32 2, %s18
          %s226 = smul.addr %s16, 2
          %s227 = sadd.s32 %s225, %s226
          %s228 = smul.addr %s227, 4
          %s229 = scalar_lea.vmem %s1, %s228
          // Predicated region
          $region62: #{vec_cross_attn_block_forward.13} parent=60 // pred_check
            _
          $region63: #{vec_cross_attn_block_forward.13} parent=60 // pred_check_branch
            %231 = sbr.rel (0) target = $region65
          $region64: #{vec_cross_attn_block_forward.13} parent=60 // pred_region
            // Predicated region
            $region66: #{vec_cross_attn_block_forward.13} parent=64 // pred_check
              _
            $region67: #{vec_cross_attn_block_forward.13} parent=64 // pred_check_branch
              %233 = sbr.rel target = $region69
            $region68: #{vec_cross_attn_block_forward.13} parent=64 // pred_region
              // Predicated region
              $region81: #{vec_cross_attn_block_forward.13} parent=68 // pred_check
                _
              $region82: #{vec_cross_attn_block_forward.13} parent=68 // pred_check_branch
                %259 = sbr.rel (0) target = $region84
              $region83: #{vec_cross_attn_block_forward.13} parent=68 // pred_region
                loop: start=0, step=1, limit=1
                $region85: #{vec_cross_attn_block_forward.13} parent=83 // loop_pre_header
                  _
                $region86: #{vec_cross_attn_block_forward.13} parent=83 // loop_header
                  %s261 = sphi 0, %s265
                  %p262 = scmp.ge.s32.totalorder %s261, 1
                  %s266 = sphi %s229, %s229
                  %s267 = sphi %s224, %s224
                $region87: #{vec_cross_attn_block_forward.13} parent=83 // loop_header_branch
                  %264 = sbr.rel (%p262) target = $region91
                $region88: #{vec_cross_attn_block_forward.13} parent=83 // loop_body
                  _
                $region89: #{vec_cross_attn_block_forward.13} parent=83 // loop_footer
                  %s265 = sadd.s32 1, %s261
                $region90: #{vec_cross_attn_block_forward.13} parent=83 // loop_footer_branch
                  %260 = sbr.rel target = $region86
                $region91: #{vec_cross_attn_block_forward.13} parent=83 // loop_exit
                  _
                %s269 = ssub.s32 16, 1
                loop: start=0, step=1, limit=1
                $region92: #{vec_cross_attn_block_forward.13} parent=83 // loop_pre_header
                  _
                $region93: #{vec_cross_attn_block_forward.13} parent=83 // loop_header
                  %s271 = sphi 0, %s275
                  %p272 = scmp.ge.s32.totalorder %s271, 1
                  %s276 = sphi %s229, %s229
                  %s277 = sphi %s224, %s224
                $region94: #{vec_cross_attn_block_forward.13} parent=83 // loop_header_branch
                  %274 = sbr.rel (%p272) target = $region98
                $region95: #{vec_cross_attn_block_forward.13} parent=83 // loop_body
                  %v278 = vld [vmem:[%s276] sm:%s269]
                  %279 = vst [vmem:[%s277] sm:%s269] %v278
                  %v280 = vld [vmem:[%s276 + $0x4] sm:%s269]
                  %281 = vst [vmem:[%s277 + $0x4] sm:%s269] %v280
                  %v282 = vld [vmem:[%s276 + $0x10] sm:%s269]
                  %283 = vst [vmem:[%s277 + $0x8] sm:%s269] %v282
                  %v284 = vld [vmem:[%s276 + $0x14] sm:%s269]
                  %285 = vst [vmem:[%s277 + $0xc] sm:%s269] %v284
                  %v286 = vld [vmem:[%s276 + $0x20] sm:%s269]
                  %287 = vst [vmem:[%s277 + $0x10] sm:%s269] %v286
                  %v288 = vld [vmem:[%s276 + $0x24] sm:%s269]
                  %289 = vst [vmem:[%s277 + $0x14] sm:%s269] %v288
                $region96: #{vec_cross_attn_block_forward.13} parent=83 // loop_footer
                  %s275 = sadd.s32 1, %s271
                $region97: #{vec_cross_attn_block_forward.13} parent=83 // loop_footer_branch
                  %270 = sbr.rel target = $region93
                $region98: #{vec_cross_attn_block_forward.13} parent=83 // loop_exit
                  _
              $region84: #{vec_cross_attn_block_forward.13} parent=68 // pred_fallthru
                _
            $region69: #{vec_cross_attn_block_forward.13} parent=64 // pred_fallthru
              _
            // Predicated region
            $region70: #{vec_cross_attn_block_forward.13} parent=64 // pred_check
              _
            $region71: #{vec_cross_attn_block_forward.13} parent=64 // pred_check_branch
              %235 = sbr.rel (0) target = $region73
            $region72: #{vec_cross_attn_block_forward.13} parent=64 // pred_region
              %s237 = ssub.s32 16, 1
              loop: start=0, step=1, limit=1
              $region74: #{vec_cross_attn_block_forward.13} parent=72 // loop_pre_header
                _
              $region75: #{vec_cross_attn_block_forward.13} parent=72 // loop_header
                %s239 = sphi 0, %s243
                %p240 = scmp.ge.s32.totalorder %s239, 1
                %s244 = sphi %s229, %s229
                %s245 = sphi %s224, %s224
              $region76: #{vec_cross_attn_block_forward.13} parent=72 // loop_header_branch
                %242 = sbr.rel (%p240) target = $region80
              $region77: #{vec_cross_attn_block_forward.13} parent=72 // loop_body
                %v246 = vld [vmem:[%s244] sm:%s237]
                %247 = vst [vmem:[%s245] sm:%s237] %v246
                %v248 = vld [vmem:[%s244 + $0x4] sm:%s237]
                %249 = vst [vmem:[%s245 + $0x4] sm:%s237] %v248
                %v250 = vld [vmem:[%s244 + $0x10] sm:%s237]
                %251 = vst [vmem:[%s245 + $0x8] sm:%s237] %v250
                %v252 = vld [vmem:[%s244 + $0x14] sm:%s237]
                %253 = vst [vmem:[%s245 + $0xc] sm:%s237] %v252
                %v254 = vld [vmem:[%s244 + $0x20] sm:%s237]
                %255 = vst [vmem:[%s245 + $0x10] sm:%s237] %v254
                %v256 = vld [vmem:[%s244 + $0x24] sm:%s237]
                %257 = vst [vmem:[%s245 + $0x14] sm:%s237] %v256
              $region78: #{vec_cross_attn_block_forward.13} parent=72 // loop_footer
                %s243 = sadd.s32 1, %s239
              $region79: #{vec_cross_attn_block_forward.13} parent=72 // loop_footer_branch
                %238 = sbr.rel target = $region75
              $region80: #{vec_cross_attn_block_forward.13} parent=72 // loop_exit
                _
            $region73: #{vec_cross_attn_block_forward.13} parent=64 // pred_fallthru
              _
          $region65: #{vec_cross_attn_block_forward.13} parent=60 // pred_fallthru
            _
          %290 = vnop
        $region61: #{vec_cross_attn_block_forward.13} parent=15 // pred_fallthru
          _
        // Predicated region
        $region99: #{vec_cross_attn_block_forward.13} parent=15 // pred_check
          %p291 = pneg %p106
        $region100: #{vec_cross_attn_block_forward.13} parent=15 // pred_check_branch
          %293 = sbr.rel (%p291) target = $region102
        $region101: #{vec_cross_attn_block_forward.13} parent=15 // pred_region
          %s294 = sand.u32 %s96, 1
          %s295 = sand.u32 %s96, 1
          %s296 = smul.addr %s295, 24
          %s297 = scalar_lea.vmem [#allocation7], %s296
          %s298 = smul.u32 2, %s18
          %s299 = smul.addr %s16, 2
          %s300 = sadd.s32 %s298, %s299
          %s301 = smul.addr %s300, 4
          %s302 = scalar_lea.vmem %s2, %s301
          // Predicated region
          $region103: #{vec_cross_attn_block_forward.13} parent=101 // pred_check
            _
          $region104: #{vec_cross_attn_block_forward.13} parent=101 // pred_check_branch
            %304 = sbr.rel (0) target = $region106
          $region105: #{vec_cross_attn_block_forward.13} parent=101 // pred_region
            // Predicated region
            $region107: #{vec_cross_attn_block_forward.13} parent=105 // pred_check
              _
            $region108: #{vec_cross_attn_block_forward.13} parent=105 // pred_check_branch
              %306 = sbr.rel target = $region110
            $region109: #{vec_cross_attn_block_forward.13} parent=105 // pred_region
              // Predicated region
              $region122: #{vec_cross_attn_block_forward.13} parent=109 // pred_check
                _
              $region123: #{vec_cross_attn_block_forward.13} parent=109 // pred_check_branch
                %332 = sbr.rel (0) target = $region125
              $region124: #{vec_cross_attn_block_forward.13} parent=109 // pred_region
                loop: start=0, step=1, limit=1
                $region126: #{vec_cross_attn_block_forward.13} parent=124 // loop_pre_header
                  _
                $region127: #{vec_cross_attn_block_forward.13} parent=124 // loop_header
                  %s334 = sphi 0, %s338
                  %p335 = scmp.ge.s32.totalorder %s334, 1
                  %s339 = sphi %s302, %s302
                  %s340 = sphi %s297, %s297
                $region128: #{vec_cross_attn_block_forward.13} parent=124 // loop_header_branch
                  %337 = sbr.rel (%p335) target = $region132
                $region129: #{vec_cross_attn_block_forward.13} parent=124 // loop_body
                  _
                $region130: #{vec_cross_attn_block_forward.13} parent=124 // loop_footer
                  %s338 = sadd.s32 1, %s334
                $region131: #{vec_cross_attn_block_forward.13} parent=124 // loop_footer_branch
                  %333 = sbr.rel target = $region127
                $region132: #{vec_cross_attn_block_forward.13} parent=124 // loop_exit
                  _
                %s342 = ssub.s32 16, 1
                loop: start=0, step=1, limit=1
                $region133: #{vec_cross_attn_block_forward.13} parent=124 // loop_pre_header
                  _
                $region134: #{vec_cross_attn_block_forward.13} parent=124 // loop_header
                  %s344 = sphi 0, %s348
                  %p345 = scmp.ge.s32.totalorder %s344, 1
                  %s349 = sphi %s302, %s302
                  %s350 = sphi %s297, %s297
                $region135: #{vec_cross_attn_block_forward.13} parent=124 // loop_header_branch
                  %347 = sbr.rel (%p345) target = $region139
                $region136: #{vec_cross_attn_block_forward.13} parent=124 // loop_body
                  %v351 = vld [vmem:[%s349] sm:%s342]
                  %352 = vst [vmem:[%s350] sm:%s342] %v351
                  %v353 = vld [vmem:[%s349 + $0x4] sm:%s342]
                  %354 = vst [vmem:[%s350 + $0x4] sm:%s342] %v353
                  %v355 = vld [vmem:[%s349 + $0x10] sm:%s342]
                  %356 = vst [vmem:[%s350 + $0x8] sm:%s342] %v355
                  %v357 = vld [vmem:[%s349 + $0x14] sm:%s342]
                  %358 = vst [vmem:[%s350 + $0xc] sm:%s342] %v357
                  %v359 = vld [vmem:[%s349 + $0x20] sm:%s342]
                  %360 = vst [vmem:[%s350 + $0x10] sm:%s342] %v359
                  %v361 = vld [vmem:[%s349 + $0x24] sm:%s342]
                  %362 = vst [vmem:[%s350 + $0x14] sm:%s342] %v361
                $region137: #{vec_cross_attn_block_forward.13} parent=124 // loop_footer
                  %s348 = sadd.s32 1, %s344
                $region138: #{vec_cross_attn_block_forward.13} parent=124 // loop_footer_branch
                  %343 = sbr.rel target = $region134
                $region139: #{vec_cross_attn_block_forward.13} parent=124 // loop_exit
                  _
              $region125: #{vec_cross_attn_block_forward.13} parent=109 // pred_fallthru
                _
            $region110: #{vec_cross_attn_block_forward.13} parent=105 // pred_fallthru
              _
            // Predicated region
            $region111: #{vec_cross_attn_block_forward.13} parent=105 // pred_check
              _
            $region112: #{vec_cross_attn_block_forward.13} parent=105 // pred_check_branch
              %308 = sbr.rel (0) target = $region114
            $region113: #{vec_cross_attn_block_forward.13} parent=105 // pred_region
              %s310 = ssub.s32 16, 1
              loop: start=0, step=1, limit=1
              $region115: #{vec_cross_attn_block_forward.13} parent=113 // loop_pre_header
                _
              $region116: #{vec_cross_attn_block_forward.13} parent=113 // loop_header
                %s312 = sphi 0, %s316
                %p313 = scmp.ge.s32.totalorder %s312, 1
                %s317 = sphi %s302, %s302
                %s318 = sphi %s297, %s297
              $region117: #{vec_cross_attn_block_forward.13} parent=113 // loop_header_branch
                %315 = sbr.rel (%p313) target = $region121
              $region118: #{vec_cross_attn_block_forward.13} parent=113 // loop_body
                %v319 = vld [vmem:[%s317] sm:%s310]
                %320 = vst [vmem:[%s318] sm:%s310] %v319
                %v321 = vld [vmem:[%s317 + $0x4] sm:%s310]
                %322 = vst [vmem:[%s318 + $0x4] sm:%s310] %v321
                %v323 = vld [vmem:[%s317 + $0x10] sm:%s310]
                %324 = vst [vmem:[%s318 + $0x8] sm:%s310] %v323
                %v325 = vld [vmem:[%s317 + $0x14] sm:%s310]
                %326 = vst [vmem:[%s318 + $0xc] sm:%s310] %v325
                %v327 = vld [vmem:[%s317 + $0x20] sm:%s310]
                %328 = vst [vmem:[%s318 + $0x10] sm:%s310] %v327
                %v329 = vld [vmem:[%s317 + $0x24] sm:%s310]
                %330 = vst [vmem:[%s318 + $0x14] sm:%s310] %v329
              $region119: #{vec_cross_attn_block_forward.13} parent=113 // loop_footer
                %s316 = sadd.s32 1, %s312
              $region120: #{vec_cross_attn_block_forward.13} parent=113 // loop_footer_branch
                %311 = sbr.rel target = $region116
              $region121: #{vec_cross_attn_block_forward.13} parent=113 // loop_exit
                _
            $region114: #{vec_cross_attn_block_forward.13} parent=105 // pred_fallthru
              _
          $region106: #{vec_cross_attn_block_forward.13} parent=101 // pred_fallthru
            _
          %363 = vnop
        $region102: #{vec_cross_attn_block_forward.13} parent=15 // pred_fallthru
          _
      $region16: #{vec_cross_attn_block_forward.13} parent=5 // pred_fallthru
        _
      %p364 = scmp.le.s32.totalorder 1, %s9
      %p365 = scmp.lt.s32.totalorder %s9, 3
      %p366 = pnand %p364, %p365
      %p367 = pneg %p366
      // Predicated region
      $region140: #{vec_cross_attn_block_forward.13} parent=5 // pred_check
        _
      $region141: #{vec_cross_attn_block_forward.13} parent=5 // pred_check_branch
        %369 = sbr.rel (%p366) target = $region143
      $region142: #{vec_cross_attn_block_forward.13} parent=5 // pred_region
        %s370 = ssub.s32 %s9, 1
        %s371 = sand.u32 %s43, 1
        %s372 = sand.u32 %s43, 1
        %s373 = smul.addr %s372, 12
        %s374 = scalar_lea.vmem [#allocation5], %s373
        // Predicated region
        $region144: #{vec_cross_attn_block_forward.13} parent=142 // pred_check
          %p375 = pneg %p56
        $region145: #{vec_cross_attn_block_forward.13} parent=142 // pred_check_branch
          %377 = sbr.rel (%p375) target = $region147
        $region146: #{vec_cross_attn_block_forward.13} parent=142 // pred_region
          _
        $region147: #{vec_cross_attn_block_forward.13} parent=142 // pred_fallthru
          _
        %s378 = sand.u32 %s71, 1
        %s379 = sand.u32 %s71, 1
        %s380 = smul.addr %s379, 24
        %s381 = scalar_lea.vmem [#allocation6], %s380
        // Predicated region
        $region148: #{vec_cross_attn_block_forward.13} parent=142 // pred_check
          %p382 = pneg %p84
        $region149: #{vec_cross_attn_block_forward.13} parent=142 // pred_check_branch
          %384 = sbr.rel (%p382) target = $region151
        $region150: #{vec_cross_attn_block_forward.13} parent=142 // pred_region
          _
        $region151: #{vec_cross_attn_block_forward.13} parent=142 // pred_fallthru
          _
        %s385 = sand.u32 %s99, 1
        %s386 = sand.u32 %s99, 1
        %s387 = smul.addr %s386, 24
        %s388 = scalar_lea.vmem [#allocation7], %s387
        // Predicated region
        $region152: #{vec_cross_attn_block_forward.13} parent=142 // pred_check
          %p389 = pneg %p112
        $region153: #{vec_cross_attn_block_forward.13} parent=142 // pred_check_branch
          %391 = sbr.rel (%p389) target = $region155
        $region154: #{vec_cross_attn_block_forward.13} parent=142 // pred_region
          _
        $region155: #{vec_cross_attn_block_forward.13} parent=142 // pred_fallthru
          _
        %s392 = sand.u32 %s43, 1
        %s393 = sand.u32 %s43, 1
        %s394 = smul.addr %s393, 12
        %s395 = scalar_lea.vmem [#allocation5], %s394
        %p396 = pneg %p56
        %p397 = pneg %p53
        %s398 = sand.u32 %s71, 1
        %s399 = sand.u32 %s71, 1
        %s400 = smul.addr %s399, 24
        %s401 = scalar_lea.vmem [#allocation6], %s400
        %p402 = pneg %p84
        %p403 = pneg %p81
        %s404 = sand.u32 %s99, 1
        %s405 = sand.u32 %s99, 1
        %s406 = smul.addr %s405, 24
        %s407 = scalar_lea.vmem [#allocation7], %s406
        %p408 = pneg %p112
        %p409 = pneg %p109
        %p410 = pneg %p140
        %p411 = pneg %p137
        %s412 = sand.u32 %s127, 1
        %s413 = sand.u32 %s127, 1
        %s414 = smul.addr %s413, 12
        %s415 = scalar_lea.vmem [#allocation8], %s414
        %s416 = smul.u32 2, %s21
        %s417 = smul.u32 2, %s21
        %p419 = scmp.eq.s32.totalorder %s21, 0
        // Predicated region
        $region156: #{vec_cross_attn_block_forward.13} parent=142 // pred_check
          %p420 = pneg %p419
        $region157: #{vec_cross_attn_block_forward.13} parent=142 // pred_check_branch
          %422 = sbr.rel (%p420) target = $region159
        $region158: #{vec_cross_attn_block_forward.13} parent=142 // pred_region
          %423 = vst [vmem:[#allocation2] sm:$0xff] -1e+30
          %424 = vst [vmem:[#allocation2 + $0x8] sm:$0xff] -1e+30
          %425 = vst [vmem:[#allocation3] sm:$0xff] 0.0
          %426 = vst [vmem:[#allocation3 + $0x8] sm:$0xff] 0.0
          %vm427 = vcmask 64512
          %428 = vst.msk [vmem:[#allocation4] sm:$0xff] %vm427, 0.0
          %429 = vst.msk [vmem:[#allocation4 + $0x8] sm:$0xff] %vm427, 0.0
          %430 = vst.msk [vmem:[#allocation4 + $0x10] sm:$0xff] %vm427, 0.0
        $region159: #{vec_cross_attn_block_forward.13} parent=142 // pred_fallthru
          _
        %v431 = vld [vmem:[%s374] sm:$0xf]
        %v432 = vld [vmem:[%s374 + $0x4] sm:$0xf]
        %v433 = vld [vmem:[%s374 + $0x8] sm:$0xf]
        %v434 = vld [vmem:[%s381] sm:$0xf]
        %v435 = vld [vmem:[%s381 + $0x4] sm:$0xf]
        %v436 = vld [vmem:[%s381 + $0x8] sm:$0xf]
        %v437 = vld [vmem:[%s381 + $0xc] sm:$0xf]
        %v438 = vld [vmem:[%s381 + $0x10] sm:$0xf]
        %v439 = vld [vmem:[%s381 + $0x14] sm:$0xf]
        %v440 = vld [vmem:[%s388] sm:$0xf]
        %v441 = vld [vmem:[%s388 + $0x4] sm:$0xf]
        %v442 = vld [vmem:[%s388 + $0x8] sm:$0xf]
        %v443 = vld [vmem:[%s388 + $0xc] sm:$0xf]
        %v444 = vld [vmem:[%s388 + $0x10] sm:$0xf]
        %v445 = vld [vmem:[%s388 + $0x14] sm:$0xf]
        %v448 = vunpack.c.l.b16 %v436
        %v449 = vunpack.c.l.b16 %v437
        %v450 = vpack.c.b16 %v449, %v448
        %vm451 = vcmask 31744
        %v453 = vsel %vm451, %v432, 0
        %v456 = vsel %vm451, %v450, 0
        %458 = vmatpush.bf16.xpose.msra.mxu0 0
        %459 = vmatpush.bf16.xpose.msra.mxu0 0
        %460 = vmatpush.bf16.xpose.msra.mxu0 0
        %461 = vmatpush.bf16.xpose.msra.mxu0 0
        %462 = vmatpush.bf16.xpose.msra.mxu0 0
        %463 = vmatpush.bf16.xpose.msra.mxu0 0
        %464 = vmatpush.bf16.xpose.msra.mxu0 0
        %465 = vmatpush.bf16.xpose.msra.mxu0 %v456
        %466 = vmatmul.bf16.gmra.mxu0 %v453
        %v467 = vpop.f32.mrf.mxu0
        %v468 = vadd.f32 0.0, %v467
        %v469 = vpop.f32.mrf.mxu0
        %470 = vdwg.mxu0
        %v473 = vunpack.c.l.b16 %v434
        %v474 = vunpack.c.l.b16 %v435
        %v475 = vpack.c.b16 %v474, %v473
        %v477 = vsel %vm451, %v431, 0
        %v480 = vsel %vm451, %v475, 0
        %482 = vmatpush.bf16.xpose.msra.mxu0 0
        %483 = vmatpush.bf16.xpose.msra.mxu0 0
        %484 = vmatpush.bf16.xpose.msra.mxu0 0
        %485 = vmatpush.bf16.xpose.msra.mxu0 0
        %486 = vmatpush.bf16.xpose.msra.mxu0 0
        %487 = vmatpush.bf16.xpose.msra.mxu0 0
        %488 = vmatpush.bf16.xpose.msra.mxu0 0
        %489 = vmatpush.bf16.xpose.msra.mxu0 %v480
        %490 = vmatmul.bf16.gmra.mxu0 %v477
        %v491 = vpop.f32.mrf.mxu0
        %v492 = vadd.f32 %v468, %v491
        %v493 = vpop.f32.mrf.mxu0
        %494 = vdwg.mxu0
        %v497 = vunpack.c.l.b16 %v438
        %v498 = vunpack.c.l.b16 %v439
        %v499 = vpack.c.b16 %v498, %v497
        %v501 = vsel %vm451, %v433, 0
        %v504 = vsel %vm451, %v499, 0
        %506 = vmatpush.bf16.xpose.msra.mxu0 0
        %507 = vmatpush.bf16.xpose.msra.mxu0 0
        %508 = vmatpush.bf16.xpose.msra.mxu0 0
        %509 = vmatpush.bf16.xpose.msra.mxu0 0
        %510 = vmatpush.bf16.xpose.msra.mxu0 0
        %511 = vmatpush.bf16.xpose.msra.mxu0 0
        %512 = vmatpush.bf16.xpose.msra.mxu0 0
        %513 = vmatpush.bf16.xpose.msra.mxu0 %v504
        %514 = vmatmul.bf16.gmra.mxu0 %v501
        %v515 = vpop.f32.mrf.mxu0
        %v516 = vadd.f32 0.0, %v515
        %v517 = vpop.f32.mrf.mxu0
        %518 = vdwg.mxu0
        %v519 = vadd.f32 %v492, %v516
        %v520 = vld [vmem:[#allocation2] sm:$0xff]
        %v521 = vld [vmem:[#allocation3] sm:$0xff]
        %vm522 = vcmask 130048
        %v523 = vsel %vm522, %v519, -inf
        %524 = vmax.xlane.f32.xlu0 %v523
        %v525 = vpop.xlane.xlu0 %524
        %v526 = vmax.f32 %v520, %v525
        %v527 = vsub.f32 %v520, %v526
        %v528 = vmul.f32 %v527, 1.442695
        %v529 = vpow.pop %v528
        %531 = vset.pattern.permute.xlu0 0
        %532 = vperm.xlu0 %531, %v526
        %v533 = vpop.permute.xlu0 %532
        %v535 = vsub.f32 %v519, %v533
        %v536 = vmul.f32 %v535, 1.442695
        %v537 = vpow.pop %v536
        %v538 = vmul.f32 %v529, %v521
        %v539 = vsel %vm522, %v537, 0.0
        %540 = vadd.xlane.f32.xlu0 %v539
        %v541 = vpop.xlane.xlu0 %540
        %v542 = vadd.f32 %v538, %v541
        %543 = vst [vmem:[#allocation3] sm:$0xff] %v542
        %544 = vst [vmem:[#allocation2] sm:$0xff] %v526
        %v545 = vpack.c.bf16 %v537, %v537
        %v546 = vld [vmem:[#allocation4] sm:$0xff]
        %548 = vset.pattern.permute.xlu0 0
        %549 = vperm.xlu0 %548, %v529
        %v550 = vpop.permute.xlu0 %549
        %v552 = vmul.f32 %v550, %v546
        %v555 = vunpack.c.l.b16 %v440
        %v556 = vunpack.c.l.b16 %v441
        %v557 = vpack.c.b16 %v556, %v555
        %v560 = vsel %vm522, %v545, 0
        %562 = vmatpush.bf16.msra.mxu0 0
        %563 = vmatpush.bf16.msra.mxu0 0
        %564 = vmatpush.bf16.msra.mxu0 0
        %565 = vmatpush.bf16.msra.mxu0 0
        %566 = vmatpush.bf16.msra.mxu0 0
        %567 = vmatpush.bf16.msra.mxu0 0
        %568 = vmatpush.bf16.msra.mxu0 0
        %569 = vmatpush.bf16.msra.mxu0 %v557
        %570 = vmatmul.bf16.gmra.mxu0 %v560
        %v571 = vpop.f32.mrf.mxu0
        %v572 = vadd.f32 0.0, %v571
        %v573 = vpop.f32.mrf.mxu0
        %574 = vdwg.mxu0
        %v575 = vadd.f32 %v552, %v572
        %576 = vst.msk [vmem:[#allocation4] sm:$0xff] %vm451, %v575
        %s577 = scalar_lea.vmem [#allocation4], 8
        %v578 = vld [vmem:[%s577] sm:$0xff]
        %v579 = vmul.f32 %v550, %v578
        %v582 = vunpack.c.l.b16 %v442
        %v583 = vunpack.c.l.b16 %v443
        %v584 = vpack.c.b16 %v583, %v582
        %586 = vmatpush.bf16.msra.mxu0 0
        %587 = vmatpush.bf16.msra.mxu0 0
        %588 = vmatpush.bf16.msra.mxu0 0
        %589 = vmatpush.bf16.msra.mxu0 0
        %590 = vmatpush.bf16.msra.mxu0 0
        %591 = vmatpush.bf16.msra.mxu0 0
        %592 = vmatpush.bf16.msra.mxu0 0
        %593 = vmatpush.bf16.msra.mxu0 %v584
        %594 = vmatmul.bf16.gmra.mxu0 %v560
        %v595 = vpop.f32.mrf.mxu0
        %v596 = vadd.f32 0.0, %v595
        %v597 = vpop.f32.mrf.mxu0
        %598 = vdwg.mxu0
        %v599 = vadd.f32 %v579, %v596
        %600 = vst.msk [vmem:[%s577] sm:$0xff] %vm451, %v599
        %s601 = scalar_lea.vmem [#allocation4], 16
        %v602 = vld [vmem:[%s601] sm:$0xff]
        %v603 = vmul.f32 %v550, %v602
        %v606 = vunpack.c.l.b16 %v444
        %v607 = vunpack.c.l.b16 %v445
        %v608 = vpack.c.b16 %v607, %v606
        %610 = vmatpush.bf16.msra.mxu0 0
        %611 = vmatpush.bf16.msra.mxu0 0
        %612 = vmatpush.bf16.msra.mxu0 0
        %613 = vmatpush.bf16.msra.mxu0 0
        %614 = vmatpush.bf16.msra.mxu0 0
        %615 = vmatpush.bf16.msra.mxu0 0
        %616 = vmatpush.bf16.msra.mxu0 0
        %617 = vmatpush.bf16.msra.mxu0 %v608
        %618 = vmatmul.bf16.gmra.mxu0 %v560
        %v619 = vpop.f32.mrf.mxu0
        %v620 = vadd.f32 0.0, %v619
        %v621 = vpop.f32.mrf.mxu0
        %622 = vdwg.mxu0
        %v623 = vadd.f32 %v603, %v620
        %624 = vst.msk [vmem:[%s601] sm:$0xff] %vm451, %v623
        %v626 = vunpack.c.l.b16 %v432
        %v627 = vpack.c.b16 %v626, %v626
        %628 = vrot.lane.b32.xlu0 %v627, 124
        %v629 = vpop.permute.xlu0 %628
        %630 = vrot.lane.b32.xlu0 %v450, 124
        %v631 = vpop.permute.xlu0 %630
        %v633 = vsel %vm451, %v629, 0
        %v636 = vsel %vm451, %v631, 0
        %638 = vmatpush.bf16.xpose.msra.mxu0 0
        %639 = vmatpush.bf16.xpose.msra.mxu0 0
        %640 = vmatpush.bf16.xpose.msra.mxu0 0
        %641 = vmatpush.bf16.xpose.msra.mxu0 0
        %642 = vmatpush.bf16.xpose.msra.mxu0 0
        %643 = vmatpush.bf16.xpose.msra.mxu0 0
        %644 = vmatpush.bf16.xpose.msra.mxu0 0
        %645 = vmatpush.bf16.xpose.msra.mxu0 %v636
        %646 = vmatmul.bf16.gmra.mxu0 %v633
        %v647 = vpop.f32.mrf.mxu0
        %v648 = vadd.f32 0.0, %v647
        %v649 = vpop.f32.mrf.mxu0
        %650 = vdwg.mxu0
        %v652 = vunpack.c.l.b16 %v431
        %v653 = vpack.c.b16 %v652, %v652
        %654 = vrot.lane.b32.xlu0 %v653, 124
        %v655 = vpop.permute.xlu0 %654
        %656 = vrot.lane.b32.xlu0 %v475, 124
        %v657 = vpop.permute.xlu0 %656
        %v659 = vsel %vm451, %v655, 0
        %v662 = vsel %vm451, %v657, 0
        %664 = vmatpush.bf16.xpose.msra.mxu0 0
        %665 = vmatpush.bf16.xpose.msra.mxu0 0
        %666 = vmatpush.bf16.xpose.msra.mxu0 0
        %667 = vmatpush.bf16.xpose.msra.mxu0 0
        %668 = vmatpush.bf16.xpose.msra.mxu0 0
        %669 = vmatpush.bf16.xpose.msra.mxu0 0
        %670 = vmatpush.bf16.xpose.msra.mxu0 0
        %671 = vmatpush.bf16.xpose.msra.mxu0 %v662
        %672 = vmatmul.bf16.gmra.mxu0 %v659
        %v673 = vpop.f32.mrf.mxu0
        %v674 = vadd.f32 %v648, %v673
        %v675 = vpop.f32.mrf.mxu0
        %676 = vdwg.mxu0
        %v678 = vunpack.c.l.b16 %v433
        %v679 = vpack.c.b16 %v678, %v678
        %680 = vrot.lane.b32.xlu0 %v679, 124
        %v681 = vpop.permute.xlu0 %680
        %682 = vrot.lane.b32.xlu0 %v499, 124
        %v683 = vpop.permute.xlu0 %682
        %v685 = vsel %vm451, %v681, 0
        %v688 = vsel %vm451, %v683, 0
        %690 = vmatpush.bf16.xpose.msra.mxu0 0
        %691 = vmatpush.bf16.xpose.msra.mxu0 0
        %692 = vmatpush.bf16.xpose.msra.mxu0 0
        %693 = vmatpush.bf16.xpose.msra.mxu0 0
        %694 = vmatpush.bf16.xpose.msra.mxu0 0
        %695 = vmatpush.bf16.xpose.msra.mxu0 0
        %696 = vmatpush.bf16.xpose.msra.mxu0 0
        %697 = vmatpush.bf16.xpose.msra.mxu0 %v688
        %698 = vmatmul.bf16.gmra.mxu0 %v685
        %v699 = vpop.f32.mrf.mxu0
        %v700 = vadd.f32 0.0, %v699
        %v701 = vpop.f32.mrf.mxu0
        %702 = vdwg.mxu0
        %v703 = vadd.f32 %v674, %v700
        %s704 = scalar_lea.vmem [#allocation2], 8
        %v705 = vld [vmem:[%s704] sm:$0xff]
        %s706 = scalar_lea.vmem [#allocation3], 8
        %v707 = vld [vmem:[%s706] sm:$0xff]
        %v708 = vsel %vm522, %v703, -inf
        %709 = vmax.xlane.f32.xlu0 %v708
        %v710 = vpop.xlane.xlu0 %709
        %v711 = vmax.f32 %v705, %v710
        %v712 = vsub.f32 %v705, %v711
        %v713 = vmul.f32 %v712, 1.442695
        %v714 = vpow.pop %v713
        %716 = vset.pattern.permute.xlu0 0
        %717 = vperm.xlu0 %716, %v711
        %v718 = vpop.permute.xlu0 %717
        %v720 = vsub.f32 %v703, %v718
        %v721 = vmul.f32 %v720, 1.442695
        %v722 = vpow.pop %v721
        %v723 = vmul.f32 %v714, %v707
        %v724 = vsel %vm522, %v722, 0.0
        %725 = vadd.xlane.f32.xlu0 %v724
        %v726 = vpop.xlane.xlu0 %725
        %v727 = vadd.f32 %v723, %v726
        %728 = vst [vmem:[%s706] sm:$0xff] %v727
        %729 = vst [vmem:[%s704] sm:$0xff] %v711
        %v730 = vpack.c.bf16 %v722, %v722
        %v731 = vld [vmem:[#allocation4] sm:$0xff]
        %733 = vset.pattern.permute.xlu0 0
        %734 = vperm.xlu0 %733, %v714
        %v735 = vpop.permute.xlu0 %734
        %v737 = vmul.f32 %v735, %v731
        %738 = vrot.lane.b32.xlu0 %v557, 124
        %v739 = vpop.permute.xlu0 %738
        %v742 = vsel %vm522, %v730, 0
        %744 = vmatpush.bf16.msra.mxu0 0
        %745 = vmatpush.bf16.msra.mxu0 0
        %746 = vmatpush.bf16.msra.mxu0 0
        %747 = vmatpush.bf16.msra.mxu0 0
        %748 = vmatpush.bf16.msra.mxu0 0
        %749 = vmatpush.bf16.msra.mxu0 0
        %750 = vmatpush.bf16.msra.mxu0 0
        %751 = vmatpush.bf16.msra.mxu0 %v739
        %752 = vmatmul.bf16.gmra.mxu0 %v742
        %v753 = vpop.f32.mrf.mxu0
        %v754 = vadd.f32 0.0, %v753
        %v755 = vpop.f32.mrf.mxu0
        %756 = vdwg.mxu0
        %758 = vrot.lane.b32.xlu0 %v754, 4
        %v759 = vpop.permute.xlu0 %758
        %v761 = vadd.f32 %v737, %v759
        %vm762 = vcmask 64544
        %763 = vst.msk [vmem:[#allocation4] sm:$0xff] %vm762, %v761
        %v764 = vld [vmem:[%s577] sm:$0xff]
        %v765 = vmul.f32 %v735, %v764
        %766 = vrot.lane.b32.xlu0 %v584, 124
        %v767 = vpop.permute.xlu0 %766
        %769 = vmatpush.bf16.msra.mxu0 0
        %770 = vmatpush.bf16.msra.mxu0 0
        %771 = vmatpush.bf16.msra.mxu0 0
        %772 = vmatpush.bf16.msra.mxu0 0
        %773 = vmatpush.bf16.msra.mxu0 0
        %774 = vmatpush.bf16.msra.mxu0 0
        %775 = vmatpush.bf16.msra.mxu0 0
        %776 = vmatpush.bf16.msra.mxu0 %v767
        %777 = vmatmul.bf16.gmra.mxu0 %v742
        %v778 = vpop.f32.mrf.mxu0
        %v779 = vadd.f32 0.0, %v778
        %v780 = vpop.f32.mrf.mxu0
        %781 = vdwg.mxu0
        %783 = vrot.lane.b32.xlu0 %v779, 4
        %v784 = vpop.permute.xlu0 %783
        %v786 = vadd.f32 %v765, %v784
        %787 = vst.msk [vmem:[%s577] sm:$0xff] %vm762, %v786
        %v788 = vld [vmem:[%s601] sm:$0xff]
        %v789 = vmul.f32 %v735, %v788
        %790 = vrot.lane.b32.xlu0 %v608, 124
        %v791 = vpop.permute.xlu0 %790
        %793 = vmatpush.bf16.msra.mxu0 0
        %794 = vmatpush.bf16.msra.mxu0 0
        %795 = vmatpush.bf16.msra.mxu0 0
        %796 = vmatpush.bf16.msra.mxu0 0
        %797 = vmatpush.bf16.msra.mxu0 0
        %798 = vmatpush.bf16.msra.mxu0 0
        %799 = vmatpush.bf16.msra.mxu0 0
        %800 = vmatpush.bf16.msra.mxu0 %v791
        %801 = vmatmul.bf16.gmra.mxu0 %v742
        %v802 = vpop.f32.mrf.mxu0
        %v803 = vadd.f32 0.0, %v802
        %v804 = vpop.f32.mrf.mxu0
        %805 = vdwg.mxu0
        %807 = vrot.lane.b32.xlu0 %v803, 4
        %v808 = vpop.permute.xlu0 %807
        %v810 = vadd.f32 %v789, %v808
        %811 = vst.msk [vmem:[%s601] sm:$0xff] %vm762, %v810
        // Predicated region
        $region160: #{vec_cross_attn_block_forward.13} parent=142 // pred_check
          %p812 = pneg %p419
        $region161: #{vec_cross_attn_block_forward.13} parent=142 // pred_check_branch
          %814 = sbr.rel (%p812) target = $region163
        $region162: #{vec_cross_attn_block_forward.13} parent=142 // pred_region
          %v815 = vld [vmem:[#allocation3] sm:$0xff]
          %v816 = vrcp.pop %v815
          %818 = vset.pattern.permute.xlu0 0
          %819 = vperm.xlu0 %818, %v816
          %v820 = vpop.permute.xlu0 %819
          %v822 = vld [vmem:[%s706] sm:$0xff]
          %v823 = vrcp.pop %v822
          %825 = vset.pattern.permute.xlu0 0
          %826 = vperm.xlu0 %825, %v823
          %v827 = vpop.permute.xlu0 %826
          %v829 = vsel %vm451, %v820, %v827
          %v830 = vld [vmem:[#allocation4] sm:$0xff]
          %v831 = vld [vmem:[#allocation4 + $0x8] sm:$0xff]
          %v832 = vld [vmem:[#allocation4 + $0x10] sm:$0xff]
          %v833 = vmul.f32 %v830, %v829
          %v834 = vmul.f32 %v831, %v829
          %v835 = vmul.f32 %v832, %v829
          %v836 = vpack.c.bf16 %v833, %v833
          %v837 = vpack.c.bf16 %v834, %v834
          %v838 = vpack.c.bf16 %v835, %v835
          %vm839 = vcmask 60416
          %840 = vst.msk [vmem:[%s415] sm:$0xf] %vm839, %v836
          %841 = vst.msk [vmem:[%s415 + $0x4] sm:$0xf] %vm839, %v837
          %842 = vst.msk [vmem:[%s415 + $0x8] sm:$0xf] %vm839, %v838
        $region163: #{vec_cross_attn_block_forward.13} parent=142 // pred_fallthru
          _
        %s843 = sand.u32 %s127, 1
        %s844 = sand.u32 %s127, 1
        %s845 = smul.addr %s844, 12
        %s846 = scalar_lea.vmem [#allocation8], %s845
        // Predicated region
        $region164: #{vec_cross_attn_block_forward.13} parent=142 // pred_check
          %p847 = pneg %p137
        $region165: #{vec_cross_attn_block_forward.13} parent=142 // pred_check_branch
          %849 = sbr.rel (%p847) target = $region167
        $region166: #{vec_cross_attn_block_forward.13} parent=142 // pred_region
          %s850 = sadd.s32 %s20, %s19
          %s851 = smul.addr %s850, 4
          %s852 = scalar_lea.vmem %s3, %s851
          // Predicated region
          $region168: #{vec_cross_attn_block_forward.13} parent=166 // pred_check
            _
          $region169: #{vec_cross_attn_block_forward.13} parent=166 // pred_check_branch
            %854 = sbr.rel (0) target = $region171
          $region170: #{vec_cross_attn_block_forward.13} parent=166 // pred_region
            // Predicated region
            $region172: #{vec_cross_attn_block_forward.13} parent=170 // pred_check
              _
            $region173: #{vec_cross_attn_block_forward.13} parent=170 // pred_check_branch
              %856 = sbr.rel target = $region175
            $region174: #{vec_cross_attn_block_forward.13} parent=170 // pred_region
              // Predicated region
              $region187: #{vec_cross_attn_block_forward.13} parent=174 // pred_check
                _
              $region188: #{vec_cross_attn_block_forward.13} parent=174 // pred_check_branch
                %876 = sbr.rel (0) target = $region190
              $region189: #{vec_cross_attn_block_forward.13} parent=174 // pred_region
                loop: start=0, step=1, limit=1
                $region191: #{vec_cross_attn_block_forward.13} parent=189 // loop_pre_header
                  _
                $region192: #{vec_cross_attn_block_forward.13} parent=189 // loop_header
                  %s878 = sphi 0, %s882
                  %p879 = scmp.ge.s32.totalorder %s878, 1
                  %s883 = sphi %s846, %s846
                  %s884 = sphi %s852, %s852
                $region193: #{vec_cross_attn_block_forward.13} parent=189 // loop_header_branch
                  %881 = sbr.rel (%p879) target = $region197
                $region194: #{vec_cross_attn_block_forward.13} parent=189 // loop_body
                  _
                $region195: #{vec_cross_attn_block_forward.13} parent=189 // loop_footer
                  %s882 = sadd.s32 1, %s878
                $region196: #{vec_cross_attn_block_forward.13} parent=189 // loop_footer_branch
                  %877 = sbr.rel target = $region192
                $region197: #{vec_cross_attn_block_forward.13} parent=189 // loop_exit
                  _
                %s886 = ssub.s32 16, 1
                loop: start=0, step=1, limit=1
                $region198: #{vec_cross_attn_block_forward.13} parent=189 // loop_pre_header
                  _
                $region199: #{vec_cross_attn_block_forward.13} parent=189 // loop_header
                  %s888 = sphi 0, %s892
                  %p889 = scmp.ge.s32.totalorder %s888, 1
                  %s893 = sphi %s846, %s846
                  %s894 = sphi %s852, %s852
                $region200: #{vec_cross_attn_block_forward.13} parent=189 // loop_header_branch
                  %891 = sbr.rel (%p889) target = $region204
                $region201: #{vec_cross_attn_block_forward.13} parent=189 // loop_body
                  %v895 = vld [vmem:[%s893] sm:%s886]
                  %896 = vst [vmem:[%s894] sm:%s886] %v895
                  %v897 = vld [vmem:[%s893 + $0x4] sm:%s886]
                  %898 = vst [vmem:[%s894 + $0x8] sm:%s886] %v897
                  %v899 = vld [vmem:[%s893 + $0x8] sm:%s886]
                  %900 = vst [vmem:[%s894 + $0x10] sm:%s886] %v899
                $region202: #{vec_cross_attn_block_forward.13} parent=189 // loop_footer
                  %s892 = sadd.s32 1, %s888
                $region203: #{vec_cross_attn_block_forward.13} parent=189 // loop_footer_branch
                  %887 = sbr.rel target = $region199
                $region204: #{vec_cross_attn_block_forward.13} parent=189 // loop_exit
                  _
              $region190: #{vec_cross_attn_block_forward.13} parent=174 // pred_fallthru
                _
            $region175: #{vec_cross_attn_block_forward.13} parent=170 // pred_fallthru
              _
            // Predicated region
            $region176: #{vec_cross_attn_block_forward.13} parent=170 // pred_check
              _
            $region177: #{vec_cross_attn_block_forward.13} parent=170 // pred_check_branch
              %858 = sbr.rel (0) target = $region179
            $region178: #{vec_cross_attn_block_forward.13} parent=170 // pred_region
              %s860 = ssub.s32 16, 1
              loop: start=0, step=1, limit=1
              $region180: #{vec_cross_attn_block_forward.13} parent=178 // loop_pre_header
                _
              $region181: #{vec_cross_attn_block_forward.13} parent=178 // loop_header
                %s862 = sphi 0, %s866
                %p863 = scmp.ge.s32.totalorder %s862, 1
                %s867 = sphi %s846, %s846
                %s868 = sphi %s852, %s852
              $region182: #{vec_cross_attn_block_forward.13} parent=178 // loop_header_branch
                %865 = sbr.rel (%p863) target = $region186
              $region183: #{vec_cross_attn_block_forward.13} parent=178 // loop_body
                %v869 = vld [vmem:[%s867] sm:%s860]
                %870 = vst [vmem:[%s868] sm:%s860] %v869
                %v871 = vld [vmem:[%s867 + $0x4] sm:%s860]
                %872 = vst [vmem:[%s868 + $0x8] sm:%s860] %v871
                %v873 = vld [vmem:[%s867 + $0x8] sm:%s860]
                %874 = vst [vmem:[%s868 + $0x10] sm:%s860] %v873
              $region184: #{vec_cross_attn_block_forward.13} parent=178 // loop_footer
                %s866 = sadd.s32 1, %s862
              $region185: #{vec_cross_attn_block_forward.13} parent=178 // loop_footer_branch
                %861 = sbr.rel target = $region181
              $region186: #{vec_cross_attn_block_forward.13} parent=178 // loop_exit
                _
            $region179: #{vec_cross_attn_block_forward.13} parent=170 // pred_fallthru
              _
          $region171: #{vec_cross_attn_block_forward.13} parent=166 // pred_fallthru
            _
          %901 = vnop
        $region167: #{vec_cross_attn_block_forward.13} parent=142 // pred_fallthru
          _
      $region143: #{vec_cross_attn_block_forward.13} parent=5 // pred_fallthru
        _
      %p902 = scmp.le.s32.totalorder 2, %s9
      // Predicated region
      $region205: #{vec_cross_attn_block_forward.13} parent=5 // pred_check
        %p903 = pneg %p902
      $region206: #{vec_cross_attn_block_forward.13} parent=5 // pred_check_branch
        %905 = sbr.rel (%p903) target = $region208
      $region207: #{vec_cross_attn_block_forward.13} parent=5 // pred_region
        %s906 = ssub.s32 %s9, 2
        // Predicated region
        $region209: #{vec_cross_attn_block_forward.13} parent=207 // pred_check
          %p907 = pneg %p143
        $region210: #{vec_cross_attn_block_forward.13} parent=207 // pred_check_branch
          %909 = sbr.rel (%p907) target = $region212
        $region211: #{vec_cross_attn_block_forward.13} parent=207 // pred_region
          %s910 = sand.u32 %s128, 1
          %s911 = sand.u32 %s128, 1
          %s912 = smul.addr %s911, 12
          %s913 = scalar_lea.vmem [#allocation8], %s912
        $region212: #{vec_cross_attn_block_forward.13} parent=207 // pred_fallthru
          _
      $region208: #{vec_cross_attn_block_forward.13} parent=5 // pred_fallthru
        _
    $region6: #{vec_cross_attn_block_forward.13} parent=1 // loop_footer
      %s13 = sadd.s32 1, %s9
    $region7: #{vec_cross_attn_block_forward.13} parent=1 // loop_footer_branch
      %8 = sbr.rel target = $region3
    $region8: #{vec_cross_attn_block_forward.13} parent=1 // loop_exit
      _

</llo_original>
